<compile_context>
chip_gen: v7x
topology: tpu7x:2x2x1
jax: 0.10.0
libtpu: 0.0.40
codegen_flags: <defaults>
</compile_context>

<pallas_src>
import functools

import jax
import jax.numpy as jnp
from jax.experimental import pallas as pl
from jax.experimental.pallas import tpu as pltpu


_LN_EPS = 1e-5


# ----------------------------------------------------------------------------
# Fused kernel: one grid step = one (batch, row-block) tile of tm tokens.
# Layout: channels on sublanes, tokens on lanes (lane-dense loads/stores).
# ----------------------------------------------------------------------------

def _generator_kernel(irb_ref, visb_ref, irdm_ref, visdm_ref, irh_ref, vish_ref,
                      u_ref, v_ref, wv_ref, c0_ref, q_ref,
                      wct_ref, bc_ref, wft_ref, bfu_ref, wo_ref, bo_ref,
                      out_ref, det_ref, cols_ref, *, width, tm, guard):
    f32 = jnp.float32
    bf16 = jnp.bfloat16
    w = width
    g0 = guard
    mid = g0 + w                     # lane offset of the first real token

    # ---------------- Base branch (folded embed -> LN -> 1x1 proj) ----------
    xb = irb_ref[...].astype(f32)                                    # (1, tm)
    yb = visb_ref[...].astype(f32)                                   # (1, tm)
    q = q_ref[...]                                                   # (1, 128)
    var = (q[:, 0:1] * xb * xb + q[:, 1:2] * yb * yb + q[:, 2:3] * (xb * yb)
           + q[:, 3:4] * xb + q[:, 4:5] * yb + q[:, 5:6])
    inv = jax.lax.rsqrt(var + _LN_EPS)                               # (1, tm)
    base = (u_ref[...] * xb + v_ref[...] * yb + wv_ref[...]) * inv + c0_ref[...]
    # base: (64, tm)

    # ---------------- Detail branch: assemble haloed token lines ------------
    # det_ref rows: 0=ir_detail, 1=vis_detail, 2=detail_max.  Lane layout:
    # [0:g0) zeros | [g0:mid) top halo row | [mid:mid+tm) block rows |
    # [mid+tm:mid+tm+w) bottom halo row | [mid+tm+w:) zeros.
    det_ref[0:2, 0:g0] = jnp.zeros((2, g0), f32)
    det_ref[0:2, mid + tm + w:] = jnp.zeros((2, g0), f32)
    det_ref[0:1, g0:mid] = irh_ref[0:1, :].astype(f32)
    det_ref[1:2, g0:mid] = vish_ref[0:1, :].astype(f32)
    det_ref[0:1, mid:mid + tm] = irdm_ref[...].astype(f32)           # aligned
    det_ref[1:2, mid:mid + tm] = visdm_ref[...].astype(f32)          # aligned
    det_ref[0:1, mid + tm:mid + tm + w] = irh_ref[1:2, :].astype(f32)
    det_ref[1:2, mid + tm:mid + tm + w] = vish_ref[1:2, :].astype(f32)
    det_ref[2:3, :] = jnp.maximum(det_ref[0:1, :], det_ref[1:2, :])  # detail_max

    # Column-boundary masks (kill dx = +/-1 taps that wrap across image rows).
    col = jax.lax.broadcasted_iota(jnp.int32, (1, tm), 1) % w
    not_l = col != 0
    not_r = col != w - 1

    # 9 (dy, dx) tap groups -> rows [3g, 3g+3) of the cols scratch.
    # One sublane-stacked (3, tm) store per group (no 27-way concatenate).
    for grp, (dy, dx) in enumerate([(dy, dx) for dy in (-1, 0, 1)
                                    for dx in (-1, 0, 1)]):
        start = g0 + (dy + 1) * w + dx          # static lane offset
        tap = det_ref[:, start:start + tm]      # (3, tm)
        if dx == -1:
            tap = jnp.where(not_l, tap, 0.0)
        elif dx == 1:
            tap = jnp.where(not_r, tap, 0.0)
        cols_ref[3 * grp:3 * grp + 3, :] = tap
    cols_ref[27:32, :] = jnp.zeros((5, tm), f32)     # K padded 27 -> 32

    # 3x3 conv 3->32 as one MXU matmul, bf16 operands, f32 accumulate.
    detail = jnp.dot(wct_ref[...], cols_ref[...].astype(bf16),
                     preferred_element_type=f32) + bc_ref[...]
    detail = jnp.maximum(detail, 0.0)                                # (32, tm)

    # ---------------- Fusion head -------------------------------------------
    fused = jnp.dot(wft_ref[...], detail.astype(bf16),
                    preferred_element_type=f32) + bfu_ref[...] + base
    fused = jnp.maximum(fused, 0.0)                                  # (64, tm)
    y = jnp.sum(fused * wo_ref[...], axis=0, keepdims=True) + bo_ref[...]
    out_ref[...] = jnp.tanh(y).astype(out_ref.dtype)                 # (1, tm)


# ----------------------------------------------------------------------------
# Host-side glue (free reshapes + a tiny 2-rows-per-block halo gather).
# ----------------------------------------------------------------------------

def _pick_row_tile(h, width, target_tokens, batch):
    """Largest divisor TH of H with TH*W <= target_tokens, then halved until
    the grid has >= 2 parallel steps (v7x has 2 TensorCores)."""
    best = 1
    for th in range(1, h + 1):
        if h % th == 0 and th * width <= target_tokens:
            best = th
    th = best
    while batch * (h // th) < 2 and th % 2 == 0:
        th //= 2
    return th


def _halo_rows(x, th):
    """x: (N, H, W) -> (N, HB, 2, W): the rows just above / below each row
    block (zeros at the image border).  Touches only 2 rows per block."""
    n, h, width = x.shape
    hb = h // th
    top_idx = jnp.arange(hb) * th - 1
    bot_idx = jnp.arange(hb) * th + th
    zero = jnp.zeros((), x.dtype)
    top = jnp.where((top_idx >= 0)[None, :, None],
                    x[:, jnp.clip(top_idx, 0, h - 1), :], zero)
    bot = jnp.where((bot_idx < h)[None, :, None],
                    x[:, jnp.clip(bot_idx, 0, h - 1), :], zero)
    return jnp.stack([top, bot], axis=2)


def _const_spec(shape):
    nd = len(shape)
    return pl.BlockSpec(shape, lambda ni, bi, _nd=nd: (0,) * _nd)


def _tile_spec(rows, last):
    return pl.BlockSpec((None, None, rows, last), lambda ni, bi: (ni, bi, 0, 0))


def generator_forward(params, ir_base, ir_detail, vis_base, vis_detail,
                      *, token_tile=8192):
    """Inputs are NCHW single-channel images: (N, 1, H, W), f32 (or bf16)."""
    n, c, h, width = ir_base.shape
    assert c == 1, "Generator expects single-channel base/detail inputs"
    f32 = jnp.float32
    bf16 = jnp.bfloat16

    th = _pick_row_tile(h, width, min(token_tile, 32768), n)
    hb = h // th
    tm = th * width                          # tokens per grid step
    guard = (-width) % 128                   # aligns the middle store & dy=0 taps
    if guard == 0:
        guard = 128
    tmh = tm + 2 * width + 2 * guard         # haloed token line length

    # --- fold Base_MODEL stand-in (1x1 embed -> LN -> 1x1 proj) -------------
    # emb = a*ir + b*vis + d  ->  mu/var are per-token quadratics; the whole
    # branch collapses to base = (u*ir + v*vis + wv) * rsqrt(var+eps) + c0.
    w0 = params["w0"][:, :, 0].astype(f32)             # (3, 96)
    g = params["ln_g"][:, 0].astype(f32)
    be = params["ln_b"][:, 0].astype(f32)
    w1 = params["w1t"].astype(f32)                      # (64, 96)
    b1 = params["b1"][:, 0].astype(f32)
    a = w0[0] + 0.5 * w0[2]
    b = w0[1] + 0.5 * w0[2]
    d = params["b0"][:, 0].astype(f32)
    ap = a - jnp.mean(a)
    bp = b - jnp.mean(b)
    dp = d - jnp.mean(d)
    qv = jnp.stack([jnp.mean(ap * ap), jnp.mean(bp * bp),
                    2.0 * jnp.mean(ap * bp), 2.0 * jnp.mean(ap * dp),
                    2.0 * jnp.mean(bp * dp), jnp.mean(dp * dp)])
    q = jnp.zeros((1, 128), f32).at[0, :6].set(qv)
    u = (w1 @ (g * ap)).reshape(64, 1)
    v = (w1 @ (g * bp)).reshape(64, 1)
    wv = (w1 @ (g * dp)).reshape(64, 1)
    c0 = (w1 @ be + b1).reshape(64, 1)

    # --- conv / fusion weights as bf16 MXU operands (conv K padded to 32) ---
    wct = jnp.zeros((32, 32), bf16).at[:, :27].set(params["wct"].astype(bf16))
    bc = params["bc"].astype(f32)
    wft = params["wft"].astype(bf16)
    bfu = params["bf"].astype(f32)
    wo = params["wo"].astype(f32)
    bo = params["bo"].astype(f32)

    def tok(x):                              # free contiguous reshape
        return x.reshape(n, hb, 1, tm)

    irb = tok(ir_base)
    visb = tok(vis_base)
    irdm = tok(ir_detail)
    visdm = tok(vis_detail)
    irh = _halo_rows(ir_detail.reshape(n, h, width), th)     # (n, hb, 2, W)
    vish = _halo_rows(vis_detail.reshape(n, h, width), th)

    in_specs = [
        _tile_spec(1, tm), _tile_spec(1, tm),            # ir_base, vis_base
        _tile_spec(1, tm), _tile_spec(1, tm),            # detail interiors
        _tile_spec(2, width), _tile_spec(2, width),      # detail halo rows
    ] + [_const_spec(p.shape) for p in
         (u, v, wv, c0, q, wct, bc, wft, bfu, wo, bo)]

    # VMEM budget derived from the tile (fits v7x's 64 MiB as well).
    vmem_limit = int(min(112 * 2**20, max(32 * 2**20, 1400 * tm + (4 << 20))))

    out = pl.pallas_call(
        functools.partial(_generator_kernel, width=width, tm=tm, guard=guard),
        out_shape=jax.ShapeDtypeStruct((n, hb, 1, tm), jnp.float32),
        grid_spec=pltpu.PrefetchScalarGridSpec(
            num_scalar_prefetch=0,
            grid=(n, hb),
            in_specs=in_specs,
            out_specs=_tile_spec(1, tm),
            scratch_shapes=[pltpu.VMEM((3, tmh), f32),     # haloed detail lines
                            pltpu.VMEM((32, tm), f32)]),   # conv im2col columns
        compiler_params=pltpu.CompilerParams(
            dimension_semantics=("parallel", "parallel"),
            vmem_limit_bytes=vmem_limit),
    )(irb, visb, irdm, visdm, irh, vish,
      u, v, wv, c0, q, wct, bc, wft, bfu, wo, bo)

    # (N, HB, 1, TH*W) -> (N, 1, H, W): pure contiguous reshape.
    return out.reshape(n, 1, h, width)


# ----------------------------------------------------------------------------
# Deterministic synthetic parameters (stand-in sub-models).
# ----------------------------------------------------------------------------

def make_params(key):
    ks = jax.random.split(key, 12)

    def w(k, shape, scale=0.05):
        return (scale * jax.random.normal(k, shape)).astype(jnp.float32)

    return {
        # Base_MODEL stand-in: 1x1 embed 3->96, LayerNorm(96), 1x1 proj 96->64
        "w0":   w(ks[0], (3, 96, 1)),
        "b0":   w(ks[1], (96, 1)),
        "ln_g": (1.0 + 0.05 * jax.random.normal(ks[2], (96, 1))).astype(jnp.float32),
        "ln_b": w(ks[3], (96, 1)),
        "w1t":  w(ks[4], (64, 96)),
        "b1":   w(ks[5], (64, 1)),
        # Detail_MODEL stand-in: 3x3 conv 3->32 (+ReLU)
        # wct[o, tap], tap = ((dy+1)*3 + (dx+1))*3 + k, k in {ird, visd, max}
        "wct":  w(ks[6], (32, 27)),
        "bc":   w(ks[7], (32, 1)),
        # Fusion_MODEL stand-in: 1x1 32->64 + residual base + ReLU, 1x1 64->1 + tanh
        "wft":  w(ks[8], (64, 32)),
        "bf":   w(ks[9], (64, 1)),
        "wo":   w(ks[10], (64, 1)),
        "bo":   w(ks[11], (1, 1)),
    }


# ----------------------------------------------------------------------------
# Pure-JAX reference (independent, unfolded formulation) for correctness.
# ----------------------------------------------------------------------------

def _reference(params, ir_base, ir_detail, vis_base, vis_detail):
    n, _, h, width = ir_base.shape
    hp = jax.lax.Precision.HIGHEST
    irb = ir_base.reshape(n, h, width)
    visb = vis_base.reshape(n, h, width)
    ird = ir_detail.reshape(n, h, width)
    visd = vis_detail.reshape(n, h, width)

    base_avg = (irb + visb) * 0.5
    detail_max = jnp.maximum(ird, visd)

    # Base path on the (M, 3) token matrix.
    x3 = jnp.stack([irb.reshape(-1), visb.reshape(-1), base_avg.reshape(-1)], -1)
    emb = jnp.dot(x3, params["w0"][:, :, 0], precision=hp) + params["b0"][:, 0]
    mu = jnp.mean(emb, axis=-1, keepdims=True)
    var = jnp.mean((emb - mu) ** 2, axis=-1, keepdims=True)
    emb = (emb - mu) * jax.lax.rsqrt(var + _LN_EPS) * params["ln_g"][:, 0] \
        + params["ln_b"][:, 0]
    base = jnp.dot(emb, params["w1t"].T, precision=hp) + params["b1"][:, 0]

    # Detail path: 3x3 "same" conv over [ird, visd, detail_max].
    planes = [ird, visd, detail_max]
    acc = jnp.zeros((n, h, width, 32), jnp.float32)
    for dy in (-1, 0, 1):
        for dx in (-1, 0, 1):
            for k in range(3):
                tap = ((dy + 1) * 3 + (dx + 1)) * 3 + k
                p = jnp.pad(planes[k], ((0, 0), (1, 1), (1, 1)))
                shifted = p[:, 1 + dy:1 + dy + h, 1 + dx:1 + dx + width]
                acc = acc + shifted[..., None] * params["wct"][:, tap]
    detail = jnp.maximum(acc.reshape(-1, 32) + params["bc"][:, 0], 0.0)

    fused = jnp.maximum(jnp.dot(detail, params["wft"].T, precision=hp)
                        + params["bf"][:, 0] + base, 0.0)
    y = jnp.tanh(jnp.dot(fused, params["wo"][:, 0], precision=hp)
                 + params["bo"][0, 0])
    return y.reshape(n, 1, h, width)


# ----------------------------------------------------------------------------
# Main
# ----------------------------------------------------------------------------

if __name__ == "__main__":
    key = jax.random.PRNGKey(0)
    k_p, k1, k2, k3, k4 = jax.random.split(key, 5)

    params = make_params(k_p)

    N, H, W = 2, 64, 64
    ir_base = jax.random.normal(k1, (N, 1, H, W), jnp.float32)
    ir_detail = jax.random.normal(k2, (N, 1, H, W), jnp.float32)
    vis_base = jax.random.normal(k3, (N, 1, H, W), jnp.float32)
    vis_detail = jax.random.normal(k4, (N, 1, H, W), jnp.float32)

    fwd = jax.jit(generator_forward)
    fuse_out = fwd(params, ir_base, ir_detail, vis_base, vis_detail)
    jax.block_until_ready(fuse_out)
    assert fuse_out.shape == (N, 1, H, W)

    ref = _reference(params, ir_base, ir_detail, vis_base, vis_detail)
    err = float(jnp.max(jnp.abs(fuse_out - ref)))
    assert err < 1e-2, f"kernel/reference mismatch, max abs err = {err}"

    print("KERNEL_OK")
</pallas_src>

<mosaic_0001>
module attributes {stable_mosaic.version = 11 : i64} {
  func.func @_generator_kernel(%arg0: i32, %arg1: i32, %arg2: memref<1x1x1x4096xf32, #tpu.memory_space<vmem>>, %arg3: memref<1x1x1x4096xf32, #tpu.memory_space<vmem>>, %arg4: memref<1x1x1x4096xf32, #tpu.memory_space<vmem>>, %arg5: memref<1x1x1x4096xf32, #tpu.memory_space<vmem>>, %arg6: memref<1x1x2x64xf32, #tpu.memory_space<vmem>>, %arg7: memref<1x1x2x64xf32, #tpu.memory_space<vmem>>, %arg8: memref<64x1xf32, #tpu.memory_space<vmem>>, %arg9: memref<64x1xf32, #tpu.memory_space<vmem>>, %arg10: memref<64x1xf32, #tpu.memory_space<vmem>>, %arg11: memref<64x1xf32, #tpu.memory_space<vmem>>, %arg12: memref<1x128xf32, #tpu.memory_space<vmem>>, %arg13: memref<32x32xbf16, #tpu.memory_space<vmem>>, %arg14: memref<32x1xf32, #tpu.memory_space<vmem>>, %arg15: memref<64x32xbf16, #tpu.memory_space<vmem>>, %arg16: memref<64x1xf32, #tpu.memory_space<vmem>>, %arg17: memref<64x1xf32, #tpu.memory_space<vmem>>, %arg18: memref<1x1xf32, #tpu.memory_space<vmem>>, %arg19: memref<1x1x1x4096xf32, #tpu.memory_space<vmem>>, %arg20: memref<3x4352xf32, #tpu.memory_space<vmem>>, %arg21: memref<32x4096xf32, #tpu.memory_space<vmem>>) attributes {dimension_semantics = [#tpu.dimension_semantics<parallel>, #tpu.dimension_semantics<parallel>], iteration_bounds = array<i64: 2, 1>, scalar_prefetch = 0 : i64, scratch_operands = 2 : i64, tpu.core_type = #tpu.core_type<tc>, window_params = [{transform_indices = @transform_0, window_bounds = array<i64: 1, 1, 1, 4096>}, {transform_indices = @transform_1, window_bounds = array<i64: 1, 1, 1, 4096>}, {transform_indices = @transform_2, window_bounds = array<i64: 1, 1, 1, 4096>}, {transform_indices = @transform_3, window_bounds = array<i64: 1, 1, 1, 4096>}, {transform_indices = @transform_4, window_bounds = array<i64: 1, 1, 2, 64>}, {transform_indices = @transform_5, window_bounds = array<i64: 1, 1, 2, 64>}, {pipeline_mode = #tpu.pipeline_mode<synchronous>, transform_indices = @transform_6, window_bounds = array<i64: 64, 1>}, {pipeline_mode = #tpu.pipeline_mode<synchronous>, transform_indices = @transform_7, window_bounds = array<i64: 64, 1>}, {pipeline_mode = #tpu.pipeline_mode<synchronous>, transform_indices = @transform_8, window_bounds = array<i64: 64, 1>}, {pipeline_mode = #tpu.pipeline_mode<synchronous>, transform_indices = @transform_9, window_bounds = array<i64: 64, 1>}, {pipeline_mode = #tpu.pipeline_mode<synchronous>, transform_indices = @transform_10, window_bounds = array<i64: 1, 128>}, {pipeline_mode = #tpu.pipeline_mode<synchronous>, transform_indices = @transform_11, window_bounds = array<i64: 32, 32>}, {pipeline_mode = #tpu.pipeline_mode<synchronous>, transform_indices = @transform_12, window_bounds = array<i64: 32, 1>}, {pipeline_mode = #tpu.pipeline_mode<synchronous>, transform_indices = @transform_13, window_bounds = array<i64: 64, 32>}, {pipeline_mode = #tpu.pipeline_mode<synchronous>, transform_indices = @transform_14, window_bounds = array<i64: 64, 1>}, {pipeline_mode = #tpu.pipeline_mode<synchronous>, transform_indices = @transform_15, window_bounds = array<i64: 64, 1>}, {pipeline_mode = #tpu.pipeline_mode<synchronous>, transform_indices = @transform_16, window_bounds = array<i64: 1, 1>}, {transform_indices = @transform_17, window_bounds = array<i64: 1, 1, 1, 4096>}]} {
    %c0 = arith.constant 0 : index
    %c0_0 = arith.constant 0 : index
    %c0_1 = arith.constant 0 : index
    %c0_2 = arith.constant 0 : index
    %0 = vector.load %arg2[%c0, %c0_0, %c0_1, %c0_2] : memref<1x1x1x4096xf32, #tpu.memory_space<vmem>>, vector<1x1x1x4096xf32>
    %1 = vector.shape_cast %0 : vector<1x1x1x4096xf32> to vector<1x4096xf32>
    %c0_3 = arith.constant 0 : index
    %c0_4 = arith.constant 0 : index
    %c0_5 = arith.constant 0 : index
    %c0_6 = arith.constant 0 : index
    %2 = vector.load %arg3[%c0_3, %c0_4, %c0_5, %c0_6] : memref<1x1x1x4096xf32, #tpu.memory_space<vmem>>, vector<1x1x1x4096xf32>
    %3 = vector.shape_cast %2 : vector<1x1x1x4096xf32> to vector<1x4096xf32>
    %c0_7 = arith.constant 0 : index
    %c0_8 = arith.constant 0 : index
    %4 = vector.load %arg12[%c0_7, %c0_8] : memref<1x128xf32, #tpu.memory_space<vmem>>, vector<1x128xf32>
    %5 = vector.extract_strided_slice %4 {offsets = [0, 0], sizes = [1, 1], strides = [1, 1]} : vector<1x128xf32> to vector<1x1xf32>
    %6 = vector.broadcast %5 : vector<1x1xf32> to vector<1x4096xf32>
    %7 = arith.mulf %6, %1 : vector<1x4096xf32>
    %8 = arith.mulf %7, %1 : vector<1x4096xf32>
    %9 = vector.extract_strided_slice %4 {offsets = [0, 1], sizes = [1, 1], strides = [1, 1]} : vector<1x128xf32> to vector<1x1xf32>
    %10 = vector.broadcast %9 : vector<1x1xf32> to vector<1x4096xf32>
    %11 = arith.mulf %10, %3 : vector<1x4096xf32>
    %12 = arith.mulf %11, %3 : vector<1x4096xf32>
    %13 = arith.addf %8, %12 : vector<1x4096xf32>
    %14 = vector.extract_strided_slice %4 {offsets = [0, 2], sizes = [1, 1], strides = [1, 1]} : vector<1x128xf32> to vector<1x1xf32>
    %15 = arith.mulf %1, %3 : vector<1x4096xf32>
    %16 = vector.broadcast %14 : vector<1x1xf32> to vector<1x4096xf32>
    %17 = arith.mulf %16, %15 : vector<1x4096xf32>
    %18 = arith.addf %13, %17 : vector<1x4096xf32>
    %19 = vector.extract_strided_slice %4 {offsets = [0, 3], sizes = [1, 1], strides = [1, 1]} : vector<1x128xf32> to vector<1x1xf32>
    %20 = vector.broadcast %19 : vector<1x1xf32> to vector<1x4096xf32>
    %21 = arith.mulf %20, %1 : vector<1x4096xf32>
    %22 = arith.addf %18, %21 : vector<1x4096xf32>
    %23 = vector.extract_strided_slice %4 {offsets = [0, 4], sizes = [1, 1], strides = [1, 1]} : vector<1x128xf32> to vector<1x1xf32>
    %24 = vector.broadcast %23 : vector<1x1xf32> to vector<1x4096xf32>
    %25 = arith.mulf %24, %3 : vector<1x4096xf32>
    %26 = arith.addf %22, %25 : vector<1x4096xf32>
    %27 = vector.extract_strided_slice %4 {offsets = [0, 5], sizes = [1, 1], strides = [1, 1]} : vector<1x128xf32> to vector<1x1xf32>
    %28 = vector.broadcast %27 : vector<1x1xf32> to vector<1x4096xf32>
    %29 = arith.addf %26, %28 : vector<1x4096xf32>
    %cst = arith.constant 9.99999974E-6 : f32
    %30 = vector.broadcast %cst : f32 to vector<1x4096xf32>
    %31 = arith.addf %29, %30 : vector<1x4096xf32>
    %32 = math.rsqrt %31 : vector<1x4096xf32>
    %c0_9 = arith.constant 0 : index
    %c0_10 = arith.constant 0 : index
    %33 = vector.load %arg8[%c0_9, %c0_10] : memref<64x1xf32, #tpu.memory_space<vmem>>, vector<64x1xf32>
    %34 = vector.broadcast %33 : vector<64x1xf32> to vector<64x4096xf32>
    %35 = vector.broadcast %1 : vector<1x4096xf32> to vector<64x4096xf32>
    %36 = arith.mulf %34, %35 : vector<64x4096xf32>
    %c0_11 = arith.constant 0 : index
    %c0_12 = arith.constant 0 : index
    %37 = vector.load %arg9[%c0_11, %c0_12] : memref<64x1xf32, #tpu.memory_space<vmem>>, vector<64x1xf32>
    %38 = vector.broadcast %37 : vector<64x1xf32> to vector<64x4096xf32>
    %39 = vector.broadcast %3 : vector<1x4096xf32> to vector<64x4096xf32>
    %40 = arith.mulf %38, %39 : vector<64x4096xf32>
    %41 = arith.addf %36, %40 : vector<64x4096xf32>
    %c0_13 = arith.constant 0 : index
    %c0_14 = arith.constant 0 : index
    %42 = vector.load %arg10[%c0_13, %c0_14] : memref<64x1xf32, #tpu.memory_space<vmem>>, vector<64x1xf32>
    %43 = vector.broadcast %42 : vector<64x1xf32> to vector<64x4096xf32>
    %44 = arith.addf %41, %43 : vector<64x4096xf32>
    %45 = vector.broadcast %32 : vector<1x4096xf32> to vector<64x4096xf32>
    %46 = arith.mulf %44, %45 : vector<64x4096xf32>
    %c0_15 = arith.constant 0 : index
    %c0_16 = arith.constant 0 : index
    %47 = vector.load %arg11[%c0_15, %c0_16] : memref<64x1xf32, #tpu.memory_space<vmem>>, vector<64x1xf32>
    %48 = vector.broadcast %47 : vector<64x1xf32> to vector<64x4096xf32>
    %49 = arith.addf %46, %48 : vector<64x4096xf32>
    %cst_17 = arith.constant 0.000000e+00 : f32
    %50 = vector.broadcast %cst_17 : f32 to vector<2x64xf32>
    %c0_18 = arith.constant 0 : index
    %c0_19 = arith.constant 0 : index
    %51 = vector.load %arg20[%c0_18, %c0_19] : memref<3x4352xf32, #tpu.memory_space<vmem>>, vector<2x64xf32>
    tpu.vector_store %arg20[%c0_18, %c0_19], %50 {strides = array<i32>} : memref<3x4352xf32, #tpu.memory_space<vmem>>, vector<2x64xf32>,
    %cst_20 = arith.constant 0.000000e+00 : f32
    %52 = vector.broadcast %cst_20 : f32 to vector<2x64xf32>
    %c0_21 = arith.constant 0 : index
    %c4288 = arith.constant 4288 : index
    %53 = vector.load %arg20[%c0_21, %c4288] : memref<3x4352xf32, #tpu.memory_space<vmem>>, vector<2x64xf32>
    tpu.vector_store %arg20[%c0_21, %c4288], %52 {strides = array<i32>} : memref<3x4352xf32, #tpu.memory_space<vmem>>, vector<2x64xf32>,
    %c0_22 = arith.constant 0 : index
    %c0_23 = arith.constant 0 : index
    %c0_24 = arith.constant 0 : index
    %c0_25 = arith.constant 0 : index
    %54 = vector.load %arg6[%c0_22, %c0_23, %c0_24, %c0_25] : memref<1x1x2x64xf32, #tpu.memory_space<vmem>>, vector<1x1x1x64xf32>
    %55 = vector.shape_cast %54 : vector<1x1x1x64xf32> to vector<1x64xf32>
    %c0_26 = arith.constant 0 : index
    %c64 = arith.constant 64 : index
    %56 = vector.load %arg20[%c0_26, %c64] : memref<3x4352xf32, #tpu.memory_space<vmem>>, vector<1x64xf32>
    tpu.vector_store %arg20[%c0_26, %c64], %55 {strides = array<i32>} : memref<3x4352xf32, #tpu.memory_space<vmem>>, vector<1x64xf32>,
    %c0_27 = arith.constant 0 : index
    %c0_28 = arith.constant 0 : index
    %c0_29 = arith.constant 0 : index
    %c0_30 = arith.constant 0 : index
    %57 = vector.load %arg7[%c0_27, %c0_28, %c0_29, %c0_30] : memref<1x1x2x64xf32, #tpu.memory_space<vmem>>, vector<1x1x1x64xf32>
    %58 = vector.shape_cast %57 : vector<1x1x1x64xf32> to vector<1x64xf32>
    %c1 = arith.constant 1 : index
    %c64_31 = arith.constant 64 : index
    %59 = vector.load %arg20[%c1, %c64_31] : memref<3x4352xf32, #tpu.memory_space<vmem>>, vector<1x64xf32>
    tpu.vector_store %arg20[%c1, %c64_31], %58 {strides = array<i32>} : memref<3x4352xf32, #tpu.memory_space<vmem>>, vector<1x64xf32>,
    %c0_32 = arith.constant 0 : index
    %c0_33 = arith.constant 0 : index
    %c0_34 = arith.constant 0 : index
    %c0_35 = arith.constant 0 : index
    %60 = vector.load %arg4[%c0_32, %c0_33, %c0_34, %c0_35] : memref<1x1x1x4096xf32, #tpu.memory_space<vmem>>, vector<1x1x1x4096xf32>
    %61 = vector.shape_cast %60 : vector<1x1x1x4096xf32> to vector<1x4096xf32>
    %c0_36 = arith.constant 0 : index
    %c128 = arith.constant 128 : index
    %62 = vector.load %arg20[%c0_36, %c128] : memref<3x4352xf32, #tpu.memory_space<vmem>>, vector<1x4096xf32>
    tpu.vector_store %arg20[%c0_36, %c128], %61 {strides = array<i32>} : memref<3x4352xf32, #tpu.memory_space<vmem>>, vector<1x4096xf32>,
    %c0_37 = arith.constant 0 : index
    %c0_38 = arith.constant 0 : index
    %c0_39 = arith.constant 0 : index
    %c0_40 = arith.constant 0 : index
    %63 = vector.load %arg5[%c0_37, %c0_38, %c0_39, %c0_40] : memref<1x1x1x4096xf32, #tpu.memory_space<vmem>>, vector<1x1x1x4096xf32>
    %64 = vector.shape_cast %63 : vector<1x1x1x4096xf32> to vector<1x4096xf32>
    %c1_41 = arith.constant 1 : index
    %c128_42 = arith.constant 128 : index
    %65 = vector.load %arg20[%c1_41, %c128_42] : memref<3x4352xf32, #tpu.memory_space<vmem>>, vector<1x4096xf32>
    tpu.vector_store %arg20[%c1_41, %c128_42], %64 {strides = array<i32>} : memref<3x4352xf32, #tpu.memory_space<vmem>>, vector<1x4096xf32>,
    %c0_43 = arith.constant 0 : index
    %c0_44 = arith.constant 0 : index
    %c1_45 = arith.constant 1 : index
    %c0_46 = arith.constant 0 : index
    %66 = vector.load %arg6[%c0_43, %c0_44, %c1_45, %c0_46] : memref<1x1x2x64xf32, #tpu.memory_space<vmem>>, vector<1x1x1x64xf32>
    %67 = vector.shape_cast %66 : vector<1x1x1x64xf32> to vector<1x64xf32>
    %c0_47 = arith.constant 0 : index
    %c4224 = arith.constant 4224 : index
    %68 = vector.load %arg20[%c0_47, %c4224] : memref<3x4352xf32, #tpu.memory_space<vmem>>, vector<1x64xf32>
    tpu.vector_store %arg20[%c0_47, %c4224], %67 {strides = array<i32>} : memref<3x4352xf32, #tpu.memory_space<vmem>>, vector<1x64xf32>,
    %c0_48 = arith.constant 0 : index
    %c0_49 = arith.constant 0 : index
    %c1_50 = arith.constant 1 : index
    %c0_51 = arith.constant 0 : index
    %69 = vector.load %arg7[%c0_48, %c0_49, %c1_50, %c0_51] : memref<1x1x2x64xf32, #tpu.memory_space<vmem>>, vector<1x1x1x64xf32>
    %70 = vector.shape_cast %69 : vector<1x1x1x64xf32> to vector<1x64xf32>
    %c1_52 = arith.constant 1 : index
    %c4224_53 = arith.constant 4224 : index
    %71 = vector.load %arg20[%c1_52, %c4224_53] : memref<3x4352xf32, #tpu.memory_space<vmem>>, vector<1x64xf32>
    tpu.vector_store %arg20[%c1_52, %c4224_53], %70 {strides = array<i32>} : memref<3x4352xf32, #tpu.memory_space<vmem>>, vector<1x64xf32>,
    %c0_54 = arith.constant 0 : index
    %c0_55 = arith.constant 0 : index
    %72 = vector.load %arg20[%c0_54, %c0_55] : memref<3x4352xf32, #tpu.memory_space<vmem>>, vector<1x4352xf32>
    %c1_56 = arith.constant 1 : index
    %c0_57 = arith.constant 0 : index
    %73 = vector.load %arg20[%c1_56, %c0_57] : memref<3x4352xf32, #tpu.memory_space<vmem>>, vector<1x4352xf32>
    %74 = arith.maximumf %72, %73 : vector<1x4352xf32>
    %c2 = arith.constant 2 : index
    %c0_58 = arith.constant 0 : index
    %75 = vector.load %arg20[%c2, %c0_58] : memref<3x4352xf32, #tpu.memory_space<vmem>>, vector<1x4352xf32>
    tpu.vector_store %arg20[%c2, %c0_58], %74 {strides = array<i32>} : memref<3x4352xf32, #tpu.memory_space<vmem>>, vector<1x4352xf32>,
    %76 = tpu.iota {dimensions = array<i32: 1>} : vector<1x4096xi32>
    %c64_i32 = arith.constant 64 : i32
    %c0_i32 = arith.constant 0 : i32
    %77 = arith.cmpi eq, %c64_i32, %c0_i32 : i32
    %c1_i32 = arith.constant 1 : i32
    %78 = arith.select %77, %c1_i32, %c64_i32 : i32
    %79 = vector.broadcast %78 : i32 to vector<1x4096xi32>
    %80 = arith.remsi %76, %79 : vector<1x4096xi32>
    %c0_i32_59 = arith.constant 0 : i32
    %81 = vector.broadcast %c0_i32_59 : i32 to vector<1x4096xi32>
    %82 = arith.cmpi ne, %80, %81 : vector<1x4096xi32>
    %c0_i32_60 = arith.constant 0 : i32
    %83 = vector.broadcast %c0_i32_60 : i32 to vector<1x4096xi32>
    %84 = arith.cmpi slt, %80, %83 : vector<1x4096xi32>
    %c0_i32_61 = arith.constant 0 : i32
    %85 = arith.cmpi slt, %78, %c0_i32_61 : i32
    %86 = vector.broadcast %85 : i1 to vector<1x4096xi1>
    %87 = vector.broadcast %86 : vector<1x4096xi1> to vector<1x4096xi1>
    %88 = arith.xori %84, %87 : vector<1x4096xi1>
    %89 = arith.andi %88, %82 : vector<1x4096xi1>
    %90 = vector.broadcast %78 : i32 to vector<1x4096xi32>
    %91 = arith.addi %80, %90 : vector<1x4096xi32>
    %92 = arith.select %89, %91, %80 : vector<1x4096xi1>, vector<1x4096xi32>
    %c0_i32_62 = arith.constant 0 : i32
    %93 = vector.broadcast %c0_i32_62 : i32 to vector<1x4096xi32>
    %94 = arith.cmpi ne, %92, %93 : vector<1x4096xi32>
    %c63_i32 = arith.constant 63 : i32
    %95 = vector.broadcast %c63_i32 : i32 to vector<1x4096xi32>
    %96 = arith.cmpi ne, %92, %95 : vector<1x4096xi32>
    %c0_63 = arith.constant 0 : index
    %c63 = arith.constant 63 : index
    %97 = vector.load %arg20[%c0_63, %c63] : memref<3x4352xf32, #tpu.memory_space<vmem>>, vector<3x4096xf32>
    %cst_64 = arith.constant 0.000000e+00 : f32
    %98 = vector.shape_cast %94 : vector<1x4096xi1> to vector<1x4096xi1>
    %99 = vector.broadcast %98 : vector<1x4096xi1> to vector<3x4096xi1>
    %100 = vector.broadcast %cst_64 : f32 to vector<3x4096xf32>
    %101 = arith.select %99, %97, %100 : vector<3x4096xi1>, vector<3x4096xf32>
    %c0_65 = arith.constant 0 : index
    %c0_66 = arith.constant 0 : index
    %102 = vector.load %arg21[%c0_65, %c0_66] : memref<32x4096xf32, #tpu.memory_space<vmem>>, vector<3x4096xf32>
    tpu.vector_store %arg21[%c0_65, %c0_66], %101 {strides = array<i32>} : memref<32x4096xf32, #tpu.memory_space<vmem>>, vector<3x4096xf32>,
    %c0_67 = arith.constant 0 : index
    %c64_68 = arith.constant 64 : index
    %103 = vector.load %arg20[%c0_67, %c64_68] : memref<3x4352xf32, #tpu.memory_space<vmem>>, vector<3x4096xf32>
    %c3 = arith.constant 3 : index
    %c0_69 = arith.constant 0 : index
    %104 = vector.load %arg21[%c3, %c0_69] : memref<32x4096xf32, #tpu.memory_space<vmem>>, vector<3x4096xf32>
    tpu.vector_store %arg21[%c3, %c0_69], %103 {strides = array<i32>} : memref<32x4096xf32, #tpu.memory_space<vmem>>, vector<3x4096xf32>,
    %c0_70 = arith.constant 0 : index
    %c65 = arith.constant 65 : index
    %105 = vector.load %arg20[%c0_70, %c65] : memref<3x4352xf32, #tpu.memory_space<vmem>>, vector<3x4096xf32>
    %cst_71 = arith.constant 0.000000e+00 : f32
    %106 = vector.shape_cast %96 : vector<1x4096xi1> to vector<1x4096xi1>
    %107 = vector.broadcast %106 : vector<1x4096xi1> to vector<3x4096xi1>
    %108 = vector.broadcast %cst_71 : f32 to vector<3x4096xf32>
    %109 = arith.select %107, %105, %108 : vector<3x4096xi1>, vector<3x4096xf32>
    %c6 = arith.constant 6 : index
    %c0_72 = arith.constant 0 : index
    %110 = vector.load %arg21[%c6, %c0_72] : memref<32x4096xf32, #tpu.memory_space<vmem>>, vector<3x4096xf32>
    tpu.vector_store %arg21[%c6, %c0_72], %109 {strides = array<i32>} : memref<32x4096xf32, #tpu.memory_space<vmem>>, vector<3x4096xf32>,
    %c0_73 = arith.constant 0 : index
    %c127 = arith.constant 127 : index
    %111 = vector.load %arg20[%c0_73, %c127] : memref<3x4352xf32, #tpu.memory_space<vmem>>, vector<3x4096xf32>
    %cst_74 = arith.constant 0.000000e+00 : f32
    %112 = vector.shape_cast %94 : vector<1x4096xi1> to vector<1x4096xi1>
    %113 = vector.broadcast %112 : vector<1x4096xi1> to vector<3x4096xi1>
    %114 = vector.broadcast %cst_74 : f32 to vector<3x4096xf32>
    %115 = arith.select %113, %111, %114 : vector<3x4096xi1>, vector<3x4096xf32>
    %c9 = arith.constant 9 : index
    %c0_75 = arith.constant 0 : index
    %116 = vector.load %arg21[%c9, %c0_75] : memref<32x4096xf32, #tpu.memory_space<vmem>>, vector<3x4096xf32>
    tpu.vector_store %arg21[%c9, %c0_75], %115 {strides = array<i32>} : memref<32x4096xf32, #tpu.memory_space<vmem>>, vector<3x4096xf32>,
    %c0_76 = arith.constant 0 : index
    %c128_77 = arith.constant 128 : index
    %117 = vector.load %arg20[%c0_76, %c128_77] : memref<3x4352xf32, #tpu.memory_space<vmem>>, vector<3x4096xf32>
    %c12 = arith.constant 12 : index
    %c0_78 = arith.constant 0 : index
    %118 = vector.load %arg21[%c12, %c0_78] : memref<32x4096xf32, #tpu.memory_space<vmem>>, vector<3x4096xf32>
    tpu.vector_store %arg21[%c12, %c0_78], %117 {strides = array<i32>} : memref<32x4096xf32, #tpu.memory_space<vmem>>, vector<3x4096xf32>,
    %c0_79 = arith.constant 0 : index
    %c129 = arith.constant 129 : index
    %119 = vector.load %arg20[%c0_79, %c129] : memref<3x4352xf32, #tpu.memory_space<vmem>>, vector<3x4096xf32>
    %cst_80 = arith.constant 0.000000e+00 : f32
    %120 = vector.shape_cast %96 : vector<1x4096xi1> to vector<1x4096xi1>
    %121 = vector.broadcast %120 : vector<1x4096xi1> to vector<3x4096xi1>
    %122 = vector.broadcast %cst_80 : f32 to vector<3x4096xf32>
    %123 = arith.select %121, %119, %122 : vector<3x4096xi1>, vector<3x4096xf32>
    %c15 = arith.constant 15 : index
    %c0_81 = arith.constant 0 : index
    %124 = vector.load %arg21[%c15, %c0_81] : memref<32x4096xf32, #tpu.memory_space<vmem>>, vector<3x4096xf32>
    tpu.vector_store %arg21[%c15, %c0_81], %123 {strides = array<i32>} : memref<32x4096xf32, #tpu.memory_space<vmem>>, vector<3x4096xf32>,
    %c0_82 = arith.constant 0 : index
    %c191 = arith.constant 191 : index
    %125 = vector.load %arg20[%c0_82, %c191] : memref<3x4352xf32, #tpu.memory_space<vmem>>, vector<3x4096xf32>
    %cst_83 = arith.constant 0.000000e+00 : f32
    %126 = vector.shape_cast %94 : vector<1x4096xi1> to vector<1x4096xi1>
    %127 = vector.broadcast %126 : vector<1x4096xi1> to vector<3x4096xi1>
    %128 = vector.broadcast %cst_83 : f32 to vector<3x4096xf32>
    %129 = arith.select %127, %125, %128 : vector<3x4096xi1>, vector<3x4096xf32>
    %c18 = arith.constant 18 : index
    %c0_84 = arith.constant 0 : index
    %130 = vector.load %arg21[%c18, %c0_84] : memref<32x4096xf32, #tpu.memory_space<vmem>>, vector<3x4096xf32>
    tpu.vector_store %arg21[%c18, %c0_84], %129 {strides = array<i32>} : memref<32x4096xf32, #tpu.memory_space<vmem>>, vector<3x4096xf32>,
    %c0_85 = arith.constant 0 : index
    %c192 = arith.constant 192 : index
    %131 = vector.load %arg20[%c0_85, %c192] : memref<3x4352xf32, #tpu.memory_space<vmem>>, vector<3x4096xf32>
    %c21 = arith.constant 21 : index
    %c0_86 = arith.constant 0 : index
    %132 = vector.load %arg21[%c21, %c0_86] : memref<32x4096xf32, #tpu.memory_space<vmem>>, vector<3x4096xf32>
    tpu.vector_store %arg21[%c21, %c0_86], %131 {strides = array<i32>} : memref<32x4096xf32, #tpu.memory_space<vmem>>, vector<3x4096xf32>,
    %c0_87 = arith.constant 0 : index
    %c193 = arith.constant 193 : index
    %133 = vector.load %arg20[%c0_87, %c193] : memref<3x4352xf32, #tpu.memory_space<vmem>>, vector<3x4096xf32>
    %cst_88 = arith.constant 0.000000e+00 : f32
    %134 = vector.shape_cast %96 : vector<1x4096xi1> to vector<1x4096xi1>
    %135 = vector.broadcast %134 : vector<1x4096xi1> to vector<3x4096xi1>
    %136 = vector.broadcast %cst_88 : f32 to vector<3x4096xf32>
    %137 = arith.select %135, %133, %136 : vector<3x4096xi1>, vector<3x4096xf32>
    %c24 = arith.constant 24 : index
    %c0_89 = arith.constant 0 : index
    %138 = vector.load %arg21[%c24, %c0_89] : memref<32x4096xf32, #tpu.memory_space<vmem>>, vector<3x4096xf32>
    tpu.vector_store %arg21[%c24, %c0_89], %137 {strides = array<i32>} : memref<32x4096xf32, #tpu.memory_space<vmem>>, vector<3x4096xf32>,
    %cst_90 = arith.constant 0.000000e+00 : f32
    %139 = vector.broadcast %cst_90 : f32 to vector<5x4096xf32>
    %c27 = arith.constant 27 : index
    %c0_91 = arith.constant 0 : index
    %140 = vector.load %arg21[%c27, %c0_91] : memref<32x4096xf32, #tpu.memory_space<vmem>>, vector<5x4096xf32>
    tpu.vector_store %arg21[%c27, %c0_91], %139 {strides = array<i32>} : memref<32x4096xf32, #tpu.memory_space<vmem>>, vector<5x4096xf32>,
    %c0_92 = arith.constant 0 : index
    %c0_93 = arith.constant 0 : index
    %141 = vector.load %arg13[%c0_92, %c0_93] : memref<32x32xbf16, #tpu.memory_space<vmem>>, vector<32x32xbf16>
    %c0_94 = arith.constant 0 : index
    %c0_95 = arith.constant 0 : index
    %142 = vector.load %arg21[%c0_94, %c0_95] : memref<32x4096xf32, #tpu.memory_space<vmem>>, vector<32x4096xf32>
    %143 = arith.truncf %142 : vector<32x4096xf32> to vector<32x4096xbf16>
    %cst_96 = arith.constant dense<0.000000e+00> : vector<32x4096xf32>
    %144 = tpu.matmul %141, %143, %cst_96 {dimension_numbers = #tpu.dot_dimension_numbers<[1], [0], [0], [1], [0, 0, 1, 1], [], []>} : vector<32x32xbf16>, vector<32x4096xbf16>, vector<32x4096xf32> -> vector<32x4096xf32>
    %c0_97 = arith.constant 0 : index
    %c0_98 = arith.constant 0 : index
    %145 = vector.load %arg14[%c0_97, %c0_98] : memref<32x1xf32, #tpu.memory_space<vmem>>, vector<32x1xf32>
    %146 = vector.broadcast %145 : vector<32x1xf32> to vector<32x4096xf32>
    %147 = arith.addf %144, %146 : vector<32x4096xf32>
    %cst_99 = arith.constant 0.000000e+00 : f32
    %148 = vector.broadcast %cst_99 : f32 to vector<32x4096xf32>
    %149 = arith.maximumf %147, %148 : vector<32x4096xf32>
    %c0_100 = arith.constant 0 : index
    %c0_101 = arith.constant 0 : index
    %150 = vector.load %arg15[%c0_100, %c0_101] : memref<64x32xbf16, #tpu.memory_space<vmem>>, vector<64x32xbf16>
    %151 = arith.truncf %149 : vector<32x4096xf32> to vector<32x4096xbf16>
    %cst_102 = arith.constant dense<0.000000e+00> : vector<64x4096xf32>
    %152 = tpu.matmul %150, %151, %cst_102 {dimension_numbers = #tpu.dot_dimension_numbers<[1], [0], [0], [1], [0, 0, 1, 1], [], []>} : vector<64x32xbf16>, vector<32x4096xbf16>, vector<64x4096xf32> -> vector<64x4096xf32>
    %c0_103 = arith.constant 0 : index
    %c0_104 = arith.constant 0 : index
    %153 = vector.load %arg16[%c0_103, %c0_104] : memref<64x1xf32, #tpu.memory_space<vmem>>, vector<64x1xf32>
    %154 = vector.broadcast %153 : vector<64x1xf32> to vector<64x4096xf32>
    %155 = arith.addf %152, %154 : vector<64x4096xf32>
    %156 = arith.addf %155, %49 : vector<64x4096xf32>
    %cst_105 = arith.constant 0.000000e+00 : f32
    %157 = vector.broadcast %cst_105 : f32 to vector<64x4096xf32>
    %158 = arith.maximumf %156, %157 : vector<64x4096xf32>
    %c0_106 = arith.constant 0 : index
    %c0_107 = arith.constant 0 : index
    %159 = vector.load %arg17[%c0_106, %c0_107] : memref<64x1xf32, #tpu.memory_space<vmem>>, vector<64x1xf32>
    %160 = vector.broadcast %159 : vector<64x1xf32> to vector<64x4096xf32>
    %161 = arith.mulf %158, %160 : vector<64x4096xf32>
    %cst_108 = arith.constant dense<0.000000e+00> : vector<4096xf32>
    %162 = vector.multi_reduction <add>, %161, %cst_108 [0] : vector<64x4096xf32> to vector<4096xf32>
    %163 = vector.shape_cast %162 : vector<4096xf32> to vector<1x4096xf32>
    %c0_109 = arith.constant 0 : index
    %c0_110 = arith.constant 0 : index
    %164 = vector.load %arg18[%c0_109, %c0_110] : memref<1x1xf32, #tpu.memory_space<vmem>>, vector<1x1xf32>
    %165 = vector.broadcast %164 : vector<1x1xf32> to vector<1x4096xf32>
    %166 = arith.addf %163, %165 : vector<1x4096xf32>
    %167 = math.tanh %166 : vector<1x4096xf32>
    %c0_111 = arith.constant 0 : index
    %c0_112 = arith.constant 0 : index
    %c0_113 = arith.constant 0 : index
    %c0_114 = arith.constant 0 : index
    %168 = vector.load %arg19[%c0_111, %c0_112, %c0_113, %c0_114] : memref<1x1x1x4096xf32, #tpu.memory_space<vmem>>, vector<1x1x1x4096xf32>
    %169 = vector.shape_cast %168 : vector<1x1x1x4096xf32> to vector<1x4096xf32>
    %170 = vector.shape_cast %167 : vector<1x4096xf32> to vector<1x1x1x4096xf32>
    tpu.vector_store %arg19[%c0_111, %c0_112, %c0_113, %c0_114], %170 {strides = array<i32>} : memref<1x1x1x4096xf32, #tpu.memory_space<vmem>>, vector<1x1x1x4096xf32>,
    return
  }
  func.func @transform_0(%arg0: i32, %arg1: i32) -> (i32, i32, i32, i32) {
    %c0_i32 = arith.constant 0 : i32
    %c0_i32_0 = arith.constant 0 : i32
    %c0_i32_1 = arith.constant 0 : i32
    return %arg0, %arg1, %c0_i32, %c0_i32_0 : i32, i32, i32, i32
  }
  func.func @transform_1(%arg0: i32, %arg1: i32) -> (i32, i32, i32, i32) {
    %c0_i32 = arith.constant 0 : i32
    %c0_i32_0 = arith.constant 0 : i32
    %c0_i32_1 = arith.constant 0 : i32
    return %arg0, %arg1, %c0_i32, %c0_i32_0 : i32, i32, i32, i32
  }
  func.func @transform_2(%arg0: i32, %arg1: i32) -> (i32, i32, i32, i32) {
    %c0_i32 = arith.constant 0 : i32
    %c0_i32_0 = arith.constant 0 : i32
    %c0_i32_1 = arith.constant 0 : i32
    return %arg0, %arg1, %c0_i32, %c0_i32_0 : i32, i32, i32, i32
  }
  func.func @transform_3(%arg0: i32, %arg1: i32) -> (i32, i32, i32, i32) {
    %c0_i32 = arith.constant 0 : i32
    %c0_i32_0 = arith.constant 0 : i32
    %c0_i32_1 = arith.constant 0 : i32
    return %arg0, %arg1, %c0_i32, %c0_i32_0 : i32, i32, i32, i32
  }
  func.func @transform_4(%arg0: i32, %arg1: i32) -> (i32, i32, i32, i32) {
    %c0_i32 = arith.constant 0 : i32
    %c0_i32_0 = arith.constant 0 : i32
    %c0_i32_1 = arith.constant 0 : i32
    return %arg0, %arg1, %c0_i32, %c0_i32_0 : i32, i32, i32, i32
  }
  func.func @transform_5(%arg0: i32, %arg1: i32) -> (i32, i32, i32, i32) {
    %c0_i32 = arith.constant 0 : i32
    %c0_i32_0 = arith.constant 0 : i32
    %c0_i32_1 = arith.constant 0 : i32
    return %arg0, %arg1, %c0_i32, %c0_i32_0 : i32, i32, i32, i32
  }
  func.func @transform_6(%arg0: i32, %arg1: i32) -> (i32, i32) {
    %c0_i32 = arith.constant 0 : i32
    %c0_i32_0 = arith.constant 0 : i32
    %c0_i32_1 = arith.constant 0 : i32
    return %c0_i32, %c0_i32_0 : i32, i32
  }
  func.func @transform_7(%arg0: i32, %arg1: i32) -> (i32, i32) {
    %c0_i32 = arith.constant 0 : i32
    %c0_i32_0 = arith.constant 0 : i32
    %c0_i32_1 = arith.constant 0 : i32
    return %c0_i32, %c0_i32_0 : i32, i32
  }
  func.func @transform_8(%arg0: i32, %arg1: i32) -> (i32, i32) {
    %c0_i32 = arith.constant 0 : i32
    %c0_i32_0 = arith.constant 0 : i32
    %c0_i32_1 = arith.constant 0 : i32
    return %c0_i32, %c0_i32_0 : i32, i32
  }
  func.func @transform_9(%arg0: i32, %arg1: i32) -> (i32, i32) {
    %c0_i32 = arith.constant 0 : i32
    %c0_i32_0 = arith.constant 0 : i32
    %c0_i32_1 = arith.constant 0 : i32
    return %c0_i32, %c0_i32_0 : i32, i32
  }
  func.func @transform_10(%arg0: i32, %arg1: i32) -> (i32, i32) {
    %c0_i32 = arith.constant 0 : i32
    %c0_i32_0 = arith.constant 0 : i32
    %c0_i32_1 = arith.constant 0 : i32
    return %c0_i32, %c0_i32_0 : i32, i32
  }
  func.func @transform_11(%arg0: i32, %arg1: i32) -> (i32, i32) {
    %c0_i32 = arith.constant 0 : i32
    %c0_i32_0 = arith.constant 0 : i32
    %c0_i32_1 = arith.constant 0 : i32
    return %c0_i32, %c0_i32_0 : i32, i32
  }
  func.func @transform_12(%arg0: i32, %arg1: i32) -> (i32, i32) {
    %c0_i32 = arith.constant 0 : i32
    %c0_i32_0 = arith.constant 0 : i32
    %c0_i32_1 = arith.constant 0 : i32
    return %c0_i32, %c0_i32_0 : i32, i32
  }
  func.func @transform_13(%arg0: i32, %arg1: i32) -> (i32, i32) {
    %c0_i32 = arith.constant 0 : i32
    %c0_i32_0 = arith.constant 0 : i32
    %c0_i32_1 = arith.constant 0 : i32
    return %c0_i32, %c0_i32_0 : i32, i32
  }
  func.func @transform_14(%arg0: i32, %arg1: i32) -> (i32, i32) {
    %c0_i32 = arith.constant 0 : i32
    %c0_i32_0 = arith.constant 0 : i32
    %c0_i32_1 = arith.constant 0 : i32
    return %c0_i32, %c0_i32_0 : i32, i32
  }
  func.func @transform_15(%arg0: i32, %arg1: i32) -> (i32, i32) {
    %c0_i32 = arith.constant 0 : i32
    %c0_i32_0 = arith.constant 0 : i32
    %c0_i32_1 = arith.constant 0 : i32
    return %c0_i32, %c0_i32_0 : i32, i32
  }
  func.func @transform_16(%arg0: i32, %arg1: i32) -> (i32, i32) {
    %c0_i32 = arith.constant 0 : i32
    %c0_i32_0 = arith.constant 0 : i32
    %c0_i32_1 = arith.constant 0 : i32
    return %c0_i32, %c0_i32_0 : i32, i32
  }
  func.func @transform_17(%arg0: i32, %arg1: i32) -> (i32, i32, i32, i32) {
    %c0_i32 = arith.constant 0 : i32
    %c0_i32_0 = arith.constant 0 : i32
    %c0_i32_1 = arith.constant 0 : i32
    return %arg0, %arg1, %c0_i32, %c0_i32_0 : i32, i32, i32, i32
  }
}

</mosaic_0001>

<llo_original>
// kernel: generator_forward.1
$region0: #{generator_forward.1}
  #allocation0 [shape = 'u32[]', space=smem, size = 0x4, offset = 0x4, fixed_abs, tag = 'smem constant byte address 0x4 - core index']
  #allocation1 [shape = 'u32[144,128]{1,0:T(1,128)}', space=vmem, size = 0x12000, scoped, tag = 'internal scratch']
  #allocation2 [shape = 'f32[3,4352]{1,0:T(4,128)}', space=vmem, size = 0x11000, scoped, tag = 'scratch operand']
  #allocation3 [shape = 'f32[32,4096]{1,0:T(8,128)}', space=vmem, size = 0x80000, scoped, tag = 'scratch operand']
  #allocation4 [shape = 'f32[1,1]{1,0:T(1,128)S(1)}', space=vmem, size = 0x200, scoped, tag = 'scoped memory for generator_forward.1']
  %s0 = inlined_call_operand.vmem [shape: f32[2,1,1,4096], index: 0, kind: input, shape index: {}]
  %s1 = inlined_call_operand.vmem [shape: f32[2,1,1,4096], index: 1, kind: input, shape index: {}]
  %s2 = inlined_call_operand.vmem [shape: f32[2,1,1,4096], index: 2, kind: input, shape index: {}]
  %s3 = inlined_call_operand.vmem [shape: f32[2,1,1,4096], index: 3, kind: input, shape index: {}]
  %s4 = inlined_call_operand.vmem [shape: f32[2,1,2,64], index: 4, kind: input, shape index: {}, may-alias: {4,5}]
  %s5 = inlined_call_operand.vmem [shape: f32[2,1,2,64], index: 5, kind: input, shape index: {}, may-alias: {4,5}]
  %s6 = inlined_call_operand.vmem [shape: f32[64,1], index: 6, kind: input, shape index: {}]
  %s7 = inlined_call_operand.vmem [shape: f32[64,1], index: 7, kind: input, shape index: {}]
  %s8 = inlined_call_operand.vmem [shape: f32[64,1], index: 8, kind: input, shape index: {}]
  %s9 = inlined_call_operand.vmem [shape: f32[64,1], index: 9, kind: input, shape index: {}]
  %s10 = inlined_call_operand.vmem [shape: f32[1,128], index: 10, kind: input, shape index: {}]
  %s11 = inlined_call_operand.vmem [shape: bf16[32,32], index: 11, kind: input, shape index: {}]
  %s12 = inlined_call_operand.vmem [shape: f32[32,1], index: 12, kind: input, shape index: {}]
  %s13 = inlined_call_operand.vmem [shape: bf16[64,32], index: 13, kind: input, shape index: {}]
  %s14 = inlined_call_operand.vmem [shape: f32[64,1], index: 14, kind: input, shape index: {}]
  %s15 = inlined_call_operand.vmem [shape: f32[64,1], index: 15, kind: input, shape index: {}]
  %s16 = inlined_call_operand.<no memory space> [shape: f32[1,1], index: 16, kind: input, shape index: {}]
  %s17 = inlined_call_operand.vmem [shape: f32[2,1,1,4096], index: 17, kind: output, shape index: {}]
  %s18 = sld [smem:[#allocation0]]
  $region101: #{generator_forward.1} parent=0
    _
  %s20 = ssub.s32 1, %s18
  %s21 = scalar_select 0, %s20, %s18
  %v22 = vstv %s16
  %23 = vst [vmem:[#allocation4] sm:$0x1] %v22
  loop: start=0, step=1, limit=4
  $region2: #{generator_forward.1} parent=0 // loop_pre_header
    _
  $region3: #{generator_forward.1} parent=0 // loop_header
    %s25 = sphi 0, %s29
    %p26 = scmp.ge.s32.totalorder %s25, 4
    %s32 = sphi 0, %s44
    %s33 = sphi 0, %s40
    %s34 = sphi 0, %s32
    %s35 = sphi 0, %s33
    %s36 = sphi 0, %s34
    %s37 = sphi 0, %s35
    %s49 = sphi 0, %s51
    %s52 = sphi 0, %s49
    %s53 = sphi 0, %s52
    %s69 = sphi 0, %s53
    %s77 = sphi 0, %s79
    %s80 = sphi 0, %s77
    %s81 = sphi 0, %s80
    %s97 = sphi 0, %s81
    %s105 = sphi 0, %s107
    %s108 = sphi 0, %s105
    %s109 = sphi 0, %s108
    %s125 = sphi 0, %s109
    %s133 = sphi 0, %s135
    %s136 = sphi 0, %s133
    %s137 = sphi 0, %s136
    %s153 = sphi 0, %s137
    %s161 = sphi 0, %s163
    %s164 = sphi 0, %s161
    %s165 = sphi 0, %s164
    %s181 = sphi 0, %s165
    %s189 = sphi 0, %s191
    %s192 = sphi 0, %s189
    %s193 = sphi 0, %s192
    %s209 = sphi 0, %s193
    %s213 = sphi 0, %s213
    %s215 = sphi 0, %s213
    %s216 = sphi 0, %s215
    %s230 = sphi 0, %s216
    %s234 = sphi 0, %s234
    %s236 = sphi 0, %s234
    %s237 = sphi 0, %s236
    %s251 = sphi 0, %s237
    %s255 = sphi 0, %s255
    %s257 = sphi 0, %s255
    %s258 = sphi 0, %s257
    %s272 = sphi 0, %s258
    %s276 = sphi 0, %s276
    %s278 = sphi 0, %s276
    %s279 = sphi 0, %s278
    %s293 = sphi 0, %s279
    %s297 = sphi 0, %s297
    %s299 = sphi 0, %s297
    %s300 = sphi 0, %s299
    %s314 = sphi 0, %s300
    %s318 = sphi 0, %s318
    %s320 = sphi 0, %s318
    %s321 = sphi 0, %s320
    %s335 = sphi 0, %s321
    %s339 = sphi 0, %s339
    %s341 = sphi 0, %s339
    %s342 = sphi 0, %s341
    %s356 = sphi 0, %s342
    %s360 = sphi 0, %s360
    %s362 = sphi 0, %s360
    %s363 = sphi 0, %s362
    %s377 = sphi 0, %s363
    %s381 = sphi 0, %s381
    %s383 = sphi 0, %s381
    %s384 = sphi 0, %s383
    %s398 = sphi 0, %s384
    %s402 = sphi 0, %s402
    %s404 = sphi 0, %s402
    %s405 = sphi 0, %s404
    %s419 = sphi 0, %s405
    %s423 = sphi 0, %s423
    %s425 = sphi 0, %s423
    %s426 = sphi 0, %s425
    %s440 = sphi 0, %s426
    %s448 = sphi 0, %s450
    %s451 = sphi 0, %s448
    %s452 = sphi 0, %s451
    %s468 = sphi 0, %s452
  $region4: #{generator_forward.1} parent=0 // loop_header_branch
    %28 = sbr.rel (%p26) target = $region8
  $region5: #{generator_forward.1} parent=0 // loop_body
    %s30 = ssub.s32 %s25, 1
    %s31 = ssub.s32 %s25, 2
    %s38 = sadd.s32 1, %s33
    %p39 = scmp.ge.s32.totalorder %s38, 1
    %s40 = scalar_select %p39, 0, %s38
    %s41 = sadd.s32 1, %s32
    %s42 = scalar_select %p39, %s41, %s32
    %p43 = scmp.ge.s32.totalorder %s42, 2
    %s44 = scalar_select %p43, 0, %s42
    %s45 = ssub.s32 %s32, %s44
    %s46 = ssub.s32 %s33, %s40
    %s47 = sor.u32 %s45, %s46
    %p48 = scmp.eq.s32.totalorder %s47, 0
    %s50 = sadd.s32 %s49, 1
    %s51 = scalar_select %p48, %s49, %s50
    %p54 = pneg %p48
    %p55 = scmp.eq.s32.totalorder %s25, 1
    %p56 = por %p54, %p55
    %p57 = scmp.ne.s32.totalorder %s49, %s52
    %p58 = scmp.eq.s32.totalorder %s25, 0
    %p59 = por %p57, %p58
    %p60 = scmp.ne.s32.totalorder %s49, %s52
    %p61 = scmp.eq.s32.totalorder %s30, 1
    %p62 = por %p60, %p61
    %p63 = scmp.ne.s32.totalorder %s52, %s53
    %p64 = scmp.eq.s32.totalorder %s30, 0
    %p65 = por %p63, %p64
    %p66 = scmp.ne.s32.totalorder %s52, %s53
    %p67 = scmp.eq.s32.totalorder %s31, 1
    %p68 = por %p66, %p67
    %p70 = scmp.ne.s32.totalorder %s53, %s69
    %p71 = scmp.eq.s32.totalorder %s31, 0
    %p72 = por %p70, %p71
    %s73 = ssub.s32 %s32, %s44
    %s74 = ssub.s32 %s33, %s40
    %s75 = sor.u32 %s73, %s74
    %p76 = scmp.eq.s32.totalorder %s75, 0
    %s78 = sadd.s32 %s77, 1
    %s79 = scalar_select %p76, %s77, %s78
    %p82 = pneg %p76
    %p83 = scmp.eq.s32.totalorder %s25, 1
    %p84 = por %p82, %p83
    %p85 = scmp.ne.s32.totalorder %s77, %s80
    %p86 = scmp.eq.s32.totalorder %s25, 0
    %p87 = por %p85, %p86
    %p88 = scmp.ne.s32.totalorder %s77, %s80
    %p89 = scmp.eq.s32.totalorder %s30, 1
    %p90 = por %p88, %p89
    %p91 = scmp.ne.s32.totalorder %s80, %s81
    %p92 = scmp.eq.s32.totalorder %s30, 0
    %p93 = por %p91, %p92
    %p94 = scmp.ne.s32.totalorder %s80, %s81
    %p95 = scmp.eq.s32.totalorder %s31, 1
    %p96 = por %p94, %p95
    %p98 = scmp.ne.s32.totalorder %s81, %s97
    %p99 = scmp.eq.s32.totalorder %s31, 0
    %p100 = por %p98, %p99
    %s101 = ssub.s32 %s32, %s44
    %s102 = ssub.s32 %s33, %s40
    %s103 = sor.u32 %s101, %s102
    %p104 = scmp.eq.s32.totalorder %s103, 0
    %s106 = sadd.s32 %s105, 1
    %s107 = scalar_select %p104, %s105, %s106
    %p110 = pneg %p104
    %p111 = scmp.eq.s32.totalorder %s25, 1
    %p112 = por %p110, %p111
    %p113 = scmp.ne.s32.totalorder %s105, %s108
    %p114 = scmp.eq.s32.totalorder %s25, 0
    %p115 = por %p113, %p114
    %p116 = scmp.ne.s32.totalorder %s105, %s108
    %p117 = scmp.eq.s32.totalorder %s30, 1
    %p118 = por %p116, %p117
    %p119 = scmp.ne.s32.totalorder %s108, %s109
    %p120 = scmp.eq.s32.totalorder %s30, 0
    %p121 = por %p119, %p120
    %p122 = scmp.ne.s32.totalorder %s108, %s109
    %p123 = scmp.eq.s32.totalorder %s31, 1
    %p124 = por %p122, %p123
    %p126 = scmp.ne.s32.totalorder %s109, %s125
    %p127 = scmp.eq.s32.totalorder %s31, 0
    %p128 = por %p126, %p127
    %s129 = ssub.s32 %s32, %s44
    %s130 = ssub.s32 %s33, %s40
    %s131 = sor.u32 %s129, %s130
    %p132 = scmp.eq.s32.totalorder %s131, 0
    %s134 = sadd.s32 %s133, 1
    %s135 = scalar_select %p132, %s133, %s134
    %p138 = pneg %p132
    %p139 = scmp.eq.s32.totalorder %s25, 1
    %p140 = por %p138, %p139
    %p141 = scmp.ne.s32.totalorder %s133, %s136
    %p142 = scmp.eq.s32.totalorder %s25, 0
    %p143 = por %p141, %p142
    %p144 = scmp.ne.s32.totalorder %s133, %s136
    %p145 = scmp.eq.s32.totalorder %s30, 1
    %p146 = por %p144, %p145
    %p147 = scmp.ne.s32.totalorder %s136, %s137
    %p148 = scmp.eq.s32.totalorder %s30, 0
    %p149 = por %p147, %p148
    %p150 = scmp.ne.s32.totalorder %s136, %s137
    %p151 = scmp.eq.s32.totalorder %s31, 1
    %p152 = por %p150, %p151
    %p154 = scmp.ne.s32.totalorder %s137, %s153
    %p155 = scmp.eq.s32.totalorder %s31, 0
    %p156 = por %p154, %p155
    %s157 = ssub.s32 %s32, %s44
    %s158 = ssub.s32 %s33, %s40
    %s159 = sor.u32 %s157, %s158
    %p160 = scmp.eq.s32.totalorder %s159, 0
    %s162 = sadd.s32 %s161, 1
    %s163 = scalar_select %p160, %s161, %s162
    %p166 = pneg %p160
    %p167 = scmp.eq.s32.totalorder %s25, 1
    %p168 = por %p166, %p167
    %p169 = scmp.ne.s32.totalorder %s161, %s164
    %p170 = scmp.eq.s32.totalorder %s25, 0
    %p171 = por %p169, %p170
    %p172 = scmp.ne.s32.totalorder %s161, %s164
    %p173 = scmp.eq.s32.totalorder %s30, 1
    %p174 = por %p172, %p173
    %p175 = scmp.ne.s32.totalorder %s164, %s165
    %p176 = scmp.eq.s32.totalorder %s30, 0
    %p177 = por %p175, %p176
    %p178 = scmp.ne.s32.totalorder %s164, %s165
    %p179 = scmp.eq.s32.totalorder %s31, 1
    %p180 = por %p178, %p179
    %p182 = scmp.ne.s32.totalorder %s165, %s181
    %p183 = scmp.eq.s32.totalorder %s31, 0
    %p184 = por %p182, %p183
    %s185 = ssub.s32 %s32, %s44
    %s186 = ssub.s32 %s33, %s40
    %s187 = sor.u32 %s185, %s186
    %p188 = scmp.eq.s32.totalorder %s187, 0
    %s190 = sadd.s32 %s189, 1
    %s191 = scalar_select %p188, %s189, %s190
    %p194 = pneg %p188
    %p195 = scmp.eq.s32.totalorder %s25, 1
    %p196 = por %p194, %p195
    %p197 = scmp.ne.s32.totalorder %s189, %s192
    %p198 = scmp.eq.s32.totalorder %s25, 0
    %p199 = por %p197, %p198
    %p200 = scmp.ne.s32.totalorder %s189, %s192
    %p201 = scmp.eq.s32.totalorder %s30, 1
    %p202 = por %p200, %p201
    %p203 = scmp.ne.s32.totalorder %s192, %s193
    %p204 = scmp.eq.s32.totalorder %s30, 0
    %p205 = por %p203, %p204
    %p206 = scmp.ne.s32.totalorder %s192, %s193
    %p207 = scmp.eq.s32.totalorder %s31, 1
    %p208 = por %p206, %p207
    %p210 = scmp.ne.s32.totalorder %s193, %s209
    %p211 = scmp.eq.s32.totalorder %s31, 0
    %p212 = por %p210, %p211
    %s214 = sadd.s32 %s213, 1
    %p217 = scmp.eq.s32.totalorder %s25, 1
    %p218 = scmp.ne.s32.totalorder %s213, %s215
    %p219 = scmp.eq.s32.totalorder %s25, 0
    %p220 = por %p218, %p219
    %p221 = scmp.ne.s32.totalorder %s213, %s215
    %p222 = scmp.eq.s32.totalorder %s30, 1
    %p223 = por %p221, %p222
    %p224 = scmp.ne.s32.totalorder %s215, %s216
    %p225 = scmp.eq.s32.totalorder %s30, 0
    %p226 = por %p224, %p225
    %p227 = scmp.ne.s32.totalorder %s215, %s216
    %p228 = scmp.eq.s32.totalorder %s31, 1
    %p229 = por %p227, %p228
    %p231 = scmp.ne.s32.totalorder %s216, %s230
    %p232 = scmp.eq.s32.totalorder %s31, 0
    %p233 = por %p231, %p232
    %s235 = sadd.s32 %s234, 1
    %p238 = scmp.eq.s32.totalorder %s25, 1
    %p239 = scmp.ne.s32.totalorder %s234, %s236
    %p240 = scmp.eq.s32.totalorder %s25, 0
    %p241 = por %p239, %p240
    %p242 = scmp.ne.s32.totalorder %s234, %s236
    %p243 = scmp.eq.s32.totalorder %s30, 1
    %p244 = por %p242, %p243
    %p245 = scmp.ne.s32.totalorder %s236, %s237
    %p246 = scmp.eq.s32.totalorder %s30, 0
    %p247 = por %p245, %p246
    %p248 = scmp.ne.s32.totalorder %s236, %s237
    %p249 = scmp.eq.s32.totalorder %s31, 1
    %p250 = por %p248, %p249
    %p252 = scmp.ne.s32.totalorder %s237, %s251
    %p253 = scmp.eq.s32.totalorder %s31, 0
    %p254 = por %p252, %p253
    %s256 = sadd.s32 %s255, 1
    %p259 = scmp.eq.s32.totalorder %s25, 1
    %p260 = scmp.ne.s32.totalorder %s255, %s257
    %p261 = scmp.eq.s32.totalorder %s25, 0
    %p262 = por %p260, %p261
    %p263 = scmp.ne.s32.totalorder %s255, %s257
    %p264 = scmp.eq.s32.totalorder %s30, 1
    %p265 = por %p263, %p264
    %p266 = scmp.ne.s32.totalorder %s257, %s258
    %p267 = scmp.eq.s32.totalorder %s30, 0
    %p268 = por %p266, %p267
    %p269 = scmp.ne.s32.totalorder %s257, %s258
    %p270 = scmp.eq.s32.totalorder %s31, 1
    %p271 = por %p269, %p270
    %p273 = scmp.ne.s32.totalorder %s258, %s272
    %p274 = scmp.eq.s32.totalorder %s31, 0
    %p275 = por %p273, %p274
    %s277 = sadd.s32 %s276, 1
    %p280 = scmp.eq.s32.totalorder %s25, 1
    %p281 = scmp.ne.s32.totalorder %s276, %s278
    %p282 = scmp.eq.s32.totalorder %s25, 0
    %p283 = por %p281, %p282
    %p284 = scmp.ne.s32.totalorder %s276, %s278
    %p285 = scmp.eq.s32.totalorder %s30, 1
    %p286 = por %p284, %p285
    %p287 = scmp.ne.s32.totalorder %s278, %s279
    %p288 = scmp.eq.s32.totalorder %s30, 0
    %p289 = por %p287, %p288
    %p290 = scmp.ne.s32.totalorder %s278, %s279
    %p291 = scmp.eq.s32.totalorder %s31, 1
    %p292 = por %p290, %p291
    %p294 = scmp.ne.s32.totalorder %s279, %s293
    %p295 = scmp.eq.s32.totalorder %s31, 0
    %p296 = por %p294, %p295
    %s298 = sadd.s32 %s297, 1
    %p301 = scmp.eq.s32.totalorder %s25, 1
    %p302 = scmp.ne.s32.totalorder %s297, %s299
    %p303 = scmp.eq.s32.totalorder %s25, 0
    %p304 = por %p302, %p303
    %p305 = scmp.ne.s32.totalorder %s297, %s299
    %p306 = scmp.eq.s32.totalorder %s30, 1
    %p307 = por %p305, %p306
    %p308 = scmp.ne.s32.totalorder %s299, %s300
    %p309 = scmp.eq.s32.totalorder %s30, 0
    %p310 = por %p308, %p309
    %p311 = scmp.ne.s32.totalorder %s299, %s300
    %p312 = scmp.eq.s32.totalorder %s31, 1
    %p313 = por %p311, %p312
    %p315 = scmp.ne.s32.totalorder %s300, %s314
    %p316 = scmp.eq.s32.totalorder %s31, 0
    %p317 = por %p315, %p316
    %s319 = sadd.s32 %s318, 1
    %p322 = scmp.eq.s32.totalorder %s25, 1
    %p323 = scmp.ne.s32.totalorder %s318, %s320
    %p324 = scmp.eq.s32.totalorder %s25, 0
    %p325 = por %p323, %p324
    %p326 = scmp.ne.s32.totalorder %s318, %s320
    %p327 = scmp.eq.s32.totalorder %s30, 1
    %p328 = por %p326, %p327
    %p329 = scmp.ne.s32.totalorder %s320, %s321
    %p330 = scmp.eq.s32.totalorder %s30, 0
    %p331 = por %p329, %p330
    %p332 = scmp.ne.s32.totalorder %s320, %s321
    %p333 = scmp.eq.s32.totalorder %s31, 1
    %p334 = por %p332, %p333
    %p336 = scmp.ne.s32.totalorder %s321, %s335
    %p337 = scmp.eq.s32.totalorder %s31, 0
    %p338 = por %p336, %p337
    %s340 = sadd.s32 %s339, 1
    %p343 = scmp.eq.s32.totalorder %s25, 1
    %p344 = scmp.ne.s32.totalorder %s339, %s341
    %p345 = scmp.eq.s32.totalorder %s25, 0
    %p346 = por %p344, %p345
    %p347 = scmp.ne.s32.totalorder %s339, %s341
    %p348 = scmp.eq.s32.totalorder %s30, 1
    %p349 = por %p347, %p348
    %p350 = scmp.ne.s32.totalorder %s341, %s342
    %p351 = scmp.eq.s32.totalorder %s30, 0
    %p352 = por %p350, %p351
    %p353 = scmp.ne.s32.totalorder %s341, %s342
    %p354 = scmp.eq.s32.totalorder %s31, 1
    %p355 = por %p353, %p354
    %p357 = scmp.ne.s32.totalorder %s342, %s356
    %p358 = scmp.eq.s32.totalorder %s31, 0
    %p359 = por %p357, %p358
    %s361 = sadd.s32 %s360, 1
    %p364 = scmp.eq.s32.totalorder %s25, 1
    %p365 = scmp.ne.s32.totalorder %s360, %s362
    %p366 = scmp.eq.s32.totalorder %s25, 0
    %p367 = por %p365, %p366
    %p368 = scmp.ne.s32.totalorder %s360, %s362
    %p369 = scmp.eq.s32.totalorder %s30, 1
    %p370 = por %p368, %p369
    %p371 = scmp.ne.s32.totalorder %s362, %s363
    %p372 = scmp.eq.s32.totalorder %s30, 0
    %p373 = por %p371, %p372
    %p374 = scmp.ne.s32.totalorder %s362, %s363
    %p375 = scmp.eq.s32.totalorder %s31, 1
    %p376 = por %p374, %p375
    %p378 = scmp.ne.s32.totalorder %s363, %s377
    %p379 = scmp.eq.s32.totalorder %s31, 0
    %p380 = por %p378, %p379
    %s382 = sadd.s32 %s381, 1
    %p385 = scmp.eq.s32.totalorder %s25, 1
    %p386 = scmp.ne.s32.totalorder %s381, %s383
    %p387 = scmp.eq.s32.totalorder %s25, 0
    %p388 = por %p386, %p387
    %p389 = scmp.ne.s32.totalorder %s381, %s383
    %p390 = scmp.eq.s32.totalorder %s30, 1
    %p391 = por %p389, %p390
    %p392 = scmp.ne.s32.totalorder %s383, %s384
    %p393 = scmp.eq.s32.totalorder %s30, 0
    %p394 = por %p392, %p393
    %p395 = scmp.ne.s32.totalorder %s383, %s384
    %p396 = scmp.eq.s32.totalorder %s31, 1
    %p397 = por %p395, %p396
    %p399 = scmp.ne.s32.totalorder %s384, %s398
    %p400 = scmp.eq.s32.totalorder %s31, 0
    %p401 = por %p399, %p400
    %s403 = sadd.s32 %s402, 1
    %p406 = scmp.eq.s32.totalorder %s25, 1
    %p407 = scmp.ne.s32.totalorder %s402, %s404
    %p408 = scmp.eq.s32.totalorder %s25, 0
    %p409 = por %p407, %p408
    %p410 = scmp.ne.s32.totalorder %s402, %s404
    %p411 = scmp.eq.s32.totalorder %s30, 1
    %p412 = por %p410, %p411
    %p413 = scmp.ne.s32.totalorder %s404, %s405
    %p414 = scmp.eq.s32.totalorder %s30, 0
    %p415 = por %p413, %p414
    %p416 = scmp.ne.s32.totalorder %s404, %s405
    %p417 = scmp.eq.s32.totalorder %s31, 1
    %p418 = por %p416, %p417
    %p420 = scmp.ne.s32.totalorder %s405, %s419
    %p421 = scmp.eq.s32.totalorder %s31, 0
    %p422 = por %p420, %p421
    %s424 = sadd.s32 %s423, 1
    %p427 = scmp.eq.s32.totalorder %s25, 1
    %p428 = scmp.ne.s32.totalorder %s423, %s425
    %p429 = scmp.eq.s32.totalorder %s25, 0
    %p430 = por %p428, %p429
    %p431 = scmp.ne.s32.totalorder %s423, %s425
    %p432 = scmp.eq.s32.totalorder %s30, 1
    %p433 = por %p431, %p432
    %p434 = scmp.ne.s32.totalorder %s425, %s426
    %p435 = scmp.eq.s32.totalorder %s30, 0
    %p436 = por %p434, %p435
    %p437 = scmp.ne.s32.totalorder %s425, %s426
    %p438 = scmp.eq.s32.totalorder %s31, 1
    %p439 = por %p437, %p438
    %p441 = scmp.ne.s32.totalorder %s426, %s440
    %p442 = scmp.eq.s32.totalorder %s31, 0
    %p443 = por %p441, %p442
    %s444 = ssub.s32 %s32, %s44
    %s445 = ssub.s32 %s33, %s40
    %s446 = sor.u32 %s444, %s445
    %p447 = scmp.eq.s32.totalorder %s446, 0
    %s449 = sadd.s32 %s448, 1
    %s450 = scalar_select %p447, %s448, %s449
    %p453 = pneg %p447
    %p454 = scmp.eq.s32.totalorder %s25, 1
    %p455 = por %p453, %p454
    %p456 = scmp.ne.s32.totalorder %s448, %s451
    %p457 = scmp.eq.s32.totalorder %s25, 0
    %p458 = por %p456, %p457
    %p459 = scmp.ne.s32.totalorder %s448, %s451
    %p460 = scmp.eq.s32.totalorder %s30, 1
    %p461 = por %p459, %p460
    %p462 = scmp.ne.s32.totalorder %s451, %s452
    %p463 = scmp.eq.s32.totalorder %s30, 0
    %p464 = por %p462, %p463
    %p465 = scmp.ne.s32.totalorder %s451, %s452
    %p466 = scmp.eq.s32.totalorder %s31, 1
    %p467 = por %p465, %p466
    %p469 = scmp.ne.s32.totalorder %s452, %s468
    %p470 = scmp.eq.s32.totalorder %s31, 0
    %p471 = por %p469, %p470
    %p472 = scmp.le.s32.totalorder 1, %s25
    %p473 = scmp.lt.s32.totalorder %s25, 3
    %p474 = pnand %p472, %p473
    %p475 = pneg %p474
    // Predicated region
    $region9: #{generator_forward.1} parent=5 // pred_check
      _
    $region10: #{generator_forward.1} parent=5 // pred_check_branch
      %477 = sbr.rel (%p474) target = $region12
    $region11: #{generator_forward.1} parent=5 // pred_region
      %s478 = ssub.s32 %s25, 1
      // Predicated region
      $region13: #{generator_forward.1} parent=11 // pred_check
        %p479 = pneg %p226
      $region14: #{generator_forward.1} parent=11 // pred_check_branch
        %481 = sbr.rel (%p479) target = $region16
      $region15: #{generator_forward.1} parent=11 // pred_region
        _
      $region16: #{generator_forward.1} parent=11 // pred_fallthru
        _
      // Predicated region
      $region17: #{generator_forward.1} parent=11 // pred_check
        %p482 = pneg %p247
      $region18: #{generator_forward.1} parent=11 // pred_check_branch
        %484 = sbr.rel (%p482) target = $region20
      $region19: #{generator_forward.1} parent=11 // pred_region
        _
      $region20: #{generator_forward.1} parent=11 // pred_fallthru
        _
      // Predicated region
      $region21: #{generator_forward.1} parent=11 // pred_check
        %p485 = pneg %p268
      $region22: #{generator_forward.1} parent=11 // pred_check_branch
        %487 = sbr.rel (%p485) target = $region24
      $region23: #{generator_forward.1} parent=11 // pred_region
        _
      $region24: #{generator_forward.1} parent=11 // pred_fallthru
        _
      // Predicated region
      $region25: #{generator_forward.1} parent=11 // pred_check
        %p488 = pneg %p289
      $region26: #{generator_forward.1} parent=11 // pred_check_branch
        %490 = sbr.rel (%p488) target = $region28
      $region27: #{generator_forward.1} parent=11 // pred_region
        _
      $region28: #{generator_forward.1} parent=11 // pred_fallthru
        _
      // Predicated region
      $region29: #{generator_forward.1} parent=11 // pred_check
        %p491 = pneg %p310
      $region30: #{generator_forward.1} parent=11 // pred_check_branch
        %493 = sbr.rel (%p491) target = $region32
      $region31: #{generator_forward.1} parent=11 // pred_region
        _
      $region32: #{generator_forward.1} parent=11 // pred_fallthru
        _
      // Predicated region
      $region33: #{generator_forward.1} parent=11 // pred_check
        %p494 = pneg %p331
      $region34: #{generator_forward.1} parent=11 // pred_check_branch
        %496 = sbr.rel (%p494) target = $region36
      $region35: #{generator_forward.1} parent=11 // pred_region
        _
      $region36: #{generator_forward.1} parent=11 // pred_fallthru
        _
      // Predicated region
      $region37: #{generator_forward.1} parent=11 // pred_check
        %p497 = pneg %p352
      $region38: #{generator_forward.1} parent=11 // pred_check_branch
        %499 = sbr.rel (%p497) target = $region40
      $region39: #{generator_forward.1} parent=11 // pred_region
        _
      $region40: #{generator_forward.1} parent=11 // pred_fallthru
        _
      // Predicated region
      $region41: #{generator_forward.1} parent=11 // pred_check
        %p500 = pneg %p373
      $region42: #{generator_forward.1} parent=11 // pred_check_branch
        %502 = sbr.rel (%p500) target = $region44
      $region43: #{generator_forward.1} parent=11 // pred_region
        _
      $region44: #{generator_forward.1} parent=11 // pred_fallthru
        _
      // Predicated region
      $region45: #{generator_forward.1} parent=11 // pred_check
        %p503 = pneg %p394
      $region46: #{generator_forward.1} parent=11 // pred_check_branch
        %505 = sbr.rel (%p503) target = $region48
      $region47: #{generator_forward.1} parent=11 // pred_region
        _
      $region48: #{generator_forward.1} parent=11 // pred_fallthru
        _
      // Predicated region
      $region49: #{generator_forward.1} parent=11 // pred_check
        %p506 = pneg %p415
      $region50: #{generator_forward.1} parent=11 // pred_check_branch
        %508 = sbr.rel (%p506) target = $region52
      $region51: #{generator_forward.1} parent=11 // pred_region
        _
      $region52: #{generator_forward.1} parent=11 // pred_fallthru
        _
      // Predicated region
      $region53: #{generator_forward.1} parent=11 // pred_check
        %p509 = pneg %p436
      $region54: #{generator_forward.1} parent=11 // pred_check_branch
        %511 = sbr.rel (%p509) target = $region56
      $region55: #{generator_forward.1} parent=11 // pred_region
        _
      $region56: #{generator_forward.1} parent=11 // pred_fallthru
        _
    $region12: #{generator_forward.1} parent=5 // pred_fallthru
      _
    %p512 = scmp.lt.s32.totalorder %s25, 2
    // Predicated region
    $region57: #{generator_forward.1} parent=5 // pred_check
      %p513 = pneg %p512
    $region58: #{generator_forward.1} parent=5 // pred_check_branch
      %515 = sbr.rel (%p513) target = $region60
    $region59: #{generator_forward.1} parent=5 // pred_region
      // Predicated region
      $region61: #{generator_forward.1} parent=59 // pred_check
        %p516 = pneg %p59
      $region62: #{generator_forward.1} parent=59 // pred_check_branch
        %518 = sbr.rel (%p516) target = $region64
      $region63: #{generator_forward.1} parent=59 // pred_region
        %p519 = scmp.lt.s32.totalorder %s32, 1
        %s520 = scalar_select %p519, %s32, 1
        %p521 = scmp.lt.s32.totalorder %s33, 0
        %s522 = scalar_select %p521, %s33, 0
        %s523 = smul.addr %s522, 32
        %s524 = smul.addr %s520, 32
        %s525 = sadd.s32 %s523, %s524
        %s526 = scalar_lea.vmem %s0, %s525
      $region64: #{generator_forward.1} parent=59 // pred_fallthru
        _
      // Predicated region
      $region65: #{generator_forward.1} parent=59 // pred_check
        %p527 = pneg %p87
      $region66: #{generator_forward.1} parent=59 // pred_check_branch
        %529 = sbr.rel (%p527) target = $region68
      $region67: #{generator_forward.1} parent=59 // pred_region
        %p530 = scmp.lt.s32.totalorder %s32, 1
        %s531 = scalar_select %p530, %s32, 1
        %p532 = scmp.lt.s32.totalorder %s33, 0
        %s533 = scalar_select %p532, %s33, 0
        %s534 = smul.addr %s533, 32
        %s535 = smul.addr %s531, 32
        %s536 = sadd.s32 %s534, %s535
        %s537 = scalar_lea.vmem %s1, %s536
      $region68: #{generator_forward.1} parent=59 // pred_fallthru
        _
      // Predicated region
      $region69: #{generator_forward.1} parent=59 // pred_check
        %p538 = pneg %p115
      $region70: #{generator_forward.1} parent=59 // pred_check_branch
        %540 = sbr.rel (%p538) target = $region72
      $region71: #{generator_forward.1} parent=59 // pred_region
        %p541 = scmp.lt.s32.totalorder %s32, 1
        %s542 = scalar_select %p541, %s32, 1
        %p543 = scmp.lt.s32.totalorder %s33, 0
        %s544 = scalar_select %p543, %s33, 0
        %s545 = smul.addr %s544, 32
        %s546 = smul.addr %s542, 32
        %s547 = sadd.s32 %s545, %s546
        %s548 = scalar_lea.vmem %s2, %s547
      $region72: #{generator_forward.1} parent=59 // pred_fallthru
        _
      // Predicated region
      $region73: #{generator_forward.1} parent=59 // pred_check
        %p549 = pneg %p143
      $region74: #{generator_forward.1} parent=59 // pred_check_branch
        %551 = sbr.rel (%p549) target = $region76
      $region75: #{generator_forward.1} parent=59 // pred_region
        %p552 = scmp.lt.s32.totalorder %s32, 1
        %s553 = scalar_select %p552, %s32, 1
        %p554 = scmp.lt.s32.totalorder %s33, 0
        %s555 = scalar_select %p554, %s33, 0
        %s556 = smul.addr %s555, 32
        %s557 = smul.addr %s553, 32
        %s558 = sadd.s32 %s556, %s557
        %s559 = scalar_lea.vmem %s3, %s558
      $region76: #{generator_forward.1} parent=59 // pred_fallthru
        _
      // Predicated region
      $region77: #{generator_forward.1} parent=59 // pred_check
        %p560 = pneg %p171
      $region78: #{generator_forward.1} parent=59 // pred_check_branch
        %562 = sbr.rel (%p560) target = $region80
      $region79: #{generator_forward.1} parent=59 // pred_region
        %p563 = scmp.lt.s32.totalorder %s32, 1
        %s564 = scalar_select %p563, %s32, 1
        %p565 = scmp.lt.s32.totalorder %s33, 0
        %s566 = scalar_select %p565, %s33, 0
        %s567 = sadd.s32 %s566, %s564
        %s568 = smul.addr %s567, 2
        %s569 = scalar_lea.vmem %s4, %s568
      $region80: #{generator_forward.1} parent=59 // pred_fallthru
        _
      // Predicated region
      $region81: #{generator_forward.1} parent=59 // pred_check
        %p570 = pneg %p199
      $region82: #{generator_forward.1} parent=59 // pred_check_branch
        %572 = sbr.rel (%p570) target = $region84
      $region83: #{generator_forward.1} parent=59 // pred_region
        %p573 = scmp.lt.s32.totalorder %s32, 1
        %s574 = scalar_select %p573, %s32, 1
        %p575 = scmp.lt.s32.totalorder %s33, 0
        %s576 = scalar_select %p575, %s33, 0
        %s577 = sadd.s32 %s576, %s574
        %s578 = smul.addr %s577, 2
        %s579 = scalar_lea.vmem %s5, %s578
      $region84: #{generator_forward.1} parent=59 // pred_fallthru
        _
    $region60: #{generator_forward.1} parent=5 // pred_fallthru
      _
    %p580 = scmp.le.s32.totalorder 1, %s25
    %p581 = scmp.lt.s32.totalorder %s25, 3
    %p582 = pnand %p580, %p581
    %p583 = pneg %p582
    // Predicated region
    $region85: #{generator_forward.1} parent=5 // pred_check
      _
    $region86: #{generator_forward.1} parent=5 // pred_check_branch
      %585 = sbr.rel (%p582) target = $region88
    $region87: #{generator_forward.1} parent=5 // pred_region
      %s586 = ssub.s32 %s25, 1
      %p587 = scmp.lt.s32.totalorder %s34, 1
      %s588 = scalar_select %p587, %s34, 1
      %p589 = scmp.lt.s32.totalorder %s35, 0
      %s590 = scalar_select %p589, %s35, 0
      %s591 = smul.addr %s590, 32
      %s592 = smul.addr %s588, 32
      %s593 = sadd.s32 %s591, %s592
      %s594 = scalar_lea.vmem %s0, %s593
      %p595 = pneg %p65
      %p596 = pneg %p62
      %p597 = scmp.lt.s32.totalorder %s34, 1
      %s598 = scalar_select %p597, %s34, 1
      %p599 = scmp.lt.s32.totalorder %s35, 0
      %s600 = scalar_select %p599, %s35, 0
      %s601 = smul.addr %s600, 32
      %s602 = smul.addr %s598, 32
      %s603 = sadd.s32 %s601, %s602
      %s604 = scalar_lea.vmem %s1, %s603
      %p605 = pneg %p93
      %p606 = pneg %p90
      %p607 = scmp.lt.s32.totalorder %s34, 1
      %s608 = scalar_select %p607, %s34, 1
      %p609 = scmp.lt.s32.totalorder %s35, 0
      %s610 = scalar_select %p609, %s35, 0
      %s611 = smul.addr %s610, 32
      %s612 = smul.addr %s608, 32
      %s613 = sadd.s32 %s611, %s612
      %s614 = scalar_lea.vmem %s2, %s613
      %p615 = pneg %p121
      %p616 = pneg %p118
      %p617 = scmp.lt.s32.totalorder %s34, 1
      %s618 = scalar_select %p617, %s34, 1
      %p619 = scmp.lt.s32.totalorder %s35, 0
      %s620 = scalar_select %p619, %s35, 0
      %s621 = smul.addr %s620, 32
      %s622 = smul.addr %s618, 32
      %s623 = sadd.s32 %s621, %s622
      %s624 = scalar_lea.vmem %s3, %s623
      %p625 = pneg %p149
      %p626 = pneg %p146
      %p627 = scmp.lt.s32.totalorder %s34, 1
      %s628 = scalar_select %p627, %s34, 1
      %p629 = scmp.lt.s32.totalorder %s35, 0
      %s630 = scalar_select %p629, %s35, 0
      %s631 = sadd.s32 %s630, %s628
      %s632 = smul.addr %s631, 2
      %s633 = scalar_lea.vmem %s4, %s632
      %p634 = pneg %p177
      %p635 = pneg %p174
      %p636 = scmp.lt.s32.totalorder %s34, 1
      %s637 = scalar_select %p636, %s34, 1
      %p638 = scmp.lt.s32.totalorder %s35, 0
      %s639 = scalar_select %p638, %s35, 0
      %s640 = sadd.s32 %s639, %s637
      %s641 = smul.addr %s640, 2
      %s642 = scalar_lea.vmem %s5, %s641
      %p643 = pneg %p205
      %p644 = pneg %p202
      %p645 = pneg %p226
      %p646 = pneg %p223
      %p647 = pneg %p247
      %p648 = pneg %p244
      %p649 = pneg %p268
      %p650 = pneg %p265
      %p651 = pneg %p289
      %p652 = pneg %p286
      %p653 = pneg %p310
      %p654 = pneg %p307
      %p655 = pneg %p331
      %p656 = pneg %p328
      %p657 = pneg %p352
      %p658 = pneg %p349
      %p659 = pneg %p373
      %p660 = pneg %p370
      %p661 = pneg %p394
      %p662 = pneg %p391
      %p663 = pneg %p415
      %p664 = pneg %p412
      %p665 = pneg %p436
      %p666 = pneg %p433
      %p667 = pneg %p464
      %p668 = pneg %p461
      %p669 = scmp.lt.s32.totalorder %s34, 1
      %s670 = scalar_select %p669, %s34, 1
      %p671 = scmp.lt.s32.totalorder %s35, 0
      %s672 = scalar_select %p671, %s35, 0
      %s673 = smul.addr %s672, 32
      %s674 = smul.addr %s670, 32
      %s675 = sadd.s32 %s673, %s674
      %s676 = scalar_lea.vmem %s17, %s675
      %p677 = scmp.lt.s32.totalorder %s34, 1
      %s678 = scalar_select %p677, %s34, 1
      %p679 = scmp.lt.s32.totalorder %s35, 0
      %s680 = scalar_select %p679, %s35, 0
      %s681 = smul.addr %s680, 32
      %s682 = smul.addr %s678, 32
      %s683 = sadd.s32 %s681, %s682
      %s684 = scalar_lea.vmem %s0, %s683
      %p685 = scmp.lt.s32.totalorder %s34, 1
      %s686 = scalar_select %p685, %s34, 1
      %p687 = scmp.lt.s32.totalorder %s35, 0
      %s688 = scalar_select %p687, %s35, 0
      %s689 = smul.addr %s688, 32
      %s690 = smul.addr %s686, 32
      %s691 = sadd.s32 %s689, %s690
      %s692 = scalar_lea.vmem %s1, %s691
      %p693 = scmp.lt.s32.totalorder %s34, 1
      %s694 = scalar_select %p693, %s34, 1
      %p695 = scmp.lt.s32.totalorder %s35, 0
      %s696 = scalar_select %p695, %s35, 0
      %s697 = smul.addr %s696, 32
      %s698 = smul.addr %s694, 32
      %s699 = sadd.s32 %s697, %s698
      %s700 = scalar_lea.vmem %s2, %s699
      %p701 = scmp.lt.s32.totalorder %s34, 1
      %s702 = scalar_select %p701, %s34, 1
      %p703 = scmp.lt.s32.totalorder %s35, 0
      %s704 = scalar_select %p703, %s35, 0
      %s705 = smul.addr %s704, 32
      %s706 = smul.addr %s702, 32
      %s707 = sadd.s32 %s705, %s706
      %s708 = scalar_lea.vmem %s3, %s707
      %p709 = scmp.lt.s32.totalorder %s34, 1
      %s710 = scalar_select %p709, %s34, 1
      %p711 = scmp.lt.s32.totalorder %s35, 0
      %s712 = scalar_select %p711, %s35, 0
      %s713 = sadd.s32 %s712, %s710
      %s714 = smul.addr %s713, 2
      %s715 = scalar_lea.vmem %s4, %s714
      %p716 = scmp.lt.s32.totalorder %s34, 1
      %s717 = scalar_select %p716, %s34, 1
      %p718 = scmp.lt.s32.totalorder %s35, 0
      %s719 = scalar_select %p718, %s35, 0
      %s720 = sadd.s32 %s719, %s717
      %s721 = smul.addr %s720, 2
      %s722 = scalar_lea.vmem %s5, %s721
      %p723 = scmp.lt.s32.totalorder %s34, 1
      %s724 = scalar_select %p723, %s34, 1
      %p725 = scmp.lt.s32.totalorder %s35, 0
      %s726 = scalar_select %p725, %s35, 0
      %s727 = smul.addr %s726, 32
      %s728 = smul.addr %s724, 32
      %s729 = sadd.s32 %s727, %s728
      %s730 = scalar_lea.vmem %s17, %s729
      %v732 = vld [vmem:[%s684] sm:$0xff]
      %v733 = vld [vmem:[%s684 + $0x8] sm:$0xff]
      %v734 = vld [vmem:[%s684 + $0x10] sm:$0xff]
      %v735 = vld [vmem:[%s684 + $0x18] sm:$0xff]
      %v736 = vld [vmem:[%s692] sm:$0xff]
      %v737 = vld [vmem:[%s692 + $0x8] sm:$0xff]
      %v738 = vld [vmem:[%s692 + $0x10] sm:$0xff]
      %v739 = vld [vmem:[%s692 + $0x18] sm:$0xff]
      %v740 = vld [vmem:[%s10] sm:$0x1]
      %742 = vset.pattern.permute.xlu0 0
      %743 = vperm.xlu0 %742, %v740
      %v744 = vpop.permute.xlu0 %743
      %v746 = vlaneseq
      %v747 = vshrl.u32 %v746, 7
      %v748 = vsub.s32 0, %v747
      %v749 = vrot.slane %v744, %v748
      %v750 = vmul.f32 %v749, %v732
      %v751 = vmul.f32 %v749, %v733
      %v752 = vmul.f32 %v749, %v734
      %v753 = vmul.f32 %v749, %v735
      %v754 = vmul.f32 %v750, %v732
      %v755 = vmul.f32 %v751, %v733
      %v756 = vmul.f32 %v752, %v734
      %v757 = vmul.f32 %v753, %v735
      %758 = vset.pattern.permute.xlu0 1
      %759 = vperm.xlu0 %758, %v740
      %v760 = vpop.permute.xlu0 %759
      %v762 = vlaneseq
      %v763 = vshrl.u32 %v762, 7
      %v764 = vsub.s32 0, %v763
      %v765 = vrot.slane %v760, %v764
      %v766 = vmul.f32 %v765, %v736
      %v767 = vmul.f32 %v765, %v737
      %v768 = vmul.f32 %v765, %v738
      %v769 = vmul.f32 %v765, %v739
      %v770 = vmul.f32 %v766, %v736
      %v771 = vmul.f32 %v767, %v737
      %v772 = vmul.f32 %v768, %v738
      %v773 = vmul.f32 %v769, %v739
      %v774 = vadd.f32 %v754, %v770
      %v775 = vadd.f32 %v755, %v771
      %v776 = vadd.f32 %v756, %v772
      %v777 = vadd.f32 %v757, %v773
      %v778 = vmul.f32 %v732, %v736
      %v779 = vmul.f32 %v733, %v737
      %v780 = vmul.f32 %v734, %v738
      %v781 = vmul.f32 %v735, %v739
      %782 = vset.pattern.permute.xlu0 2
      %783 = vperm.xlu0 %782, %v740
      %v784 = vpop.permute.xlu0 %783
      %v786 = vlaneseq
      %v787 = vshrl.u32 %v786, 7
      %v788 = vsub.s32 0, %v787
      %v789 = vrot.slane %v784, %v788
      %v790 = vmul.f32 %v789, %v778
      %v791 = vmul.f32 %v789, %v779
      %v792 = vmul.f32 %v789, %v780
      %v793 = vmul.f32 %v789, %v781
      %v794 = vadd.f32 %v774, %v790
      %v795 = vadd.f32 %v775, %v791
      %v796 = vadd.f32 %v776, %v792
      %v797 = vadd.f32 %v777, %v793
      %798 = vset.pattern.permute.xlu0 3
      %799 = vperm.xlu0 %798, %v740
      %v800 = vpop.permute.xlu0 %799
      %v802 = vlaneseq
      %v803 = vshrl.u32 %v802, 7
      %v804 = vsub.s32 0, %v803
      %v805 = vrot.slane %v800, %v804
      %v806 = vmul.f32 %v805, %v732
      %v807 = vmul.f32 %v805, %v733
      %v808 = vmul.f32 %v805, %v734
      %v809 = vmul.f32 %v805, %v735
      %v810 = vadd.f32 %v794, %v806
      %v811 = vadd.f32 %v795, %v807
      %v812 = vadd.f32 %v796, %v808
      %v813 = vadd.f32 %v797, %v809
      %814 = vset.pattern.permute.xlu0 4
      %815 = vperm.xlu0 %814, %v740
      %v816 = vpop.permute.xlu0 %815
      %v818 = vlaneseq
      %v819 = vshrl.u32 %v818, 7
      %v820 = vsub.s32 0, %v819
      %v821 = vrot.slane %v816, %v820
      %v822 = vmul.f32 %v821, %v736
      %v823 = vmul.f32 %v821, %v737
      %v824 = vmul.f32 %v821, %v738
      %v825 = vmul.f32 %v821, %v739
      %v826 = vadd.f32 %v810, %v822
      %v827 = vadd.f32 %v811, %v823
      %v828 = vadd.f32 %v812, %v824
      %v829 = vadd.f32 %v813, %v825
      %830 = vset.pattern.permute.xlu0 5
      %831 = vperm.xlu0 %830, %v740
      %v832 = vpop.permute.xlu0 %831
      %v834 = vlaneseq
      %v835 = vshrl.u32 %v834, 7
      %v836 = vsub.s32 0, %v835
      %v837 = vrot.slane %v832, %v836
      %v838 = vadd.f32 %v826, %v837
      %v839 = vadd.f32 %v827, %v837
      %v840 = vadd.f32 %v828, %v837
      %v841 = vadd.f32 %v829, %v837
      %v842 = vadd.f32 %v838, 1e-05
      %v843 = vadd.f32 %v839, 1e-05
      %v844 = vadd.f32 %v840, 1e-05
      %v845 = vadd.f32 %v841, 1e-05
      %v846 = vrsqrt.pop %v842
      %v847 = vrsqrt.pop %v843
      %v848 = vrsqrt.pop %v844
      %v849 = vrsqrt.pop %v845
      %v850 = vld [vmem:[%s6] sm:$0xff]
      %v851 = vld [vmem:[%s6 + $0x8] sm:$0xff]
      %v852 = vld [vmem:[%s6 + $0x10] sm:$0xff]
      %v853 = vld [vmem:[%s6 + $0x18] sm:$0xff]
      %v854 = vld [vmem:[%s6 + $0x20] sm:$0xff]
      %v855 = vld [vmem:[%s6 + $0x28] sm:$0xff]
      %v856 = vld [vmem:[%s6 + $0x30] sm:$0xff]
      %v857 = vld [vmem:[%s6 + $0x38] sm:$0xff]
      %859 = vset.pattern.permute.xlu0 0
      %860 = vperm.xlu0 %859, %v850
      %v861 = vpop.permute.xlu0 %860
      %864 = vset.pattern.permute.xlu0 0
      %865 = vperm.xlu0 %864, %v851
      %v866 = vpop.permute.xlu0 %865
      %869 = vset.pattern.permute.xlu0 0
      %870 = vperm.xlu0 %869, %v852
      %v871 = vpop.permute.xlu0 %870
      %874 = vset.pattern.permute.xlu0 0
      %875 = vperm.xlu0 %874, %v853
      %v876 = vpop.permute.xlu0 %875
      %879 = vset.pattern.permute.xlu0 0
      %880 = vperm.xlu0 %879, %v854
      %v881 = vpop.permute.xlu0 %880
      %884 = vset.pattern.permute.xlu0 0
      %885 = vperm.xlu0 %884, %v855
      %v886 = vpop.permute.xlu0 %885
      %889 = vset.pattern.permute.xlu0 0
      %890 = vperm.xlu0 %889, %v856
      %v891 = vpop.permute.xlu0 %890
      %894 = vset.pattern.permute.xlu0 0
      %895 = vperm.xlu0 %894, %v857
      %v896 = vpop.permute.xlu0 %895
      %v902 = vlaneseq
      %v903 = vshrl.u32 %v902, 7
      %v904 = vsub.s32 0, %v903
      %v905 = vrot.slane %v732, %v904
      %v906 = vlaneseq
      %v907 = vshrl.u32 %v906, 7
      %v908 = vsub.s32 1, %v907
      %v909 = vrot.slane %v732, %v908
      %v910 = vlaneseq
      %v911 = vshrl.u32 %v910, 7
      %v912 = vsub.s32 2, %v911
      %v913 = vrot.slane %v732, %v912
      %v914 = vlaneseq
      %v915 = vshrl.u32 %v914, 7
      %v916 = vsub.s32 3, %v915
      %v917 = vrot.slane %v732, %v916
      %v918 = vlaneseq
      %v919 = vshrl.u32 %v918, 7
      %v920 = vsub.s32 4, %v919
      %v921 = vrot.slane %v732, %v920
      %v922 = vlaneseq
      %v923 = vshrl.u32 %v922, 7
      %v924 = vsub.s32 5, %v923
      %v925 = vrot.slane %v732, %v924
      %v926 = vlaneseq
      %v927 = vshrl.u32 %v926, 7
      %v928 = vsub.s32 6, %v927
      %v929 = vrot.slane %v732, %v928
      %v930 = vlaneseq
      %v931 = vshrl.u32 %v930, 7
      %v932 = vsub.s32 7, %v931
      %v933 = vrot.slane %v732, %v932
      %v934 = vlaneseq
      %v935 = vshrl.u32 %v934, 7
      %v936 = vsub.s32 0, %v935
      %v937 = vrot.slane %v733, %v936
      %v938 = vlaneseq
      %v939 = vshrl.u32 %v938, 7
      %v940 = vsub.s32 1, %v939
      %v941 = vrot.slane %v733, %v940
      %v942 = vlaneseq
      %v943 = vshrl.u32 %v942, 7
      %v944 = vsub.s32 2, %v943
      %v945 = vrot.slane %v733, %v944
      %v946 = vlaneseq
      %v947 = vshrl.u32 %v946, 7
      %v948 = vsub.s32 3, %v947
      %v949 = vrot.slane %v733, %v948
      %v950 = vlaneseq
      %v951 = vshrl.u32 %v950, 7
      %v952 = vsub.s32 4, %v951
      %v953 = vrot.slane %v733, %v952
      %v954 = vlaneseq
      %v955 = vshrl.u32 %v954, 7
      %v956 = vsub.s32 5, %v955
      %v957 = vrot.slane %v733, %v956
      %v958 = vlaneseq
      %v959 = vshrl.u32 %v958, 7
      %v960 = vsub.s32 6, %v959
      %v961 = vrot.slane %v733, %v960
      %v962 = vlaneseq
      %v963 = vshrl.u32 %v962, 7
      %v964 = vsub.s32 7, %v963
      %v965 = vrot.slane %v733, %v964
      %v966 = vlaneseq
      %v967 = vshrl.u32 %v966, 7
      %v968 = vsub.s32 0, %v967
      %v969 = vrot.slane %v734, %v968
      %v970 = vlaneseq
      %v971 = vshrl.u32 %v970, 7
      %v972 = vsub.s32 1, %v971
      %v973 = vrot.slane %v734, %v972
      %v974 = vlaneseq
      %v975 = vshrl.u32 %v974, 7
      %v976 = vsub.s32 2, %v975
      %v977 = vrot.slane %v734, %v976
      %v978 = vlaneseq
      %v979 = vshrl.u32 %v978, 7
      %v980 = vsub.s32 3, %v979
      %v981 = vrot.slane %v734, %v980
      %v982 = vlaneseq
      %v983 = vshrl.u32 %v982, 7
      %v984 = vsub.s32 4, %v983
      %v985 = vrot.slane %v734, %v984
      %v986 = vlaneseq
      %v987 = vshrl.u32 %v986, 7
      %v988 = vsub.s32 5, %v987
      %v989 = vrot.slane %v734, %v988
      %v990 = vlaneseq
      %v991 = vshrl.u32 %v990, 7
      %v992 = vsub.s32 6, %v991
      %v993 = vrot.slane %v734, %v992
      %v994 = vlaneseq
      %v995 = vshrl.u32 %v994, 7
      %v996 = vsub.s32 7, %v995
      %v997 = vrot.slane %v734, %v996
      %v998 = vlaneseq
      %v999 = vshrl.u32 %v998, 7
      %v1000 = vsub.s32 0, %v999
      %v1001 = vrot.slane %v735, %v1000
      %v1002 = vlaneseq
      %v1003 = vshrl.u32 %v1002, 7
      %v1004 = vsub.s32 1, %v1003
      %v1005 = vrot.slane %v735, %v1004
      %v1006 = vlaneseq
      %v1007 = vshrl.u32 %v1006, 7
      %v1008 = vsub.s32 2, %v1007
      %v1009 = vrot.slane %v735, %v1008
      %v1010 = vlaneseq
      %v1011 = vshrl.u32 %v1010, 7
      %v1012 = vsub.s32 3, %v1011
      %v1013 = vrot.slane %v735, %v1012
      %v1014 = vlaneseq
      %v1015 = vshrl.u32 %v1014, 7
      %v1016 = vsub.s32 4, %v1015
      %v1017 = vrot.slane %v735, %v1016
      %v1018 = vlaneseq
      %v1019 = vshrl.u32 %v1018, 7
      %v1020 = vsub.s32 5, %v1019
      %v1021 = vrot.slane %v735, %v1020
      %v1022 = vlaneseq
      %v1023 = vshrl.u32 %v1022, 7
      %v1024 = vsub.s32 6, %v1023
      %v1025 = vrot.slane %v735, %v1024
      %v1026 = vlaneseq
      %v1027 = vshrl.u32 %v1026, 7
      %v1028 = vsub.s32 7, %v1027
      %v1029 = vrot.slane %v735, %v1028
      %v1062 = vmul.f32 %v861, %v905
      %v1063 = vmul.f32 %v861, %v909
      %v1064 = vmul.f32 %v861, %v913
      %v1065 = vmul.f32 %v861, %v917
      %v1066 = vmul.f32 %v861, %v921
      %v1067 = vmul.f32 %v861, %v925
      %v1068 = vmul.f32 %v861, %v929
      %v1069 = vmul.f32 %v861, %v933
      %v1070 = vmul.f32 %v861, %v937
      %v1071 = vmul.f32 %v861, %v941
      %v1072 = vmul.f32 %v861, %v945
      %v1073 = vmul.f32 %v861, %v949
      %v1074 = vmul.f32 %v861, %v953
      %v1075 = vmul.f32 %v861, %v957
      %v1076 = vmul.f32 %v861, %v961
      %v1077 = vmul.f32 %v861, %v965
      %v1078 = vmul.f32 %v861, %v969
      %v1079 = vmul.f32 %v861, %v973
      %v1080 = vmul.f32 %v861, %v977
      %v1081 = vmul.f32 %v861, %v981
      %v1082 = vmul.f32 %v861, %v985
      %v1083 = vmul.f32 %v861, %v989
      %v1084 = vmul.f32 %v861, %v993
      %v1085 = vmul.f32 %v861, %v997
      %v1086 = vmul.f32 %v861, %v1001
      %v1087 = vmul.f32 %v861, %v1005
      %v1088 = vmul.f32 %v861, %v1009
      %v1089 = vmul.f32 %v861, %v1013
      %v1090 = vmul.f32 %v861, %v1017
      %v1091 = vmul.f32 %v861, %v1021
      %v1092 = vmul.f32 %v861, %v1025
      %v1093 = vmul.f32 %v861, %v1029
      %v1094 = vmul.f32 %v866, %v905
      %v1095 = vmul.f32 %v866, %v909
      %v1096 = vmul.f32 %v866, %v913
      %v1097 = vmul.f32 %v866, %v917
      %v1098 = vmul.f32 %v866, %v921
      %v1099 = vmul.f32 %v866, %v925
      %v1100 = vmul.f32 %v866, %v929
      %v1101 = vmul.f32 %v866, %v933
      %v1102 = vmul.f32 %v866, %v937
      %v1103 = vmul.f32 %v866, %v941
      %v1104 = vmul.f32 %v866, %v945
      %v1105 = vmul.f32 %v866, %v949
      %v1106 = vmul.f32 %v866, %v953
      %v1107 = vmul.f32 %v866, %v957
      %v1108 = vmul.f32 %v866, %v961
      %v1109 = vmul.f32 %v866, %v965
      %v1110 = vmul.f32 %v866, %v969
      %v1111 = vmul.f32 %v866, %v973
      %v1112 = vmul.f32 %v866, %v977
      %v1113 = vmul.f32 %v866, %v981
      %v1114 = vmul.f32 %v866, %v985
      %v1115 = vmul.f32 %v866, %v989
      %v1116 = vmul.f32 %v866, %v993
      %v1117 = vmul.f32 %v866, %v997
      %v1118 = vmul.f32 %v866, %v1001
      %v1119 = vmul.f32 %v866, %v1005
      %v1120 = vmul.f32 %v866, %v1009
      %v1121 = vmul.f32 %v866, %v1013
      %v1122 = vmul.f32 %v866, %v1017
      %v1123 = vmul.f32 %v866, %v1021
      %v1124 = vmul.f32 %v866, %v1025
      %v1125 = vmul.f32 %v866, %v1029
      %v1126 = vmul.f32 %v871, %v905
      %v1127 = vmul.f32 %v871, %v909
      %v1128 = vmul.f32 %v871, %v913
      %v1129 = vmul.f32 %v871, %v917
      %v1130 = vmul.f32 %v871, %v921
      %v1131 = vmul.f32 %v871, %v925
      %v1132 = vmul.f32 %v871, %v929
      %v1133 = vmul.f32 %v871, %v933
      %v1134 = vmul.f32 %v871, %v937
      %v1135 = vmul.f32 %v871, %v941
      %v1136 = vmul.f32 %v871, %v945
      %v1137 = vmul.f32 %v871, %v949
      %v1138 = vmul.f32 %v871, %v953
      %v1139 = vmul.f32 %v871, %v957
      %v1140 = vmul.f32 %v871, %v961
      %v1141 = vmul.f32 %v871, %v965
      %v1142 = vmul.f32 %v871, %v969
      %v1143 = vmul.f32 %v871, %v973
      %v1144 = vmul.f32 %v871, %v977
      %v1145 = vmul.f32 %v871, %v981
      %v1146 = vmul.f32 %v871, %v985
      %v1147 = vmul.f32 %v871, %v989
      %v1148 = vmul.f32 %v871, %v993
      %v1149 = vmul.f32 %v871, %v997
      %v1150 = vmul.f32 %v871, %v1001
      %v1151 = vmul.f32 %v871, %v1005
      %v1152 = vmul.f32 %v871, %v1009
      %v1153 = vmul.f32 %v871, %v1013
      %v1154 = vmul.f32 %v871, %v1017
      %v1155 = vmul.f32 %v871, %v1021
      %v1156 = vmul.f32 %v871, %v1025
      %v1157 = vmul.f32 %v871, %v1029
      %v1158 = vmul.f32 %v876, %v905
      %v1159 = vmul.f32 %v876, %v909
      %v1160 = vmul.f32 %v876, %v913
      %v1161 = vmul.f32 %v876, %v917
      %v1162 = vmul.f32 %v876, %v921
      %v1163 = vmul.f32 %v876, %v925
      %v1164 = vmul.f32 %v876, %v929
      %v1165 = vmul.f32 %v876, %v933
      %v1166 = vmul.f32 %v876, %v937
      %v1167 = vmul.f32 %v876, %v941
      %v1168 = vmul.f32 %v876, %v945
      %v1169 = vmul.f32 %v876, %v949
      %v1170 = vmul.f32 %v876, %v953
      %v1171 = vmul.f32 %v876, %v957
      %v1172 = vmul.f32 %v876, %v961
      %v1173 = vmul.f32 %v876, %v965
      %v1174 = vmul.f32 %v876, %v969
      %v1175 = vmul.f32 %v876, %v973
      %v1176 = vmul.f32 %v876, %v977
      %v1177 = vmul.f32 %v876, %v981
      %v1178 = vmul.f32 %v876, %v985
      %v1179 = vmul.f32 %v876, %v989
      %v1180 = vmul.f32 %v876, %v993
      %v1181 = vmul.f32 %v876, %v997
      %v1182 = vmul.f32 %v876, %v1001
      %v1183 = vmul.f32 %v876, %v1005
      %v1184 = vmul.f32 %v876, %v1009
      %v1185 = vmul.f32 %v876, %v1013
      %v1186 = vmul.f32 %v876, %v1017
      %v1187 = vmul.f32 %v876, %v1021
      %v1188 = vmul.f32 %v876, %v1025
      %v1189 = vmul.f32 %v876, %v1029
      %v1190 = vmul.f32 %v881, %v905
      %v1191 = vmul.f32 %v881, %v909
      %v1192 = vmul.f32 %v881, %v913
      %v1193 = vmul.f32 %v881, %v917
      %v1194 = vmul.f32 %v881, %v921
      %v1195 = vmul.f32 %v881, %v925
      %v1196 = vmul.f32 %v881, %v929
      %v1197 = vmul.f32 %v881, %v933
      %v1198 = vmul.f32 %v881, %v937
      %v1199 = vmul.f32 %v881, %v941
      %v1200 = vmul.f32 %v881, %v945
      %v1201 = vmul.f32 %v881, %v949
      %v1202 = vmul.f32 %v881, %v953
      %v1203 = vmul.f32 %v881, %v957
      %v1204 = vmul.f32 %v881, %v961
      %v1205 = vmul.f32 %v881, %v965
      %v1206 = vmul.f32 %v881, %v969
      %v1207 = vmul.f32 %v881, %v973
      %v1208 = vmul.f32 %v881, %v977
      %v1209 = vmul.f32 %v881, %v981
      %v1210 = vmul.f32 %v881, %v985
      %v1211 = vmul.f32 %v881, %v989
      %v1212 = vmul.f32 %v881, %v993
      %v1213 = vmul.f32 %v881, %v997
      %v1214 = vmul.f32 %v881, %v1001
      %v1215 = vmul.f32 %v881, %v1005
      %v1216 = vmul.f32 %v881, %v1009
      %v1217 = vmul.f32 %v881, %v1013
      %v1218 = vmul.f32 %v881, %v1017
      %v1219 = vmul.f32 %v881, %v1021
      %v1220 = vmul.f32 %v881, %v1025
      %v1221 = vmul.f32 %v881, %v1029
      %v1222 = vmul.f32 %v886, %v905
      %v1223 = vmul.f32 %v886, %v909
      %v1224 = vmul.f32 %v886, %v913
      %v1225 = vmul.f32 %v886, %v917
      %v1226 = vmul.f32 %v886, %v921
      %v1227 = vmul.f32 %v886, %v925
      %v1228 = vmul.f32 %v886, %v929
      %v1229 = vmul.f32 %v886, %v933
      %v1230 = vmul.f32 %v886, %v937
      %v1231 = vmul.f32 %v886, %v941
      %v1232 = vmul.f32 %v886, %v945
      %v1233 = vmul.f32 %v886, %v949
      %v1234 = vmul.f32 %v886, %v953
      %v1235 = vmul.f32 %v886, %v957
      %v1236 = vmul.f32 %v886, %v961
      %v1237 = vmul.f32 %v886, %v965
      %v1238 = vmul.f32 %v886, %v969
      %v1239 = vmul.f32 %v886, %v973
      %v1240 = vmul.f32 %v886, %v977
      %v1241 = vmul.f32 %v886, %v981
      %v1242 = vmul.f32 %v886, %v985
      %v1243 = vmul.f32 %v886, %v989
      %v1244 = vmul.f32 %v886, %v993
      %v1245 = vmul.f32 %v886, %v997
      %v1246 = vmul.f32 %v886, %v1001
      %v1247 = vmul.f32 %v886, %v1005
      %v1248 = vmul.f32 %v886, %v1009
      %v1249 = vmul.f32 %v886, %v1013
      %v1250 = vmul.f32 %v886, %v1017
      %v1251 = vmul.f32 %v886, %v1021
      %v1252 = vmul.f32 %v886, %v1025
      %v1253 = vmul.f32 %v886, %v1029
      %v1254 = vmul.f32 %v891, %v905
      %v1255 = vmul.f32 %v891, %v909
      %v1256 = vmul.f32 %v891, %v913
      %v1257 = vmul.f32 %v891, %v917
      %v1258 = vmul.f32 %v891, %v921
      %v1259 = vmul.f32 %v891, %v925
      %v1260 = vmul.f32 %v891, %v929
      %v1261 = vmul.f32 %v891, %v933
      %v1262 = vmul.f32 %v891, %v937
      %v1263 = vmul.f32 %v891, %v941
      %v1264 = vmul.f32 %v891, %v945
      %v1265 = vmul.f32 %v891, %v949
      %v1266 = vmul.f32 %v891, %v953
      %v1267 = vmul.f32 %v891, %v957
      %v1268 = vmul.f32 %v891, %v961
      %v1269 = vmul.f32 %v891, %v965
      %v1270 = vmul.f32 %v891, %v969
      %v1271 = vmul.f32 %v891, %v973
      %v1272 = vmul.f32 %v891, %v977
      %v1273 = vmul.f32 %v891, %v981
      %v1274 = vmul.f32 %v891, %v985
      %v1275 = vmul.f32 %v891, %v989
      %v1276 = vmul.f32 %v891, %v993
      %v1277 = vmul.f32 %v891, %v997
      %v1278 = vmul.f32 %v891, %v1001
      %v1279 = vmul.f32 %v891, %v1005
      %v1280 = vmul.f32 %v891, %v1009
      %v1281 = vmul.f32 %v891, %v1013
      %v1282 = vmul.f32 %v891, %v1017
      %v1283 = vmul.f32 %v891, %v1021
      %v1284 = vmul.f32 %v891, %v1025
      %v1285 = vmul.f32 %v891, %v1029
      %v1286 = vmul.f32 %v896, %v905
      %v1287 = vmul.f32 %v896, %v909
      %v1288 = vmul.f32 %v896, %v913
      %v1289 = vmul.f32 %v896, %v917
      %v1290 = vmul.f32 %v896, %v921
      %v1291 = vmul.f32 %v896, %v925
      %v1292 = vmul.f32 %v896, %v929
      %v1293 = vmul.f32 %v896, %v933
      %v1294 = vmul.f32 %v896, %v937
      %v1295 = vmul.f32 %v896, %v941
      %v1296 = vmul.f32 %v896, %v945
      %v1297 = vmul.f32 %v896, %v949
      %v1298 = vmul.f32 %v896, %v953
      %v1299 = vmul.f32 %v896, %v957
      %v1300 = vmul.f32 %v896, %v961
      %v1301 = vmul.f32 %v896, %v965
      %v1302 = vmul.f32 %v896, %v969
      %v1303 = vmul.f32 %v896, %v973
      %v1304 = vmul.f32 %v896, %v977
      %v1305 = vmul.f32 %v896, %v981
      %v1306 = vmul.f32 %v896, %v985
      %v1307 = vmul.f32 %v896, %v989
      %v1308 = vmul.f32 %v896, %v993
      %v1309 = vmul.f32 %v896, %v997
      %v1310 = vmul.f32 %v896, %v1001
      %v1311 = vmul.f32 %v896, %v1005
      %v1312 = vmul.f32 %v896, %v1009
      %v1313 = vmul.f32 %v896, %v1013
      %v1314 = vmul.f32 %v896, %v1017
      %v1315 = vmul.f32 %v896, %v1021
      %v1316 = vmul.f32 %v896, %v1025
      %v1317 = vmul.f32 %v896, %v1029
      %v1318 = vld [vmem:[%s7] sm:$0xff]
      %v1319 = vld [vmem:[%s7 + $0x8] sm:$0xff]
      %v1320 = vld [vmem:[%s7 + $0x10] sm:$0xff]
      %v1321 = vld [vmem:[%s7 + $0x18] sm:$0xff]
      %v1322 = vld [vmem:[%s7 + $0x20] sm:$0xff]
      %v1323 = vld [vmem:[%s7 + $0x28] sm:$0xff]
      %v1324 = vld [vmem:[%s7 + $0x30] sm:$0xff]
      %v1325 = vld [vmem:[%s7 + $0x38] sm:$0xff]
      %1327 = vset.pattern.permute.xlu0 0
      %1328 = vperm.xlu0 %1327, %v1318
      %v1329 = vpop.permute.xlu0 %1328
      %1332 = vset.pattern.permute.xlu0 0
      %1333 = vperm.xlu0 %1332, %v1319
      %v1334 = vpop.permute.xlu0 %1333
      %1337 = vset.pattern.permute.xlu0 0
      %1338 = vperm.xlu0 %1337, %v1320
      %v1339 = vpop.permute.xlu0 %1338
      %1342 = vset.pattern.permute.xlu0 0
      %1343 = vperm.xlu0 %1342, %v1321
      %v1344 = vpop.permute.xlu0 %1343
      %1347 = vset.pattern.permute.xlu0 0
      %1348 = vperm.xlu0 %1347, %v1322
      %v1349 = vpop.permute.xlu0 %1348
      %1352 = vset.pattern.permute.xlu0 0
      %1353 = vperm.xlu0 %1352, %v1323
      %v1354 = vpop.permute.xlu0 %1353
      %1357 = vset.pattern.permute.xlu0 0
      %1358 = vperm.xlu0 %1357, %v1324
      %v1359 = vpop.permute.xlu0 %1358
      %1362 = vset.pattern.permute.xlu0 0
      %1363 = vperm.xlu0 %1362, %v1325
      %v1364 = vpop.permute.xlu0 %1363
      %v1370 = vlaneseq
      %v1371 = vshrl.u32 %v1370, 7
      %v1372 = vsub.s32 0, %v1371
      %v1373 = vrot.slane %v736, %v1372
      %v1374 = vlaneseq
      %v1375 = vshrl.u32 %v1374, 7
      %v1376 = vsub.s32 1, %v1375
      %v1377 = vrot.slane %v736, %v1376
      %v1378 = vlaneseq
      %v1379 = vshrl.u32 %v1378, 7
      %v1380 = vsub.s32 2, %v1379
      %v1381 = vrot.slane %v736, %v1380
      %v1382 = vlaneseq
      %v1383 = vshrl.u32 %v1382, 7
      %v1384 = vsub.s32 3, %v1383
      %v1385 = vrot.slane %v736, %v1384
      %v1386 = vlaneseq
      %v1387 = vshrl.u32 %v1386, 7
      %v1388 = vsub.s32 4, %v1387
      %v1389 = vrot.slane %v736, %v1388
      %v1390 = vlaneseq
      %v1391 = vshrl.u32 %v1390, 7
      %v1392 = vsub.s32 5, %v1391
      %v1393 = vrot.slane %v736, %v1392
      %v1394 = vlaneseq
      %v1395 = vshrl.u32 %v1394, 7
      %v1396 = vsub.s32 6, %v1395
      %v1397 = vrot.slane %v736, %v1396
      %v1398 = vlaneseq
      %v1399 = vshrl.u32 %v1398, 7
      %v1400 = vsub.s32 7, %v1399
      %v1401 = vrot.slane %v736, %v1400
      %v1402 = vlaneseq
      %v1403 = vshrl.u32 %v1402, 7
      %v1404 = vsub.s32 0, %v1403
      %v1405 = vrot.slane %v737, %v1404
      %v1406 = vlaneseq
      %v1407 = vshrl.u32 %v1406, 7
      %v1408 = vsub.s32 1, %v1407
      %v1409 = vrot.slane %v737, %v1408
      %v1410 = vlaneseq
      %v1411 = vshrl.u32 %v1410, 7
      %v1412 = vsub.s32 2, %v1411
      %v1413 = vrot.slane %v737, %v1412
      %v1414 = vlaneseq
      %v1415 = vshrl.u32 %v1414, 7
      %v1416 = vsub.s32 3, %v1415
      %v1417 = vrot.slane %v737, %v1416
      %v1418 = vlaneseq
      %v1419 = vshrl.u32 %v1418, 7
      %v1420 = vsub.s32 4, %v1419
      %v1421 = vrot.slane %v737, %v1420
      %v1422 = vlaneseq
      %v1423 = vshrl.u32 %v1422, 7
      %v1424 = vsub.s32 5, %v1423
      %v1425 = vrot.slane %v737, %v1424
      %v1426 = vlaneseq
      %v1427 = vshrl.u32 %v1426, 7
      %v1428 = vsub.s32 6, %v1427
      %v1429 = vrot.slane %v737, %v1428
      %v1430 = vlaneseq
      %v1431 = vshrl.u32 %v1430, 7
      %v1432 = vsub.s32 7, %v1431
      %v1433 = vrot.slane %v737, %v1432
      %v1434 = vlaneseq
      %v1435 = vshrl.u32 %v1434, 7
      %v1436 = vsub.s32 0, %v1435
      %v1437 = vrot.slane %v738, %v1436
      %v1438 = vlaneseq
      %v1439 = vshrl.u32 %v1438, 7
      %v1440 = vsub.s32 1, %v1439
      %v1441 = vrot.slane %v738, %v1440
      %v1442 = vlaneseq
      %v1443 = vshrl.u32 %v1442, 7
      %v1444 = vsub.s32 2, %v1443
      %v1445 = vrot.slane %v738, %v1444
      %v1446 = vlaneseq
      %v1447 = vshrl.u32 %v1446, 7
      %v1448 = vsub.s32 3, %v1447
      %v1449 = vrot.slane %v738, %v1448
      %v1450 = vlaneseq
      %v1451 = vshrl.u32 %v1450, 7
      %v1452 = vsub.s32 4, %v1451
      %v1453 = vrot.slane %v738, %v1452
      %v1454 = vlaneseq
      %v1455 = vshrl.u32 %v1454, 7
      %v1456 = vsub.s32 5, %v1455
      %v1457 = vrot.slane %v738, %v1456
      %v1458 = vlaneseq
      %v1459 = vshrl.u32 %v1458, 7
      %v1460 = vsub.s32 6, %v1459
      %v1461 = vrot.slane %v738, %v1460
      %v1462 = vlaneseq
      %v1463 = vshrl.u32 %v1462, 7
      %v1464 = vsub.s32 7, %v1463
      %v1465 = vrot.slane %v738, %v1464
      %v1466 = vlaneseq
      %v1467 = vshrl.u32 %v1466, 7
      %v1468 = vsub.s32 0, %v1467
      %v1469 = vrot.slane %v739, %v1468
      %v1470 = vlaneseq
      %v1471 = vshrl.u32 %v1470, 7
      %v1472 = vsub.s32 1, %v1471
      %v1473 = vrot.slane %v739, %v1472
      %v1474 = vlaneseq
      %v1475 = vshrl.u32 %v1474, 7
      %v1476 = vsub.s32 2, %v1475
      %v1477 = vrot.slane %v739, %v1476
      %v1478 = vlaneseq
      %v1479 = vshrl.u32 %v1478, 7
      %v1480 = vsub.s32 3, %v1479
      %v1481 = vrot.slane %v739, %v1480
      %v1482 = vlaneseq
      %v1483 = vshrl.u32 %v1482, 7
      %v1484 = vsub.s32 4, %v1483
      %v1485 = vrot.slane %v739, %v1484
      %v1486 = vlaneseq
      %v1487 = vshrl.u32 %v1486, 7
      %v1488 = vsub.s32 5, %v1487
      %v1489 = vrot.slane %v739, %v1488
      %v1490 = vlaneseq
      %v1491 = vshrl.u32 %v1490, 7
      %v1492 = vsub.s32 6, %v1491
      %v1493 = vrot.slane %v739, %v1492
      %v1494 = vlaneseq
      %v1495 = vshrl.u32 %v1494, 7
      %v1496 = vsub.s32 7, %v1495
      %v1497 = vrot.slane %v739, %v1496
      %v1530 = vmul.f32 %v1329, %v1373
      %v1531 = vmul.f32 %v1329, %v1377
      %v1532 = vmul.f32 %v1329, %v1381
      %v1533 = vmul.f32 %v1329, %v1385
      %v1534 = vmul.f32 %v1329, %v1389
      %v1535 = vmul.f32 %v1329, %v1393
      %v1536 = vmul.f32 %v1329, %v1397
      %v1537 = vmul.f32 %v1329, %v1401
      %v1538 = vmul.f32 %v1329, %v1405
      %v1539 = vmul.f32 %v1329, %v1409
      %v1540 = vmul.f32 %v1329, %v1413
      %v1541 = vmul.f32 %v1329, %v1417
      %v1542 = vmul.f32 %v1329, %v1421
      %v1543 = vmul.f32 %v1329, %v1425
      %v1544 = vmul.f32 %v1329, %v1429
      %v1545 = vmul.f32 %v1329, %v1433
      %v1546 = vmul.f32 %v1329, %v1437
      %v1547 = vmul.f32 %v1329, %v1441
      %v1548 = vmul.f32 %v1329, %v1445
      %v1549 = vmul.f32 %v1329, %v1449
      %v1550 = vmul.f32 %v1329, %v1453
      %v1551 = vmul.f32 %v1329, %v1457
      %v1552 = vmul.f32 %v1329, %v1461
      %v1553 = vmul.f32 %v1329, %v1465
      %v1554 = vmul.f32 %v1329, %v1469
      %v1555 = vmul.f32 %v1329, %v1473
      %v1556 = vmul.f32 %v1329, %v1477
      %v1557 = vmul.f32 %v1329, %v1481
      %v1558 = vmul.f32 %v1329, %v1485
      %v1559 = vmul.f32 %v1329, %v1489
      %v1560 = vmul.f32 %v1329, %v1493
      %v1561 = vmul.f32 %v1329, %v1497
      %v1562 = vmul.f32 %v1334, %v1373
      %v1563 = vmul.f32 %v1334, %v1377
      %v1564 = vmul.f32 %v1334, %v1381
      %v1565 = vmul.f32 %v1334, %v1385
      %v1566 = vmul.f32 %v1334, %v1389
      %v1567 = vmul.f32 %v1334, %v1393
      %v1568 = vmul.f32 %v1334, %v1397
      %v1569 = vmul.f32 %v1334, %v1401
      %v1570 = vmul.f32 %v1334, %v1405
      %v1571 = vmul.f32 %v1334, %v1409
      %v1572 = vmul.f32 %v1334, %v1413
      %v1573 = vmul.f32 %v1334, %v1417
      %v1574 = vmul.f32 %v1334, %v1421
      %v1575 = vmul.f32 %v1334, %v1425
      %v1576 = vmul.f32 %v1334, %v1429
      %v1577 = vmul.f32 %v1334, %v1433
      %v1578 = vmul.f32 %v1334, %v1437
      %v1579 = vmul.f32 %v1334, %v1441
      %v1580 = vmul.f32 %v1334, %v1445
      %v1581 = vmul.f32 %v1334, %v1449
      %v1582 = vmul.f32 %v1334, %v1453
      %v1583 = vmul.f32 %v1334, %v1457
      %v1584 = vmul.f32 %v1334, %v1461
      %v1585 = vmul.f32 %v1334, %v1465
      %v1586 = vmul.f32 %v1334, %v1469
      %v1587 = vmul.f32 %v1334, %v1473
      %v1588 = vmul.f32 %v1334, %v1477
      %v1589 = vmul.f32 %v1334, %v1481
      %v1590 = vmul.f32 %v1334, %v1485
      %v1591 = vmul.f32 %v1334, %v1489
      %v1592 = vmul.f32 %v1334, %v1493
      %v1593 = vmul.f32 %v1334, %v1497
      %v1594 = vmul.f32 %v1339, %v1373
      %v1595 = vmul.f32 %v1339, %v1377
      %v1596 = vmul.f32 %v1339, %v1381
      %v1597 = vmul.f32 %v1339, %v1385
      %v1598 = vmul.f32 %v1339, %v1389
      %v1599 = vmul.f32 %v1339, %v1393
      %v1600 = vmul.f32 %v1339, %v1397
      %v1601 = vmul.f32 %v1339, %v1401
      %v1602 = vmul.f32 %v1339, %v1405
      %v1603 = vmul.f32 %v1339, %v1409
      %v1604 = vmul.f32 %v1339, %v1413
      %v1605 = vmul.f32 %v1339, %v1417
      %v1606 = vmul.f32 %v1339, %v1421
      %v1607 = vmul.f32 %v1339, %v1425
      %v1608 = vmul.f32 %v1339, %v1429
      %v1609 = vmul.f32 %v1339, %v1433
      %v1610 = vmul.f32 %v1339, %v1437
      %v1611 = vmul.f32 %v1339, %v1441
      %v1612 = vmul.f32 %v1339, %v1445
      %v1613 = vmul.f32 %v1339, %v1449
      %v1614 = vmul.f32 %v1339, %v1453
      %v1615 = vmul.f32 %v1339, %v1457
      %v1616 = vmul.f32 %v1339, %v1461
      %v1617 = vmul.f32 %v1339, %v1465
      %v1618 = vmul.f32 %v1339, %v1469
      %v1619 = vmul.f32 %v1339, %v1473
      %v1620 = vmul.f32 %v1339, %v1477
      %v1621 = vmul.f32 %v1339, %v1481
      %v1622 = vmul.f32 %v1339, %v1485
      %v1623 = vmul.f32 %v1339, %v1489
      %v1624 = vmul.f32 %v1339, %v1493
      %v1625 = vmul.f32 %v1339, %v1497
      %v1626 = vmul.f32 %v1344, %v1373
      %v1627 = vmul.f32 %v1344, %v1377
      %v1628 = vmul.f32 %v1344, %v1381
      %v1629 = vmul.f32 %v1344, %v1385
      %v1630 = vmul.f32 %v1344, %v1389
      %v1631 = vmul.f32 %v1344, %v1393
      %v1632 = vmul.f32 %v1344, %v1397
      %v1633 = vmul.f32 %v1344, %v1401
      %v1634 = vmul.f32 %v1344, %v1405
      %v1635 = vmul.f32 %v1344, %v1409
      %v1636 = vmul.f32 %v1344, %v1413
      %v1637 = vmul.f32 %v1344, %v1417
      %v1638 = vmul.f32 %v1344, %v1421
      %v1639 = vmul.f32 %v1344, %v1425
      %v1640 = vmul.f32 %v1344, %v1429
      %v1641 = vmul.f32 %v1344, %v1433
      %v1642 = vmul.f32 %v1344, %v1437
      %v1643 = vmul.f32 %v1344, %v1441
      %v1644 = vmul.f32 %v1344, %v1445
      %v1645 = vmul.f32 %v1344, %v1449
      %v1646 = vmul.f32 %v1344, %v1453
      %v1647 = vmul.f32 %v1344, %v1457
      %v1648 = vmul.f32 %v1344, %v1461
      %v1649 = vmul.f32 %v1344, %v1465
      %v1650 = vmul.f32 %v1344, %v1469
      %v1651 = vmul.f32 %v1344, %v1473
      %v1652 = vmul.f32 %v1344, %v1477
      %v1653 = vmul.f32 %v1344, %v1481
      %v1654 = vmul.f32 %v1344, %v1485
      %v1655 = vmul.f32 %v1344, %v1489
      %v1656 = vmul.f32 %v1344, %v1493
      %v1657 = vmul.f32 %v1344, %v1497
      %v1658 = vmul.f32 %v1349, %v1373
      %v1659 = vmul.f32 %v1349, %v1377
      %v1660 = vmul.f32 %v1349, %v1381
      %v1661 = vmul.f32 %v1349, %v1385
      %v1662 = vmul.f32 %v1349, %v1389
      %v1663 = vmul.f32 %v1349, %v1393
      %v1664 = vmul.f32 %v1349, %v1397
      %v1665 = vmul.f32 %v1349, %v1401
      %v1666 = vmul.f32 %v1349, %v1405
      %v1667 = vmul.f32 %v1349, %v1409
      %v1668 = vmul.f32 %v1349, %v1413
      %v1669 = vmul.f32 %v1349, %v1417
      %v1670 = vmul.f32 %v1349, %v1421
      %v1671 = vmul.f32 %v1349, %v1425
      %v1672 = vmul.f32 %v1349, %v1429
      %v1673 = vmul.f32 %v1349, %v1433
      %v1674 = vmul.f32 %v1349, %v1437
      %v1675 = vmul.f32 %v1349, %v1441
      %v1676 = vmul.f32 %v1349, %v1445
      %v1677 = vmul.f32 %v1349, %v1449
      %v1678 = vmul.f32 %v1349, %v1453
      %v1679 = vmul.f32 %v1349, %v1457
      %v1680 = vmul.f32 %v1349, %v1461
      %v1681 = vmul.f32 %v1349, %v1465
      %v1682 = vmul.f32 %v1349, %v1469
      %v1683 = vmul.f32 %v1349, %v1473
      %v1684 = vmul.f32 %v1349, %v1477
      %v1685 = vmul.f32 %v1349, %v1481
      %v1686 = vmul.f32 %v1349, %v1485
      %v1687 = vmul.f32 %v1349, %v1489
      %v1688 = vmul.f32 %v1349, %v1493
      %v1689 = vmul.f32 %v1349, %v1497
      %v1690 = vmul.f32 %v1354, %v1373
      %v1691 = vmul.f32 %v1354, %v1377
      %v1692 = vmul.f32 %v1354, %v1381
      %v1693 = vmul.f32 %v1354, %v1385
      %v1694 = vmul.f32 %v1354, %v1389
      %v1695 = vmul.f32 %v1354, %v1393
      %v1696 = vmul.f32 %v1354, %v1397
      %v1697 = vmul.f32 %v1354, %v1401
      %v1698 = vmul.f32 %v1354, %v1405
      %v1699 = vmul.f32 %v1354, %v1409
      %v1700 = vmul.f32 %v1354, %v1413
      %v1701 = vmul.f32 %v1354, %v1417
      %v1702 = vmul.f32 %v1354, %v1421
      %v1703 = vmul.f32 %v1354, %v1425
      %v1704 = vmul.f32 %v1354, %v1429
      %v1705 = vmul.f32 %v1354, %v1433
      %v1706 = vmul.f32 %v1354, %v1437
      %v1707 = vmul.f32 %v1354, %v1441
      %v1708 = vmul.f32 %v1354, %v1445
      %v1709 = vmul.f32 %v1354, %v1449
      %v1710 = vmul.f32 %v1354, %v1453
      %v1711 = vmul.f32 %v1354, %v1457
      %v1712 = vmul.f32 %v1354, %v1461
      %v1713 = vmul.f32 %v1354, %v1465
      %v1714 = vmul.f32 %v1354, %v1469
      %v1715 = vmul.f32 %v1354, %v1473
      %v1716 = vmul.f32 %v1354, %v1477
      %v1717 = vmul.f32 %v1354, %v1481
      %v1718 = vmul.f32 %v1354, %v1485
      %v1719 = vmul.f32 %v1354, %v1489
      %v1720 = vmul.f32 %v1354, %v1493
      %v1721 = vmul.f32 %v1354, %v1497
      %v1722 = vmul.f32 %v1359, %v1373
      %v1723 = vmul.f32 %v1359, %v1377
      %v1724 = vmul.f32 %v1359, %v1381
      %v1725 = vmul.f32 %v1359, %v1385
      %v1726 = vmul.f32 %v1359, %v1389
      %v1727 = vmul.f32 %v1359, %v1393
      %v1728 = vmul.f32 %v1359, %v1397
      %v1729 = vmul.f32 %v1359, %v1401
      %v1730 = vmul.f32 %v1359, %v1405
      %v1731 = vmul.f32 %v1359, %v1409
      %v1732 = vmul.f32 %v1359, %v1413
      %v1733 = vmul.f32 %v1359, %v1417
      %v1734 = vmul.f32 %v1359, %v1421
      %v1735 = vmul.f32 %v1359, %v1425
      %v1736 = vmul.f32 %v1359, %v1429
      %v1737 = vmul.f32 %v1359, %v1433
      %v1738 = vmul.f32 %v1359, %v1437
      %v1739 = vmul.f32 %v1359, %v1441
      %v1740 = vmul.f32 %v1359, %v1445
      %v1741 = vmul.f32 %v1359, %v1449
      %v1742 = vmul.f32 %v1359, %v1453
      %v1743 = vmul.f32 %v1359, %v1457
      %v1744 = vmul.f32 %v1359, %v1461
      %v1745 = vmul.f32 %v1359, %v1465
      %v1746 = vmul.f32 %v1359, %v1469
      %v1747 = vmul.f32 %v1359, %v1473
      %v1748 = vmul.f32 %v1359, %v1477
      %v1749 = vmul.f32 %v1359, %v1481
      %v1750 = vmul.f32 %v1359, %v1485
      %v1751 = vmul.f32 %v1359, %v1489
      %v1752 = vmul.f32 %v1359, %v1493
      %v1753 = vmul.f32 %v1359, %v1497
      %v1754 = vmul.f32 %v1364, %v1373
      %v1755 = vmul.f32 %v1364, %v1377
      %v1756 = vmul.f32 %v1364, %v1381
      %v1757 = vmul.f32 %v1364, %v1385
      %v1758 = vmul.f32 %v1364, %v1389
      %v1759 = vmul.f32 %v1364, %v1393
      %v1760 = vmul.f32 %v1364, %v1397
      %v1761 = vmul.f32 %v1364, %v1401
      %v1762 = vmul.f32 %v1364, %v1405
      %v1763 = vmul.f32 %v1364, %v1409
      %v1764 = vmul.f32 %v1364, %v1413
      %v1765 = vmul.f32 %v1364, %v1417
      %v1766 = vmul.f32 %v1364, %v1421
      %v1767 = vmul.f32 %v1364, %v1425
      %v1768 = vmul.f32 %v1364, %v1429
      %v1769 = vmul.f32 %v1364, %v1433
      %v1770 = vmul.f32 %v1364, %v1437
      %v1771 = vmul.f32 %v1364, %v1441
      %v1772 = vmul.f32 %v1364, %v1445
      %v1773 = vmul.f32 %v1364, %v1449
      %v1774 = vmul.f32 %v1364, %v1453
      %v1775 = vmul.f32 %v1364, %v1457
      %v1776 = vmul.f32 %v1364, %v1461
      %v1777 = vmul.f32 %v1364, %v1465
      %v1778 = vmul.f32 %v1364, %v1469
      %v1779 = vmul.f32 %v1364, %v1473
      %v1780 = vmul.f32 %v1364, %v1477
      %v1781 = vmul.f32 %v1364, %v1481
      %v1782 = vmul.f32 %v1364, %v1485
      %v1783 = vmul.f32 %v1364, %v1489
      %v1784 = vmul.f32 %v1364, %v1493
      %v1785 = vmul.f32 %v1364, %v1497
      %v1786 = vadd.f32 %v1062, %v1530
      %v1787 = vadd.f32 %v1063, %v1531
      %v1788 = vadd.f32 %v1064, %v1532
      %v1789 = vadd.f32 %v1065, %v1533
      %v1790 = vadd.f32 %v1066, %v1534
      %v1791 = vadd.f32 %v1067, %v1535
      %v1792 = vadd.f32 %v1068, %v1536
      %v1793 = vadd.f32 %v1069, %v1537
      %v1794 = vadd.f32 %v1070, %v1538
      %v1795 = vadd.f32 %v1071, %v1539
      %v1796 = vadd.f32 %v1072, %v1540
      %v1797 = vadd.f32 %v1073, %v1541
      %v1798 = vadd.f32 %v1074, %v1542
      %v1799 = vadd.f32 %v1075, %v1543
      %v1800 = vadd.f32 %v1076, %v1544
      %v1801 = vadd.f32 %v1077, %v1545
      %v1802 = vadd.f32 %v1078, %v1546
      %v1803 = vadd.f32 %v1079, %v1547
      %v1804 = vadd.f32 %v1080, %v1548
      %v1805 = vadd.f32 %v1081, %v1549
      %v1806 = vadd.f32 %v1082, %v1550
      %v1807 = vadd.f32 %v1083, %v1551
      %v1808 = vadd.f32 %v1084, %v1552
      %v1809 = vadd.f32 %v1085, %v1553
      %v1810 = vadd.f32 %v1086, %v1554
      %v1811 = vadd.f32 %v1087, %v1555
      %v1812 = vadd.f32 %v1088, %v1556
      %v1813 = vadd.f32 %v1089, %v1557
      %v1814 = vadd.f32 %v1090, %v1558
      %v1815 = vadd.f32 %v1091, %v1559
      %v1816 = vadd.f32 %v1092, %v1560
      %v1817 = vadd.f32 %v1093, %v1561
      %v1818 = vadd.f32 %v1094, %v1562
      %v1819 = vadd.f32 %v1095, %v1563
      %v1820 = vadd.f32 %v1096, %v1564
      %v1821 = vadd.f32 %v1097, %v1565
      %v1822 = vadd.f32 %v1098, %v1566
      %v1823 = vadd.f32 %v1099, %v1567
      %v1824 = vadd.f32 %v1100, %v1568
      %v1825 = vadd.f32 %v1101, %v1569
      %v1826 = vadd.f32 %v1102, %v1570
      %v1827 = vadd.f32 %v1103, %v1571
      %v1828 = vadd.f32 %v1104, %v1572
      %v1829 = vadd.f32 %v1105, %v1573
      %v1830 = vadd.f32 %v1106, %v1574
      %v1831 = vadd.f32 %v1107, %v1575
      %v1832 = vadd.f32 %v1108, %v1576
      %v1833 = vadd.f32 %v1109, %v1577
      %v1834 = vadd.f32 %v1110, %v1578
      %v1835 = vadd.f32 %v1111, %v1579
      %v1836 = vadd.f32 %v1112, %v1580
      %v1837 = vadd.f32 %v1113, %v1581
      %v1838 = vadd.f32 %v1114, %v1582
      %v1839 = vadd.f32 %v1115, %v1583
      %v1840 = vadd.f32 %v1116, %v1584
      %v1841 = vadd.f32 %v1117, %v1585
      %v1842 = vadd.f32 %v1118, %v1586
      %v1843 = vadd.f32 %v1119, %v1587
      %v1844 = vadd.f32 %v1120, %v1588
      %v1845 = vadd.f32 %v1121, %v1589
      %v1846 = vadd.f32 %v1122, %v1590
      %v1847 = vadd.f32 %v1123, %v1591
      %v1848 = vadd.f32 %v1124, %v1592
      %v1849 = vadd.f32 %v1125, %v1593
      %v1850 = vadd.f32 %v1126, %v1594
      %v1851 = vadd.f32 %v1127, %v1595
      %v1852 = vadd.f32 %v1128, %v1596
      %v1853 = vadd.f32 %v1129, %v1597
      %v1854 = vadd.f32 %v1130, %v1598
      %v1855 = vadd.f32 %v1131, %v1599
      %v1856 = vadd.f32 %v1132, %v1600
      %v1857 = vadd.f32 %v1133, %v1601
      %v1858 = vadd.f32 %v1134, %v1602
      %v1859 = vadd.f32 %v1135, %v1603
      %v1860 = vadd.f32 %v1136, %v1604
      %v1861 = vadd.f32 %v1137, %v1605
      %v1862 = vadd.f32 %v1138, %v1606
      %v1863 = vadd.f32 %v1139, %v1607
      %v1864 = vadd.f32 %v1140, %v1608
      %v1865 = vadd.f32 %v1141, %v1609
      %v1866 = vadd.f32 %v1142, %v1610
      %v1867 = vadd.f32 %v1143, %v1611
      %v1868 = vadd.f32 %v1144, %v1612
      %v1869 = vadd.f32 %v1145, %v1613
      %v1870 = vadd.f32 %v1146, %v1614
      %v1871 = vadd.f32 %v1147, %v1615
      %v1872 = vadd.f32 %v1148, %v1616
      %v1873 = vadd.f32 %v1149, %v1617
      %v1874 = vadd.f32 %v1150, %v1618
      %v1875 = vadd.f32 %v1151, %v1619
      %v1876 = vadd.f32 %v1152, %v1620
      %v1877 = vadd.f32 %v1153, %v1621
      %v1878 = vadd.f32 %v1154, %v1622
      %v1879 = vadd.f32 %v1155, %v1623
      %v1880 = vadd.f32 %v1156, %v1624
      %v1881 = vadd.f32 %v1157, %v1625
      %v1882 = vadd.f32 %v1158, %v1626
      %v1883 = vadd.f32 %v1159, %v1627
      %v1884 = vadd.f32 %v1160, %v1628
      %v1885 = vadd.f32 %v1161, %v1629
      %v1886 = vadd.f32 %v1162, %v1630
      %v1887 = vadd.f32 %v1163, %v1631
      %v1888 = vadd.f32 %v1164, %v1632
      %v1889 = vadd.f32 %v1165, %v1633
      %v1890 = vadd.f32 %v1166, %v1634
      %v1891 = vadd.f32 %v1167, %v1635
      %v1892 = vadd.f32 %v1168, %v1636
      %v1893 = vadd.f32 %v1169, %v1637
      %v1894 = vadd.f32 %v1170, %v1638
      %v1895 = vadd.f32 %v1171, %v1639
      %v1896 = vadd.f32 %v1172, %v1640
      %v1897 = vadd.f32 %v1173, %v1641
      %v1898 = vadd.f32 %v1174, %v1642
      %v1899 = vadd.f32 %v1175, %v1643
      %v1900 = vadd.f32 %v1176, %v1644
      %v1901 = vadd.f32 %v1177, %v1645
      %v1902 = vadd.f32 %v1178, %v1646
      %v1903 = vadd.f32 %v1179, %v1647
      %v1904 = vadd.f32 %v1180, %v1648
      %v1905 = vadd.f32 %v1181, %v1649
      %v1906 = vadd.f32 %v1182, %v1650
      %v1907 = vadd.f32 %v1183, %v1651
      %v1908 = vadd.f32 %v1184, %v1652
      %v1909 = vadd.f32 %v1185, %v1653
      %v1910 = vadd.f32 %v1186, %v1654
      %v1911 = vadd.f32 %v1187, %v1655
      %v1912 = vadd.f32 %v1188, %v1656
      %v1913 = vadd.f32 %v1189, %v1657
      %v1914 = vadd.f32 %v1190, %v1658
      %v1915 = vadd.f32 %v1191, %v1659
      %v1916 = vadd.f32 %v1192, %v1660
      %v1917 = vadd.f32 %v1193, %v1661
      %v1918 = vadd.f32 %v1194, %v1662
      %v1919 = vadd.f32 %v1195, %v1663
      %v1920 = vadd.f32 %v1196, %v1664
      %v1921 = vadd.f32 %v1197, %v1665
      %v1922 = vadd.f32 %v1198, %v1666
      %v1923 = vadd.f32 %v1199, %v1667
      %v1924 = vadd.f32 %v1200, %v1668
      %v1925 = vadd.f32 %v1201, %v1669
      %v1926 = vadd.f32 %v1202, %v1670
      %v1927 = vadd.f32 %v1203, %v1671
      %v1928 = vadd.f32 %v1204, %v1672
      %v1929 = vadd.f32 %v1205, %v1673
      %v1930 = vadd.f32 %v1206, %v1674
      %v1931 = vadd.f32 %v1207, %v1675
      %v1932 = vadd.f32 %v1208, %v1676
      %v1933 = vadd.f32 %v1209, %v1677
      %v1934 = vadd.f32 %v1210, %v1678
      %v1935 = vadd.f32 %v1211, %v1679
      %v1936 = vadd.f32 %v1212, %v1680
      %v1937 = vadd.f32 %v1213, %v1681
      %v1938 = vadd.f32 %v1214, %v1682
      %v1939 = vadd.f32 %v1215, %v1683
      %v1940 = vadd.f32 %v1216, %v1684
      %v1941 = vadd.f32 %v1217, %v1685
      %v1942 = vadd.f32 %v1218, %v1686
      %v1943 = vadd.f32 %v1219, %v1687
      %v1944 = vadd.f32 %v1220, %v1688
      %v1945 = vadd.f32 %v1221, %v1689
      %v1946 = vadd.f32 %v1222, %v1690
      %v1947 = vadd.f32 %v1223, %v1691
      %v1948 = vadd.f32 %v1224, %v1692
      %v1949 = vadd.f32 %v1225, %v1693
      %v1950 = vadd.f32 %v1226, %v1694
      %v1951 = vadd.f32 %v1227, %v1695
      %v1952 = vadd.f32 %v1228, %v1696
      %v1953 = vadd.f32 %v1229, %v1697
      %v1954 = vadd.f32 %v1230, %v1698
      %v1955 = vadd.f32 %v1231, %v1699
      %v1956 = vadd.f32 %v1232, %v1700
      %v1957 = vadd.f32 %v1233, %v1701
      %v1958 = vadd.f32 %v1234, %v1702
      %v1959 = vadd.f32 %v1235, %v1703
      %v1960 = vadd.f32 %v1236, %v1704
      %v1961 = vadd.f32 %v1237, %v1705
      %v1962 = vadd.f32 %v1238, %v1706
      %v1963 = vadd.f32 %v1239, %v1707
      %v1964 = vadd.f32 %v1240, %v1708
      %v1965 = vadd.f32 %v1241, %v1709
      %v1966 = vadd.f32 %v1242, %v1710
      %v1967 = vadd.f32 %v1243, %v1711
      %v1968 = vadd.f32 %v1244, %v1712
      %v1969 = vadd.f32 %v1245, %v1713
      %v1970 = vadd.f32 %v1246, %v1714
      %v1971 = vadd.f32 %v1247, %v1715
      %v1972 = vadd.f32 %v1248, %v1716
      %v1973 = vadd.f32 %v1249, %v1717
      %v1974 = vadd.f32 %v1250, %v1718
      %v1975 = vadd.f32 %v1251, %v1719
      %v1976 = vadd.f32 %v1252, %v1720
      %v1977 = vadd.f32 %v1253, %v1721
      %v1978 = vadd.f32 %v1254, %v1722
      %v1979 = vadd.f32 %v1255, %v1723
      %v1980 = vadd.f32 %v1256, %v1724
      %v1981 = vadd.f32 %v1257, %v1725
      %v1982 = vadd.f32 %v1258, %v1726
      %v1983 = vadd.f32 %v1259, %v1727
      %v1984 = vadd.f32 %v1260, %v1728
      %v1985 = vadd.f32 %v1261, %v1729
      %v1986 = vadd.f32 %v1262, %v1730
      %v1987 = vadd.f32 %v1263, %v1731
      %v1988 = vadd.f32 %v1264, %v1732
      %v1989 = vadd.f32 %v1265, %v1733
      %v1990 = vadd.f32 %v1266, %v1734
      %v1991 = vadd.f32 %v1267, %v1735
      %v1992 = vadd.f32 %v1268, %v1736
      %v1993 = vadd.f32 %v1269, %v1737
      %v1994 = vadd.f32 %v1270, %v1738
      %v1995 = vadd.f32 %v1271, %v1739
      %v1996 = vadd.f32 %v1272, %v1740
      %v1997 = vadd.f32 %v1273, %v1741
      %v1998 = vadd.f32 %v1274, %v1742
      %v1999 = vadd.f32 %v1275, %v1743
      %v2000 = vadd.f32 %v1276, %v1744
      %v2001 = vadd.f32 %v1277, %v1745
      %v2002 = vadd.f32 %v1278, %v1746
      %v2003 = vadd.f32 %v1279, %v1747
      %v2004 = vadd.f32 %v1280, %v1748
      %v2005 = vadd.f32 %v1281, %v1749
      %v2006 = vadd.f32 %v1282, %v1750
      %v2007 = vadd.f32 %v1283, %v1751
      %v2008 = vadd.f32 %v1284, %v1752
      %v2009 = vadd.f32 %v1285, %v1753
      %v2010 = vadd.f32 %v1286, %v1754
      %v2011 = vadd.f32 %v1287, %v1755
      %v2012 = vadd.f32 %v1288, %v1756
      %v2013 = vadd.f32 %v1289, %v1757
      %v2014 = vadd.f32 %v1290, %v1758
      %v2015 = vadd.f32 %v1291, %v1759
      %v2016 = vadd.f32 %v1292, %v1760
      %v2017 = vadd.f32 %v1293, %v1761
      %v2018 = vadd.f32 %v1294, %v1762
      %v2019 = vadd.f32 %v1295, %v1763
      %v2020 = vadd.f32 %v1296, %v1764
      %v2021 = vadd.f32 %v1297, %v1765
      %v2022 = vadd.f32 %v1298, %v1766
      %v2023 = vadd.f32 %v1299, %v1767
      %v2024 = vadd.f32 %v1300, %v1768
      %v2025 = vadd.f32 %v1301, %v1769
      %v2026 = vadd.f32 %v1302, %v1770
      %v2027 = vadd.f32 %v1303, %v1771
      %v2028 = vadd.f32 %v1304, %v1772
      %v2029 = vadd.f32 %v1305, %v1773
      %v2030 = vadd.f32 %v1306, %v1774
      %v2031 = vadd.f32 %v1307, %v1775
      %v2032 = vadd.f32 %v1308, %v1776
      %v2033 = vadd.f32 %v1309, %v1777
      %v2034 = vadd.f32 %v1310, %v1778
      %v2035 = vadd.f32 %v1311, %v1779
      %v2036 = vadd.f32 %v1312, %v1780
      %v2037 = vadd.f32 %v1313, %v1781
      %v2038 = vadd.f32 %v1314, %v1782
      %v2039 = vadd.f32 %v1315, %v1783
      %v2040 = vadd.f32 %v1316, %v1784
      %v2041 = vadd.f32 %v1317, %v1785
      %v2042 = vld [vmem:[%s8] sm:$0xff]
      %v2043 = vld [vmem:[%s8 + $0x8] sm:$0xff]
      %v2044 = vld [vmem:[%s8 + $0x10] sm:$0xff]
      %v2045 = vld [vmem:[%s8 + $0x18] sm:$0xff]
      %v2046 = vld [vmem:[%s8 + $0x20] sm:$0xff]
      %v2047 = vld [vmem:[%s8 + $0x28] sm:$0xff]
      %v2048 = vld [vmem:[%s8 + $0x30] sm:$0xff]
      %v2049 = vld [vmem:[%s8 + $0x38] sm:$0xff]
      %2051 = vset.pattern.permute.xlu0 0
      %2052 = vperm.xlu0 %2051, %v2042
      %v2053 = vpop.permute.xlu0 %2052
      %2056 = vset.pattern.permute.xlu0 0
      %2057 = vperm.xlu0 %2056, %v2043
      %v2058 = vpop.permute.xlu0 %2057
      %2061 = vset.pattern.permute.xlu0 0
      %2062 = vperm.xlu0 %2061, %v2044
      %v2063 = vpop.permute.xlu0 %2062
      %2066 = vset.pattern.permute.xlu0 0
      %2067 = vperm.xlu0 %2066, %v2045
      %v2068 = vpop.permute.xlu0 %2067
      %2071 = vset.pattern.permute.xlu0 0
      %2072 = vperm.xlu0 %2071, %v2046
      %v2073 = vpop.permute.xlu0 %2072
      %2076 = vset.pattern.permute.xlu0 0
      %2077 = vperm.xlu0 %2076, %v2047
      %v2078 = vpop.permute.xlu0 %2077
      %2081 = vset.pattern.permute.xlu0 0
      %2082 = vperm.xlu0 %2081, %v2048
      %v2083 = vpop.permute.xlu0 %2082
      %2086 = vset.pattern.permute.xlu0 0
      %2087 = vperm.xlu0 %2086, %v2049
      %v2088 = vpop.permute.xlu0 %2087
      %v2090 = vadd.f32 %v1786, %v2053
      %v2091 = vadd.f32 %v1787, %v2053
      %v2092 = vadd.f32 %v1788, %v2053
      %v2093 = vadd.f32 %v1789, %v2053
      %v2094 = vadd.f32 %v1790, %v2053
      %v2095 = vadd.f32 %v1791, %v2053
      %v2096 = vadd.f32 %v1792, %v2053
      %v2097 = vadd.f32 %v1793, %v2053
      %v2098 = vadd.f32 %v1794, %v2053
      %v2099 = vadd.f32 %v1795, %v2053
      %v2100 = vadd.f32 %v1796, %v2053
      %v2101 = vadd.f32 %v1797, %v2053
      %v2102 = vadd.f32 %v1798, %v2053
      %v2103 = vadd.f32 %v1799, %v2053
      %v2104 = vadd.f32 %v1800, %v2053
      %v2105 = vadd.f32 %v1801, %v2053
      %v2106 = vadd.f32 %v1802, %v2053
      %v2107 = vadd.f32 %v1803, %v2053
      %v2108 = vadd.f32 %v1804, %v2053
      %v2109 = vadd.f32 %v1805, %v2053
      %v2110 = vadd.f32 %v1806, %v2053
      %v2111 = vadd.f32 %v1807, %v2053
      %v2112 = vadd.f32 %v1808, %v2053
      %v2113 = vadd.f32 %v1809, %v2053
      %v2114 = vadd.f32 %v1810, %v2053
      %v2115 = vadd.f32 %v1811, %v2053
      %v2116 = vadd.f32 %v1812, %v2053
      %v2117 = vadd.f32 %v1813, %v2053
      %v2118 = vadd.f32 %v1814, %v2053
      %v2119 = vadd.f32 %v1815, %v2053
      %v2120 = vadd.f32 %v1816, %v2053
      %v2121 = vadd.f32 %v1817, %v2053
      %v2122 = vadd.f32 %v1818, %v2058
      %v2123 = vadd.f32 %v1819, %v2058
      %v2124 = vadd.f32 %v1820, %v2058
      %v2125 = vadd.f32 %v1821, %v2058
      %v2126 = vadd.f32 %v1822, %v2058
      %v2127 = vadd.f32 %v1823, %v2058
      %v2128 = vadd.f32 %v1824, %v2058
      %v2129 = vadd.f32 %v1825, %v2058
      %v2130 = vadd.f32 %v1826, %v2058
      %v2131 = vadd.f32 %v1827, %v2058
      %v2132 = vadd.f32 %v1828, %v2058
      %v2133 = vadd.f32 %v1829, %v2058
      %v2134 = vadd.f32 %v1830, %v2058
      %v2135 = vadd.f32 %v1831, %v2058
      %v2136 = vadd.f32 %v1832, %v2058
      %v2137 = vadd.f32 %v1833, %v2058
      %v2138 = vadd.f32 %v1834, %v2058
      %v2139 = vadd.f32 %v1835, %v2058
      %v2140 = vadd.f32 %v1836, %v2058
      %v2141 = vadd.f32 %v1837, %v2058
      %v2142 = vadd.f32 %v1838, %v2058
      %v2143 = vadd.f32 %v1839, %v2058
      %v2144 = vadd.f32 %v1840, %v2058
      %v2145 = vadd.f32 %v1841, %v2058
      %v2146 = vadd.f32 %v1842, %v2058
      %v2147 = vadd.f32 %v1843, %v2058
      %v2148 = vadd.f32 %v1844, %v2058
      %v2149 = vadd.f32 %v1845, %v2058
      %v2150 = vadd.f32 %v1846, %v2058
      %v2151 = vadd.f32 %v1847, %v2058
      %v2152 = vadd.f32 %v1848, %v2058
      %v2153 = vadd.f32 %v1849, %v2058
      %v2154 = vadd.f32 %v1850, %v2063
      %v2155 = vadd.f32 %v1851, %v2063
      %v2156 = vadd.f32 %v1852, %v2063
      %v2157 = vadd.f32 %v1853, %v2063
      %v2158 = vadd.f32 %v1854, %v2063
      %v2159 = vadd.f32 %v1855, %v2063
      %v2160 = vadd.f32 %v1856, %v2063
      %v2161 = vadd.f32 %v1857, %v2063
      %v2162 = vadd.f32 %v1858, %v2063
      %v2163 = vadd.f32 %v1859, %v2063
      %v2164 = vadd.f32 %v1860, %v2063
      %v2165 = vadd.f32 %v1861, %v2063
      %v2166 = vadd.f32 %v1862, %v2063
      %v2167 = vadd.f32 %v1863, %v2063
      %v2168 = vadd.f32 %v1864, %v2063
      %v2169 = vadd.f32 %v1865, %v2063
      %v2170 = vadd.f32 %v1866, %v2063
      %v2171 = vadd.f32 %v1867, %v2063
      %v2172 = vadd.f32 %v1868, %v2063
      %v2173 = vadd.f32 %v1869, %v2063
      %v2174 = vadd.f32 %v1870, %v2063
      %v2175 = vadd.f32 %v1871, %v2063
      %v2176 = vadd.f32 %v1872, %v2063
      %v2177 = vadd.f32 %v1873, %v2063
      %v2178 = vadd.f32 %v1874, %v2063
      %v2179 = vadd.f32 %v1875, %v2063
      %v2180 = vadd.f32 %v1876, %v2063
      %v2181 = vadd.f32 %v1877, %v2063
      %v2182 = vadd.f32 %v1878, %v2063
      %v2183 = vadd.f32 %v1879, %v2063
      %v2184 = vadd.f32 %v1880, %v2063
      %v2185 = vadd.f32 %v1881, %v2063
      %v2186 = vadd.f32 %v1882, %v2068
      %v2187 = vadd.f32 %v1883, %v2068
      %v2188 = vadd.f32 %v1884, %v2068
      %v2189 = vadd.f32 %v1885, %v2068
      %v2190 = vadd.f32 %v1886, %v2068
      %v2191 = vadd.f32 %v1887, %v2068
      %v2192 = vadd.f32 %v1888, %v2068
      %v2193 = vadd.f32 %v1889, %v2068
      %v2194 = vadd.f32 %v1890, %v2068
      %v2195 = vadd.f32 %v1891, %v2068
      %v2196 = vadd.f32 %v1892, %v2068
      %v2197 = vadd.f32 %v1893, %v2068
      %v2198 = vadd.f32 %v1894, %v2068
      %v2199 = vadd.f32 %v1895, %v2068
      %v2200 = vadd.f32 %v1896, %v2068
      %v2201 = vadd.f32 %v1897, %v2068
      %v2202 = vadd.f32 %v1898, %v2068
      %v2203 = vadd.f32 %v1899, %v2068
      %v2204 = vadd.f32 %v1900, %v2068
      %v2205 = vadd.f32 %v1901, %v2068
      %v2206 = vadd.f32 %v1902, %v2068
      %v2207 = vadd.f32 %v1903, %v2068
      %v2208 = vadd.f32 %v1904, %v2068
      %v2209 = vadd.f32 %v1905, %v2068
      %v2210 = vadd.f32 %v1906, %v2068
      %v2211 = vadd.f32 %v1907, %v2068
      %v2212 = vadd.f32 %v1908, %v2068
      %v2213 = vadd.f32 %v1909, %v2068
      %v2214 = vadd.f32 %v1910, %v2068
      %v2215 = vadd.f32 %v1911, %v2068
      %v2216 = vadd.f32 %v1912, %v2068
      %v2217 = vadd.f32 %v1913, %v2068
      %v2218 = vadd.f32 %v1914, %v2073
      %v2219 = vadd.f32 %v1915, %v2073
      %v2220 = vadd.f32 %v1916, %v2073
      %v2221 = vadd.f32 %v1917, %v2073
      %v2222 = vadd.f32 %v1918, %v2073
      %v2223 = vadd.f32 %v1919, %v2073
      %v2224 = vadd.f32 %v1920, %v2073
      %v2225 = vadd.f32 %v1921, %v2073
      %v2226 = vadd.f32 %v1922, %v2073
      %v2227 = vadd.f32 %v1923, %v2073
      %v2228 = vadd.f32 %v1924, %v2073
      %v2229 = vadd.f32 %v1925, %v2073
      %v2230 = vadd.f32 %v1926, %v2073
      %v2231 = vadd.f32 %v1927, %v2073
      %v2232 = vadd.f32 %v1928, %v2073
      %v2233 = vadd.f32 %v1929, %v2073
      %v2234 = vadd.f32 %v1930, %v2073
      %v2235 = vadd.f32 %v1931, %v2073
      %v2236 = vadd.f32 %v1932, %v2073
      %v2237 = vadd.f32 %v1933, %v2073
      %v2238 = vadd.f32 %v1934, %v2073
      %v2239 = vadd.f32 %v1935, %v2073
      %v2240 = vadd.f32 %v1936, %v2073
      %v2241 = vadd.f32 %v1937, %v2073
      %v2242 = vadd.f32 %v1938, %v2073
      %v2243 = vadd.f32 %v1939, %v2073
      %v2244 = vadd.f32 %v1940, %v2073
      %v2245 = vadd.f32 %v1941, %v2073
      %v2246 = vadd.f32 %v1942, %v2073
      %v2247 = vadd.f32 %v1943, %v2073
      %v2248 = vadd.f32 %v1944, %v2073
      %v2249 = vadd.f32 %v1945, %v2073
      %v2250 = vadd.f32 %v1946, %v2078
      %v2251 = vadd.f32 %v1947, %v2078
      %v2252 = vadd.f32 %v1948, %v2078
      %v2253 = vadd.f32 %v1949, %v2078
      %v2254 = vadd.f32 %v1950, %v2078
      %v2255 = vadd.f32 %v1951, %v2078
      %v2256 = vadd.f32 %v1952, %v2078
      %v2257 = vadd.f32 %v1953, %v2078
      %v2258 = vadd.f32 %v1954, %v2078
      %v2259 = vadd.f32 %v1955, %v2078
      %v2260 = vadd.f32 %v1956, %v2078
      %v2261 = vadd.f32 %v1957, %v2078
      %v2262 = vadd.f32 %v1958, %v2078
      %v2263 = vadd.f32 %v1959, %v2078
      %v2264 = vadd.f32 %v1960, %v2078
      %v2265 = vadd.f32 %v1961, %v2078
      %v2266 = vadd.f32 %v1962, %v2078
      %v2267 = vadd.f32 %v1963, %v2078
      %v2268 = vadd.f32 %v1964, %v2078
      %v2269 = vadd.f32 %v1965, %v2078
      %v2270 = vadd.f32 %v1966, %v2078
      %v2271 = vadd.f32 %v1967, %v2078
      %v2272 = vadd.f32 %v1968, %v2078
      %v2273 = vadd.f32 %v1969, %v2078
      %v2274 = vadd.f32 %v1970, %v2078
      %v2275 = vadd.f32 %v1971, %v2078
      %v2276 = vadd.f32 %v1972, %v2078
      %v2277 = vadd.f32 %v1973, %v2078
      %v2278 = vadd.f32 %v1974, %v2078
      %v2279 = vadd.f32 %v1975, %v2078
      %v2280 = vadd.f32 %v1976, %v2078
      %v2281 = vadd.f32 %v1977, %v2078
      %v2282 = vadd.f32 %v1978, %v2083
      %v2283 = vadd.f32 %v1979, %v2083
      %v2284 = vadd.f32 %v1980, %v2083
      %v2285 = vadd.f32 %v1981, %v2083
      %v2286 = vadd.f32 %v1982, %v2083
      %v2287 = vadd.f32 %v1983, %v2083
      %v2288 = vadd.f32 %v1984, %v2083
      %v2289 = vadd.f32 %v1985, %v2083
      %v2290 = vadd.f32 %v1986, %v2083
      %v2291 = vadd.f32 %v1987, %v2083
      %v2292 = vadd.f32 %v1988, %v2083
      %v2293 = vadd.f32 %v1989, %v2083
      %v2294 = vadd.f32 %v1990, %v2083
      %v2295 = vadd.f32 %v1991, %v2083
      %v2296 = vadd.f32 %v1992, %v2083
      %v2297 = vadd.f32 %v1993, %v2083
      %v2298 = vadd.f32 %v1994, %v2083
      %v2299 = vadd.f32 %v1995, %v2083
      %v2300 = vadd.f32 %v1996, %v2083
      %v2301 = vadd.f32 %v1997, %v2083
      %v2302 = vadd.f32 %v1998, %v2083
      %v2303 = vadd.f32 %v1999, %v2083
      %v2304 = vadd.f32 %v2000, %v2083
      %v2305 = vadd.f32 %v2001, %v2083
      %v2306 = vadd.f32 %v2002, %v2083
      %v2307 = vadd.f32 %v2003, %v2083
      %v2308 = vadd.f32 %v2004, %v2083
      %v2309 = vadd.f32 %v2005, %v2083
      %v2310 = vadd.f32 %v2006, %v2083
      %v2311 = vadd.f32 %v2007, %v2083
      %v2312 = vadd.f32 %v2008, %v2083
      %v2313 = vadd.f32 %v2009, %v2083
      %v2314 = vadd.f32 %v2010, %v2088
      %v2315 = vadd.f32 %v2011, %v2088
      %v2316 = vadd.f32 %v2012, %v2088
      %v2317 = vadd.f32 %v2013, %v2088
      %v2318 = vadd.f32 %v2014, %v2088
      %v2319 = vadd.f32 %v2015, %v2088
      %v2320 = vadd.f32 %v2016, %v2088
      %v2321 = vadd.f32 %v2017, %v2088
      %v2322 = vadd.f32 %v2018, %v2088
      %v2323 = vadd.f32 %v2019, %v2088
      %v2324 = vadd.f32 %v2020, %v2088
      %v2325 = vadd.f32 %v2021, %v2088
      %v2326 = vadd.f32 %v2022, %v2088
      %v2327 = vadd.f32 %v2023, %v2088
      %v2328 = vadd.f32 %v2024, %v2088
      %v2329 = vadd.f32 %v2025, %v2088
      %v2330 = vadd.f32 %v2026, %v2088
      %v2331 = vadd.f32 %v2027, %v2088
      %v2332 = vadd.f32 %v2028, %v2088
      %v2333 = vadd.f32 %v2029, %v2088
      %v2334 = vadd.f32 %v2030, %v2088
      %v2335 = vadd.f32 %v2031, %v2088
      %v2336 = vadd.f32 %v2032, %v2088
      %v2337 = vadd.f32 %v2033, %v2088
      %v2338 = vadd.f32 %v2034, %v2088
      %v2339 = vadd.f32 %v2035, %v2088
      %v2340 = vadd.f32 %v2036, %v2088
      %v2341 = vadd.f32 %v2037, %v2088
      %v2342 = vadd.f32 %v2038, %v2088
      %v2343 = vadd.f32 %v2039, %v2088
      %v2344 = vadd.f32 %v2040, %v2088
      %v2345 = vadd.f32 %v2041, %v2088
      %v2350 = vlaneseq
      %v2351 = vshrl.u32 %v2350, 7
      %v2352 = vsub.s32 0, %v2351
      %v2353 = vrot.slane %v846, %v2352
      %v2354 = vlaneseq
      %v2355 = vshrl.u32 %v2354, 7
      %v2356 = vsub.s32 1, %v2355
      %v2357 = vrot.slane %v846, %v2356
      %v2358 = vlaneseq
      %v2359 = vshrl.u32 %v2358, 7
      %v2360 = vsub.s32 2, %v2359
      %v2361 = vrot.slane %v846, %v2360
      %v2362 = vlaneseq
      %v2363 = vshrl.u32 %v2362, 7
      %v2364 = vsub.s32 3, %v2363
      %v2365 = vrot.slane %v846, %v2364
      %v2366 = vlaneseq
      %v2367 = vshrl.u32 %v2366, 7
      %v2368 = vsub.s32 4, %v2367
      %v2369 = vrot.slane %v846, %v2368
      %v2370 = vlaneseq
      %v2371 = vshrl.u32 %v2370, 7
      %v2372 = vsub.s32 5, %v2371
      %v2373 = vrot.slane %v846, %v2372
      %v2374 = vlaneseq
      %v2375 = vshrl.u32 %v2374, 7
      %v2376 = vsub.s32 6, %v2375
      %v2377 = vrot.slane %v846, %v2376
      %v2378 = vlaneseq
      %v2379 = vshrl.u32 %v2378, 7
      %v2380 = vsub.s32 7, %v2379
      %v2381 = vrot.slane %v846, %v2380
      %v2382 = vlaneseq
      %v2383 = vshrl.u32 %v2382, 7
      %v2384 = vsub.s32 0, %v2383
      %v2385 = vrot.slane %v847, %v2384
      %v2386 = vlaneseq
      %v2387 = vshrl.u32 %v2386, 7
      %v2388 = vsub.s32 1, %v2387
      %v2389 = vrot.slane %v847, %v2388
      %v2390 = vlaneseq
      %v2391 = vshrl.u32 %v2390, 7
      %v2392 = vsub.s32 2, %v2391
      %v2393 = vrot.slane %v847, %v2392
      %v2394 = vlaneseq
      %v2395 = vshrl.u32 %v2394, 7
      %v2396 = vsub.s32 3, %v2395
      %v2397 = vrot.slane %v847, %v2396
      %v2398 = vlaneseq
      %v2399 = vshrl.u32 %v2398, 7
      %v2400 = vsub.s32 4, %v2399
      %v2401 = vrot.slane %v847, %v2400
      %v2402 = vlaneseq
      %v2403 = vshrl.u32 %v2402, 7
      %v2404 = vsub.s32 5, %v2403
      %v2405 = vrot.slane %v847, %v2404
      %v2406 = vlaneseq
      %v2407 = vshrl.u32 %v2406, 7
      %v2408 = vsub.s32 6, %v2407
      %v2409 = vrot.slane %v847, %v2408
      %v2410 = vlaneseq
      %v2411 = vshrl.u32 %v2410, 7
      %v2412 = vsub.s32 7, %v2411
      %v2413 = vrot.slane %v847, %v2412
      %v2414 = vlaneseq
      %v2415 = vshrl.u32 %v2414, 7
      %v2416 = vsub.s32 0, %v2415
      %v2417 = vrot.slane %v848, %v2416
      %v2418 = vlaneseq
      %v2419 = vshrl.u32 %v2418, 7
      %v2420 = vsub.s32 1, %v2419
      %v2421 = vrot.slane %v848, %v2420
      %v2422 = vlaneseq
      %v2423 = vshrl.u32 %v2422, 7
      %v2424 = vsub.s32 2, %v2423
      %v2425 = vrot.slane %v848, %v2424
      %v2426 = vlaneseq
      %v2427 = vshrl.u32 %v2426, 7
      %v2428 = vsub.s32 3, %v2427
      %v2429 = vrot.slane %v848, %v2428
      %v2430 = vlaneseq
      %v2431 = vshrl.u32 %v2430, 7
      %v2432 = vsub.s32 4, %v2431
      %v2433 = vrot.slane %v848, %v2432
      %v2434 = vlaneseq
      %v2435 = vshrl.u32 %v2434, 7
      %v2436 = vsub.s32 5, %v2435
      %v2437 = vrot.slane %v848, %v2436
      %v2438 = vlaneseq
      %v2439 = vshrl.u32 %v2438, 7
      %v2440 = vsub.s32 6, %v2439
      %v2441 = vrot.slane %v848, %v2440
      %v2442 = vlaneseq
      %v2443 = vshrl.u32 %v2442, 7
      %v2444 = vsub.s32 7, %v2443
      %v2445 = vrot.slane %v848, %v2444
      %v2446 = vlaneseq
      %v2447 = vshrl.u32 %v2446, 7
      %v2448 = vsub.s32 0, %v2447
      %v2449 = vrot.slane %v849, %v2448
      %v2450 = vlaneseq
      %v2451 = vshrl.u32 %v2450, 7
      %v2452 = vsub.s32 1, %v2451
      %v2453 = vrot.slane %v849, %v2452
      %v2454 = vlaneseq
      %v2455 = vshrl.u32 %v2454, 7
      %v2456 = vsub.s32 2, %v2455
      %v2457 = vrot.slane %v849, %v2456
      %v2458 = vlaneseq
      %v2459 = vshrl.u32 %v2458, 7
      %v2460 = vsub.s32 3, %v2459
      %v2461 = vrot.slane %v849, %v2460
      %v2462 = vlaneseq
      %v2463 = vshrl.u32 %v2462, 7
      %v2464 = vsub.s32 4, %v2463
      %v2465 = vrot.slane %v849, %v2464
      %v2466 = vlaneseq
      %v2467 = vshrl.u32 %v2466, 7
      %v2468 = vsub.s32 5, %v2467
      %v2469 = vrot.slane %v849, %v2468
      %v2470 = vlaneseq
      %v2471 = vshrl.u32 %v2470, 7
      %v2472 = vsub.s32 6, %v2471
      %v2473 = vrot.slane %v849, %v2472
      %v2474 = vlaneseq
      %v2475 = vshrl.u32 %v2474, 7
      %v2476 = vsub.s32 7, %v2475
      %v2477 = vrot.slane %v849, %v2476
      %v2510 = vmul.f32 %v2090, %v2353
      %v2511 = vmul.f32 %v2091, %v2357
      %v2512 = vmul.f32 %v2092, %v2361
      %v2513 = vmul.f32 %v2093, %v2365
      %v2514 = vmul.f32 %v2094, %v2369
      %v2515 = vmul.f32 %v2095, %v2373
      %v2516 = vmul.f32 %v2096, %v2377
      %v2517 = vmul.f32 %v2097, %v2381
      %v2518 = vmul.f32 %v2098, %v2385
      %v2519 = vmul.f32 %v2099, %v2389
      %v2520 = vmul.f32 %v2100, %v2393
      %v2521 = vmul.f32 %v2101, %v2397
      %v2522 = vmul.f32 %v2102, %v2401
      %v2523 = vmul.f32 %v2103, %v2405
      %v2524 = vmul.f32 %v2104, %v2409
      %v2525 = vmul.f32 %v2105, %v2413
      %v2526 = vmul.f32 %v2106, %v2417
      %v2527 = vmul.f32 %v2107, %v2421
      %v2528 = vmul.f32 %v2108, %v2425
      %v2529 = vmul.f32 %v2109, %v2429
      %v2530 = vmul.f32 %v2110, %v2433
      %v2531 = vmul.f32 %v2111, %v2437
      %v2532 = vmul.f32 %v2112, %v2441
      %v2533 = vmul.f32 %v2113, %v2445
      %v2534 = vmul.f32 %v2114, %v2449
      %v2535 = vmul.f32 %v2115, %v2453
      %v2536 = vmul.f32 %v2116, %v2457
      %v2537 = vmul.f32 %v2117, %v2461
      %v2538 = vmul.f32 %v2118, %v2465
      %v2539 = vmul.f32 %v2119, %v2469
      %v2540 = vmul.f32 %v2120, %v2473
      %v2541 = vmul.f32 %v2121, %v2477
      %v2542 = vmul.f32 %v2122, %v2353
      %v2543 = vmul.f32 %v2123, %v2357
      %v2544 = vmul.f32 %v2124, %v2361
      %v2545 = vmul.f32 %v2125, %v2365
      %v2546 = vmul.f32 %v2126, %v2369
      %v2547 = vmul.f32 %v2127, %v2373
      %v2548 = vmul.f32 %v2128, %v2377
      %v2549 = vmul.f32 %v2129, %v2381
      %v2550 = vmul.f32 %v2130, %v2385
      %v2551 = vmul.f32 %v2131, %v2389
      %v2552 = vmul.f32 %v2132, %v2393
      %v2553 = vmul.f32 %v2133, %v2397
      %v2554 = vmul.f32 %v2134, %v2401
      %v2555 = vmul.f32 %v2135, %v2405
      %v2556 = vmul.f32 %v2136, %v2409
      %v2557 = vmul.f32 %v2137, %v2413
      %v2558 = vmul.f32 %v2138, %v2417
      %v2559 = vmul.f32 %v2139, %v2421
      %v2560 = vmul.f32 %v2140, %v2425
      %v2561 = vmul.f32 %v2141, %v2429
      %v2562 = vmul.f32 %v2142, %v2433
      %v2563 = vmul.f32 %v2143, %v2437
      %v2564 = vmul.f32 %v2144, %v2441
      %v2565 = vmul.f32 %v2145, %v2445
      %v2566 = vmul.f32 %v2146, %v2449
      %v2567 = vmul.f32 %v2147, %v2453
      %v2568 = vmul.f32 %v2148, %v2457
      %v2569 = vmul.f32 %v2149, %v2461
      %v2570 = vmul.f32 %v2150, %v2465
      %v2571 = vmul.f32 %v2151, %v2469
      %v2572 = vmul.f32 %v2152, %v2473
      %v2573 = vmul.f32 %v2153, %v2477
      %v2574 = vmul.f32 %v2154, %v2353
      %v2575 = vmul.f32 %v2155, %v2357
      %v2576 = vmul.f32 %v2156, %v2361
      %v2577 = vmul.f32 %v2157, %v2365
      %v2578 = vmul.f32 %v2158, %v2369
      %v2579 = vmul.f32 %v2159, %v2373
      %v2580 = vmul.f32 %v2160, %v2377
      %v2581 = vmul.f32 %v2161, %v2381
      %v2582 = vmul.f32 %v2162, %v2385
      %v2583 = vmul.f32 %v2163, %v2389
      %v2584 = vmul.f32 %v2164, %v2393
      %v2585 = vmul.f32 %v2165, %v2397
      %v2586 = vmul.f32 %v2166, %v2401
      %v2587 = vmul.f32 %v2167, %v2405
      %v2588 = vmul.f32 %v2168, %v2409
      %v2589 = vmul.f32 %v2169, %v2413
      %v2590 = vmul.f32 %v2170, %v2417
      %v2591 = vmul.f32 %v2171, %v2421
      %v2592 = vmul.f32 %v2172, %v2425
      %v2593 = vmul.f32 %v2173, %v2429
      %v2594 = vmul.f32 %v2174, %v2433
      %v2595 = vmul.f32 %v2175, %v2437
      %v2596 = vmul.f32 %v2176, %v2441
      %v2597 = vmul.f32 %v2177, %v2445
      %v2598 = vmul.f32 %v2178, %v2449
      %v2599 = vmul.f32 %v2179, %v2453
      %v2600 = vmul.f32 %v2180, %v2457
      %v2601 = vmul.f32 %v2181, %v2461
      %v2602 = vmul.f32 %v2182, %v2465
      %v2603 = vmul.f32 %v2183, %v2469
      %v2604 = vmul.f32 %v2184, %v2473
      %v2605 = vmul.f32 %v2185, %v2477
      %v2606 = vmul.f32 %v2186, %v2353
      %v2607 = vmul.f32 %v2187, %v2357
      %v2608 = vmul.f32 %v2188, %v2361
      %v2609 = vmul.f32 %v2189, %v2365
      %v2610 = vmul.f32 %v2190, %v2369
      %v2611 = vmul.f32 %v2191, %v2373
      %v2612 = vmul.f32 %v2192, %v2377
      %v2613 = vmul.f32 %v2193, %v2381
      %v2614 = vmul.f32 %v2194, %v2385
      %v2615 = vmul.f32 %v2195, %v2389
      %v2616 = vmul.f32 %v2196, %v2393
      %v2617 = vmul.f32 %v2197, %v2397
      %v2618 = vmul.f32 %v2198, %v2401
      %v2619 = vmul.f32 %v2199, %v2405
      %v2620 = vmul.f32 %v2200, %v2409
      %v2621 = vmul.f32 %v2201, %v2413
      %v2622 = vmul.f32 %v2202, %v2417
      %v2623 = vmul.f32 %v2203, %v2421
      %v2624 = vmul.f32 %v2204, %v2425
      %v2625 = vmul.f32 %v2205, %v2429
      %v2626 = vmul.f32 %v2206, %v2433
      %v2627 = vmul.f32 %v2207, %v2437
      %v2628 = vmul.f32 %v2208, %v2441
      %v2629 = vmul.f32 %v2209, %v2445
      %v2630 = vmul.f32 %v2210, %v2449
      %v2631 = vmul.f32 %v2211, %v2453
      %v2632 = vmul.f32 %v2212, %v2457
      %v2633 = vmul.f32 %v2213, %v2461
      %v2634 = vmul.f32 %v2214, %v2465
      %v2635 = vmul.f32 %v2215, %v2469
      %v2636 = vmul.f32 %v2216, %v2473
      %v2637 = vmul.f32 %v2217, %v2477
      %v2638 = vmul.f32 %v2218, %v2353
      %v2639 = vmul.f32 %v2219, %v2357
      %v2640 = vmul.f32 %v2220, %v2361
      %v2641 = vmul.f32 %v2221, %v2365
      %v2642 = vmul.f32 %v2222, %v2369
      %v2643 = vmul.f32 %v2223, %v2373
      %v2644 = vmul.f32 %v2224, %v2377
      %v2645 = vmul.f32 %v2225, %v2381
      %v2646 = vmul.f32 %v2226, %v2385
      %v2647 = vmul.f32 %v2227, %v2389
      %v2648 = vmul.f32 %v2228, %v2393
      %v2649 = vmul.f32 %v2229, %v2397
      %v2650 = vmul.f32 %v2230, %v2401
      %v2651 = vmul.f32 %v2231, %v2405
      %v2652 = vmul.f32 %v2232, %v2409
      %v2653 = vmul.f32 %v2233, %v2413
      %v2654 = vmul.f32 %v2234, %v2417
      %v2655 = vmul.f32 %v2235, %v2421
      %v2656 = vmul.f32 %v2236, %v2425
      %v2657 = vmul.f32 %v2237, %v2429
      %v2658 = vmul.f32 %v2238, %v2433
      %v2659 = vmul.f32 %v2239, %v2437
      %v2660 = vmul.f32 %v2240, %v2441
      %v2661 = vmul.f32 %v2241, %v2445
      %v2662 = vmul.f32 %v2242, %v2449
      %v2663 = vmul.f32 %v2243, %v2453
      %v2664 = vmul.f32 %v2244, %v2457
      %v2665 = vmul.f32 %v2245, %v2461
      %v2666 = vmul.f32 %v2246, %v2465
      %v2667 = vmul.f32 %v2247, %v2469
      %v2668 = vmul.f32 %v2248, %v2473
      %v2669 = vmul.f32 %v2249, %v2477
      %v2670 = vmul.f32 %v2250, %v2353
      %v2671 = vmul.f32 %v2251, %v2357
      %v2672 = vmul.f32 %v2252, %v2361
      %v2673 = vmul.f32 %v2253, %v2365
      %v2674 = vmul.f32 %v2254, %v2369
      %v2675 = vmul.f32 %v2255, %v2373
      %v2676 = vmul.f32 %v2256, %v2377
      %v2677 = vmul.f32 %v2257, %v2381
      %v2678 = vmul.f32 %v2258, %v2385
      %v2679 = vmul.f32 %v2259, %v2389
      %v2680 = vmul.f32 %v2260, %v2393
      %v2681 = vmul.f32 %v2261, %v2397
      %v2682 = vmul.f32 %v2262, %v2401
      %v2683 = vmul.f32 %v2263, %v2405
      %v2684 = vmul.f32 %v2264, %v2409
      %v2685 = vmul.f32 %v2265, %v2413
      %v2686 = vmul.f32 %v2266, %v2417
      %v2687 = vmul.f32 %v2267, %v2421
      %v2688 = vmul.f32 %v2268, %v2425
      %v2689 = vmul.f32 %v2269, %v2429
      %v2690 = vmul.f32 %v2270, %v2433
      %v2691 = vmul.f32 %v2271, %v2437
      %v2692 = vmul.f32 %v2272, %v2441
      %v2693 = vmul.f32 %v2273, %v2445
      %v2694 = vmul.f32 %v2274, %v2449
      %v2695 = vmul.f32 %v2275, %v2453
      %v2696 = vmul.f32 %v2276, %v2457
      %v2697 = vmul.f32 %v2277, %v2461
      %v2698 = vmul.f32 %v2278, %v2465
      %v2699 = vmul.f32 %v2279, %v2469
      %v2700 = vmul.f32 %v2280, %v2473
      %v2701 = vmul.f32 %v2281, %v2477
      %v2702 = vmul.f32 %v2282, %v2353
      %v2703 = vmul.f32 %v2283, %v2357
      %v2704 = vmul.f32 %v2284, %v2361
      %v2705 = vmul.f32 %v2285, %v2365
      %v2706 = vmul.f32 %v2286, %v2369
      %v2707 = vmul.f32 %v2287, %v2373
      %v2708 = vmul.f32 %v2288, %v2377
      %v2709 = vmul.f32 %v2289, %v2381
      %v2710 = vmul.f32 %v2290, %v2385
      %v2711 = vmul.f32 %v2291, %v2389
      %v2712 = vmul.f32 %v2292, %v2393
      %v2713 = vmul.f32 %v2293, %v2397
      %v2714 = vmul.f32 %v2294, %v2401
      %v2715 = vmul.f32 %v2295, %v2405
      %v2716 = vmul.f32 %v2296, %v2409
      %v2717 = vmul.f32 %v2297, %v2413
      %v2718 = vmul.f32 %v2298, %v2417
      %v2719 = vmul.f32 %v2299, %v2421
      %v2720 = vmul.f32 %v2300, %v2425
      %v2721 = vmul.f32 %v2301, %v2429
      %v2722 = vmul.f32 %v2302, %v2433
      %v2723 = vmul.f32 %v2303, %v2437
      %v2724 = vmul.f32 %v2304, %v2441
      %v2725 = vmul.f32 %v2305, %v2445
      %v2726 = vmul.f32 %v2306, %v2449
      %v2727 = vmul.f32 %v2307, %v2453
      %v2728 = vmul.f32 %v2308, %v2457
      %v2729 = vmul.f32 %v2309, %v2461
      %v2730 = vmul.f32 %v2310, %v2465
      %v2731 = vmul.f32 %v2311, %v2469
      %v2732 = vmul.f32 %v2312, %v2473
      %v2733 = vmul.f32 %v2313, %v2477
      %v2734 = vmul.f32 %v2314, %v2353
      %v2735 = vmul.f32 %v2315, %v2357
      %v2736 = vmul.f32 %v2316, %v2361
      %v2737 = vmul.f32 %v2317, %v2365
      %v2738 = vmul.f32 %v2318, %v2369
      %v2739 = vmul.f32 %v2319, %v2373
      %v2740 = vmul.f32 %v2320, %v2377
      %v2741 = vmul.f32 %v2321, %v2381
      %v2742 = vmul.f32 %v2322, %v2385
      %v2743 = vmul.f32 %v2323, %v2389
      %v2744 = vmul.f32 %v2324, %v2393
      %v2745 = vmul.f32 %v2325, %v2397
      %v2746 = vmul.f32 %v2326, %v2401
      %v2747 = vmul.f32 %v2327, %v2405
      %v2748 = vmul.f32 %v2328, %v2409
      %v2749 = vmul.f32 %v2329, %v2413
      %v2750 = vmul.f32 %v2330, %v2417
      %v2751 = vmul.f32 %v2331, %v2421
      %v2752 = vmul.f32 %v2332, %v2425
      %v2753 = vmul.f32 %v2333, %v2429
      %v2754 = vmul.f32 %v2334, %v2433
      %v2755 = vmul.f32 %v2335, %v2437
      %v2756 = vmul.f32 %v2336, %v2441
      %v2757 = vmul.f32 %v2337, %v2445
      %v2758 = vmul.f32 %v2338, %v2449
      %v2759 = vmul.f32 %v2339, %v2453
      %v2760 = vmul.f32 %v2340, %v2457
      %v2761 = vmul.f32 %v2341, %v2461
      %v2762 = vmul.f32 %v2342, %v2465
      %v2763 = vmul.f32 %v2343, %v2469
      %v2764 = vmul.f32 %v2344, %v2473
      %v2765 = vmul.f32 %v2345, %v2477
      %v2766 = vld [vmem:[%s9] sm:$0xff]
      %v2767 = vld [vmem:[%s9 + $0x8] sm:$0xff]
      %v2768 = vld [vmem:[%s9 + $0x10] sm:$0xff]
      %v2769 = vld [vmem:[%s9 + $0x18] sm:$0xff]
      %v2770 = vld [vmem:[%s9 + $0x20] sm:$0xff]
      %v2771 = vld [vmem:[%s9 + $0x28] sm:$0xff]
      %v2772 = vld [vmem:[%s9 + $0x30] sm:$0xff]
      %v2773 = vld [vmem:[%s9 + $0x38] sm:$0xff]
      %2775 = vset.pattern.permute.xlu0 0
      %2776 = vperm.xlu0 %2775, %v2766
      %v2777 = vpop.permute.xlu0 %2776
      %2780 = vset.pattern.permute.xlu0 0
      %2781 = vperm.xlu0 %2780, %v2767
      %v2782 = vpop.permute.xlu0 %2781
      %2785 = vset.pattern.permute.xlu0 0
      %2786 = vperm.xlu0 %2785, %v2768
      %v2787 = vpop.permute.xlu0 %2786
      %2790 = vset.pattern.permute.xlu0 0
      %2791 = vperm.xlu0 %2790, %v2769
      %v2792 = vpop.permute.xlu0 %2791
      %2795 = vset.pattern.permute.xlu0 0
      %2796 = vperm.xlu0 %2795, %v2770
      %v2797 = vpop.permute.xlu0 %2796
      %2800 = vset.pattern.permute.xlu0 0
      %2801 = vperm.xlu0 %2800, %v2771
      %v2802 = vpop.permute.xlu0 %2801
      %2805 = vset.pattern.permute.xlu0 0
      %2806 = vperm.xlu0 %2805, %v2772
      %v2807 = vpop.permute.xlu0 %2806
      %2810 = vset.pattern.permute.xlu0 0
      %2811 = vperm.xlu0 %2810, %v2773
      %v2812 = vpop.permute.xlu0 %2811
      %v2814 = vadd.f32 %v2510, %v2777
      %v2815 = vadd.f32 %v2511, %v2777
      %v2816 = vadd.f32 %v2512, %v2777
      %v2817 = vadd.f32 %v2513, %v2777
      %v2818 = vadd.f32 %v2514, %v2777
      %v2819 = vadd.f32 %v2515, %v2777
      %v2820 = vadd.f32 %v2516, %v2777
      %v2821 = vadd.f32 %v2517, %v2777
      %v2822 = vadd.f32 %v2518, %v2777
      %v2823 = vadd.f32 %v2519, %v2777
      %v2824 = vadd.f32 %v2520, %v2777
      %v2825 = vadd.f32 %v2521, %v2777
      %v2826 = vadd.f32 %v2522, %v2777
      %v2827 = vadd.f32 %v2523, %v2777
      %v2828 = vadd.f32 %v2524, %v2777
      %v2829 = vadd.f32 %v2525, %v2777
      %v2830 = vadd.f32 %v2526, %v2777
      %v2831 = vadd.f32 %v2527, %v2777
      %v2832 = vadd.f32 %v2528, %v2777
      %v2833 = vadd.f32 %v2529, %v2777
      %v2834 = vadd.f32 %v2530, %v2777
      %v2835 = vadd.f32 %v2531, %v2777
      %v2836 = vadd.f32 %v2532, %v2777
      %v2837 = vadd.f32 %v2533, %v2777
      %v2838 = vadd.f32 %v2534, %v2777
      %v2839 = vadd.f32 %v2535, %v2777
      %v2840 = vadd.f32 %v2536, %v2777
      %v2841 = vadd.f32 %v2537, %v2777
      %v2842 = vadd.f32 %v2538, %v2777
      %v2843 = vadd.f32 %v2539, %v2777
      %v2844 = vadd.f32 %v2540, %v2777
      %v2845 = vadd.f32 %v2541, %v2777
      %v2846 = vadd.f32 %v2542, %v2782
      %v2847 = vadd.f32 %v2543, %v2782
      %v2848 = vadd.f32 %v2544, %v2782
      %v2849 = vadd.f32 %v2545, %v2782
      %v2850 = vadd.f32 %v2546, %v2782
      %v2851 = vadd.f32 %v2547, %v2782
      %v2852 = vadd.f32 %v2548, %v2782
      %v2853 = vadd.f32 %v2549, %v2782
      %v2854 = vadd.f32 %v2550, %v2782
      %v2855 = vadd.f32 %v2551, %v2782
      %v2856 = vadd.f32 %v2552, %v2782
      %v2857 = vadd.f32 %v2553, %v2782
      %v2858 = vadd.f32 %v2554, %v2782
      %v2859 = vadd.f32 %v2555, %v2782
      %v2860 = vadd.f32 %v2556, %v2782
      %v2861 = vadd.f32 %v2557, %v2782
      %v2862 = vadd.f32 %v2558, %v2782
      %v2863 = vadd.f32 %v2559, %v2782
      %v2864 = vadd.f32 %v2560, %v2782
      %v2865 = vadd.f32 %v2561, %v2782
      %v2866 = vadd.f32 %v2562, %v2782
      %v2867 = vadd.f32 %v2563, %v2782
      %v2868 = vadd.f32 %v2564, %v2782
      %v2869 = vadd.f32 %v2565, %v2782
      %v2870 = vadd.f32 %v2566, %v2782
      %v2871 = vadd.f32 %v2567, %v2782
      %v2872 = vadd.f32 %v2568, %v2782
      %v2873 = vadd.f32 %v2569, %v2782
      %v2874 = vadd.f32 %v2570, %v2782
      %v2875 = vadd.f32 %v2571, %v2782
      %v2876 = vadd.f32 %v2572, %v2782
      %v2877 = vadd.f32 %v2573, %v2782
      %v2878 = vadd.f32 %v2574, %v2787
      %v2879 = vadd.f32 %v2575, %v2787
      %v2880 = vadd.f32 %v2576, %v2787
      %v2881 = vadd.f32 %v2577, %v2787
      %v2882 = vadd.f32 %v2578, %v2787
      %v2883 = vadd.f32 %v2579, %v2787
      %v2884 = vadd.f32 %v2580, %v2787
      %v2885 = vadd.f32 %v2581, %v2787
      %v2886 = vadd.f32 %v2582, %v2787
      %v2887 = vadd.f32 %v2583, %v2787
      %v2888 = vadd.f32 %v2584, %v2787
      %v2889 = vadd.f32 %v2585, %v2787
      %v2890 = vadd.f32 %v2586, %v2787
      %v2891 = vadd.f32 %v2587, %v2787
      %v2892 = vadd.f32 %v2588, %v2787
      %v2893 = vadd.f32 %v2589, %v2787
      %v2894 = vadd.f32 %v2590, %v2787
      %v2895 = vadd.f32 %v2591, %v2787
      %v2896 = vadd.f32 %v2592, %v2787
      %v2897 = vadd.f32 %v2593, %v2787
      %v2898 = vadd.f32 %v2594, %v2787
      %v2899 = vadd.f32 %v2595, %v2787
      %v2900 = vadd.f32 %v2596, %v2787
      %v2901 = vadd.f32 %v2597, %v2787
      %v2902 = vadd.f32 %v2598, %v2787
      %v2903 = vadd.f32 %v2599, %v2787
      %v2904 = vadd.f32 %v2600, %v2787
      %v2905 = vadd.f32 %v2601, %v2787
      %v2906 = vadd.f32 %v2602, %v2787
      %v2907 = vadd.f32 %v2603, %v2787
      %v2908 = vadd.f32 %v2604, %v2787
      %v2909 = vadd.f32 %v2605, %v2787
      %v2910 = vadd.f32 %v2606, %v2792
      %v2911 = vadd.f32 %v2607, %v2792
      %v2912 = vadd.f32 %v2608, %v2792
      %v2913 = vadd.f32 %v2609, %v2792
      %v2914 = vadd.f32 %v2610, %v2792
      %v2915 = vadd.f32 %v2611, %v2792
      %v2916 = vadd.f32 %v2612, %v2792
      %v2917 = vadd.f32 %v2613, %v2792
      %v2918 = vadd.f32 %v2614, %v2792
      %v2919 = vadd.f32 %v2615, %v2792
      %v2920 = vadd.f32 %v2616, %v2792
      %v2921 = vadd.f32 %v2617, %v2792
      %v2922 = vadd.f32 %v2618, %v2792
      %v2923 = vadd.f32 %v2619, %v2792
      %v2924 = vadd.f32 %v2620, %v2792
      %v2925 = vadd.f32 %v2621, %v2792
      %v2926 = vadd.f32 %v2622, %v2792
      %v2927 = vadd.f32 %v2623, %v2792
      %v2928 = vadd.f32 %v2624, %v2792
      %v2929 = vadd.f32 %v2625, %v2792
      %v2930 = vadd.f32 %v2626, %v2792
      %v2931 = vadd.f32 %v2627, %v2792
      %v2932 = vadd.f32 %v2628, %v2792
      %v2933 = vadd.f32 %v2629, %v2792
      %v2934 = vadd.f32 %v2630, %v2792
      %v2935 = vadd.f32 %v2631, %v2792
      %v2936 = vadd.f32 %v2632, %v2792
      %v2937 = vadd.f32 %v2633, %v2792
      %v2938 = vadd.f32 %v2634, %v2792
      %v2939 = vadd.f32 %v2635, %v2792
      %v2940 = vadd.f32 %v2636, %v2792
      %v2941 = vadd.f32 %v2637, %v2792
      %v2942 = vadd.f32 %v2638, %v2797
      %v2943 = vadd.f32 %v2639, %v2797
      %v2944 = vadd.f32 %v2640, %v2797
      %v2945 = vadd.f32 %v2641, %v2797
      %v2946 = vadd.f32 %v2642, %v2797
      %v2947 = vadd.f32 %v2643, %v2797
      %v2948 = vadd.f32 %v2644, %v2797
      %v2949 = vadd.f32 %v2645, %v2797
      %v2950 = vadd.f32 %v2646, %v2797
      %v2951 = vadd.f32 %v2647, %v2797
      %v2952 = vadd.f32 %v2648, %v2797
      %v2953 = vadd.f32 %v2649, %v2797
      %v2954 = vadd.f32 %v2650, %v2797
      %v2955 = vadd.f32 %v2651, %v2797
      %v2956 = vadd.f32 %v2652, %v2797
      %v2957 = vadd.f32 %v2653, %v2797
      %v2958 = vadd.f32 %v2654, %v2797
      %v2959 = vadd.f32 %v2655, %v2797
      %v2960 = vadd.f32 %v2656, %v2797
      %v2961 = vadd.f32 %v2657, %v2797
      %v2962 = vadd.f32 %v2658, %v2797
      %v2963 = vadd.f32 %v2659, %v2797
      %v2964 = vadd.f32 %v2660, %v2797
      %v2965 = vadd.f32 %v2661, %v2797
      %v2966 = vadd.f32 %v2662, %v2797
      %v2967 = vadd.f32 %v2663, %v2797
      %v2968 = vadd.f32 %v2664, %v2797
      %v2969 = vadd.f32 %v2665, %v2797
      %v2970 = vadd.f32 %v2666, %v2797
      %v2971 = vadd.f32 %v2667, %v2797
      %v2972 = vadd.f32 %v2668, %v2797
      %v2973 = vadd.f32 %v2669, %v2797
      %v2974 = vadd.f32 %v2670, %v2802
      %v2975 = vadd.f32 %v2671, %v2802
      %v2976 = vadd.f32 %v2672, %v2802
      %v2977 = vadd.f32 %v2673, %v2802
      %v2978 = vadd.f32 %v2674, %v2802
      %v2979 = vadd.f32 %v2675, %v2802
      %v2980 = vadd.f32 %v2676, %v2802
      %v2981 = vadd.f32 %v2677, %v2802
      %v2982 = vadd.f32 %v2678, %v2802
      %v2983 = vadd.f32 %v2679, %v2802
      %v2984 = vadd.f32 %v2680, %v2802
      %v2985 = vadd.f32 %v2681, %v2802
      %v2986 = vadd.f32 %v2682, %v2802
      %v2987 = vadd.f32 %v2683, %v2802
      %v2988 = vadd.f32 %v2684, %v2802
      %v2989 = vadd.f32 %v2685, %v2802
      %v2990 = vadd.f32 %v2686, %v2802
      %v2991 = vadd.f32 %v2687, %v2802
      %v2992 = vadd.f32 %v2688, %v2802
      %v2993 = vadd.f32 %v2689, %v2802
      %v2994 = vadd.f32 %v2690, %v2802
      %v2995 = vadd.f32 %v2691, %v2802
      %v2996 = vadd.f32 %v2692, %v2802
      %v2997 = vadd.f32 %v2693, %v2802
      %v2998 = vadd.f32 %v2694, %v2802
      %v2999 = vadd.f32 %v2695, %v2802
      %v3000 = vadd.f32 %v2696, %v2802
      %v3001 = vadd.f32 %v2697, %v2802
      %v3002 = vadd.f32 %v2698, %v2802
      %v3003 = vadd.f32 %v2699, %v2802
      %v3004 = vadd.f32 %v2700, %v2802
      %v3005 = vadd.f32 %v2701, %v2802
      %v3006 = vadd.f32 %v2702, %v2807
      %v3007 = vadd.f32 %v2703, %v2807
      %v3008 = vadd.f32 %v2704, %v2807
      %v3009 = vadd.f32 %v2705, %v2807
      %v3010 = vadd.f32 %v2706, %v2807
      %v3011 = vadd.f32 %v2707, %v2807
      %v3012 = vadd.f32 %v2708, %v2807
      %v3013 = vadd.f32 %v2709, %v2807
      %v3014 = vadd.f32 %v2710, %v2807
      %v3015 = vadd.f32 %v2711, %v2807
      %v3016 = vadd.f32 %v2712, %v2807
      %v3017 = vadd.f32 %v2713, %v2807
      %v3018 = vadd.f32 %v2714, %v2807
      %v3019 = vadd.f32 %v2715, %v2807
      %v3020 = vadd.f32 %v2716, %v2807
      %v3021 = vadd.f32 %v2717, %v2807
      %v3022 = vadd.f32 %v2718, %v2807
      %v3023 = vadd.f32 %v2719, %v2807
      %v3024 = vadd.f32 %v2720, %v2807
      %v3025 = vadd.f32 %v2721, %v2807
      %v3026 = vadd.f32 %v2722, %v2807
      %v3027 = vadd.f32 %v2723, %v2807
      %v3028 = vadd.f32 %v2724, %v2807
      %v3029 = vadd.f32 %v2725, %v2807
      %v3030 = vadd.f32 %v2726, %v2807
      %v3031 = vadd.f32 %v2727, %v2807
      %v3032 = vadd.f32 %v2728, %v2807
      %v3033 = vadd.f32 %v2729, %v2807
      %v3034 = vadd.f32 %v2730, %v2807
      %v3035 = vadd.f32 %v2731, %v2807
      %v3036 = vadd.f32 %v2732, %v2807
      %v3037 = vadd.f32 %v2733, %v2807
      %v3038 = vadd.f32 %v2734, %v2812
      %v3039 = vadd.f32 %v2735, %v2812
      %v3040 = vadd.f32 %v2736, %v2812
      %v3041 = vadd.f32 %v2737, %v2812
      %v3042 = vadd.f32 %v2738, %v2812
      %v3043 = vadd.f32 %v2739, %v2812
      %v3044 = vadd.f32 %v2740, %v2812
      %v3045 = vadd.f32 %v2741, %v2812
      %v3046 = vadd.f32 %v2742, %v2812
      %v3047 = vadd.f32 %v2743, %v2812
      %v3048 = vadd.f32 %v2744, %v2812
      %v3049 = vadd.f32 %v2745, %v2812
      %v3050 = vadd.f32 %v2746, %v2812
      %v3051 = vadd.f32 %v2747, %v2812
      %v3052 = vadd.f32 %v2748, %v2812
      %v3053 = vadd.f32 %v2749, %v2812
      %v3054 = vadd.f32 %v2750, %v2812
      %v3055 = vadd.f32 %v2751, %v2812
      %v3056 = vadd.f32 %v2752, %v2812
      %v3057 = vadd.f32 %v2753, %v2812
      %v3058 = vadd.f32 %v2754, %v2812
      %v3059 = vadd.f32 %v2755, %v2812
      %v3060 = vadd.f32 %v2756, %v2812
      %v3061 = vadd.f32 %v2757, %v2812
      %v3062 = vadd.f32 %v2758, %v2812
      %v3063 = vadd.f32 %v2759, %v2812
      %v3064 = vadd.f32 %v2760, %v2812
      %v3065 = vadd.f32 %v2761, %v2812
      %v3066 = vadd.f32 %v2762, %v2812
      %v3067 = vadd.f32 %v2763, %v2812
      %v3068 = vadd.f32 %v2764, %v2812
      %v3069 = vadd.f32 %v2765, %v2812
      %vm3070 = vcmask 517120
      %3071 = vst.msk [vmem:[#allocation2] sm:$0x3] %vm3070, 0.0
      %vm3072 = vcmask 1041920
      %3073 = vst.msk [vmem:[#allocation2 + $0x84] sm:$0x3] %vm3072, 0.0
      %v3074 = vld [vmem:[%s715] sm:$0x1]
      %3076 = vrot.lane.b32.xlu0 %v3074, 64
      %v3077 = vpop.permute.xlu0 %3076
      %vm3079 = vcmask 1040896
      %3080 = vst.msk [vmem:[#allocation2] sm:$0x1] %vm3079, %v3077
      %v3081 = vld [vmem:[%s722] sm:$0x1]
      %3083 = vrot.lane.b32.xlu0 %v3081, 64
      %v3084 = vpop.permute.xlu0 %3083
      %3086 = vst.msk [vmem:[#allocation2 + $0x1] sm:$0x1] %vm3079, %v3084
      %v3087 = vld [vmem:[%s700] sm:$0xff]
      %v3088 = vld [vmem:[%s700 + $0x8] sm:$0xff]
      %v3089 = vld [vmem:[%s700 + $0x10] sm:$0xff]
      %v3090 = vld [vmem:[%s700 + $0x18] sm:$0xff]
      %s3091 = scalar_lea.vmem [#allocation2], 4
      %3092 = vst [vmem:[%s3091] ss:$4 sm:$0xff] %v3087
      %s3093 = scalar_lea.vmem [#allocation2], 36
      %3094 = vst [vmem:[%s3093] ss:$4 sm:$0xff] %v3088
      %s3095 = scalar_lea.vmem [#allocation2], 68
      %3096 = vst [vmem:[%s3095] ss:$4 sm:$0xff] %v3089
      %s3097 = scalar_lea.vmem [#allocation2], 100
      %3098 = vst [vmem:[%s3097] ss:$4 sm:$0xff] %v3090
      %v3099 = vld [vmem:[%s708] sm:$0xff]
      %v3100 = vld [vmem:[%s708 + $0x8] sm:$0xff]
      %v3101 = vld [vmem:[%s708 + $0x10] sm:$0xff]
      %v3102 = vld [vmem:[%s708 + $0x18] sm:$0xff]
      %s3103 = scalar_lea.vmem [#allocation2], 5
      %3104 = vst [vmem:[%s3103] ss:$4 sm:$0xff] %v3099
      %s3105 = scalar_lea.vmem [#allocation2], 37
      %3106 = vst [vmem:[%s3105] ss:$4 sm:$0xff] %v3100
      %s3107 = scalar_lea.vmem [#allocation2], 69
      %3108 = vst [vmem:[%s3107] ss:$4 sm:$0xff] %v3101
      %s3109 = scalar_lea.vmem [#allocation2], 101
      %3110 = vst [vmem:[%s3109] ss:$4 sm:$0xff] %v3102
      %v3111 = vld [vmem:[%s715 + $0x1] sm:$0x1]
      %vm3112 = vcmask 516096
      %3113 = vst.msk [vmem:[#allocation2 + $0x84] sm:$0x1] %vm3112, %v3111
      %v3114 = vld [vmem:[%s722 + $0x1] sm:$0x1]
      %3115 = vst.msk [vmem:[#allocation2 + $0x85] sm:$0x1] %vm3112, %v3114
      %v3116 = vld [vmem:[#allocation2] ss:$4 sm:$0xff]
      %s3117 = scalar_lea.vmem [#allocation2], 32
      %v3118 = vld [vmem:[%s3117] ss:$4 sm:$0xff]
      %s3119 = scalar_lea.vmem [#allocation2], 64
      %v3120 = vld [vmem:[%s3119] ss:$4 sm:$0xff]
      %s3121 = scalar_lea.vmem [#allocation2], 96
      %v3122 = vld [vmem:[%s3121] ss:$4 sm:$0xff]
      %s3123 = scalar_lea.vmem [#allocation2], 128
      %v3124 = vld [vmem:[%s3123] ss:$4 sm:$0x3]
      %s3125 = scalar_lea.vmem [#allocation2], 1
      %v3126 = vld [vmem:[%s3125] ss:$4 sm:$0xff]
      %s3127 = scalar_lea.vmem [#allocation2], 33
      %v3128 = vld [vmem:[%s3127] ss:$4 sm:$0xff]
      %s3129 = scalar_lea.vmem [#allocation2], 65
      %v3130 = vld [vmem:[%s3129] ss:$4 sm:$0xff]
      %s3131 = scalar_lea.vmem [#allocation2], 97
      %v3132 = vld [vmem:[%s3131] ss:$4 sm:$0xff]
      %s3133 = scalar_lea.vmem [#allocation2], 129
      %v3134 = vld [vmem:[%s3133] ss:$4 sm:$0x3]
      %v3135 = vmax.f32 %v3116, %v3126
      %v3136 = vmax.f32 %v3118, %v3128
      %v3137 = vmax.f32 %v3120, %v3130
      %v3138 = vmax.f32 %v3122, %v3132
      %v3139 = vmax.f32 %v3124, %v3134
      %s3140 = scalar_lea.vmem [#allocation2], 2
      %3141 = vst [vmem:[%s3140] ss:$4 sm:$0xff] %v3135
      %s3142 = scalar_lea.vmem [#allocation2], 34
      %3143 = vst [vmem:[%s3142] ss:$4 sm:$0xff] %v3136
      %s3144 = scalar_lea.vmem [#allocation2], 66
      %3145 = vst [vmem:[%s3144] ss:$4 sm:$0xff] %v3137
      %s3146 = scalar_lea.vmem [#allocation2], 98
      %3147 = vst [vmem:[%s3146] ss:$4 sm:$0xff] %v3138
      %v3148 = vlaneseq
      %vm3149 = vcmp.ge.s32.totalorder %v3148, 0
      %vm3150 = vcmp.lt.s32.totalorder %v3148, 256
      %vm3151 = vmand %vm3149, %vm3150
      %s3152 = scalar_lea.vmem [#allocation2], 130
      %3153 = vst.msk [vmem:[%s3152] ss:$4 sm:$0x3] %vm3151, %v3139
      %v3154 = vlaneseq
      %v3155 = vand.u32 %v3154, 127
      %v3156 = vadd.s32 %v3155, 128
      %v3157 = vadd.s32 %v3155, 256
      %v3158 = vadd.s32 %v3155, 384
      %v3159 = vadd.s32 %v3155, 512
      %v3160 = vadd.s32 %v3155, 640
      %v3161 = vadd.s32 %v3155, 768
      %v3162 = vadd.s32 %v3155, 896
      %v3163 = vadd.s32 %v3155, 1024
      %v3164 = vadd.s32 %v3155, 1152
      %v3165 = vadd.s32 %v3155, 1280
      %v3166 = vadd.s32 %v3155, 1408
      %v3167 = vadd.s32 %v3155, 1536
      %v3168 = vadd.s32 %v3155, 1664
      %v3169 = vadd.s32 %v3155, 1792
      %v3170 = vadd.s32 %v3155, 1920
      %v3171 = vadd.s32 %v3155, 2048
      %v3172 = vadd.s32 %v3155, 2176
      %v3173 = vadd.s32 %v3155, 2304
      %v3174 = vadd.s32 %v3155, 2432
      %v3175 = vadd.s32 %v3155, 2560
      %v3176 = vadd.s32 %v3155, 2688
      %v3177 = vadd.s32 %v3155, 2816
      %v3178 = vadd.s32 %v3155, 2944
      %v3179 = vadd.s32 %v3155, 3072
      %v3180 = vadd.s32 %v3155, 3200
      %v3181 = vadd.s32 %v3155, 3328
      %v3182 = vadd.s32 %v3155, 3456
      %v3183 = vadd.s32 %v3155, 3584
      %v3184 = vadd.s32 %v3155, 3712
      %v3185 = vadd.s32 %v3155, 3840
      %v3186 = vadd.s32 %v3155, 3968
      %vm3187 = vcmp.lt.s32.totalorder %v3155, 0
      %v3188 = vsub.s32 0, %v3155
      %v3189 = vsel %vm3187, %v3188, %v3155
      %v3190 = vshrl.u32 %v3189, 6
      %v3191 = vand.u32 %v3189, 63
      %v3192 = vsub.s32 0, %v3191
      %v3193 = vsel %vm3187, %v3192, %v3191
      %vm3194 = vcmp.lt.s32.totalorder %v3156, 0
      %v3195 = vsub.s32 0, %v3156
      %v3196 = vsel %vm3194, %v3195, %v3156
      %v3197 = vshrl.u32 %v3196, 6
      %v3198 = vand.u32 %v3196, 63
      %v3199 = vsub.s32 0, %v3198
      %v3200 = vsel %vm3194, %v3199, %v3198
      %vm3201 = vcmp.lt.s32.totalorder %v3157, 0
      %v3202 = vsub.s32 0, %v3157
      %v3203 = vsel %vm3201, %v3202, %v3157
      %v3204 = vshrl.u32 %v3203, 6
      %v3205 = vand.u32 %v3203, 63
      %v3206 = vsub.s32 0, %v3205
      %v3207 = vsel %vm3201, %v3206, %v3205
      %vm3208 = vcmp.lt.s32.totalorder %v3158, 0
      %v3209 = vsub.s32 0, %v3158
      %v3210 = vsel %vm3208, %v3209, %v3158
      %v3211 = vshrl.u32 %v3210, 6
      %v3212 = vand.u32 %v3210, 63
      %v3213 = vsub.s32 0, %v3212
      %v3214 = vsel %vm3208, %v3213, %v3212
      %vm3215 = vcmp.lt.s32.totalorder %v3159, 0
      %v3216 = vsub.s32 0, %v3159
      %v3217 = vsel %vm3215, %v3216, %v3159
      %v3218 = vshrl.u32 %v3217, 6
      %v3219 = vand.u32 %v3217, 63
      %v3220 = vsub.s32 0, %v3219
      %v3221 = vsel %vm3215, %v3220, %v3219
      %vm3222 = vcmp.lt.s32.totalorder %v3160, 0
      %v3223 = vsub.s32 0, %v3160
      %v3224 = vsel %vm3222, %v3223, %v3160
      %v3225 = vshrl.u32 %v3224, 6
      %v3226 = vand.u32 %v3224, 63
      %v3227 = vsub.s32 0, %v3226
      %v3228 = vsel %vm3222, %v3227, %v3226
      %vm3229 = vcmp.lt.s32.totalorder %v3161, 0
      %v3230 = vsub.s32 0, %v3161
      %v3231 = vsel %vm3229, %v3230, %v3161
      %v3232 = vshrl.u32 %v3231, 6
      %v3233 = vand.u32 %v3231, 63
      %v3234 = vsub.s32 0, %v3233
      %v3235 = vsel %vm3229, %v3234, %v3233
      %vm3236 = vcmp.lt.s32.totalorder %v3162, 0
      %v3237 = vsub.s32 0, %v3162
      %v3238 = vsel %vm3236, %v3237, %v3162
      %v3239 = vshrl.u32 %v3238, 6
      %v3240 = vand.u32 %v3238, 63
      %v3241 = vsub.s32 0, %v3240
      %v3242 = vsel %vm3236, %v3241, %v3240
      %vm3243 = vcmp.lt.s32.totalorder %v3163, 0
      %v3244 = vsub.s32 0, %v3163
      %v3245 = vsel %vm3243, %v3244, %v3163
      %v3246 = vshrl.u32 %v3245, 6
      %v3247 = vand.u32 %v3245, 63
      %v3248 = vsub.s32 0, %v3247
      %v3249 = vsel %vm3243, %v3248, %v3247
      %vm3250 = vcmp.lt.s32.totalorder %v3164, 0
      %v3251 = vsub.s32 0, %v3164
      %v3252 = vsel %vm3250, %v3251, %v3164
      %v3253 = vshrl.u32 %v3252, 6
      %v3254 = vand.u32 %v3252, 63
      %v3255 = vsub.s32 0, %v3254
      %v3256 = vsel %vm3250, %v3255, %v3254
      %vm3257 = vcmp.lt.s32.totalorder %v3165, 0
      %v3258 = vsub.s32 0, %v3165
      %v3259 = vsel %vm3257, %v3258, %v3165
      %v3260 = vshrl.u32 %v3259, 6
      %v3261 = vand.u32 %v3259, 63
      %v3262 = vsub.s32 0, %v3261
      %v3263 = vsel %vm3257, %v3262, %v3261
      %vm3264 = vcmp.lt.s32.totalorder %v3166, 0
      %v3265 = vsub.s32 0, %v3166
      %v3266 = vsel %vm3264, %v3265, %v3166
      %v3267 = vshrl.u32 %v3266, 6
      %v3268 = vand.u32 %v3266, 63
      %v3269 = vsub.s32 0, %v3268
      %v3270 = vsel %vm3264, %v3269, %v3268
      %vm3271 = vcmp.lt.s32.totalorder %v3167, 0
      %v3272 = vsub.s32 0, %v3167
      %v3273 = vsel %vm3271, %v3272, %v3167
      %v3274 = vshrl.u32 %v3273, 6
      %v3275 = vand.u32 %v3273, 63
      %v3276 = vsub.s32 0, %v3275
      %v3277 = vsel %vm3271, %v3276, %v3275
      %vm3278 = vcmp.lt.s32.totalorder %v3168, 0
      %v3279 = vsub.s32 0, %v3168
      %v3280 = vsel %vm3278, %v3279, %v3168
      %v3281 = vshrl.u32 %v3280, 6
      %v3282 = vand.u32 %v3280, 63
      %v3283 = vsub.s32 0, %v3282
      %v3284 = vsel %vm3278, %v3283, %v3282
      %vm3285 = vcmp.lt.s32.totalorder %v3169, 0
      %v3286 = vsub.s32 0, %v3169
      %v3287 = vsel %vm3285, %v3286, %v3169
      %v3288 = vshrl.u32 %v3287, 6
      %v3289 = vand.u32 %v3287, 63
      %v3290 = vsub.s32 0, %v3289
      %v3291 = vsel %vm3285, %v3290, %v3289
      %vm3292 = vcmp.lt.s32.totalorder %v3170, 0
      %v3293 = vsub.s32 0, %v3170
      %v3294 = vsel %vm3292, %v3293, %v3170
      %v3295 = vshrl.u32 %v3294, 6
      %v3296 = vand.u32 %v3294, 63
      %v3297 = vsub.s32 0, %v3296
      %v3298 = vsel %vm3292, %v3297, %v3296
      %vm3299 = vcmp.lt.s32.totalorder %v3171, 0
      %v3300 = vsub.s32 0, %v3171
      %v3301 = vsel %vm3299, %v3300, %v3171
      %v3302 = vshrl.u32 %v3301, 6
      %v3303 = vand.u32 %v3301, 63
      %v3304 = vsub.s32 0, %v3303
      %v3305 = vsel %vm3299, %v3304, %v3303
      %vm3306 = vcmp.lt.s32.totalorder %v3172, 0
      %v3307 = vsub.s32 0, %v3172
      %v3308 = vsel %vm3306, %v3307, %v3172
      %v3309 = vshrl.u32 %v3308, 6
      %v3310 = vand.u32 %v3308, 63
      %v3311 = vsub.s32 0, %v3310
      %v3312 = vsel %vm3306, %v3311, %v3310
      %vm3313 = vcmp.lt.s32.totalorder %v3173, 0
      %v3314 = vsub.s32 0, %v3173
      %v3315 = vsel %vm3313, %v3314, %v3173
      %v3316 = vshrl.u32 %v3315, 6
      %v3317 = vand.u32 %v3315, 63
      %v3318 = vsub.s32 0, %v3317
      %v3319 = vsel %vm3313, %v3318, %v3317
      %vm3320 = vcmp.lt.s32.totalorder %v3174, 0
      %v3321 = vsub.s32 0, %v3174
      %v3322 = vsel %vm3320, %v3321, %v3174
      %v3323 = vshrl.u32 %v3322, 6
      %v3324 = vand.u32 %v3322, 63
      %v3325 = vsub.s32 0, %v3324
      %v3326 = vsel %vm3320, %v3325, %v3324
      %vm3327 = vcmp.lt.s32.totalorder %v3175, 0
      %v3328 = vsub.s32 0, %v3175
      %v3329 = vsel %vm3327, %v3328, %v3175
      %v3330 = vshrl.u32 %v3329, 6
      %v3331 = vand.u32 %v3329, 63
      %v3332 = vsub.s32 0, %v3331
      %v3333 = vsel %vm3327, %v3332, %v3331
      %vm3334 = vcmp.lt.s32.totalorder %v3176, 0
      %v3335 = vsub.s32 0, %v3176
      %v3336 = vsel %vm3334, %v3335, %v3176
      %v3337 = vshrl.u32 %v3336, 6
      %v3338 = vand.u32 %v3336, 63
      %v3339 = vsub.s32 0, %v3338
      %v3340 = vsel %vm3334, %v3339, %v3338
      %vm3341 = vcmp.lt.s32.totalorder %v3177, 0
      %v3342 = vsub.s32 0, %v3177
      %v3343 = vsel %vm3341, %v3342, %v3177
      %v3344 = vshrl.u32 %v3343, 6
      %v3345 = vand.u32 %v3343, 63
      %v3346 = vsub.s32 0, %v3345
      %v3347 = vsel %vm3341, %v3346, %v3345
      %vm3348 = vcmp.lt.s32.totalorder %v3178, 0
      %v3349 = vsub.s32 0, %v3178
      %v3350 = vsel %vm3348, %v3349, %v3178
      %v3351 = vshrl.u32 %v3350, 6
      %v3352 = vand.u32 %v3350, 63
      %v3353 = vsub.s32 0, %v3352
      %v3354 = vsel %vm3348, %v3353, %v3352
      %vm3355 = vcmp.lt.s32.totalorder %v3179, 0
      %v3356 = vsub.s32 0, %v3179
      %v3357 = vsel %vm3355, %v3356, %v3179
      %v3358 = vshrl.u32 %v3357, 6
      %v3359 = vand.u32 %v3357, 63
      %v3360 = vsub.s32 0, %v3359
      %v3361 = vsel %vm3355, %v3360, %v3359
      %vm3362 = vcmp.lt.s32.totalorder %v3180, 0
      %v3363 = vsub.s32 0, %v3180
      %v3364 = vsel %vm3362, %v3363, %v3180
      %v3365 = vshrl.u32 %v3364, 6
      %v3366 = vand.u32 %v3364, 63
      %v3367 = vsub.s32 0, %v3366
      %v3368 = vsel %vm3362, %v3367, %v3366
      %vm3369 = vcmp.lt.s32.totalorder %v3181, 0
      %v3370 = vsub.s32 0, %v3181
      %v3371 = vsel %vm3369, %v3370, %v3181
      %v3372 = vshrl.u32 %v3371, 6
      %v3373 = vand.u32 %v3371, 63
      %v3374 = vsub.s32 0, %v3373
      %v3375 = vsel %vm3369, %v3374, %v3373
      %vm3376 = vcmp.lt.s32.totalorder %v3182, 0
      %v3377 = vsub.s32 0, %v3182
      %v3378 = vsel %vm3376, %v3377, %v3182
      %v3379 = vshrl.u32 %v3378, 6
      %v3380 = vand.u32 %v3378, 63
      %v3381 = vsub.s32 0, %v3380
      %v3382 = vsel %vm3376, %v3381, %v3380
      %vm3383 = vcmp.lt.s32.totalorder %v3183, 0
      %v3384 = vsub.s32 0, %v3183
      %v3385 = vsel %vm3383, %v3384, %v3183
      %v3386 = vshrl.u32 %v3385, 6
      %v3387 = vand.u32 %v3385, 63
      %v3388 = vsub.s32 0, %v3387
      %v3389 = vsel %vm3383, %v3388, %v3387
      %vm3390 = vcmp.lt.s32.totalorder %v3184, 0
      %v3391 = vsub.s32 0, %v3184
      %v3392 = vsel %vm3390, %v3391, %v3184
      %v3393 = vshrl.u32 %v3392, 6
      %v3394 = vand.u32 %v3392, 63
      %v3395 = vsub.s32 0, %v3394
      %v3396 = vsel %vm3390, %v3395, %v3394
      %vm3397 = vcmp.lt.s32.totalorder %v3185, 0
      %v3398 = vsub.s32 0, %v3185
      %v3399 = vsel %vm3397, %v3398, %v3185
      %v3400 = vshrl.u32 %v3399, 6
      %v3401 = vand.u32 %v3399, 63
      %v3402 = vsub.s32 0, %v3401
      %v3403 = vsel %vm3397, %v3402, %v3401
      %vm3404 = vcmp.lt.s32.totalorder %v3186, 0
      %v3405 = vsub.s32 0, %v3186
      %v3406 = vsel %vm3404, %v3405, %v3186
      %v3407 = vshrl.u32 %v3406, 6
      %v3408 = vand.u32 %v3406, 63
      %v3409 = vsub.s32 0, %v3408
      %v3410 = vsel %vm3404, %v3409, %v3408
      %vm3411 = vcmp.ne.s32.totalorder %v3193, 0
      %vm3412 = vcmp.ne.s32.totalorder %v3200, 0
      %vm3413 = vcmp.ne.s32.totalorder %v3207, 0
      %vm3414 = vcmp.ne.s32.totalorder %v3214, 0
      %vm3415 = vcmp.ne.s32.totalorder %v3221, 0
      %vm3416 = vcmp.ne.s32.totalorder %v3228, 0
      %vm3417 = vcmp.ne.s32.totalorder %v3235, 0
      %vm3418 = vcmp.ne.s32.totalorder %v3242, 0
      %vm3419 = vcmp.ne.s32.totalorder %v3249, 0
      %vm3420 = vcmp.ne.s32.totalorder %v3256, 0
      %vm3421 = vcmp.ne.s32.totalorder %v3263, 0
      %vm3422 = vcmp.ne.s32.totalorder %v3270, 0
      %vm3423 = vcmp.ne.s32.totalorder %v3277, 0
      %vm3424 = vcmp.ne.s32.totalorder %v3284, 0
      %vm3425 = vcmp.ne.s32.totalorder %v3291, 0
      %vm3426 = vcmp.ne.s32.totalorder %v3298, 0
      %vm3427 = vcmp.ne.s32.totalorder %v3305, 0
      %vm3428 = vcmp.ne.s32.totalorder %v3312, 0
      %vm3429 = vcmp.ne.s32.totalorder %v3319, 0
      %vm3430 = vcmp.ne.s32.totalorder %v3326, 0
      %vm3431 = vcmp.ne.s32.totalorder %v3333, 0
      %vm3432 = vcmp.ne.s32.totalorder %v3340, 0
      %vm3433 = vcmp.ne.s32.totalorder %v3347, 0
      %vm3434 = vcmp.ne.s32.totalorder %v3354, 0
      %vm3435 = vcmp.ne.s32.totalorder %v3361, 0
      %vm3436 = vcmp.ne.s32.totalorder %v3368, 0
      %vm3437 = vcmp.ne.s32.totalorder %v3375, 0
      %vm3438 = vcmp.ne.s32.totalorder %v3382, 0
      %vm3439 = vcmp.ne.s32.totalorder %v3389, 0
      %vm3440 = vcmp.ne.s32.totalorder %v3396, 0
      %vm3441 = vcmp.ne.s32.totalorder %v3403, 0
      %vm3442 = vcmp.ne.s32.totalorder %v3410, 0
      %vm3443 = vcmp.lt.s32.totalorder %v3193, 0
      %vm3444 = vcmp.lt.s32.totalorder %v3200, 0
      %vm3445 = vcmp.lt.s32.totalorder %v3207, 0
      %vm3446 = vcmp.lt.s32.totalorder %v3214, 0
      %vm3447 = vcmp.lt.s32.totalorder %v3221, 0
      %vm3448 = vcmp.lt.s32.totalorder %v3228, 0
      %vm3449 = vcmp.lt.s32.totalorder %v3235, 0
      %vm3450 = vcmp.lt.s32.totalorder %v3242, 0
      %vm3451 = vcmp.lt.s32.totalorder %v3249, 0
      %vm3452 = vcmp.lt.s32.totalorder %v3256, 0
      %vm3453 = vcmp.lt.s32.totalorder %v3263, 0
      %vm3454 = vcmp.lt.s32.totalorder %v3270, 0
      %vm3455 = vcmp.lt.s32.totalorder %v3277, 0
      %vm3456 = vcmp.lt.s32.totalorder %v3284, 0
      %vm3457 = vcmp.lt.s32.totalorder %v3291, 0
      %vm3458 = vcmp.lt.s32.totalorder %v3298, 0
      %vm3459 = vcmp.lt.s32.totalorder %v3305, 0
      %vm3460 = vcmp.lt.s32.totalorder %v3312, 0
      %vm3461 = vcmp.lt.s32.totalorder %v3319, 0
      %vm3462 = vcmp.lt.s32.totalorder %v3326, 0
      %vm3463 = vcmp.lt.s32.totalorder %v3333, 0
      %vm3464 = vcmp.lt.s32.totalorder %v3340, 0
      %vm3465 = vcmp.lt.s32.totalorder %v3347, 0
      %vm3466 = vcmp.lt.s32.totalorder %v3354, 0
      %vm3467 = vcmp.lt.s32.totalorder %v3361, 0
      %vm3468 = vcmp.lt.s32.totalorder %v3368, 0
      %vm3469 = vcmp.lt.s32.totalorder %v3375, 0
      %vm3470 = vcmp.lt.s32.totalorder %v3382, 0
      %vm3471 = vcmp.lt.s32.totalorder %v3389, 0
      %vm3472 = vcmp.lt.s32.totalorder %v3396, 0
      %vm3473 = vcmp.lt.s32.totalorder %v3403, 0
      %vm3474 = vcmp.lt.s32.totalorder %v3410, 0
      %vm3475 = vmand %vm3443, %vm3411
      %vm3476 = vmand %vm3444, %vm3412
      %vm3477 = vmand %vm3445, %vm3413
      %vm3478 = vmand %vm3446, %vm3414
      %vm3479 = vmand %vm3447, %vm3415
      %vm3480 = vmand %vm3448, %vm3416
      %vm3481 = vmand %vm3449, %vm3417
      %vm3482 = vmand %vm3450, %vm3418
      %vm3483 = vmand %vm3451, %vm3419
      %vm3484 = vmand %vm3452, %vm3420
      %vm3485 = vmand %vm3453, %vm3421
      %vm3486 = vmand %vm3454, %vm3422
      %vm3487 = vmand %vm3455, %vm3423
      %vm3488 = vmand %vm3456, %vm3424
      %vm3489 = vmand %vm3457, %vm3425
      %vm3490 = vmand %vm3458, %vm3426
      %vm3491 = vmand %vm3459, %vm3427
      %vm3492 = vmand %vm3460, %vm3428
      %vm3493 = vmand %vm3461, %vm3429
      %vm3494 = vmand %vm3462, %vm3430
      %vm3495 = vmand %vm3463, %vm3431
      %vm3496 = vmand %vm3464, %vm3432
      %vm3497 = vmand %vm3465, %vm3433
      %vm3498 = vmand %vm3466, %vm3434
      %vm3499 = vmand %vm3467, %vm3435
      %vm3500 = vmand %vm3468, %vm3436
      %vm3501 = vmand %vm3469, %vm3437
      %vm3502 = vmand %vm3470, %vm3438
      %vm3503 = vmand %vm3471, %vm3439
      %vm3504 = vmand %vm3472, %vm3440
      %vm3505 = vmand %vm3473, %vm3441
      %vm3506 = vmand %vm3474, %vm3442
      %v3507 = vadd.s32 %v3193, 64
      %v3508 = vadd.s32 %v3200, 64
      %v3509 = vadd.s32 %v3207, 64
      %v3510 = vadd.s32 %v3214, 64
      %v3511 = vadd.s32 %v3221, 64
      %v3512 = vadd.s32 %v3228, 64
      %v3513 = vadd.s32 %v3235, 64
      %v3514 = vadd.s32 %v3242, 64
      %v3515 = vadd.s32 %v3249, 64
      %v3516 = vadd.s32 %v3256, 64
      %v3517 = vadd.s32 %v3263, 64
      %v3518 = vadd.s32 %v3270, 64
      %v3519 = vadd.s32 %v3277, 64
      %v3520 = vadd.s32 %v3284, 64
      %v3521 = vadd.s32 %v3291, 64
      %v3522 = vadd.s32 %v3298, 64
      %v3523 = vadd.s32 %v3305, 64
      %v3524 = vadd.s32 %v3312, 64
      %v3525 = vadd.s32 %v3319, 64
      %v3526 = vadd.s32 %v3326, 64
      %v3527 = vadd.s32 %v3333, 64
      %v3528 = vadd.s32 %v3340, 64
      %v3529 = vadd.s32 %v3347, 64
      %v3530 = vadd.s32 %v3354, 64
      %v3531 = vadd.s32 %v3361, 64
      %v3532 = vadd.s32 %v3368, 64
      %v3533 = vadd.s32 %v3375, 64
      %v3534 = vadd.s32 %v3382, 64
      %v3535 = vadd.s32 %v3389, 64
      %v3536 = vadd.s32 %v3396, 64
      %v3537 = vadd.s32 %v3403, 64
      %v3538 = vadd.s32 %v3410, 64
      %v3539 = vsel %vm3475, %v3507, %v3193
      %v3540 = vsel %vm3476, %v3508, %v3200
      %v3541 = vsel %vm3477, %v3509, %v3207
      %v3542 = vsel %vm3478, %v3510, %v3214
      %v3543 = vsel %vm3479, %v3511, %v3221
      %v3544 = vsel %vm3480, %v3512, %v3228
      %v3545 = vsel %vm3481, %v3513, %v3235
      %v3546 = vsel %vm3482, %v3514, %v3242
      %v3547 = vsel %vm3483, %v3515, %v3249
      %v3548 = vsel %vm3484, %v3516, %v3256
      %v3549 = vsel %vm3485, %v3517, %v3263
      %v3550 = vsel %vm3486, %v3518, %v3270
      %v3551 = vsel %vm3487, %v3519, %v3277
      %v3552 = vsel %vm3488, %v3520, %v3284
      %v3553 = vsel %vm3489, %v3521, %v3291
      %v3554 = vsel %vm3490, %v3522, %v3298
      %v3555 = vsel %vm3491, %v3523, %v3305
      %v3556 = vsel %vm3492, %v3524, %v3312
      %v3557 = vsel %vm3493, %v3525, %v3319
      %v3558 = vsel %vm3494, %v3526, %v3326
      %v3559 = vsel %vm3495, %v3527, %v3333
      %v3560 = vsel %vm3496, %v3528, %v3340
      %v3561 = vsel %vm3497, %v3529, %v3347
      %v3562 = vsel %vm3498, %v3530, %v3354
      %v3563 = vsel %vm3499, %v3531, %v3361
      %v3564 = vsel %vm3500, %v3532, %v3368
      %v3565 = vsel %vm3501, %v3533, %v3375
      %v3566 = vsel %vm3502, %v3534, %v3382
      %v3567 = vsel %vm3503, %v3535, %v3389
      %v3568 = vsel %vm3504, %v3536, %v3396
      %v3569 = vsel %vm3505, %v3537, %v3403
      %v3570 = vsel %vm3506, %v3538, %v3410
      %vm3571 = vcmp.ne.s32.totalorder %v3539, 0
      %vm3572 = vcmp.ne.s32.totalorder %v3540, 0
      %vm3573 = vcmp.ne.s32.totalorder %v3541, 0
      %vm3574 = vcmp.ne.s32.totalorder %v3542, 0
      %vm3575 = vcmp.ne.s32.totalorder %v3543, 0
      %vm3576 = vcmp.ne.s32.totalorder %v3544, 0
      %vm3577 = vcmp.ne.s32.totalorder %v3545, 0
      %vm3578 = vcmp.ne.s32.totalorder %v3546, 0
      %vm3579 = vcmp.ne.s32.totalorder %v3547, 0
      %vm3580 = vcmp.ne.s32.totalorder %v3548, 0
      %vm3581 = vcmp.ne.s32.totalorder %v3549, 0
      %vm3582 = vcmp.ne.s32.totalorder %v3550, 0
      %vm3583 = vcmp.ne.s32.totalorder %v3551, 0
      %vm3584 = vcmp.ne.s32.totalorder %v3552, 0
      %vm3585 = vcmp.ne.s32.totalorder %v3553, 0
      %vm3586 = vcmp.ne.s32.totalorder %v3554, 0
      %vm3587 = vcmp.ne.s32.totalorder %v3555, 0
      %vm3588 = vcmp.ne.s32.totalorder %v3556, 0
      %vm3589 = vcmp.ne.s32.totalorder %v3557, 0
      %vm3590 = vcmp.ne.s32.totalorder %v3558, 0
      %vm3591 = vcmp.ne.s32.totalorder %v3559, 0
      %vm3592 = vcmp.ne.s32.totalorder %v3560, 0
      %vm3593 = vcmp.ne.s32.totalorder %v3561, 0
      %vm3594 = vcmp.ne.s32.totalorder %v3562, 0
      %vm3595 = vcmp.ne.s32.totalorder %v3563, 0
      %vm3596 = vcmp.ne.s32.totalorder %v3564, 0
      %vm3597 = vcmp.ne.s32.totalorder %v3565, 0
      %vm3598 = vcmp.ne.s32.totalorder %v3566, 0
      %vm3599 = vcmp.ne.s32.totalorder %v3567, 0
      %vm3600 = vcmp.ne.s32.totalorder %v3568, 0
      %vm3601 = vcmp.ne.s32.totalorder %v3569, 0
      %vm3602 = vcmp.ne.s32.totalorder %v3570, 0
      %vm3603 = vcmp.ne.s32.totalorder %v3539, 63
      %vm3604 = vcmp.ne.s32.totalorder %v3540, 63
      %vm3605 = vcmp.ne.s32.totalorder %v3541, 63
      %vm3606 = vcmp.ne.s32.totalorder %v3542, 63
      %vm3607 = vcmp.ne.s32.totalorder %v3543, 63
      %vm3608 = vcmp.ne.s32.totalorder %v3544, 63
      %vm3609 = vcmp.ne.s32.totalorder %v3545, 63
      %vm3610 = vcmp.ne.s32.totalorder %v3546, 63
      %vm3611 = vcmp.ne.s32.totalorder %v3547, 63
      %vm3612 = vcmp.ne.s32.totalorder %v3548, 63
      %vm3613 = vcmp.ne.s32.totalorder %v3549, 63
      %vm3614 = vcmp.ne.s32.totalorder %v3550, 63
      %vm3615 = vcmp.ne.s32.totalorder %v3551, 63
      %vm3616 = vcmp.ne.s32.totalorder %v3552, 63
      %vm3617 = vcmp.ne.s32.totalorder %v3553, 63
      %vm3618 = vcmp.ne.s32.totalorder %v3554, 63
      %vm3619 = vcmp.ne.s32.totalorder %v3555, 63
      %vm3620 = vcmp.ne.s32.totalorder %v3556, 63
      %vm3621 = vcmp.ne.s32.totalorder %v3557, 63
      %vm3622 = vcmp.ne.s32.totalorder %v3558, 63
      %vm3623 = vcmp.ne.s32.totalorder %v3559, 63
      %vm3624 = vcmp.ne.s32.totalorder %v3560, 63
      %vm3625 = vcmp.ne.s32.totalorder %v3561, 63
      %vm3626 = vcmp.ne.s32.totalorder %v3562, 63
      %vm3627 = vcmp.ne.s32.totalorder %v3563, 63
      %vm3628 = vcmp.ne.s32.totalorder %v3564, 63
      %vm3629 = vcmp.ne.s32.totalorder %v3565, 63
      %vm3630 = vcmp.ne.s32.totalorder %v3566, 63
      %vm3631 = vcmp.ne.s32.totalorder %v3567, 63
      %vm3632 = vcmp.ne.s32.totalorder %v3568, 63
      %vm3633 = vcmp.ne.s32.totalorder %v3569, 63
      %vm3634 = vcmp.ne.s32.totalorder %v3570, 63
      %v3635 = vld [vmem:[#allocation2] sm:$0x77]
      %v3636 = vld [vmem:[#allocation2 + $0x8] sm:$0x77]
      %v3637 = vld [vmem:[#allocation2 + $0x10] sm:$0x77]
      %v3638 = vld [vmem:[#allocation2 + $0x18] sm:$0x77]
      %v3639 = vld [vmem:[#allocation2 + $0x20] sm:$0x77]
      %v3640 = vld [vmem:[#allocation2 + $0x28] sm:$0x77]
      %v3641 = vld [vmem:[#allocation2 + $0x30] sm:$0x77]
      %v3642 = vld [vmem:[#allocation2 + $0x38] sm:$0x77]
      %v3643 = vld [vmem:[#allocation2 + $0x40] sm:$0x77]
      %v3644 = vld [vmem:[#allocation2 + $0x48] sm:$0x77]
      %v3645 = vld [vmem:[#allocation2 + $0x50] sm:$0x77]
      %v3646 = vld [vmem:[#allocation2 + $0x58] sm:$0x77]
      %v3647 = vld [vmem:[#allocation2 + $0x60] sm:$0x77]
      %v3648 = vld [vmem:[#allocation2 + $0x68] sm:$0x77]
      %v3649 = vld [vmem:[#allocation2 + $0x70] sm:$0x77]
      %v3650 = vld [vmem:[#allocation2 + $0x78] sm:$0x77]
      %v3651 = vld [vmem:[#allocation2 + $0x80] sm:$0x7]
      %v3652 = vsel %vm3571, 1, 0
      %v3653 = vsel %vm3572, 1, 0
      %v3654 = vsel %vm3573, 1, 0
      %v3655 = vsel %vm3574, 1, 0
      %v3656 = vsel %vm3575, 1, 0
      %v3657 = vsel %vm3576, 1, 0
      %v3658 = vsel %vm3577, 1, 0
      %v3659 = vsel %vm3578, 1, 0
      %v3660 = vsel %vm3579, 1, 0
      %v3661 = vsel %vm3580, 1, 0
      %v3662 = vsel %vm3581, 1, 0
      %v3663 = vsel %vm3582, 1, 0
      %v3664 = vsel %vm3583, 1, 0
      %v3665 = vsel %vm3584, 1, 0
      %v3666 = vsel %vm3585, 1, 0
      %v3667 = vsel %vm3586, 1, 0
      %v3668 = vsel %vm3587, 1, 0
      %v3669 = vsel %vm3588, 1, 0
      %v3670 = vsel %vm3589, 1, 0
      %v3671 = vsel %vm3590, 1, 0
      %v3672 = vsel %vm3591, 1, 0
      %v3673 = vsel %vm3592, 1, 0
      %v3674 = vsel %vm3593, 1, 0
      %v3675 = vsel %vm3594, 1, 0
      %v3676 = vsel %vm3595, 1, 0
      %v3677 = vsel %vm3596, 1, 0
      %v3678 = vsel %vm3597, 1, 0
      %v3679 = vsel %vm3598, 1, 0
      %v3680 = vsel %vm3599, 1, 0
      %v3681 = vsel %vm3600, 1, 0
      %v3682 = vsel %vm3601, 1, 0
      %v3683 = vsel %vm3602, 1, 0
      %vm3684 = vcmp.eq.s32.totalorder %v3652, 1
      %vm3685 = vcmp.eq.s32.totalorder %v3653, 1
      %vm3686 = vcmp.eq.s32.totalorder %v3654, 1
      %vm3687 = vcmp.eq.s32.totalorder %v3655, 1
      %vm3688 = vcmp.eq.s32.totalorder %v3656, 1
      %vm3689 = vcmp.eq.s32.totalorder %v3657, 1
      %vm3690 = vcmp.eq.s32.totalorder %v3658, 1
      %vm3691 = vcmp.eq.s32.totalorder %v3659, 1
      %vm3692 = vcmp.eq.s32.totalorder %v3660, 1
      %vm3693 = vcmp.eq.s32.totalorder %v3661, 1
      %vm3694 = vcmp.eq.s32.totalorder %v3662, 1
      %vm3695 = vcmp.eq.s32.totalorder %v3663, 1
      %vm3696 = vcmp.eq.s32.totalorder %v3664, 1
      %vm3697 = vcmp.eq.s32.totalorder %v3665, 1
      %vm3698 = vcmp.eq.s32.totalorder %v3666, 1
      %vm3699 = vcmp.eq.s32.totalorder %v3667, 1
      %vm3700 = vcmp.eq.s32.totalorder %v3668, 1
      %vm3701 = vcmp.eq.s32.totalorder %v3669, 1
      %vm3702 = vcmp.eq.s32.totalorder %v3670, 1
      %vm3703 = vcmp.eq.s32.totalorder %v3671, 1
      %vm3704 = vcmp.eq.s32.totalorder %v3672, 1
      %vm3705 = vcmp.eq.s32.totalorder %v3673, 1
      %vm3706 = vcmp.eq.s32.totalorder %v3674, 1
      %vm3707 = vcmp.eq.s32.totalorder %v3675, 1
      %vm3708 = vcmp.eq.s32.totalorder %v3676, 1
      %vm3709 = vcmp.eq.s32.totalorder %v3677, 1
      %vm3710 = vcmp.eq.s32.totalorder %v3678, 1
      %vm3711 = vcmp.eq.s32.totalorder %v3679, 1
      %vm3712 = vcmp.eq.s32.totalorder %v3680, 1
      %vm3713 = vcmp.eq.s32.totalorder %v3681, 1
      %vm3714 = vcmp.eq.s32.totalorder %v3682, 1
      %vm3715 = vcmp.eq.s32.totalorder %v3683, 1
      %v3733 = vcombine.high %v3635, %v3635
      %v3734 = vcombine.high %v3636, %v3636
      %v3735 = vcombine.high %v3637, %v3637
      %v3736 = vcombine.high %v3638, %v3638
      %v3737 = vcombine.high %v3639, %v3639
      %v3738 = vcombine.high %v3640, %v3640
      %v3739 = vcombine.high %v3641, %v3641
      %v3740 = vcombine.high %v3642, %v3642
      %v3741 = vcombine.high %v3643, %v3643
      %v3742 = vcombine.high %v3644, %v3644
      %v3743 = vcombine.high %v3645, %v3645
      %v3744 = vcombine.high %v3646, %v3646
      %v3745 = vcombine.high %v3647, %v3647
      %v3746 = vcombine.high %v3648, %v3648
      %v3747 = vcombine.high %v3649, %v3649
      %v3748 = vcombine.high %v3650, %v3650
      %3749 = vrot.lane.b32.xlu0 %v3635, 65
      %v3750 = vpop.permute.xlu0 %3749
      %3751 = vrot.lane.b32.xlu0 %v3733, 65
      %v3752 = vpop.permute.xlu0 %3751
      %3753 = vrot.lane.b32.xlu0 %v3636, 65
      %v3754 = vpop.permute.xlu0 %3753
      %3755 = vrot.lane.b32.xlu0 %v3734, 65
      %v3756 = vpop.permute.xlu0 %3755
      %3757 = vrot.lane.b32.xlu0 %v3637, 65
      %v3758 = vpop.permute.xlu0 %3757
      %3759 = vrot.lane.b32.xlu0 %v3735, 65
      %v3760 = vpop.permute.xlu0 %3759
      %3761 = vrot.lane.b32.xlu0 %v3638, 65
      %v3762 = vpop.permute.xlu0 %3761
      %3763 = vrot.lane.b32.xlu0 %v3736, 65
      %v3764 = vpop.permute.xlu0 %3763
      %3765 = vrot.lane.b32.xlu0 %v3639, 65
      %v3766 = vpop.permute.xlu0 %3765
      %3767 = vrot.lane.b32.xlu0 %v3737, 65
      %v3768 = vpop.permute.xlu0 %3767
      %3769 = vrot.lane.b32.xlu0 %v3640, 65
      %v3770 = vpop.permute.xlu0 %3769
      %3771 = vrot.lane.b32.xlu0 %v3738, 65
      %v3772 = vpop.permute.xlu0 %3771
      %3773 = vrot.lane.b32.xlu0 %v3641, 65
      %v3774 = vpop.permute.xlu0 %3773
      %3775 = vrot.lane.b32.xlu0 %v3739, 65
      %v3776 = vpop.permute.xlu0 %3775
      %3777 = vrot.lane.b32.xlu0 %v3642, 65
      %v3778 = vpop.permute.xlu0 %3777
      %3779 = vrot.lane.b32.xlu0 %v3740, 65
      %v3780 = vpop.permute.xlu0 %3779
      %3781 = vrot.lane.b32.xlu0 %v3643, 65
      %v3782 = vpop.permute.xlu0 %3781
      %3783 = vrot.lane.b32.xlu0 %v3741, 65
      %v3784 = vpop.permute.xlu0 %3783
      %3785 = vrot.lane.b32.xlu0 %v3644, 65
      %v3786 = vpop.permute.xlu0 %3785
      %3787 = vrot.lane.b32.xlu0 %v3742, 65
      %v3788 = vpop.permute.xlu0 %3787
      %3789 = vrot.lane.b32.xlu0 %v3645, 65
      %v3790 = vpop.permute.xlu0 %3789
      %3791 = vrot.lane.b32.xlu0 %v3743, 65
      %v3792 = vpop.permute.xlu0 %3791
      %3793 = vrot.lane.b32.xlu0 %v3646, 65
      %v3794 = vpop.permute.xlu0 %3793
      %3795 = vrot.lane.b32.xlu0 %v3744, 65
      %v3796 = vpop.permute.xlu0 %3795
      %3797 = vrot.lane.b32.xlu0 %v3647, 65
      %v3798 = vpop.permute.xlu0 %3797
      %3799 = vrot.lane.b32.xlu0 %v3745, 65
      %v3800 = vpop.permute.xlu0 %3799
      %3801 = vrot.lane.b32.xlu0 %v3648, 65
      %v3802 = vpop.permute.xlu0 %3801
      %3803 = vrot.lane.b32.xlu0 %v3746, 65
      %v3804 = vpop.permute.xlu0 %3803
      %3805 = vrot.lane.b32.xlu0 %v3649, 65
      %v3806 = vpop.permute.xlu0 %3805
      %3807 = vrot.lane.b32.xlu0 %v3747, 65
      %v3808 = vpop.permute.xlu0 %3807
      %3809 = vrot.lane.b32.xlu0 %v3650, 65
      %v3810 = vpop.permute.xlu0 %3809
      %3811 = vrot.lane.b32.xlu0 %v3748, 65
      %v3812 = vpop.permute.xlu0 %3811
      %3813 = vrot.lane.b32.xlu0 %v3651, 65
      %v3814 = vpop.permute.xlu0 %3813
      %vm3815 = vcmask 531456
      %v3816 = vsel %vm3815, %v3750, %v3752
      %v3817 = vsel %vm3815, %v3752, %v3754
      %v3818 = vsel %vm3815, %v3754, %v3756
      %v3819 = vsel %vm3815, %v3756, %v3758
      %v3820 = vsel %vm3815, %v3758, %v3760
      %v3821 = vsel %vm3815, %v3760, %v3762
      %v3822 = vsel %vm3815, %v3762, %v3764
      %v3823 = vsel %vm3815, %v3764, %v3766
      %v3824 = vsel %vm3815, %v3766, %v3768
      %v3825 = vsel %vm3815, %v3768, %v3770
      %v3826 = vsel %vm3815, %v3770, %v3772
      %v3827 = vsel %vm3815, %v3772, %v3774
      %v3828 = vsel %vm3815, %v3774, %v3776
      %v3829 = vsel %vm3815, %v3776, %v3778
      %v3830 = vsel %vm3815, %v3778, %v3780
      %v3831 = vsel %vm3815, %v3780, %v3782
      %v3832 = vsel %vm3815, %v3782, %v3784
      %v3833 = vsel %vm3815, %v3784, %v3786
      %v3834 = vsel %vm3815, %v3786, %v3788
      %v3835 = vsel %vm3815, %v3788, %v3790
      %v3836 = vsel %vm3815, %v3790, %v3792
      %v3837 = vsel %vm3815, %v3792, %v3794
      %v3838 = vsel %vm3815, %v3794, %v3796
      %v3839 = vsel %vm3815, %v3796, %v3798
      %v3840 = vsel %vm3815, %v3798, %v3800
      %v3841 = vsel %vm3815, %v3800, %v3802
      %v3842 = vsel %vm3815, %v3802, %v3804
      %v3843 = vsel %vm3815, %v3804, %v3806
      %v3844 = vsel %vm3815, %v3806, %v3808
      %v3845 = vsel %vm3815, %v3808, %v3810
      %v3846 = vsel %vm3815, %v3810, %v3812
      %v3847 = vsel %vm3815, %v3812, %v3814
      %v3880 = vsel %vm3684, %v3816, 0.0
      %v3881 = vsel %vm3685, %v3817, 0.0
      %v3882 = vsel %vm3686, %v3818, 0.0
      %v3883 = vsel %vm3687, %v3819, 0.0
      %v3884 = vsel %vm3688, %v3820, 0.0
      %v3885 = vsel %vm3689, %v3821, 0.0
      %v3886 = vsel %vm3690, %v3822, 0.0
      %v3887 = vsel %vm3691, %v3823, 0.0
      %v3888 = vsel %vm3692, %v3824, 0.0
      %v3889 = vsel %vm3693, %v3825, 0.0
      %v3890 = vsel %vm3694, %v3826, 0.0
      %v3891 = vsel %vm3695, %v3827, 0.0
      %v3892 = vsel %vm3696, %v3828, 0.0
      %v3893 = vsel %vm3697, %v3829, 0.0
      %v3894 = vsel %vm3698, %v3830, 0.0
      %v3895 = vsel %vm3699, %v3831, 0.0
      %v3896 = vsel %vm3700, %v3832, 0.0
      %v3897 = vsel %vm3701, %v3833, 0.0
      %v3898 = vsel %vm3702, %v3834, 0.0
      %v3899 = vsel %vm3703, %v3835, 0.0
      %v3900 = vsel %vm3704, %v3836, 0.0
      %v3901 = vsel %vm3705, %v3837, 0.0
      %v3902 = vsel %vm3706, %v3838, 0.0
      %v3903 = vsel %vm3707, %v3839, 0.0
      %v3904 = vsel %vm3708, %v3840, 0.0
      %v3905 = vsel %vm3709, %v3841, 0.0
      %v3906 = vsel %vm3710, %v3842, 0.0
      %v3907 = vsel %vm3711, %v3843, 0.0
      %v3908 = vsel %vm3712, %v3844, 0.0
      %v3909 = vsel %vm3713, %v3845, 0.0
      %v3910 = vsel %vm3714, %v3846, 0.0
      %v3911 = vsel %vm3715, %v3847, 0.0
      %3912 = vst [vmem:[#allocation3] sm:$0x7] %v3880
      %3913 = vst [vmem:[#allocation3 + $0x8] sm:$0x7] %v3881
      %3914 = vst [vmem:[#allocation3 + $0x10] sm:$0x7] %v3882
      %3915 = vst [vmem:[#allocation3 + $0x18] sm:$0x7] %v3883
      %3916 = vst [vmem:[#allocation3 + $0x20] sm:$0x7] %v3884
      %3917 = vst [vmem:[#allocation3 + $0x28] sm:$0x7] %v3885
      %3918 = vst [vmem:[#allocation3 + $0x30] sm:$0x7] %v3886
      %3919 = vst [vmem:[#allocation3 + $0x38] sm:$0x7] %v3887
      %3920 = vst [vmem:[#allocation3 + $0x40] sm:$0x7] %v3888
      %3921 = vst [vmem:[#allocation3 + $0x48] sm:$0x7] %v3889
      %3922 = vst [vmem:[#allocation3 + $0x50] sm:$0x7] %v3890
      %3923 = vst [vmem:[#allocation3 + $0x58] sm:$0x7] %v3891
      %3924 = vst [vmem:[#allocation3 + $0x60] sm:$0x7] %v3892
      %3925 = vst [vmem:[#allocation3 + $0x68] sm:$0x7] %v3893
      %3926 = vst [vmem:[#allocation3 + $0x70] sm:$0x7] %v3894
      %3927 = vst [vmem:[#allocation3 + $0x78] sm:$0x7] %v3895
      %3928 = vst [vmem:[#allocation3 + $0x80] sm:$0x7] %v3896
      %3929 = vst [vmem:[#allocation3 + $0x88] sm:$0x7] %v3897
      %3930 = vst [vmem:[#allocation3 + $0x90] sm:$0x7] %v3898
      %3931 = vst [vmem:[#allocation3 + $0x98] sm:$0x7] %v3899
      %3932 = vst [vmem:[#allocation3 + $0xa0] sm:$0x7] %v3900
      %3933 = vst [vmem:[#allocation3 + $0xa8] sm:$0x7] %v3901
      %3934 = vst [vmem:[#allocation3 + $0xb0] sm:$0x7] %v3902
      %3935 = vst [vmem:[#allocation3 + $0xb8] sm:$0x7] %v3903
      %3936 = vst [vmem:[#allocation3 + $0xc0] sm:$0x7] %v3904
      %3937 = vst [vmem:[#allocation3 + $0xc8] sm:$0x7] %v3905
      %3938 = vst [vmem:[#allocation3 + $0xd0] sm:$0x7] %v3906
      %3939 = vst [vmem:[#allocation3 + $0xd8] sm:$0x7] %v3907
      %3940 = vst [vmem:[#allocation3 + $0xe0] sm:$0x7] %v3908
      %3941 = vst [vmem:[#allocation3 + $0xe8] sm:$0x7] %v3909
      %3942 = vst [vmem:[#allocation3 + $0xf0] sm:$0x7] %v3910
      %3943 = vst [vmem:[#allocation3 + $0xf8] sm:$0x7] %v3911
      %v3944 = vld [vmem:[#allocation2] sm:$0x77]
      %v3945 = vld [vmem:[#allocation2 + $0x8] sm:$0x77]
      %v3946 = vld [vmem:[#allocation2 + $0x10] sm:$0x77]
      %v3947 = vld [vmem:[#allocation2 + $0x18] sm:$0x77]
      %v3948 = vld [vmem:[#allocation2 + $0x20] sm:$0x77]
      %v3949 = vld [vmem:[#allocation2 + $0x28] sm:$0x77]
      %v3950 = vld [vmem:[#allocation2 + $0x30] sm:$0x77]
      %v3951 = vld [vmem:[#allocation2 + $0x38] sm:$0x77]
      %v3952 = vld [vmem:[#allocation2 + $0x40] sm:$0x77]
      %v3953 = vld [vmem:[#allocation2 + $0x48] sm:$0x77]
      %v3954 = vld [vmem:[#allocation2 + $0x50] sm:$0x77]
      %v3955 = vld [vmem:[#allocation2 + $0x58] sm:$0x77]
      %v3956 = vld [vmem:[#allocation2 + $0x60] sm:$0x77]
      %v3957 = vld [vmem:[#allocation2 + $0x68] sm:$0x77]
      %v3958 = vld [vmem:[#allocation2 + $0x70] sm:$0x77]
      %v3959 = vld [vmem:[#allocation2 + $0x78] sm:$0x77]
      %v3960 = vld [vmem:[#allocation2 + $0x80] sm:$0x7]
      %v3978 = vcombine.high %v3944, %v3944
      %v3979 = vcombine.high %v3945, %v3945
      %v3980 = vcombine.high %v3946, %v3946
      %v3981 = vcombine.high %v3947, %v3947
      %v3982 = vcombine.high %v3948, %v3948
      %v3983 = vcombine.high %v3949, %v3949
      %v3984 = vcombine.high %v3950, %v3950
      %v3985 = vcombine.high %v3951, %v3951
      %v3986 = vcombine.high %v3952, %v3952
      %v3987 = vcombine.high %v3953, %v3953
      %v3988 = vcombine.high %v3954, %v3954
      %v3989 = vcombine.high %v3955, %v3955
      %v3990 = vcombine.high %v3956, %v3956
      %v3991 = vcombine.high %v3957, %v3957
      %v3992 = vcombine.high %v3958, %v3958
      %v3993 = vcombine.high %v3959, %v3959
      %v3994 = vrot.slane %v3944, 5
      %v3995 = vrot.slane %v3978, 5
      %v3996 = vrot.slane %v3945, 5
      %v3997 = vrot.slane %v3979, 5
      %v3998 = vrot.slane %v3946, 5
      %v3999 = vrot.slane %v3980, 5
      %v4000 = vrot.slane %v3947, 5
      %v4001 = vrot.slane %v3981, 5
      %v4002 = vrot.slane %v3948, 5
      %v4003 = vrot.slane %v3982, 5
      %v4004 = vrot.slane %v3949, 5
      %v4005 = vrot.slane %v3983, 5
      %v4006 = vrot.slane %v3950, 5
      %v4007 = vrot.slane %v3984, 5
      %v4008 = vrot.slane %v3951, 5
      %v4009 = vrot.slane %v3985, 5
      %v4010 = vrot.slane %v3952, 5
      %v4011 = vrot.slane %v3986, 5
      %v4012 = vrot.slane %v3953, 5
      %v4013 = vrot.slane %v3987, 5
      %v4014 = vrot.slane %v3954, 5
      %v4015 = vrot.slane %v3988, 5
      %v4016 = vrot.slane %v3955, 5
      %v4017 = vrot.slane %v3989, 5
      %v4018 = vrot.slane %v3956, 5
      %v4019 = vrot.slane %v3990, 5
      %v4020 = vrot.slane %v3957, 5
      %v4021 = vrot.slane %v3991, 5
      %v4022 = vrot.slane %v3958, 5
      %v4023 = vrot.slane %v3992, 5
      %v4024 = vrot.slane %v3959, 5
      %v4025 = vrot.slane %v3993, 5
      %v4026 = vrot.slane %v3960, 5
      %4027 = vrot.lane.b32.xlu0 %v3994, 64
      %v4028 = vpop.permute.xlu0 %4027
      %4029 = vrot.lane.b32.xlu0 %v3995, 64
      %v4030 = vpop.permute.xlu0 %4029
      %4031 = vrot.lane.b32.xlu0 %v3996, 64
      %v4032 = vpop.permute.xlu0 %4031
      %4033 = vrot.lane.b32.xlu0 %v3997, 64
      %v4034 = vpop.permute.xlu0 %4033
      %4035 = vrot.lane.b32.xlu0 %v3998, 64
      %v4036 = vpop.permute.xlu0 %4035
      %4037 = vrot.lane.b32.xlu0 %v3999, 64
      %v4038 = vpop.permute.xlu0 %4037
      %4039 = vrot.lane.b32.xlu0 %v4000, 64
      %v4040 = vpop.permute.xlu0 %4039
      %4041 = vrot.lane.b32.xlu0 %v4001, 64
      %v4042 = vpop.permute.xlu0 %4041
      %4043 = vrot.lane.b32.xlu0 %v4002, 64
      %v4044 = vpop.permute.xlu0 %4043
      %4045 = vrot.lane.b32.xlu0 %v4003, 64
      %v4046 = vpop.permute.xlu0 %4045
      %4047 = vrot.lane.b32.xlu0 %v4004, 64
      %v4048 = vpop.permute.xlu0 %4047
      %4049 = vrot.lane.b32.xlu0 %v4005, 64
      %v4050 = vpop.permute.xlu0 %4049
      %4051 = vrot.lane.b32.xlu0 %v4006, 64
      %v4052 = vpop.permute.xlu0 %4051
      %4053 = vrot.lane.b32.xlu0 %v4007, 64
      %v4054 = vpop.permute.xlu0 %4053
      %4055 = vrot.lane.b32.xlu0 %v4008, 64
      %v4056 = vpop.permute.xlu0 %4055
      %4057 = vrot.lane.b32.xlu0 %v4009, 64
      %v4058 = vpop.permute.xlu0 %4057
      %4059 = vrot.lane.b32.xlu0 %v4010, 64
      %v4060 = vpop.permute.xlu0 %4059
      %4061 = vrot.lane.b32.xlu0 %v4011, 64
      %v4062 = vpop.permute.xlu0 %4061
      %4063 = vrot.lane.b32.xlu0 %v4012, 64
      %v4064 = vpop.permute.xlu0 %4063
      %4065 = vrot.lane.b32.xlu0 %v4013, 64
      %v4066 = vpop.permute.xlu0 %4065
      %4067 = vrot.lane.b32.xlu0 %v4014, 64
      %v4068 = vpop.permute.xlu0 %4067
      %4069 = vrot.lane.b32.xlu0 %v4015, 64
      %v4070 = vpop.permute.xlu0 %4069
      %4071 = vrot.lane.b32.xlu0 %v4016, 64
      %v4072 = vpop.permute.xlu0 %4071
      %4073 = vrot.lane.b32.xlu0 %v4017, 64
      %v4074 = vpop.permute.xlu0 %4073
      %4075 = vrot.lane.b32.xlu0 %v4018, 64
      %v4076 = vpop.permute.xlu0 %4075
      %4077 = vrot.lane.b32.xlu0 %v4019, 64
      %v4078 = vpop.permute.xlu0 %4077
      %4079 = vrot.lane.b32.xlu0 %v4020, 64
      %v4080 = vpop.permute.xlu0 %4079
      %4081 = vrot.lane.b32.xlu0 %v4021, 64
      %v4082 = vpop.permute.xlu0 %4081
      %4083 = vrot.lane.b32.xlu0 %v4022, 64
      %v4084 = vpop.permute.xlu0 %4083
      %4085 = vrot.lane.b32.xlu0 %v4023, 64
      %v4086 = vpop.permute.xlu0 %4085
      %4087 = vrot.lane.b32.xlu0 %v4024, 64
      %v4088 = vpop.permute.xlu0 %4087
      %4089 = vrot.lane.b32.xlu0 %v4025, 64
      %v4090 = vpop.permute.xlu0 %4089
      %4091 = vrot.lane.b32.xlu0 %v4026, 64
      %v4092 = vpop.permute.xlu0 %4091
      %vm4093 = vcmask 523264
      %v4094 = vsel %vm4093, %v4028, %v4030
      %v4095 = vsel %vm4093, %v4030, %v4032
      %v4096 = vsel %vm4093, %v4032, %v4034
      %v4097 = vsel %vm4093, %v4034, %v4036
      %v4098 = vsel %vm4093, %v4036, %v4038
      %v4099 = vsel %vm4093, %v4038, %v4040
      %v4100 = vsel %vm4093, %v4040, %v4042
      %v4101 = vsel %vm4093, %v4042, %v4044
      %v4102 = vsel %vm4093, %v4044, %v4046
      %v4103 = vsel %vm4093, %v4046, %v4048
      %v4104 = vsel %vm4093, %v4048, %v4050
      %v4105 = vsel %vm4093, %v4050, %v4052
      %v4106 = vsel %vm4093, %v4052, %v4054
      %v4107 = vsel %vm4093, %v4054, %v4056
      %v4108 = vsel %vm4093, %v4056, %v4058
      %v4109 = vsel %vm4093, %v4058, %v4060
      %v4110 = vsel %vm4093, %v4060, %v4062
      %v4111 = vsel %vm4093, %v4062, %v4064
      %v4112 = vsel %vm4093, %v4064, %v4066
      %v4113 = vsel %vm4093, %v4066, %v4068
      %v4114 = vsel %vm4093, %v4068, %v4070
      %v4115 = vsel %vm4093, %v4070, %v4072
      %v4116 = vsel %vm4093, %v4072, %v4074
      %v4117 = vsel %vm4093, %v4074, %v4076
      %v4118 = vsel %vm4093, %v4076, %v4078
      %v4119 = vsel %vm4093, %v4078, %v4080
      %v4120 = vsel %vm4093, %v4080, %v4082
      %v4121 = vsel %vm4093, %v4082, %v4084
      %v4122 = vsel %vm4093, %v4084, %v4086
      %v4123 = vsel %vm4093, %v4086, %v4088
      %v4124 = vsel %vm4093, %v4088, %v4090
      %v4125 = vsel %vm4093, %v4090, %v4092
      %4158 = vst [vmem:[#allocation3] sm:$0x38] %v4094
      %4159 = vst [vmem:[#allocation3 + $0x8] sm:$0x38] %v4095
      %4160 = vst [vmem:[#allocation3 + $0x10] sm:$0x38] %v4096
      %4161 = vst [vmem:[#allocation3 + $0x18] sm:$0x38] %v4097
      %4162 = vst [vmem:[#allocation3 + $0x20] sm:$0x38] %v4098
      %4163 = vst [vmem:[#allocation3 + $0x28] sm:$0x38] %v4099
      %4164 = vst [vmem:[#allocation3 + $0x30] sm:$0x38] %v4100
      %4165 = vst [vmem:[#allocation3 + $0x38] sm:$0x38] %v4101
      %4166 = vst [vmem:[#allocation3 + $0x40] sm:$0x38] %v4102
      %4167 = vst [vmem:[#allocation3 + $0x48] sm:$0x38] %v4103
      %4168 = vst [vmem:[#allocation3 + $0x50] sm:$0x38] %v4104
      %4169 = vst [vmem:[#allocation3 + $0x58] sm:$0x38] %v4105
      %4170 = vst [vmem:[#allocation3 + $0x60] sm:$0x38] %v4106
      %4171 = vst [vmem:[#allocation3 + $0x68] sm:$0x38] %v4107
      %4172 = vst [vmem:[#allocation3 + $0x70] sm:$0x38] %v4108
      %4173 = vst [vmem:[#allocation3 + $0x78] sm:$0x38] %v4109
      %4174 = vst [vmem:[#allocation3 + $0x80] sm:$0x38] %v4110
      %4175 = vst [vmem:[#allocation3 + $0x88] sm:$0x38] %v4111
      %4176 = vst [vmem:[#allocation3 + $0x90] sm:$0x38] %v4112
      %4177 = vst [vmem:[#allocation3 + $0x98] sm:$0x38] %v4113
      %4178 = vst [vmem:[#allocation3 + $0xa0] sm:$0x38] %v4114
      %4179 = vst [vmem:[#allocation3 + $0xa8] sm:$0x38] %v4115
      %4180 = vst [vmem:[#allocation3 + $0xb0] sm:$0x38] %v4116
      %4181 = vst [vmem:[#allocation3 + $0xb8] sm:$0x38] %v4117
      %4182 = vst [vmem:[#allocation3 + $0xc0] sm:$0x38] %v4118
      %4183 = vst [vmem:[#allocation3 + $0xc8] sm:$0x38] %v4119
      %4184 = vst [vmem:[#allocation3 + $0xd0] sm:$0x38] %v4120
      %4185 = vst [vmem:[#allocation3 + $0xd8] sm:$0x38] %v4121
      %4186 = vst [vmem:[#allocation3 + $0xe0] sm:$0x38] %v4122
      %4187 = vst [vmem:[#allocation3 + $0xe8] sm:$0x38] %v4123
      %4188 = vst [vmem:[#allocation3 + $0xf0] sm:$0x38] %v4124
      %4189 = vst [vmem:[#allocation3 + $0xf8] sm:$0x38] %v4125
      %v4190 = vld [vmem:[#allocation2] sm:$0x77]
      %v4191 = vld [vmem:[#allocation2 + $0x8] sm:$0x77]
      %v4192 = vld [vmem:[#allocation2 + $0x10] sm:$0x77]
      %v4193 = vld [vmem:[#allocation2 + $0x18] sm:$0x77]
      %v4194 = vld [vmem:[#allocation2 + $0x20] sm:$0x77]
      %v4195 = vld [vmem:[#allocation2 + $0x28] sm:$0x77]
      %v4196 = vld [vmem:[#allocation2 + $0x30] sm:$0x77]
      %v4197 = vld [vmem:[#allocation2 + $0x38] sm:$0x77]
      %v4198 = vld [vmem:[#allocation2 + $0x40] sm:$0x77]
      %v4199 = vld [vmem:[#allocation2 + $0x48] sm:$0x77]
      %v4200 = vld [vmem:[#allocation2 + $0x50] sm:$0x77]
      %v4201 = vld [vmem:[#allocation2 + $0x58] sm:$0x77]
      %v4202 = vld [vmem:[#allocation2 + $0x60] sm:$0x77]
      %v4203 = vld [vmem:[#allocation2 + $0x68] sm:$0x77]
      %v4204 = vld [vmem:[#allocation2 + $0x70] sm:$0x77]
      %v4205 = vld [vmem:[#allocation2 + $0x78] sm:$0x77]
      %v4206 = vld [vmem:[#allocation2 + $0x80] sm:$0x7]
      %v4207 = vsel %vm3603, 1, 0
      %v4208 = vsel %vm3604, 1, 0
      %v4209 = vsel %vm3605, 1, 0
      %v4210 = vsel %vm3606, 1, 0
      %v4211 = vsel %vm3607, 1, 0
      %v4212 = vsel %vm3608, 1, 0
      %v4213 = vsel %vm3609, 1, 0
      %v4214 = vsel %vm3610, 1, 0
      %v4215 = vsel %vm3611, 1, 0
      %v4216 = vsel %vm3612, 1, 0
      %v4217 = vsel %vm3613, 1, 0
      %v4218 = vsel %vm3614, 1, 0
      %v4219 = vsel %vm3615, 1, 0
      %v4220 = vsel %vm3616, 1, 0
      %v4221 = vsel %vm3617, 1, 0
      %v4222 = vsel %vm3618, 1, 0
      %v4223 = vsel %vm3619, 1, 0
      %v4224 = vsel %vm3620, 1, 0
      %v4225 = vsel %vm3621, 1, 0
      %v4226 = vsel %vm3622, 1, 0
      %v4227 = vsel %vm3623, 1, 0
      %v4228 = vsel %vm3624, 1, 0
      %v4229 = vsel %vm3625, 1, 0
      %v4230 = vsel %vm3626, 1, 0
      %v4231 = vsel %vm3627, 1, 0
      %v4232 = vsel %vm3628, 1, 0
      %v4233 = vsel %vm3629, 1, 0
      %v4234 = vsel %vm3630, 1, 0
      %v4235 = vsel %vm3631, 1, 0
      %v4236 = vsel %vm3632, 1, 0
      %v4237 = vsel %vm3633, 1, 0
      %v4238 = vsel %vm3634, 1, 0
      %vm4239 = vcmp.eq.s32.totalorder %v4207, 1
      %vm4240 = vcmp.eq.s32.totalorder %v4208, 1
      %vm4241 = vcmp.eq.s32.totalorder %v4209, 1
      %vm4242 = vcmp.eq.s32.totalorder %v4210, 1
      %vm4243 = vcmp.eq.s32.totalorder %v4211, 1
      %vm4244 = vcmp.eq.s32.totalorder %v4212, 1
      %vm4245 = vcmp.eq.s32.totalorder %v4213, 1
      %vm4246 = vcmp.eq.s32.totalorder %v4214, 1
      %vm4247 = vcmp.eq.s32.totalorder %v4215, 1
      %vm4248 = vcmp.eq.s32.totalorder %v4216, 1
      %vm4249 = vcmp.eq.s32.totalorder %v4217, 1
      %vm4250 = vcmp.eq.s32.totalorder %v4218, 1
      %vm4251 = vcmp.eq.s32.totalorder %v4219, 1
      %vm4252 = vcmp.eq.s32.totalorder %v4220, 1
      %vm4253 = vcmp.eq.s32.totalorder %v4221, 1
      %vm4254 = vcmp.eq.s32.totalorder %v4222, 1
      %vm4255 = vcmp.eq.s32.totalorder %v4223, 1
      %vm4256 = vcmp.eq.s32.totalorder %v4224, 1
      %vm4257 = vcmp.eq.s32.totalorder %v4225, 1
      %vm4258 = vcmp.eq.s32.totalorder %v4226, 1
      %vm4259 = vcmp.eq.s32.totalorder %v4227, 1
      %vm4260 = vcmp.eq.s32.totalorder %v4228, 1
      %vm4261 = vcmp.eq.s32.totalorder %v4229, 1
      %vm4262 = vcmp.eq.s32.totalorder %v4230, 1
      %vm4263 = vcmp.eq.s32.totalorder %v4231, 1
      %vm4264 = vcmp.eq.s32.totalorder %v4232, 1
      %vm4265 = vcmp.eq.s32.totalorder %v4233, 1
      %vm4266 = vcmp.eq.s32.totalorder %v4234, 1
      %vm4267 = vcmp.eq.s32.totalorder %v4235, 1
      %vm4268 = vcmp.eq.s32.totalorder %v4236, 1
      %vm4269 = vcmp.eq.s32.totalorder %v4237, 1
      %vm4270 = vcmp.eq.s32.totalorder %v4238, 1
      %v4288 = vcombine.high %v4190, %v4190
      %v4289 = vcombine.high %v4191, %v4191
      %v4290 = vcombine.high %v4192, %v4192
      %v4291 = vcombine.high %v4193, %v4193
      %v4292 = vcombine.high %v4194, %v4194
      %v4293 = vcombine.high %v4195, %v4195
      %v4294 = vcombine.high %v4196, %v4196
      %v4295 = vcombine.high %v4197, %v4197
      %v4296 = vcombine.high %v4198, %v4198
      %v4297 = vcombine.high %v4199, %v4199
      %v4298 = vcombine.high %v4200, %v4200
      %v4299 = vcombine.high %v4201, %v4201
      %v4300 = vcombine.high %v4202, %v4202
      %v4301 = vcombine.high %v4203, %v4203
      %v4302 = vcombine.high %v4204, %v4204
      %v4303 = vcombine.high %v4205, %v4205
      %4304 = vrot.lane.b32.xlu0 %v4190, 63
      %v4305 = vpop.permute.xlu0 %4304
      %4306 = vrot.lane.b32.xlu0 %v4288, 63
      %v4307 = vpop.permute.xlu0 %4306
      %4308 = vrot.lane.b32.xlu0 %v4191, 63
      %v4309 = vpop.permute.xlu0 %4308
      %4310 = vrot.lane.b32.xlu0 %v4289, 63
      %v4311 = vpop.permute.xlu0 %4310
      %4312 = vrot.lane.b32.xlu0 %v4192, 63
      %v4313 = vpop.permute.xlu0 %4312
      %4314 = vrot.lane.b32.xlu0 %v4290, 63
      %v4315 = vpop.permute.xlu0 %4314
      %4316 = vrot.lane.b32.xlu0 %v4193, 63
      %v4317 = vpop.permute.xlu0 %4316
      %4318 = vrot.lane.b32.xlu0 %v4291, 63
      %v4319 = vpop.permute.xlu0 %4318
      %4320 = vrot.lane.b32.xlu0 %v4194, 63
      %v4321 = vpop.permute.xlu0 %4320
      %4322 = vrot.lane.b32.xlu0 %v4292, 63
      %v4323 = vpop.permute.xlu0 %4322
      %4324 = vrot.lane.b32.xlu0 %v4195, 63
      %v4325 = vpop.permute.xlu0 %4324
      %4326 = vrot.lane.b32.xlu0 %v4293, 63
      %v4327 = vpop.permute.xlu0 %4326
      %4328 = vrot.lane.b32.xlu0 %v4196, 63
      %v4329 = vpop.permute.xlu0 %4328
      %4330 = vrot.lane.b32.xlu0 %v4294, 63
      %v4331 = vpop.permute.xlu0 %4330
      %4332 = vrot.lane.b32.xlu0 %v4197, 63
      %v4333 = vpop.permute.xlu0 %4332
      %4334 = vrot.lane.b32.xlu0 %v4295, 63
      %v4335 = vpop.permute.xlu0 %4334
      %4336 = vrot.lane.b32.xlu0 %v4198, 63
      %v4337 = vpop.permute.xlu0 %4336
      %4338 = vrot.lane.b32.xlu0 %v4296, 63
      %v4339 = vpop.permute.xlu0 %4338
      %4340 = vrot.lane.b32.xlu0 %v4199, 63
      %v4341 = vpop.permute.xlu0 %4340
      %4342 = vrot.lane.b32.xlu0 %v4297, 63
      %v4343 = vpop.permute.xlu0 %4342
      %4344 = vrot.lane.b32.xlu0 %v4200, 63
      %v4345 = vpop.permute.xlu0 %4344
      %4346 = vrot.lane.b32.xlu0 %v4298, 63
      %v4347 = vpop.permute.xlu0 %4346
      %4348 = vrot.lane.b32.xlu0 %v4201, 63
      %v4349 = vpop.permute.xlu0 %4348
      %4350 = vrot.lane.b32.xlu0 %v4299, 63
      %v4351 = vpop.permute.xlu0 %4350
      %4352 = vrot.lane.b32.xlu0 %v4202, 63
      %v4353 = vpop.permute.xlu0 %4352
      %4354 = vrot.lane.b32.xlu0 %v4300, 63
      %v4355 = vpop.permute.xlu0 %4354
      %4356 = vrot.lane.b32.xlu0 %v4203, 63
      %v4357 = vpop.permute.xlu0 %4356
      %4358 = vrot.lane.b32.xlu0 %v4301, 63
      %v4359 = vpop.permute.xlu0 %4358
      %4360 = vrot.lane.b32.xlu0 %v4204, 63
      %v4361 = vpop.permute.xlu0 %4360
      %4362 = vrot.lane.b32.xlu0 %v4302, 63
      %v4363 = vpop.permute.xlu0 %4362
      %4364 = vrot.lane.b32.xlu0 %v4205, 63
      %v4365 = vpop.permute.xlu0 %4364
      %4366 = vrot.lane.b32.xlu0 %v4303, 63
      %v4367 = vpop.permute.xlu0 %4366
      %4368 = vrot.lane.b32.xlu0 %v4206, 63
      %v4369 = vpop.permute.xlu0 %4368
      %vm4370 = vcmask 515072
      %v4371 = vsel %vm4370, %v4305, %v4307
      %v4372 = vsel %vm4370, %v4307, %v4309
      %v4373 = vsel %vm4370, %v4309, %v4311
      %v4374 = vsel %vm4370, %v4311, %v4313
      %v4375 = vsel %vm4370, %v4313, %v4315
      %v4376 = vsel %vm4370, %v4315, %v4317
      %v4377 = vsel %vm4370, %v4317, %v4319
      %v4378 = vsel %vm4370, %v4319, %v4321
      %v4379 = vsel %vm4370, %v4321, %v4323
      %v4380 = vsel %vm4370, %v4323, %v4325
      %v4381 = vsel %vm4370, %v4325, %v4327
      %v4382 = vsel %vm4370, %v4327, %v4329
      %v4383 = vsel %vm4370, %v4329, %v4331
      %v4384 = vsel %vm4370, %v4331, %v4333
      %v4385 = vsel %vm4370, %v4333, %v4335
      %v4386 = vsel %vm4370, %v4335, %v4337
      %v4387 = vsel %vm4370, %v4337, %v4339
      %v4388 = vsel %vm4370, %v4339, %v4341
      %v4389 = vsel %vm4370, %v4341, %v4343
      %v4390 = vsel %vm4370, %v4343, %v4345
      %v4391 = vsel %vm4370, %v4345, %v4347
      %v4392 = vsel %vm4370, %v4347, %v4349
      %v4393 = vsel %vm4370, %v4349, %v4351
      %v4394 = vsel %vm4370, %v4351, %v4353
      %v4395 = vsel %vm4370, %v4353, %v4355
      %v4396 = vsel %vm4370, %v4355, %v4357
      %v4397 = vsel %vm4370, %v4357, %v4359
      %v4398 = vsel %vm4370, %v4359, %v4361
      %v4399 = vsel %vm4370, %v4361, %v4363
      %v4400 = vsel %vm4370, %v4363, %v4365
      %v4401 = vsel %vm4370, %v4365, %v4367
      %v4402 = vsel %vm4370, %v4367, %v4369
      %v4435 = vsel %vm4239, %v4371, 0.0
      %v4436 = vsel %vm4240, %v4372, 0.0
      %v4437 = vsel %vm4241, %v4373, 0.0
      %v4438 = vsel %vm4242, %v4374, 0.0
      %v4439 = vsel %vm4243, %v4375, 0.0
      %v4440 = vsel %vm4244, %v4376, 0.0
      %v4441 = vsel %vm4245, %v4377, 0.0
      %v4442 = vsel %vm4246, %v4378, 0.0
      %v4443 = vsel %vm4247, %v4379, 0.0
      %v4444 = vsel %vm4248, %v4380, 0.0
      %v4445 = vsel %vm4249, %v4381, 0.0
      %v4446 = vsel %vm4250, %v4382, 0.0
      %v4447 = vsel %vm4251, %v4383, 0.0
      %v4448 = vsel %vm4252, %v4384, 0.0
      %v4449 = vsel %vm4253, %v4385, 0.0
      %v4450 = vsel %vm4254, %v4386, 0.0
      %v4451 = vsel %vm4255, %v4387, 0.0
      %v4452 = vsel %vm4256, %v4388, 0.0
      %v4453 = vsel %vm4257, %v4389, 0.0
      %v4454 = vsel %vm4258, %v4390, 0.0
      %v4455 = vsel %vm4259, %v4391, 0.0
      %v4456 = vsel %vm4260, %v4392, 0.0
      %v4457 = vsel %vm4261, %v4393, 0.0
      %v4458 = vsel %vm4262, %v4394, 0.0
      %v4459 = vsel %vm4263, %v4395, 0.0
      %v4460 = vsel %vm4264, %v4396, 0.0
      %v4461 = vsel %vm4265, %v4397, 0.0
      %v4462 = vsel %vm4266, %v4398, 0.0
      %v4463 = vsel %vm4267, %v4399, 0.0
      %v4464 = vsel %vm4268, %v4400, 0.0
      %v4465 = vsel %vm4269, %v4401, 0.0
      %v4466 = vsel %vm4270, %v4402, 0.0
      %v4499 = vrot.slane %v4435, 2
      %v4500 = vrot.slane %v4436, 2
      %v4501 = vrot.slane %v4437, 2
      %v4502 = vrot.slane %v4438, 2
      %v4503 = vrot.slane %v4439, 2
      %v4504 = vrot.slane %v4440, 2
      %v4505 = vrot.slane %v4441, 2
      %v4506 = vrot.slane %v4442, 2
      %v4507 = vrot.slane %v4443, 2
      %v4508 = vrot.slane %v4444, 2
      %v4509 = vrot.slane %v4445, 2
      %v4510 = vrot.slane %v4446, 2
      %v4511 = vrot.slane %v4447, 2
      %v4512 = vrot.slane %v4448, 2
      %v4513 = vrot.slane %v4449, 2
      %v4514 = vrot.slane %v4450, 2
      %v4515 = vrot.slane %v4451, 2
      %v4516 = vrot.slane %v4452, 2
      %v4517 = vrot.slane %v4453, 2
      %v4518 = vrot.slane %v4454, 2
      %v4519 = vrot.slane %v4455, 2
      %v4520 = vrot.slane %v4456, 2
      %v4521 = vrot.slane %v4457, 2
      %v4522 = vrot.slane %v4458, 2
      %v4523 = vrot.slane %v4459, 2
      %v4524 = vrot.slane %v4460, 2
      %v4525 = vrot.slane %v4461, 2
      %v4526 = vrot.slane %v4462, 2
      %v4527 = vrot.slane %v4463, 2
      %v4528 = vrot.slane %v4464, 2
      %v4529 = vrot.slane %v4465, 2
      %v4530 = vrot.slane %v4466, 2
      %4563 = vst [vmem:[#allocation3] sm:$0xc0] %v4499
      %4564 = vst [vmem:[#allocation3 + $0x8] sm:$0xc0] %v4500
      %4565 = vst [vmem:[#allocation3 + $0x10] sm:$0xc0] %v4501
      %4566 = vst [vmem:[#allocation3 + $0x18] sm:$0xc0] %v4502
      %4567 = vst [vmem:[#allocation3 + $0x20] sm:$0xc0] %v4503
      %4568 = vst [vmem:[#allocation3 + $0x28] sm:$0xc0] %v4504
      %4569 = vst [vmem:[#allocation3 + $0x30] sm:$0xc0] %v4505
      %4570 = vst [vmem:[#allocation3 + $0x38] sm:$0xc0] %v4506
      %4571 = vst [vmem:[#allocation3 + $0x40] sm:$0xc0] %v4507
      %4572 = vst [vmem:[#allocation3 + $0x48] sm:$0xc0] %v4508
      %4573 = vst [vmem:[#allocation3 + $0x50] sm:$0xc0] %v4509
      %4574 = vst [vmem:[#allocation3 + $0x58] sm:$0xc0] %v4510
      %4575 = vst [vmem:[#allocation3 + $0x60] sm:$0xc0] %v4511
      %4576 = vst [vmem:[#allocation3 + $0x68] sm:$0xc0] %v4512
      %4577 = vst [vmem:[#allocation3 + $0x70] sm:$0xc0] %v4513
      %4578 = vst [vmem:[#allocation3 + $0x78] sm:$0xc0] %v4514
      %4579 = vst [vmem:[#allocation3 + $0x80] sm:$0xc0] %v4515
      %4580 = vst [vmem:[#allocation3 + $0x88] sm:$0xc0] %v4516
      %4581 = vst [vmem:[#allocation3 + $0x90] sm:$0xc0] %v4517
      %4582 = vst [vmem:[#allocation3 + $0x98] sm:$0xc0] %v4518
      %4583 = vst [vmem:[#allocation3 + $0xa0] sm:$0xc0] %v4519
      %4584 = vst [vmem:[#allocation3 + $0xa8] sm:$0xc0] %v4520
      %4585 = vst [vmem:[#allocation3 + $0xb0] sm:$0xc0] %v4521
      %4586 = vst [vmem:[#allocation3 + $0xb8] sm:$0xc0] %v4522
      %4587 = vst [vmem:[#allocation3 + $0xc0] sm:$0xc0] %v4523
      %4588 = vst [vmem:[#allocation3 + $0xc8] sm:$0xc0] %v4524
      %4589 = vst [vmem:[#allocation3 + $0xd0] sm:$0xc0] %v4525
      %4590 = vst [vmem:[#allocation3 + $0xd8] sm:$0xc0] %v4526
      %4591 = vst [vmem:[#allocation3 + $0xe0] sm:$0xc0] %v4527
      %4592 = vst [vmem:[#allocation3 + $0xe8] sm:$0xc0] %v4528
      %4593 = vst [vmem:[#allocation3 + $0xf0] sm:$0xc0] %v4529
      %4594 = vst [vmem:[#allocation3 + $0xf8] sm:$0xc0] %v4530
      %4595 = vst [vmem:[#allocation3 + $0x100] sm:$0x1] %v4499
      %4596 = vst [vmem:[#allocation3 + $0x108] sm:$0x1] %v4500
      %4597 = vst [vmem:[#allocation3 + $0x110] sm:$0x1] %v4501
      %4598 = vst [vmem:[#allocation3 + $0x118] sm:$0x1] %v4502
      %4599 = vst [vmem:[#allocation3 + $0x120] sm:$0x1] %v4503
      %4600 = vst [vmem:[#allocation3 + $0x128] sm:$0x1] %v4504
      %4601 = vst [vmem:[#allocation3 + $0x130] sm:$0x1] %v4505
      %4602 = vst [vmem:[#allocation3 + $0x138] sm:$0x1] %v4506
      %4603 = vst [vmem:[#allocation3 + $0x140] sm:$0x1] %v4507
      %4604 = vst [vmem:[#allocation3 + $0x148] sm:$0x1] %v4508
      %4605 = vst [vmem:[#allocation3 + $0x150] sm:$0x1] %v4509
      %4606 = vst [vmem:[#allocation3 + $0x158] sm:$0x1] %v4510
      %4607 = vst [vmem:[#allocation3 + $0x160] sm:$0x1] %v4511
      %4608 = vst [vmem:[#allocation3 + $0x168] sm:$0x1] %v4512
      %4609 = vst [vmem:[#allocation3 + $0x170] sm:$0x1] %v4513
      %4610 = vst [vmem:[#allocation3 + $0x178] sm:$0x1] %v4514
      %4611 = vst [vmem:[#allocation3 + $0x180] sm:$0x1] %v4515
      %4612 = vst [vmem:[#allocation3 + $0x188] sm:$0x1] %v4516
      %4613 = vst [vmem:[#allocation3 + $0x190] sm:$0x1] %v4517
      %4614 = vst [vmem:[#allocation3 + $0x198] sm:$0x1] %v4518
      %4615 = vst [vmem:[#allocation3 + $0x1a0] sm:$0x1] %v4519
      %4616 = vst [vmem:[#allocation3 + $0x1a8] sm:$0x1] %v4520
      %4617 = vst [vmem:[#allocation3 + $0x1b0] sm:$0x1] %v4521
      %4618 = vst [vmem:[#allocation3 + $0x1b8] sm:$0x1] %v4522
      %4619 = vst [vmem:[#allocation3 + $0x1c0] sm:$0x1] %v4523
      %4620 = vst [vmem:[#allocation3 + $0x1c8] sm:$0x1] %v4524
      %4621 = vst [vmem:[#allocation3 + $0x1d0] sm:$0x1] %v4525
      %4622 = vst [vmem:[#allocation3 + $0x1d8] sm:$0x1] %v4526
      %4623 = vst [vmem:[#allocation3 + $0x1e0] sm:$0x1] %v4527
      %4624 = vst [vmem:[#allocation3 + $0x1e8] sm:$0x1] %v4528
      %4625 = vst [vmem:[#allocation3 + $0x1f0] sm:$0x1] %v4529
      %4626 = vst [vmem:[#allocation3 + $0x1f8] sm:$0x1] %v4530
      %v4627 = vld [vmem:[#allocation2] sm:$0x77]
      %v4628 = vld [vmem:[#allocation2 + $0x8] sm:$0x77]
      %v4629 = vld [vmem:[#allocation2 + $0x10] sm:$0x77]
      %v4630 = vld [vmem:[#allocation2 + $0x18] sm:$0x77]
      %v4631 = vld [vmem:[#allocation2 + $0x20] sm:$0x77]
      %v4632 = vld [vmem:[#allocation2 + $0x28] sm:$0x77]
      %v4633 = vld [vmem:[#allocation2 + $0x30] sm:$0x77]
      %v4634 = vld [vmem:[#allocation2 + $0x38] sm:$0x77]
      %v4635 = vld [vmem:[#allocation2 + $0x40] sm:$0x77]
      %v4636 = vld [vmem:[#allocation2 + $0x48] sm:$0x77]
      %v4637 = vld [vmem:[#allocation2 + $0x50] sm:$0x77]
      %v4638 = vld [vmem:[#allocation2 + $0x58] sm:$0x77]
      %v4639 = vld [vmem:[#allocation2 + $0x60] sm:$0x77]
      %v4640 = vld [vmem:[#allocation2 + $0x68] sm:$0x77]
      %v4641 = vld [vmem:[#allocation2 + $0x70] sm:$0x77]
      %v4642 = vld [vmem:[#allocation2 + $0x78] sm:$0x77]
      %v4643 = vld [vmem:[#allocation2 + $0x80] sm:$0x7]
      %v4661 = vcombine.high %v4627, %v4627
      %v4662 = vcombine.high %v4628, %v4628
      %v4663 = vcombine.high %v4629, %v4629
      %v4664 = vcombine.high %v4630, %v4630
      %v4665 = vcombine.high %v4631, %v4631
      %v4666 = vcombine.high %v4632, %v4632
      %v4667 = vcombine.high %v4633, %v4633
      %v4668 = vcombine.high %v4634, %v4634
      %v4669 = vcombine.high %v4635, %v4635
      %v4670 = vcombine.high %v4636, %v4636
      %v4671 = vcombine.high %v4637, %v4637
      %v4672 = vcombine.high %v4638, %v4638
      %v4673 = vcombine.high %v4639, %v4639
      %v4674 = vcombine.high %v4640, %v4640
      %v4675 = vcombine.high %v4641, %v4641
      %v4676 = vcombine.high %v4642, %v4642
      %4677 = vrot.lane.b32.xlu0 %v4627, 1
      %v4678 = vpop.permute.xlu0 %4677
      %4679 = vrot.lane.b32.xlu0 %v4661, 1
      %v4680 = vpop.permute.xlu0 %4679
      %4681 = vrot.lane.b32.xlu0 %v4628, 1
      %v4682 = vpop.permute.xlu0 %4681
      %4683 = vrot.lane.b32.xlu0 %v4662, 1
      %v4684 = vpop.permute.xlu0 %4683
      %4685 = vrot.lane.b32.xlu0 %v4629, 1
      %v4686 = vpop.permute.xlu0 %4685
      %4687 = vrot.lane.b32.xlu0 %v4663, 1
      %v4688 = vpop.permute.xlu0 %4687
      %4689 = vrot.lane.b32.xlu0 %v4630, 1
      %v4690 = vpop.permute.xlu0 %4689
      %4691 = vrot.lane.b32.xlu0 %v4664, 1
      %v4692 = vpop.permute.xlu0 %4691
      %4693 = vrot.lane.b32.xlu0 %v4631, 1
      %v4694 = vpop.permute.xlu0 %4693
      %4695 = vrot.lane.b32.xlu0 %v4665, 1
      %v4696 = vpop.permute.xlu0 %4695
      %4697 = vrot.lane.b32.xlu0 %v4632, 1
      %v4698 = vpop.permute.xlu0 %4697
      %4699 = vrot.lane.b32.xlu0 %v4666, 1
      %v4700 = vpop.permute.xlu0 %4699
      %4701 = vrot.lane.b32.xlu0 %v4633, 1
      %v4702 = vpop.permute.xlu0 %4701
      %4703 = vrot.lane.b32.xlu0 %v4667, 1
      %v4704 = vpop.permute.xlu0 %4703
      %4705 = vrot.lane.b32.xlu0 %v4634, 1
      %v4706 = vpop.permute.xlu0 %4705
      %4707 = vrot.lane.b32.xlu0 %v4668, 1
      %v4708 = vpop.permute.xlu0 %4707
      %4709 = vrot.lane.b32.xlu0 %v4635, 1
      %v4710 = vpop.permute.xlu0 %4709
      %4711 = vrot.lane.b32.xlu0 %v4669, 1
      %v4712 = vpop.permute.xlu0 %4711
      %4713 = vrot.lane.b32.xlu0 %v4636, 1
      %v4714 = vpop.permute.xlu0 %4713
      %4715 = vrot.lane.b32.xlu0 %v4670, 1
      %v4716 = vpop.permute.xlu0 %4715
      %4717 = vrot.lane.b32.xlu0 %v4637, 1
      %v4718 = vpop.permute.xlu0 %4717
      %4719 = vrot.lane.b32.xlu0 %v4671, 1
      %v4720 = vpop.permute.xlu0 %4719
      %4721 = vrot.lane.b32.xlu0 %v4638, 1
      %v4722 = vpop.permute.xlu0 %4721
      %4723 = vrot.lane.b32.xlu0 %v4672, 1
      %v4724 = vpop.permute.xlu0 %4723
      %4725 = vrot.lane.b32.xlu0 %v4639, 1
      %v4726 = vpop.permute.xlu0 %4725
      %4727 = vrot.lane.b32.xlu0 %v4673, 1
      %v4728 = vpop.permute.xlu0 %4727
      %4729 = vrot.lane.b32.xlu0 %v4640, 1
      %v4730 = vpop.permute.xlu0 %4729
      %4731 = vrot.lane.b32.xlu0 %v4674, 1
      %v4732 = vpop.permute.xlu0 %4731
      %4733 = vrot.lane.b32.xlu0 %v4641, 1
      %v4734 = vpop.permute.xlu0 %4733
      %4735 = vrot.lane.b32.xlu0 %v4675, 1
      %v4736 = vpop.permute.xlu0 %4735
      %4737 = vrot.lane.b32.xlu0 %v4642, 1
      %v4738 = vpop.permute.xlu0 %4737
      %4739 = vrot.lane.b32.xlu0 %v4676, 1
      %v4740 = vpop.permute.xlu0 %4739
      %4741 = vrot.lane.b32.xlu0 %v4643, 1
      %v4742 = vpop.permute.xlu0 %4741
      %vm4743 = vcmask 7168
      %v4744 = vsel %vm4743, %v4678, %v4680
      %v4745 = vsel %vm4743, %v4680, %v4682
      %v4746 = vsel %vm4743, %v4682, %v4684
      %v4747 = vsel %vm4743, %v4684, %v4686
      %v4748 = vsel %vm4743, %v4686, %v4688
      %v4749 = vsel %vm4743, %v4688, %v4690
      %v4750 = vsel %vm4743, %v4690, %v4692
      %v4751 = vsel %vm4743, %v4692, %v4694
      %v4752 = vsel %vm4743, %v4694, %v4696
      %v4753 = vsel %vm4743, %v4696, %v4698
      %v4754 = vsel %vm4743, %v4698, %v4700
      %v4755 = vsel %vm4743, %v4700, %v4702
      %v4756 = vsel %vm4743, %v4702, %v4704
      %v4757 = vsel %vm4743, %v4704, %v4706
      %v4758 = vsel %vm4743, %v4706, %v4708
      %v4759 = vsel %vm4743, %v4708, %v4710
      %v4760 = vsel %vm4743, %v4710, %v4712
      %v4761 = vsel %vm4743, %v4712, %v4714
      %v4762 = vsel %vm4743, %v4714, %v4716
      %v4763 = vsel %vm4743, %v4716, %v4718
      %v4764 = vsel %vm4743, %v4718, %v4720
      %v4765 = vsel %vm4743, %v4720, %v4722
      %v4766 = vsel %vm4743, %v4722, %v4724
      %v4767 = vsel %vm4743, %v4724, %v4726
      %v4768 = vsel %vm4743, %v4726, %v4728
      %v4769 = vsel %vm4743, %v4728, %v4730
      %v4770 = vsel %vm4743, %v4730, %v4732
      %v4771 = vsel %vm4743, %v4732, %v4734
      %v4772 = vsel %vm4743, %v4734, %v4736
      %v4773 = vsel %vm4743, %v4736, %v4738
      %v4774 = vsel %vm4743, %v4738, %v4740
      %v4775 = vsel %vm4743, %v4740, %v4742
      %v4808 = vsel %vm3684, %v4744, 0.0
      %v4809 = vsel %vm3685, %v4745, 0.0
      %v4810 = vsel %vm3686, %v4746, 0.0
      %v4811 = vsel %vm3687, %v4747, 0.0
      %v4812 = vsel %vm3688, %v4748, 0.0
      %v4813 = vsel %vm3689, %v4749, 0.0
      %v4814 = vsel %vm3690, %v4750, 0.0
      %v4815 = vsel %vm3691, %v4751, 0.0
      %v4816 = vsel %vm3692, %v4752, 0.0
      %v4817 = vsel %vm3693, %v4753, 0.0
      %v4818 = vsel %vm3694, %v4754, 0.0
      %v4819 = vsel %vm3695, %v4755, 0.0
      %v4820 = vsel %vm3696, %v4756, 0.0
      %v4821 = vsel %vm3697, %v4757, 0.0
      %v4822 = vsel %vm3698, %v4758, 0.0
      %v4823 = vsel %vm3699, %v4759, 0.0
      %v4824 = vsel %vm3700, %v4760, 0.0
      %v4825 = vsel %vm3701, %v4761, 0.0
      %v4826 = vsel %vm3702, %v4762, 0.0
      %v4827 = vsel %vm3703, %v4763, 0.0
      %v4828 = vsel %vm3704, %v4764, 0.0
      %v4829 = vsel %vm3705, %v4765, 0.0
      %v4830 = vsel %vm3706, %v4766, 0.0
      %v4831 = vsel %vm3707, %v4767, 0.0
      %v4832 = vsel %vm3708, %v4768, 0.0
      %v4833 = vsel %vm3709, %v4769, 0.0
      %v4834 = vsel %vm3710, %v4770, 0.0
      %v4835 = vsel %vm3711, %v4771, 0.0
      %v4836 = vsel %vm3712, %v4772, 0.0
      %v4837 = vsel %vm3713, %v4773, 0.0
      %v4838 = vsel %vm3714, %v4774, 0.0
      %v4839 = vsel %vm3715, %v4775, 0.0
      %v4872 = vrot.slane %v4808, 7
      %v4873 = vrot.slane %v4809, 7
      %v4874 = vrot.slane %v4810, 7
      %v4875 = vrot.slane %v4811, 7
      %v4876 = vrot.slane %v4812, 7
      %v4877 = vrot.slane %v4813, 7
      %v4878 = vrot.slane %v4814, 7
      %v4879 = vrot.slane %v4815, 7
      %v4880 = vrot.slane %v4816, 7
      %v4881 = vrot.slane %v4817, 7
      %v4882 = vrot.slane %v4818, 7
      %v4883 = vrot.slane %v4819, 7
      %v4884 = vrot.slane %v4820, 7
      %v4885 = vrot.slane %v4821, 7
      %v4886 = vrot.slane %v4822, 7
      %v4887 = vrot.slane %v4823, 7
      %v4888 = vrot.slane %v4824, 7
      %v4889 = vrot.slane %v4825, 7
      %v4890 = vrot.slane %v4826, 7
      %v4891 = vrot.slane %v4827, 7
      %v4892 = vrot.slane %v4828, 7
      %v4893 = vrot.slane %v4829, 7
      %v4894 = vrot.slane %v4830, 7
      %v4895 = vrot.slane %v4831, 7
      %v4896 = vrot.slane %v4832, 7
      %v4897 = vrot.slane %v4833, 7
      %v4898 = vrot.slane %v4834, 7
      %v4899 = vrot.slane %v4835, 7
      %v4900 = vrot.slane %v4836, 7
      %v4901 = vrot.slane %v4837, 7
      %v4902 = vrot.slane %v4838, 7
      %v4903 = vrot.slane %v4839, 7
      %4936 = vst [vmem:[#allocation3 + $0x100] sm:$0xe] %v4872
      %4937 = vst [vmem:[#allocation3 + $0x108] sm:$0xe] %v4873
      %4938 = vst [vmem:[#allocation3 + $0x110] sm:$0xe] %v4874
      %4939 = vst [vmem:[#allocation3 + $0x118] sm:$0xe] %v4875
      %4940 = vst [vmem:[#allocation3 + $0x120] sm:$0xe] %v4876
      %4941 = vst [vmem:[#allocation3 + $0x128] sm:$0xe] %v4877
      %4942 = vst [vmem:[#allocation3 + $0x130] sm:$0xe] %v4878
      %4943 = vst [vmem:[#allocation3 + $0x138] sm:$0xe] %v4879
      %4944 = vst [vmem:[#allocation3 + $0x140] sm:$0xe] %v4880
      %4945 = vst [vmem:[#allocation3 + $0x148] sm:$0xe] %v4881
      %4946 = vst [vmem:[#allocation3 + $0x150] sm:$0xe] %v4882
      %4947 = vst [vmem:[#allocation3 + $0x158] sm:$0xe] %v4883
      %4948 = vst [vmem:[#allocation3 + $0x160] sm:$0xe] %v4884
      %4949 = vst [vmem:[#allocation3 + $0x168] sm:$0xe] %v4885
      %4950 = vst [vmem:[#allocation3 + $0x170] sm:$0xe] %v4886
      %4951 = vst [vmem:[#allocation3 + $0x178] sm:$0xe] %v4887
      %4952 = vst [vmem:[#allocation3 + $0x180] sm:$0xe] %v4888
      %4953 = vst [vmem:[#allocation3 + $0x188] sm:$0xe] %v4889
      %4954 = vst [vmem:[#allocation3 + $0x190] sm:$0xe] %v4890
      %4955 = vst [vmem:[#allocation3 + $0x198] sm:$0xe] %v4891
      %4956 = vst [vmem:[#allocation3 + $0x1a0] sm:$0xe] %v4892
      %4957 = vst [vmem:[#allocation3 + $0x1a8] sm:$0xe] %v4893
      %4958 = vst [vmem:[#allocation3 + $0x1b0] sm:$0xe] %v4894
      %4959 = vst [vmem:[#allocation3 + $0x1b8] sm:$0xe] %v4895
      %4960 = vst [vmem:[#allocation3 + $0x1c0] sm:$0xe] %v4896
      %4961 = vst [vmem:[#allocation3 + $0x1c8] sm:$0xe] %v4897
      %4962 = vst [vmem:[#allocation3 + $0x1d0] sm:$0xe] %v4898
      %4963 = vst [vmem:[#allocation3 + $0x1d8] sm:$0xe] %v4899
      %4964 = vst [vmem:[#allocation3 + $0x1e0] sm:$0xe] %v4900
      %4965 = vst [vmem:[#allocation3 + $0x1e8] sm:$0xe] %v4901
      %4966 = vst [vmem:[#allocation3 + $0x1f0] sm:$0xe] %v4902
      %4967 = vst [vmem:[#allocation3 + $0x1f8] sm:$0xe] %v4903
      %v4968 = vld [vmem:[#allocation2 + $0x4] sm:$0x77]
      %v4969 = vld [vmem:[#allocation2 + $0xc] sm:$0x77]
      %v4970 = vld [vmem:[#allocation2 + $0x14] sm:$0x77]
      %v4971 = vld [vmem:[#allocation2 + $0x1c] sm:$0x77]
      %v4972 = vld [vmem:[#allocation2 + $0x24] sm:$0x77]
      %v4973 = vld [vmem:[#allocation2 + $0x2c] sm:$0x77]
      %v4974 = vld [vmem:[#allocation2 + $0x34] sm:$0x77]
      %v4975 = vld [vmem:[#allocation2 + $0x3c] sm:$0x77]
      %v4976 = vld [vmem:[#allocation2 + $0x44] sm:$0x77]
      %v4977 = vld [vmem:[#allocation2 + $0x4c] sm:$0x77]
      %v4978 = vld [vmem:[#allocation2 + $0x54] sm:$0x77]
      %v4979 = vld [vmem:[#allocation2 + $0x5c] sm:$0x77]
      %v4980 = vld [vmem:[#allocation2 + $0x64] sm:$0x77]
      %v4981 = vld [vmem:[#allocation2 + $0x6c] sm:$0x77]
      %v4982 = vld [vmem:[#allocation2 + $0x74] sm:$0x77]
      %v4983 = vld [vmem:[#allocation2 + $0x7c] sm:$0x77]
      %v5000 = vcombine.low %v4968, %v4968
      %v5001 = vcombine.low %v4969, %v4969
      %v5002 = vcombine.low %v4970, %v4970
      %v5003 = vcombine.low %v4971, %v4971
      %v5004 = vcombine.low %v4972, %v4972
      %v5005 = vcombine.low %v4973, %v4973
      %v5006 = vcombine.low %v4974, %v4974
      %v5007 = vcombine.low %v4975, %v4975
      %v5008 = vcombine.low %v4976, %v4976
      %v5009 = vcombine.low %v4977, %v4977
      %v5010 = vcombine.low %v4978, %v4978
      %v5011 = vcombine.low %v4979, %v4979
      %v5012 = vcombine.low %v4980, %v4980
      %v5013 = vcombine.low %v4981, %v4981
      %v5014 = vcombine.low %v4982, %v4982
      %v5015 = vcombine.low %v4983, %v4983
      %5032 = vst [vmem:[#allocation3 + $0x100] sm:$0x70] %v5000
      %5033 = vst [vmem:[#allocation3 + $0x108] sm:$0x70] %v4968
      %5034 = vst [vmem:[#allocation3 + $0x110] sm:$0x70] %v5001
      %5035 = vst [vmem:[#allocation3 + $0x118] sm:$0x70] %v4969
      %5036 = vst [vmem:[#allocation3 + $0x120] sm:$0x70] %v5002
      %5037 = vst [vmem:[#allocation3 + $0x128] sm:$0x70] %v4970
      %5038 = vst [vmem:[#allocation3 + $0x130] sm:$0x70] %v5003
      %5039 = vst [vmem:[#allocation3 + $0x138] sm:$0x70] %v4971
      %5040 = vst [vmem:[#allocation3 + $0x140] sm:$0x70] %v5004
      %5041 = vst [vmem:[#allocation3 + $0x148] sm:$0x70] %v4972
      %5042 = vst [vmem:[#allocation3 + $0x150] sm:$0x70] %v5005
      %5043 = vst [vmem:[#allocation3 + $0x158] sm:$0x70] %v4973
      %5044 = vst [vmem:[#allocation3 + $0x160] sm:$0x70] %v5006
      %5045 = vst [vmem:[#allocation3 + $0x168] sm:$0x70] %v4974
      %5046 = vst [vmem:[#allocation3 + $0x170] sm:$0x70] %v5007
      %5047 = vst [vmem:[#allocation3 + $0x178] sm:$0x70] %v4975
      %5048 = vst [vmem:[#allocation3 + $0x180] sm:$0x70] %v5008
      %5049 = vst [vmem:[#allocation3 + $0x188] sm:$0x70] %v4976
      %5050 = vst [vmem:[#allocation3 + $0x190] sm:$0x70] %v5009
      %5051 = vst [vmem:[#allocation3 + $0x198] sm:$0x70] %v4977
      %5052 = vst [vmem:[#allocation3 + $0x1a0] sm:$0x70] %v5010
      %5053 = vst [vmem:[#allocation3 + $0x1a8] sm:$0x70] %v4978
      %5054 = vst [vmem:[#allocation3 + $0x1b0] sm:$0x70] %v5011
      %5055 = vst [vmem:[#allocation3 + $0x1b8] sm:$0x70] %v4979
      %5056 = vst [vmem:[#allocation3 + $0x1c0] sm:$0x70] %v5012
      %5057 = vst [vmem:[#allocation3 + $0x1c8] sm:$0x70] %v4980
      %5058 = vst [vmem:[#allocation3 + $0x1d0] sm:$0x70] %v5013
      %5059 = vst [vmem:[#allocation3 + $0x1d8] sm:$0x70] %v4981
      %5060 = vst [vmem:[#allocation3 + $0x1e0] sm:$0x70] %v5014
      %5061 = vst [vmem:[#allocation3 + $0x1e8] sm:$0x70] %v4982
      %5062 = vst [vmem:[#allocation3 + $0x1f0] sm:$0x70] %v5015
      %5063 = vst [vmem:[#allocation3 + $0x1f8] sm:$0x70] %v4983
      %v5064 = vld [vmem:[#allocation2 + $0x4] sm:$0x77]
      %v5065 = vld [vmem:[#allocation2 + $0xc] sm:$0x77]
      %v5066 = vld [vmem:[#allocation2 + $0x14] sm:$0x77]
      %v5067 = vld [vmem:[#allocation2 + $0x1c] sm:$0x77]
      %v5068 = vld [vmem:[#allocation2 + $0x24] sm:$0x77]
      %v5069 = vld [vmem:[#allocation2 + $0x2c] sm:$0x77]
      %v5070 = vld [vmem:[#allocation2 + $0x34] sm:$0x77]
      %v5071 = vld [vmem:[#allocation2 + $0x3c] sm:$0x77]
      %v5072 = vld [vmem:[#allocation2 + $0x44] sm:$0x77]
      %v5073 = vld [vmem:[#allocation2 + $0x4c] sm:$0x77]
      %v5074 = vld [vmem:[#allocation2 + $0x54] sm:$0x77]
      %v5075 = vld [vmem:[#allocation2 + $0x5c] sm:$0x77]
      %v5076 = vld [vmem:[#allocation2 + $0x64] sm:$0x77]
      %v5077 = vld [vmem:[#allocation2 + $0x6c] sm:$0x77]
      %v5078 = vld [vmem:[#allocation2 + $0x74] sm:$0x77]
      %v5079 = vld [vmem:[#allocation2 + $0x7c] sm:$0x77]
      %v5080 = vld [vmem:[#allocation2 + $0x84] sm:$0x7]
      %v5098 = vcombine.high %v5064, %v5064
      %v5099 = vcombine.high %v5065, %v5065
      %v5100 = vcombine.high %v5066, %v5066
      %v5101 = vcombine.high %v5067, %v5067
      %v5102 = vcombine.high %v5068, %v5068
      %v5103 = vcombine.high %v5069, %v5069
      %v5104 = vcombine.high %v5070, %v5070
      %v5105 = vcombine.high %v5071, %v5071
      %v5106 = vcombine.high %v5072, %v5072
      %v5107 = vcombine.high %v5073, %v5073
      %v5108 = vcombine.high %v5074, %v5074
      %v5109 = vcombine.high %v5075, %v5075
      %v5110 = vcombine.high %v5076, %v5076
      %v5111 = vcombine.high %v5077, %v5077
      %v5112 = vcombine.high %v5078, %v5078
      %v5113 = vcombine.high %v5079, %v5079
      %5114 = vrot.lane.b32.xlu0 %v5064, 127
      %v5115 = vpop.permute.xlu0 %5114
      %5116 = vrot.lane.b32.xlu0 %v5098, 127
      %v5117 = vpop.permute.xlu0 %5116
      %5118 = vrot.lane.b32.xlu0 %v5065, 127
      %v5119 = vpop.permute.xlu0 %5118
      %5120 = vrot.lane.b32.xlu0 %v5099, 127
      %v5121 = vpop.permute.xlu0 %5120
      %5122 = vrot.lane.b32.xlu0 %v5066, 127
      %v5123 = vpop.permute.xlu0 %5122
      %5124 = vrot.lane.b32.xlu0 %v5100, 127
      %v5125 = vpop.permute.xlu0 %5124
      %5126 = vrot.lane.b32.xlu0 %v5067, 127
      %v5127 = vpop.permute.xlu0 %5126
      %5128 = vrot.lane.b32.xlu0 %v5101, 127
      %v5129 = vpop.permute.xlu0 %5128
      %5130 = vrot.lane.b32.xlu0 %v5068, 127
      %v5131 = vpop.permute.xlu0 %5130
      %5132 = vrot.lane.b32.xlu0 %v5102, 127
      %v5133 = vpop.permute.xlu0 %5132
      %5134 = vrot.lane.b32.xlu0 %v5069, 127
      %v5135 = vpop.permute.xlu0 %5134
      %5136 = vrot.lane.b32.xlu0 %v5103, 127
      %v5137 = vpop.permute.xlu0 %5136
      %5138 = vrot.lane.b32.xlu0 %v5070, 127
      %v5139 = vpop.permute.xlu0 %5138
      %5140 = vrot.lane.b32.xlu0 %v5104, 127
      %v5141 = vpop.permute.xlu0 %5140
      %5142 = vrot.lane.b32.xlu0 %v5071, 127
      %v5143 = vpop.permute.xlu0 %5142
      %5144 = vrot.lane.b32.xlu0 %v5105, 127
      %v5145 = vpop.permute.xlu0 %5144
      %5146 = vrot.lane.b32.xlu0 %v5072, 127
      %v5147 = vpop.permute.xlu0 %5146
      %5148 = vrot.lane.b32.xlu0 %v5106, 127
      %v5149 = vpop.permute.xlu0 %5148
      %5150 = vrot.lane.b32.xlu0 %v5073, 127
      %v5151 = vpop.permute.xlu0 %5150
      %5152 = vrot.lane.b32.xlu0 %v5107, 127
      %v5153 = vpop.permute.xlu0 %5152
      %5154 = vrot.lane.b32.xlu0 %v5074, 127
      %v5155 = vpop.permute.xlu0 %5154
      %5156 = vrot.lane.b32.xlu0 %v5108, 127
      %v5157 = vpop.permute.xlu0 %5156
      %5158 = vrot.lane.b32.xlu0 %v5075, 127
      %v5159 = vpop.permute.xlu0 %5158
      %5160 = vrot.lane.b32.xlu0 %v5109, 127
      %v5161 = vpop.permute.xlu0 %5160
      %5162 = vrot.lane.b32.xlu0 %v5076, 127
      %v5163 = vpop.permute.xlu0 %5162
      %5164 = vrot.lane.b32.xlu0 %v5110, 127
      %v5165 = vpop.permute.xlu0 %5164
      %5166 = vrot.lane.b32.xlu0 %v5077, 127
      %v5167 = vpop.permute.xlu0 %5166
      %5168 = vrot.lane.b32.xlu0 %v5111, 127
      %v5169 = vpop.permute.xlu0 %5168
      %5170 = vrot.lane.b32.xlu0 %v5078, 127
      %v5171 = vpop.permute.xlu0 %5170
      %5172 = vrot.lane.b32.xlu0 %v5112, 127
      %v5173 = vpop.permute.xlu0 %5172
      %5174 = vrot.lane.b32.xlu0 %v5079, 127
      %v5175 = vpop.permute.xlu0 %5174
      %5176 = vrot.lane.b32.xlu0 %v5113, 127
      %v5177 = vpop.permute.xlu0 %5176
      %5178 = vrot.lane.b32.xlu0 %v5080, 127
      %v5179 = vpop.permute.xlu0 %5178
      %vm5180 = vcmask 1039360
      %v5181 = vsel %vm5180, %v5115, %v5117
      %v5182 = vsel %vm5180, %v5117, %v5119
      %v5183 = vsel %vm5180, %v5119, %v5121
      %v5184 = vsel %vm5180, %v5121, %v5123
      %v5185 = vsel %vm5180, %v5123, %v5125
      %v5186 = vsel %vm5180, %v5125, %v5127
      %v5187 = vsel %vm5180, %v5127, %v5129
      %v5188 = vsel %vm5180, %v5129, %v5131
      %v5189 = vsel %vm5180, %v5131, %v5133
      %v5190 = vsel %vm5180, %v5133, %v5135
      %v5191 = vsel %vm5180, %v5135, %v5137
      %v5192 = vsel %vm5180, %v5137, %v5139
      %v5193 = vsel %vm5180, %v5139, %v5141
      %v5194 = vsel %vm5180, %v5141, %v5143
      %v5195 = vsel %vm5180, %v5143, %v5145
      %v5196 = vsel %vm5180, %v5145, %v5147
      %v5197 = vsel %vm5180, %v5147, %v5149
      %v5198 = vsel %vm5180, %v5149, %v5151
      %v5199 = vsel %vm5180, %v5151, %v5153
      %v5200 = vsel %vm5180, %v5153, %v5155
      %v5201 = vsel %vm5180, %v5155, %v5157
      %v5202 = vsel %vm5180, %v5157, %v5159
      %v5203 = vsel %vm5180, %v5159, %v5161
      %v5204 = vsel %vm5180, %v5161, %v5163
      %v5205 = vsel %vm5180, %v5163, %v5165
      %v5206 = vsel %vm5180, %v5165, %v5167
      %v5207 = vsel %vm5180, %v5167, %v5169
      %v5208 = vsel %vm5180, %v5169, %v5171
      %v5209 = vsel %vm5180, %v5171, %v5173
      %v5210 = vsel %vm5180, %v5173, %v5175
      %v5211 = vsel %vm5180, %v5175, %v5177
      %v5212 = vsel %vm5180, %v5177, %v5179
      %v5245 = vsel %vm4239, %v5181, 0.0
      %v5246 = vsel %vm4240, %v5182, 0.0
      %v5247 = vsel %vm4241, %v5183, 0.0
      %v5248 = vsel %vm4242, %v5184, 0.0
      %v5249 = vsel %vm4243, %v5185, 0.0
      %v5250 = vsel %vm4244, %v5186, 0.0
      %v5251 = vsel %vm4245, %v5187, 0.0
      %v5252 = vsel %vm4246, %v5188, 0.0
      %v5253 = vsel %vm4247, %v5189, 0.0
      %v5254 = vsel %vm4248, %v5190, 0.0
      %v5255 = vsel %vm4249, %v5191, 0.0
      %v5256 = vsel %vm4250, %v5192, 0.0
      %v5257 = vsel %vm4251, %v5193, 0.0
      %v5258 = vsel %vm4252, %v5194, 0.0
      %v5259 = vsel %vm4253, %v5195, 0.0
      %v5260 = vsel %vm4254, %v5196, 0.0
      %v5261 = vsel %vm4255, %v5197, 0.0
      %v5262 = vsel %vm4256, %v5198, 0.0
      %v5263 = vsel %vm4257, %v5199, 0.0
      %v5264 = vsel %vm4258, %v5200, 0.0
      %v5265 = vsel %vm4259, %v5201, 0.0
      %v5266 = vsel %vm4260, %v5202, 0.0
      %v5267 = vsel %vm4261, %v5203, 0.0
      %v5268 = vsel %vm4262, %v5204, 0.0
      %v5269 = vsel %vm4263, %v5205, 0.0
      %v5270 = vsel %vm4264, %v5206, 0.0
      %v5271 = vsel %vm4265, %v5207, 0.0
      %v5272 = vsel %vm4266, %v5208, 0.0
      %v5273 = vsel %vm4267, %v5209, 0.0
      %v5274 = vsel %vm4268, %v5210, 0.0
      %v5275 = vsel %vm4269, %v5211, 0.0
      %v5276 = vsel %vm4270, %v5212, 0.0
      %v5309 = vrot.slane %v5245, 1
      %v5310 = vrot.slane %v5246, 1
      %v5311 = vrot.slane %v5247, 1
      %v5312 = vrot.slane %v5248, 1
      %v5313 = vrot.slane %v5249, 1
      %v5314 = vrot.slane %v5250, 1
      %v5315 = vrot.slane %v5251, 1
      %v5316 = vrot.slane %v5252, 1
      %v5317 = vrot.slane %v5253, 1
      %v5318 = vrot.slane %v5254, 1
      %v5319 = vrot.slane %v5255, 1
      %v5320 = vrot.slane %v5256, 1
      %v5321 = vrot.slane %v5257, 1
      %v5322 = vrot.slane %v5258, 1
      %v5323 = vrot.slane %v5259, 1
      %v5324 = vrot.slane %v5260, 1
      %v5325 = vrot.slane %v5261, 1
      %v5326 = vrot.slane %v5262, 1
      %v5327 = vrot.slane %v5263, 1
      %v5328 = vrot.slane %v5264, 1
      %v5329 = vrot.slane %v5265, 1
      %v5330 = vrot.slane %v5266, 1
      %v5331 = vrot.slane %v5267, 1
      %v5332 = vrot.slane %v5268, 1
      %v5333 = vrot.slane %v5269, 1
      %v5334 = vrot.slane %v5270, 1
      %v5335 = vrot.slane %v5271, 1
      %v5336 = vrot.slane %v5272, 1
      %v5337 = vrot.slane %v5273, 1
      %v5338 = vrot.slane %v5274, 1
      %v5339 = vrot.slane %v5275, 1
      %v5340 = vrot.slane %v5276, 1
      %5373 = vst [vmem:[#allocation3 + $0x100] sm:$0x80] %v5309
      %5374 = vst [vmem:[#allocation3 + $0x108] sm:$0x80] %v5310
      %5375 = vst [vmem:[#allocation3 + $0x110] sm:$0x80] %v5311
      %5376 = vst [vmem:[#allocation3 + $0x118] sm:$0x80] %v5312
      %5377 = vst [vmem:[#allocation3 + $0x120] sm:$0x80] %v5313
      %5378 = vst [vmem:[#allocation3 + $0x128] sm:$0x80] %v5314
      %5379 = vst [vmem:[#allocation3 + $0x130] sm:$0x80] %v5315
      %5380 = vst [vmem:[#allocation3 + $0x138] sm:$0x80] %v5316
      %5381 = vst [vmem:[#allocation3 + $0x140] sm:$0x80] %v5317
      %5382 = vst [vmem:[#allocation3 + $0x148] sm:$0x80] %v5318
      %5383 = vst [vmem:[#allocation3 + $0x150] sm:$0x80] %v5319
      %5384 = vst [vmem:[#allocation3 + $0x158] sm:$0x80] %v5320
      %5385 = vst [vmem:[#allocation3 + $0x160] sm:$0x80] %v5321
      %5386 = vst [vmem:[#allocation3 + $0x168] sm:$0x80] %v5322
      %5387 = vst [vmem:[#allocation3 + $0x170] sm:$0x80] %v5323
      %5388 = vst [vmem:[#allocation3 + $0x178] sm:$0x80] %v5324
      %5389 = vst [vmem:[#allocation3 + $0x180] sm:$0x80] %v5325
      %5390 = vst [vmem:[#allocation3 + $0x188] sm:$0x80] %v5326
      %5391 = vst [vmem:[#allocation3 + $0x190] sm:$0x80] %v5327
      %5392 = vst [vmem:[#allocation3 + $0x198] sm:$0x80] %v5328
      %5393 = vst [vmem:[#allocation3 + $0x1a0] sm:$0x80] %v5329
      %5394 = vst [vmem:[#allocation3 + $0x1a8] sm:$0x80] %v5330
      %5395 = vst [vmem:[#allocation3 + $0x1b0] sm:$0x80] %v5331
      %5396 = vst [vmem:[#allocation3 + $0x1b8] sm:$0x80] %v5332
      %5397 = vst [vmem:[#allocation3 + $0x1c0] sm:$0x80] %v5333
      %5398 = vst [vmem:[#allocation3 + $0x1c8] sm:$0x80] %v5334
      %5399 = vst [vmem:[#allocation3 + $0x1d0] sm:$0x80] %v5335
      %5400 = vst [vmem:[#allocation3 + $0x1d8] sm:$0x80] %v5336
      %5401 = vst [vmem:[#allocation3 + $0x1e0] sm:$0x80] %v5337
      %5402 = vst [vmem:[#allocation3 + $0x1e8] sm:$0x80] %v5338
      %5403 = vst [vmem:[#allocation3 + $0x1f0] sm:$0x80] %v5339
      %5404 = vst [vmem:[#allocation3 + $0x1f8] sm:$0x80] %v5340
      %5405 = vst [vmem:[#allocation3 + $0x200] sm:$0x3] %v5309
      %5406 = vst [vmem:[#allocation3 + $0x208] sm:$0x3] %v5310
      %5407 = vst [vmem:[#allocation3 + $0x210] sm:$0x3] %v5311
      %5408 = vst [vmem:[#allocation3 + $0x218] sm:$0x3] %v5312
      %5409 = vst [vmem:[#allocation3 + $0x220] sm:$0x3] %v5313
      %5410 = vst [vmem:[#allocation3 + $0x228] sm:$0x3] %v5314
      %5411 = vst [vmem:[#allocation3 + $0x230] sm:$0x3] %v5315
      %5412 = vst [vmem:[#allocation3 + $0x238] sm:$0x3] %v5316
      %5413 = vst [vmem:[#allocation3 + $0x240] sm:$0x3] %v5317
      %5414 = vst [vmem:[#allocation3 + $0x248] sm:$0x3] %v5318
      %5415 = vst [vmem:[#allocation3 + $0x250] sm:$0x3] %v5319
      %5416 = vst [vmem:[#allocation3 + $0x258] sm:$0x3] %v5320
      %5417 = vst [vmem:[#allocation3 + $0x260] sm:$0x3] %v5321
      %5418 = vst [vmem:[#allocation3 + $0x268] sm:$0x3] %v5322
      %5419 = vst [vmem:[#allocation3 + $0x270] sm:$0x3] %v5323
      %5420 = vst [vmem:[#allocation3 + $0x278] sm:$0x3] %v5324
      %5421 = vst [vmem:[#allocation3 + $0x280] sm:$0x3] %v5325
      %5422 = vst [vmem:[#allocation3 + $0x288] sm:$0x3] %v5326
      %5423 = vst [vmem:[#allocation3 + $0x290] sm:$0x3] %v5327
      %5424 = vst [vmem:[#allocation3 + $0x298] sm:$0x3] %v5328
      %5425 = vst [vmem:[#allocation3 + $0x2a0] sm:$0x3] %v5329
      %5426 = vst [vmem:[#allocation3 + $0x2a8] sm:$0x3] %v5330
      %5427 = vst [vmem:[#allocation3 + $0x2b0] sm:$0x3] %v5331
      %5428 = vst [vmem:[#allocation3 + $0x2b8] sm:$0x3] %v5332
      %5429 = vst [vmem:[#allocation3 + $0x2c0] sm:$0x3] %v5333
      %5430 = vst [vmem:[#allocation3 + $0x2c8] sm:$0x3] %v5334
      %5431 = vst [vmem:[#allocation3 + $0x2d0] sm:$0x3] %v5335
      %5432 = vst [vmem:[#allocation3 + $0x2d8] sm:$0x3] %v5336
      %5433 = vst [vmem:[#allocation3 + $0x2e0] sm:$0x3] %v5337
      %5434 = vst [vmem:[#allocation3 + $0x2e8] sm:$0x3] %v5338
      %5435 = vst [vmem:[#allocation3 + $0x2f0] sm:$0x3] %v5339
      %5436 = vst [vmem:[#allocation3 + $0x2f8] sm:$0x3] %v5340
      %v5437 = vld [vmem:[#allocation2 + $0x4] sm:$0x77]
      %v5438 = vld [vmem:[#allocation2 + $0xc] sm:$0x77]
      %v5439 = vld [vmem:[#allocation2 + $0x14] sm:$0x77]
      %v5440 = vld [vmem:[#allocation2 + $0x1c] sm:$0x77]
      %v5441 = vld [vmem:[#allocation2 + $0x24] sm:$0x77]
      %v5442 = vld [vmem:[#allocation2 + $0x2c] sm:$0x77]
      %v5443 = vld [vmem:[#allocation2 + $0x34] sm:$0x77]
      %v5444 = vld [vmem:[#allocation2 + $0x3c] sm:$0x77]
      %v5445 = vld [vmem:[#allocation2 + $0x44] sm:$0x77]
      %v5446 = vld [vmem:[#allocation2 + $0x4c] sm:$0x77]
      %v5447 = vld [vmem:[#allocation2 + $0x54] sm:$0x77]
      %v5448 = vld [vmem:[#allocation2 + $0x5c] sm:$0x77]
      %v5449 = vld [vmem:[#allocation2 + $0x64] sm:$0x77]
      %v5450 = vld [vmem:[#allocation2 + $0x6c] sm:$0x77]
      %v5451 = vld [vmem:[#allocation2 + $0x74] sm:$0x77]
      %v5452 = vld [vmem:[#allocation2 + $0x7c] sm:$0x77]
      %v5453 = vld [vmem:[#allocation2 + $0x84] sm:$0x7]
      %v5471 = vcombine.high %v5437, %v5437
      %v5472 = vcombine.high %v5438, %v5438
      %v5473 = vcombine.high %v5439, %v5439
      %v5474 = vcombine.high %v5440, %v5440
      %v5475 = vcombine.high %v5441, %v5441
      %v5476 = vcombine.high %v5442, %v5442
      %v5477 = vcombine.high %v5443, %v5443
      %v5478 = vcombine.high %v5444, %v5444
      %v5479 = vcombine.high %v5445, %v5445
      %v5480 = vcombine.high %v5446, %v5446
      %v5481 = vcombine.high %v5447, %v5447
      %v5482 = vcombine.high %v5448, %v5448
      %v5483 = vcombine.high %v5449, %v5449
      %v5484 = vcombine.high %v5450, %v5450
      %v5485 = vcombine.high %v5451, %v5451
      %v5486 = vcombine.high %v5452, %v5452
      %5487 = vrot.lane.b32.xlu0 %v5437, 65
      %v5488 = vpop.permute.xlu0 %5487
      %5489 = vrot.lane.b32.xlu0 %v5471, 65
      %v5490 = vpop.permute.xlu0 %5489
      %5491 = vrot.lane.b32.xlu0 %v5438, 65
      %v5492 = vpop.permute.xlu0 %5491
      %5493 = vrot.lane.b32.xlu0 %v5472, 65
      %v5494 = vpop.permute.xlu0 %5493
      %5495 = vrot.lane.b32.xlu0 %v5439, 65
      %v5496 = vpop.permute.xlu0 %5495
      %5497 = vrot.lane.b32.xlu0 %v5473, 65
      %v5498 = vpop.permute.xlu0 %5497
      %5499 = vrot.lane.b32.xlu0 %v5440, 65
      %v5500 = vpop.permute.xlu0 %5499
      %5501 = vrot.lane.b32.xlu0 %v5474, 65
      %v5502 = vpop.permute.xlu0 %5501
      %5503 = vrot.lane.b32.xlu0 %v5441, 65
      %v5504 = vpop.permute.xlu0 %5503
      %5505 = vrot.lane.b32.xlu0 %v5475, 65
      %v5506 = vpop.permute.xlu0 %5505
      %5507 = vrot.lane.b32.xlu0 %v5442, 65
      %v5508 = vpop.permute.xlu0 %5507
      %5509 = vrot.lane.b32.xlu0 %v5476, 65
      %v5510 = vpop.permute.xlu0 %5509
      %5511 = vrot.lane.b32.xlu0 %v5443, 65
      %v5512 = vpop.permute.xlu0 %5511
      %5513 = vrot.lane.b32.xlu0 %v5477, 65
      %v5514 = vpop.permute.xlu0 %5513
      %5515 = vrot.lane.b32.xlu0 %v5444, 65
      %v5516 = vpop.permute.xlu0 %5515
      %5517 = vrot.lane.b32.xlu0 %v5478, 65
      %v5518 = vpop.permute.xlu0 %5517
      %5519 = vrot.lane.b32.xlu0 %v5445, 65
      %v5520 = vpop.permute.xlu0 %5519
      %5521 = vrot.lane.b32.xlu0 %v5479, 65
      %v5522 = vpop.permute.xlu0 %5521
      %5523 = vrot.lane.b32.xlu0 %v5446, 65
      %v5524 = vpop.permute.xlu0 %5523
      %5525 = vrot.lane.b32.xlu0 %v5480, 65
      %v5526 = vpop.permute.xlu0 %5525
      %5527 = vrot.lane.b32.xlu0 %v5447, 65
      %v5528 = vpop.permute.xlu0 %5527
      %5529 = vrot.lane.b32.xlu0 %v5481, 65
      %v5530 = vpop.permute.xlu0 %5529
      %5531 = vrot.lane.b32.xlu0 %v5448, 65
      %v5532 = vpop.permute.xlu0 %5531
      %5533 = vrot.lane.b32.xlu0 %v5482, 65
      %v5534 = vpop.permute.xlu0 %5533
      %5535 = vrot.lane.b32.xlu0 %v5449, 65
      %v5536 = vpop.permute.xlu0 %5535
      %5537 = vrot.lane.b32.xlu0 %v5483, 65
      %v5538 = vpop.permute.xlu0 %5537
      %5539 = vrot.lane.b32.xlu0 %v5450, 65
      %v5540 = vpop.permute.xlu0 %5539
      %5541 = vrot.lane.b32.xlu0 %v5484, 65
      %v5542 = vpop.permute.xlu0 %5541
      %5543 = vrot.lane.b32.xlu0 %v5451, 65
      %v5544 = vpop.permute.xlu0 %5543
      %5545 = vrot.lane.b32.xlu0 %v5485, 65
      %v5546 = vpop.permute.xlu0 %5545
      %5547 = vrot.lane.b32.xlu0 %v5452, 65
      %v5548 = vpop.permute.xlu0 %5547
      %5549 = vrot.lane.b32.xlu0 %v5486, 65
      %v5550 = vpop.permute.xlu0 %5549
      %5551 = vrot.lane.b32.xlu0 %v5453, 65
      %v5552 = vpop.permute.xlu0 %5551
      %v5553 = vsel %vm3815, %v5488, %v5490
      %v5554 = vsel %vm3815, %v5490, %v5492
      %v5555 = vsel %vm3815, %v5492, %v5494
      %v5556 = vsel %vm3815, %v5494, %v5496
      %v5557 = vsel %vm3815, %v5496, %v5498
      %v5558 = vsel %vm3815, %v5498, %v5500
      %v5559 = vsel %vm3815, %v5500, %v5502
      %v5560 = vsel %vm3815, %v5502, %v5504
      %v5561 = vsel %vm3815, %v5504, %v5506
      %v5562 = vsel %vm3815, %v5506, %v5508
      %v5563 = vsel %vm3815, %v5508, %v5510
      %v5564 = vsel %vm3815, %v5510, %v5512
      %v5565 = vsel %vm3815, %v5512, %v5514
      %v5566 = vsel %vm3815, %v5514, %v5516
      %v5567 = vsel %vm3815, %v5516, %v5518
      %v5568 = vsel %vm3815, %v5518, %v5520
      %v5569 = vsel %vm3815, %v5520, %v5522
      %v5570 = vsel %vm3815, %v5522, %v5524
      %v5571 = vsel %vm3815, %v5524, %v5526
      %v5572 = vsel %vm3815, %v5526, %v5528
      %v5573 = vsel %vm3815, %v5528, %v5530
      %v5574 = vsel %vm3815, %v5530, %v5532
      %v5575 = vsel %vm3815, %v5532, %v5534
      %v5576 = vsel %vm3815, %v5534, %v5536
      %v5577 = vsel %vm3815, %v5536, %v5538
      %v5578 = vsel %vm3815, %v5538, %v5540
      %v5579 = vsel %vm3815, %v5540, %v5542
      %v5580 = vsel %vm3815, %v5542, %v5544
      %v5581 = vsel %vm3815, %v5544, %v5546
      %v5582 = vsel %vm3815, %v5546, %v5548
      %v5583 = vsel %vm3815, %v5548, %v5550
      %v5584 = vsel %vm3815, %v5550, %v5552
      %v5617 = vsel %vm3684, %v5553, 0.0
      %v5618 = vsel %vm3685, %v5554, 0.0
      %v5619 = vsel %vm3686, %v5555, 0.0
      %v5620 = vsel %vm3687, %v5556, 0.0
      %v5621 = vsel %vm3688, %v5557, 0.0
      %v5622 = vsel %vm3689, %v5558, 0.0
      %v5623 = vsel %vm3690, %v5559, 0.0
      %v5624 = vsel %vm3691, %v5560, 0.0
      %v5625 = vsel %vm3692, %v5561, 0.0
      %v5626 = vsel %vm3693, %v5562, 0.0
      %v5627 = vsel %vm3694, %v5563, 0.0
      %v5628 = vsel %vm3695, %v5564, 0.0
      %v5629 = vsel %vm3696, %v5565, 0.0
      %v5630 = vsel %vm3697, %v5566, 0.0
      %v5631 = vsel %vm3698, %v5567, 0.0
      %v5632 = vsel %vm3699, %v5568, 0.0
      %v5633 = vsel %vm3700, %v5569, 0.0
      %v5634 = vsel %vm3701, %v5570, 0.0
      %v5635 = vsel %vm3702, %v5571, 0.0
      %v5636 = vsel %vm3703, %v5572, 0.0
      %v5637 = vsel %vm3704, %v5573, 0.0
      %v5638 = vsel %vm3705, %v5574, 0.0
      %v5639 = vsel %vm3706, %v5575, 0.0
      %v5640 = vsel %vm3707, %v5576, 0.0
      %v5641 = vsel %vm3708, %v5577, 0.0
      %v5642 = vsel %vm3709, %v5578, 0.0
      %v5643 = vsel %vm3710, %v5579, 0.0
      %v5644 = vsel %vm3711, %v5580, 0.0
      %v5645 = vsel %vm3712, %v5581, 0.0
      %v5646 = vsel %vm3713, %v5582, 0.0
      %v5647 = vsel %vm3714, %v5583, 0.0
      %v5648 = vsel %vm3715, %v5584, 0.0
      %v5681 = vrot.slane %v5617, 6
      %v5682 = vrot.slane %v5618, 6
      %v5683 = vrot.slane %v5619, 6
      %v5684 = vrot.slane %v5620, 6
      %v5685 = vrot.slane %v5621, 6
      %v5686 = vrot.slane %v5622, 6
      %v5687 = vrot.slane %v5623, 6
      %v5688 = vrot.slane %v5624, 6
      %v5689 = vrot.slane %v5625, 6
      %v5690 = vrot.slane %v5626, 6
      %v5691 = vrot.slane %v5627, 6
      %v5692 = vrot.slane %v5628, 6
      %v5693 = vrot.slane %v5629, 6
      %v5694 = vrot.slane %v5630, 6
      %v5695 = vrot.slane %v5631, 6
      %v5696 = vrot.slane %v5632, 6
      %v5697 = vrot.slane %v5633, 6
      %v5698 = vrot.slane %v5634, 6
      %v5699 = vrot.slane %v5635, 6
      %v5700 = vrot.slane %v5636, 6
      %v5701 = vrot.slane %v5637, 6
      %v5702 = vrot.slane %v5638, 6
      %v5703 = vrot.slane %v5639, 6
      %v5704 = vrot.slane %v5640, 6
      %v5705 = vrot.slane %v5641, 6
      %v5706 = vrot.slane %v5642, 6
      %v5707 = vrot.slane %v5643, 6
      %v5708 = vrot.slane %v5644, 6
      %v5709 = vrot.slane %v5645, 6
      %v5710 = vrot.slane %v5646, 6
      %v5711 = vrot.slane %v5647, 6
      %v5712 = vrot.slane %v5648, 6
      %5745 = vst [vmem:[#allocation3 + $0x200] sm:$0x1c] %v5681
      %5746 = vst [vmem:[#allocation3 + $0x208] sm:$0x1c] %v5682
      %5747 = vst [vmem:[#allocation3 + $0x210] sm:$0x1c] %v5683
      %5748 = vst [vmem:[#allocation3 + $0x218] sm:$0x1c] %v5684
      %5749 = vst [vmem:[#allocation3 + $0x220] sm:$0x1c] %v5685
      %5750 = vst [vmem:[#allocation3 + $0x228] sm:$0x1c] %v5686
      %5751 = vst [vmem:[#allocation3 + $0x230] sm:$0x1c] %v5687
      %5752 = vst [vmem:[#allocation3 + $0x238] sm:$0x1c] %v5688
      %5753 = vst [vmem:[#allocation3 + $0x240] sm:$0x1c] %v5689
      %5754 = vst [vmem:[#allocation3 + $0x248] sm:$0x1c] %v5690
      %5755 = vst [vmem:[#allocation3 + $0x250] sm:$0x1c] %v5691
      %5756 = vst [vmem:[#allocation3 + $0x258] sm:$0x1c] %v5692
      %5757 = vst [vmem:[#allocation3 + $0x260] sm:$0x1c] %v5693
      %5758 = vst [vmem:[#allocation3 + $0x268] sm:$0x1c] %v5694
      %5759 = vst [vmem:[#allocation3 + $0x270] sm:$0x1c] %v5695
      %5760 = vst [vmem:[#allocation3 + $0x278] sm:$0x1c] %v5696
      %5761 = vst [vmem:[#allocation3 + $0x280] sm:$0x1c] %v5697
      %5762 = vst [vmem:[#allocation3 + $0x288] sm:$0x1c] %v5698
      %5763 = vst [vmem:[#allocation3 + $0x290] sm:$0x1c] %v5699
      %5764 = vst [vmem:[#allocation3 + $0x298] sm:$0x1c] %v5700
      %5765 = vst [vmem:[#allocation3 + $0x2a0] sm:$0x1c] %v5701
      %5766 = vst [vmem:[#allocation3 + $0x2a8] sm:$0x1c] %v5702
      %5767 = vst [vmem:[#allocation3 + $0x2b0] sm:$0x1c] %v5703
      %5768 = vst [vmem:[#allocation3 + $0x2b8] sm:$0x1c] %v5704
      %5769 = vst [vmem:[#allocation3 + $0x2c0] sm:$0x1c] %v5705
      %5770 = vst [vmem:[#allocation3 + $0x2c8] sm:$0x1c] %v5706
      %5771 = vst [vmem:[#allocation3 + $0x2d0] sm:$0x1c] %v5707
      %5772 = vst [vmem:[#allocation3 + $0x2d8] sm:$0x1c] %v5708
      %5773 = vst [vmem:[#allocation3 + $0x2e0] sm:$0x1c] %v5709
      %5774 = vst [vmem:[#allocation3 + $0x2e8] sm:$0x1c] %v5710
      %5775 = vst [vmem:[#allocation3 + $0x2f0] sm:$0x1c] %v5711
      %5776 = vst [vmem:[#allocation3 + $0x2f8] sm:$0x1c] %v5712
      %v5777 = vld [vmem:[#allocation2 + $0x4] sm:$0x77]
      %v5778 = vld [vmem:[#allocation2 + $0xc] sm:$0x77]
      %v5779 = vld [vmem:[#allocation2 + $0x14] sm:$0x77]
      %v5780 = vld [vmem:[#allocation2 + $0x1c] sm:$0x77]
      %v5781 = vld [vmem:[#allocation2 + $0x24] sm:$0x77]
      %v5782 = vld [vmem:[#allocation2 + $0x2c] sm:$0x77]
      %v5783 = vld [vmem:[#allocation2 + $0x34] sm:$0x77]
      %v5784 = vld [vmem:[#allocation2 + $0x3c] sm:$0x77]
      %v5785 = vld [vmem:[#allocation2 + $0x44] sm:$0x77]
      %v5786 = vld [vmem:[#allocation2 + $0x4c] sm:$0x77]
      %v5787 = vld [vmem:[#allocation2 + $0x54] sm:$0x77]
      %v5788 = vld [vmem:[#allocation2 + $0x5c] sm:$0x77]
      %v5789 = vld [vmem:[#allocation2 + $0x64] sm:$0x77]
      %v5790 = vld [vmem:[#allocation2 + $0x6c] sm:$0x77]
      %v5791 = vld [vmem:[#allocation2 + $0x74] sm:$0x77]
      %v5792 = vld [vmem:[#allocation2 + $0x7c] sm:$0x77]
      %v5793 = vld [vmem:[#allocation2 + $0x84] sm:$0x7]
      %v5811 = vcombine.high %v5777, %v5777
      %v5812 = vcombine.high %v5778, %v5778
      %v5813 = vcombine.high %v5779, %v5779
      %v5814 = vcombine.high %v5780, %v5780
      %v5815 = vcombine.high %v5781, %v5781
      %v5816 = vcombine.high %v5782, %v5782
      %v5817 = vcombine.high %v5783, %v5783
      %v5818 = vcombine.high %v5784, %v5784
      %v5819 = vcombine.high %v5785, %v5785
      %v5820 = vcombine.high %v5786, %v5786
      %v5821 = vcombine.high %v5787, %v5787
      %v5822 = vcombine.high %v5788, %v5788
      %v5823 = vcombine.high %v5789, %v5789
      %v5824 = vcombine.high %v5790, %v5790
      %v5825 = vcombine.high %v5791, %v5791
      %v5826 = vcombine.high %v5792, %v5792
      %v5827 = vrot.slane %v5777, 3
      %v5828 = vrot.slane %v5811, 3
      %v5829 = vrot.slane %v5778, 3
      %v5830 = vrot.slane %v5812, 3
      %v5831 = vrot.slane %v5779, 3
      %v5832 = vrot.slane %v5813, 3
      %v5833 = vrot.slane %v5780, 3
      %v5834 = vrot.slane %v5814, 3
      %v5835 = vrot.slane %v5781, 3
      %v5836 = vrot.slane %v5815, 3
      %v5837 = vrot.slane %v5782, 3
      %v5838 = vrot.slane %v5816, 3
      %v5839 = vrot.slane %v5783, 3
      %v5840 = vrot.slane %v5817, 3
      %v5841 = vrot.slane %v5784, 3
      %v5842 = vrot.slane %v5818, 3
      %v5843 = vrot.slane %v5785, 3
      %v5844 = vrot.slane %v5819, 3
      %v5845 = vrot.slane %v5786, 3
      %v5846 = vrot.slane %v5820, 3
      %v5847 = vrot.slane %v5787, 3
      %v5848 = vrot.slane %v5821, 3
      %v5849 = vrot.slane %v5788, 3
      %v5850 = vrot.slane %v5822, 3
      %v5851 = vrot.slane %v5789, 3
      %v5852 = vrot.slane %v5823, 3
      %v5853 = vrot.slane %v5790, 3
      %v5854 = vrot.slane %v5824, 3
      %v5855 = vrot.slane %v5791, 3
      %v5856 = vrot.slane %v5825, 3
      %v5857 = vrot.slane %v5792, 3
      %v5858 = vrot.slane %v5826, 3
      %v5859 = vrot.slane %v5793, 3
      %5860 = vrot.lane.b32.xlu0 %v5827, 64
      %v5861 = vpop.permute.xlu0 %5860
      %5862 = vrot.lane.b32.xlu0 %v5828, 64
      %v5863 = vpop.permute.xlu0 %5862
      %5864 = vrot.lane.b32.xlu0 %v5829, 64
      %v5865 = vpop.permute.xlu0 %5864
      %5866 = vrot.lane.b32.xlu0 %v5830, 64
      %v5867 = vpop.permute.xlu0 %5866
      %5868 = vrot.lane.b32.xlu0 %v5831, 64
      %v5869 = vpop.permute.xlu0 %5868
      %5870 = vrot.lane.b32.xlu0 %v5832, 64
      %v5871 = vpop.permute.xlu0 %5870
      %5872 = vrot.lane.b32.xlu0 %v5833, 64
      %v5873 = vpop.permute.xlu0 %5872
      %5874 = vrot.lane.b32.xlu0 %v5834, 64
      %v5875 = vpop.permute.xlu0 %5874
      %5876 = vrot.lane.b32.xlu0 %v5835, 64
      %v5877 = vpop.permute.xlu0 %5876
      %5878 = vrot.lane.b32.xlu0 %v5836, 64
      %v5879 = vpop.permute.xlu0 %5878
      %5880 = vrot.lane.b32.xlu0 %v5837, 64
      %v5881 = vpop.permute.xlu0 %5880
      %5882 = vrot.lane.b32.xlu0 %v5838, 64
      %v5883 = vpop.permute.xlu0 %5882
      %5884 = vrot.lane.b32.xlu0 %v5839, 64
      %v5885 = vpop.permute.xlu0 %5884
      %5886 = vrot.lane.b32.xlu0 %v5840, 64
      %v5887 = vpop.permute.xlu0 %5886
      %5888 = vrot.lane.b32.xlu0 %v5841, 64
      %v5889 = vpop.permute.xlu0 %5888
      %5890 = vrot.lane.b32.xlu0 %v5842, 64
      %v5891 = vpop.permute.xlu0 %5890
      %5892 = vrot.lane.b32.xlu0 %v5843, 64
      %v5893 = vpop.permute.xlu0 %5892
      %5894 = vrot.lane.b32.xlu0 %v5844, 64
      %v5895 = vpop.permute.xlu0 %5894
      %5896 = vrot.lane.b32.xlu0 %v5845, 64
      %v5897 = vpop.permute.xlu0 %5896
      %5898 = vrot.lane.b32.xlu0 %v5846, 64
      %v5899 = vpop.permute.xlu0 %5898
      %5900 = vrot.lane.b32.xlu0 %v5847, 64
      %v5901 = vpop.permute.xlu0 %5900
      %5902 = vrot.lane.b32.xlu0 %v5848, 64
      %v5903 = vpop.permute.xlu0 %5902
      %5904 = vrot.lane.b32.xlu0 %v5849, 64
      %v5905 = vpop.permute.xlu0 %5904
      %5906 = vrot.lane.b32.xlu0 %v5850, 64
      %v5907 = vpop.permute.xlu0 %5906
      %5908 = vrot.lane.b32.xlu0 %v5851, 64
      %v5909 = vpop.permute.xlu0 %5908
      %5910 = vrot.lane.b32.xlu0 %v5852, 64
      %v5911 = vpop.permute.xlu0 %5910
      %5912 = vrot.lane.b32.xlu0 %v5853, 64
      %v5913 = vpop.permute.xlu0 %5912
      %5914 = vrot.lane.b32.xlu0 %v5854, 64
      %v5915 = vpop.permute.xlu0 %5914
      %5916 = vrot.lane.b32.xlu0 %v5855, 64
      %v5917 = vpop.permute.xlu0 %5916
      %5918 = vrot.lane.b32.xlu0 %v5856, 64
      %v5919 = vpop.permute.xlu0 %5918
      %5920 = vrot.lane.b32.xlu0 %v5857, 64
      %v5921 = vpop.permute.xlu0 %5920
      %5922 = vrot.lane.b32.xlu0 %v5858, 64
      %v5923 = vpop.permute.xlu0 %5922
      %5924 = vrot.lane.b32.xlu0 %v5859, 64
      %v5925 = vpop.permute.xlu0 %5924
      %v5926 = vsel %vm4093, %v5861, %v5863
      %v5927 = vsel %vm4093, %v5863, %v5865
      %v5928 = vsel %vm4093, %v5865, %v5867
      %v5929 = vsel %vm4093, %v5867, %v5869
      %v5930 = vsel %vm4093, %v5869, %v5871
      %v5931 = vsel %vm4093, %v5871, %v5873
      %v5932 = vsel %vm4093, %v5873, %v5875
      %v5933 = vsel %vm4093, %v5875, %v5877
      %v5934 = vsel %vm4093, %v5877, %v5879
      %v5935 = vsel %vm4093, %v5879, %v5881
      %v5936 = vsel %vm4093, %v5881, %v5883
      %v5937 = vsel %vm4093, %v5883, %v5885
      %v5938 = vsel %vm4093, %v5885, %v5887
      %v5939 = vsel %vm4093, %v5887, %v5889
      %v5940 = vsel %vm4093, %v5889, %v5891
      %v5941 = vsel %vm4093, %v5891, %v5893
      %v5942 = vsel %vm4093, %v5893, %v5895
      %v5943 = vsel %vm4093, %v5895, %v5897
      %v5944 = vsel %vm4093, %v5897, %v5899
      %v5945 = vsel %vm4093, %v5899, %v5901
      %v5946 = vsel %vm4093, %v5901, %v5903
      %v5947 = vsel %vm4093, %v5903, %v5905
      %v5948 = vsel %vm4093, %v5905, %v5907
      %v5949 = vsel %vm4093, %v5907, %v5909
      %v5950 = vsel %vm4093, %v5909, %v5911
      %v5951 = vsel %vm4093, %v5911, %v5913
      %v5952 = vsel %vm4093, %v5913, %v5915
      %v5953 = vsel %vm4093, %v5915, %v5917
      %v5954 = vsel %vm4093, %v5917, %v5919
      %v5955 = vsel %vm4093, %v5919, %v5921
      %v5956 = vsel %vm4093, %v5921, %v5923
      %v5957 = vsel %vm4093, %v5923, %v5925
      %5990 = vst [vmem:[#allocation3 + $0x200] sm:$0xe0] %v5926
      %5991 = vst [vmem:[#allocation3 + $0x208] sm:$0xe0] %v5927
      %5992 = vst [vmem:[#allocation3 + $0x210] sm:$0xe0] %v5928
      %5993 = vst [vmem:[#allocation3 + $0x218] sm:$0xe0] %v5929
      %5994 = vst [vmem:[#allocation3 + $0x220] sm:$0xe0] %v5930
      %5995 = vst [vmem:[#allocation3 + $0x228] sm:$0xe0] %v5931
      %5996 = vst [vmem:[#allocation3 + $0x230] sm:$0xe0] %v5932
      %5997 = vst [vmem:[#allocation3 + $0x238] sm:$0xe0] %v5933
      %5998 = vst [vmem:[#allocation3 + $0x240] sm:$0xe0] %v5934
      %5999 = vst [vmem:[#allocation3 + $0x248] sm:$0xe0] %v5935
      %6000 = vst [vmem:[#allocation3 + $0x250] sm:$0xe0] %v5936
      %6001 = vst [vmem:[#allocation3 + $0x258] sm:$0xe0] %v5937
      %6002 = vst [vmem:[#allocation3 + $0x260] sm:$0xe0] %v5938
      %6003 = vst [vmem:[#allocation3 + $0x268] sm:$0xe0] %v5939
      %6004 = vst [vmem:[#allocation3 + $0x270] sm:$0xe0] %v5940
      %6005 = vst [vmem:[#allocation3 + $0x278] sm:$0xe0] %v5941
      %6006 = vst [vmem:[#allocation3 + $0x280] sm:$0xe0] %v5942
      %6007 = vst [vmem:[#allocation3 + $0x288] sm:$0xe0] %v5943
      %6008 = vst [vmem:[#allocation3 + $0x290] sm:$0xe0] %v5944
      %6009 = vst [vmem:[#allocation3 + $0x298] sm:$0xe0] %v5945
      %6010 = vst [vmem:[#allocation3 + $0x2a0] sm:$0xe0] %v5946
      %6011 = vst [vmem:[#allocation3 + $0x2a8] sm:$0xe0] %v5947
      %6012 = vst [vmem:[#allocation3 + $0x2b0] sm:$0xe0] %v5948
      %6013 = vst [vmem:[#allocation3 + $0x2b8] sm:$0xe0] %v5949
      %6014 = vst [vmem:[#allocation3 + $0x2c0] sm:$0xe0] %v5950
      %6015 = vst [vmem:[#allocation3 + $0x2c8] sm:$0xe0] %v5951
      %6016 = vst [vmem:[#allocation3 + $0x2d0] sm:$0xe0] %v5952
      %6017 = vst [vmem:[#allocation3 + $0x2d8] sm:$0xe0] %v5953
      %6018 = vst [vmem:[#allocation3 + $0x2e0] sm:$0xe0] %v5954
      %6019 = vst [vmem:[#allocation3 + $0x2e8] sm:$0xe0] %v5955
      %6020 = vst [vmem:[#allocation3 + $0x2f0] sm:$0xe0] %v5956
      %6021 = vst [vmem:[#allocation3 + $0x2f8] sm:$0xe0] %v5957
      %v6022 = vld [vmem:[#allocation2 + $0x4] sm:$0x77]
      %v6023 = vld [vmem:[#allocation2 + $0xc] sm:$0x77]
      %v6024 = vld [vmem:[#allocation2 + $0x14] sm:$0x77]
      %v6025 = vld [vmem:[#allocation2 + $0x1c] sm:$0x77]
      %v6026 = vld [vmem:[#allocation2 + $0x24] sm:$0x77]
      %v6027 = vld [vmem:[#allocation2 + $0x2c] sm:$0x77]
      %v6028 = vld [vmem:[#allocation2 + $0x34] sm:$0x77]
      %v6029 = vld [vmem:[#allocation2 + $0x3c] sm:$0x77]
      %v6030 = vld [vmem:[#allocation2 + $0x44] sm:$0x77]
      %v6031 = vld [vmem:[#allocation2 + $0x4c] sm:$0x77]
      %v6032 = vld [vmem:[#allocation2 + $0x54] sm:$0x77]
      %v6033 = vld [vmem:[#allocation2 + $0x5c] sm:$0x77]
      %v6034 = vld [vmem:[#allocation2 + $0x64] sm:$0x77]
      %v6035 = vld [vmem:[#allocation2 + $0x6c] sm:$0x77]
      %v6036 = vld [vmem:[#allocation2 + $0x74] sm:$0x77]
      %v6037 = vld [vmem:[#allocation2 + $0x7c] sm:$0x77]
      %v6038 = vld [vmem:[#allocation2 + $0x84] sm:$0x7]
      %v6056 = vcombine.high %v6022, %v6022
      %v6057 = vcombine.high %v6023, %v6023
      %v6058 = vcombine.high %v6024, %v6024
      %v6059 = vcombine.high %v6025, %v6025
      %v6060 = vcombine.high %v6026, %v6026
      %v6061 = vcombine.high %v6027, %v6027
      %v6062 = vcombine.high %v6028, %v6028
      %v6063 = vcombine.high %v6029, %v6029
      %v6064 = vcombine.high %v6030, %v6030
      %v6065 = vcombine.high %v6031, %v6031
      %v6066 = vcombine.high %v6032, %v6032
      %v6067 = vcombine.high %v6033, %v6033
      %v6068 = vcombine.high %v6034, %v6034
      %v6069 = vcombine.high %v6035, %v6035
      %v6070 = vcombine.high %v6036, %v6036
      %v6071 = vcombine.high %v6037, %v6037
      %6072 = vrot.lane.b32.xlu0 %v6022, 63
      %v6073 = vpop.permute.xlu0 %6072
      %6074 = vrot.lane.b32.xlu0 %v6056, 63
      %v6075 = vpop.permute.xlu0 %6074
      %6076 = vrot.lane.b32.xlu0 %v6023, 63
      %v6077 = vpop.permute.xlu0 %6076
      %6078 = vrot.lane.b32.xlu0 %v6057, 63
      %v6079 = vpop.permute.xlu0 %6078
      %6080 = vrot.lane.b32.xlu0 %v6024, 63
      %v6081 = vpop.permute.xlu0 %6080
      %6082 = vrot.lane.b32.xlu0 %v6058, 63
      %v6083 = vpop.permute.xlu0 %6082
      %6084 = vrot.lane.b32.xlu0 %v6025, 63
      %v6085 = vpop.permute.xlu0 %6084
      %6086 = vrot.lane.b32.xlu0 %v6059, 63
      %v6087 = vpop.permute.xlu0 %6086
      %6088 = vrot.lane.b32.xlu0 %v6026, 63
      %v6089 = vpop.permute.xlu0 %6088
      %6090 = vrot.lane.b32.xlu0 %v6060, 63
      %v6091 = vpop.permute.xlu0 %6090
      %6092 = vrot.lane.b32.xlu0 %v6027, 63
      %v6093 = vpop.permute.xlu0 %6092
      %6094 = vrot.lane.b32.xlu0 %v6061, 63
      %v6095 = vpop.permute.xlu0 %6094
      %6096 = vrot.lane.b32.xlu0 %v6028, 63
      %v6097 = vpop.permute.xlu0 %6096
      %6098 = vrot.lane.b32.xlu0 %v6062, 63
      %v6099 = vpop.permute.xlu0 %6098
      %6100 = vrot.lane.b32.xlu0 %v6029, 63
      %v6101 = vpop.permute.xlu0 %6100
      %6102 = vrot.lane.b32.xlu0 %v6063, 63
      %v6103 = vpop.permute.xlu0 %6102
      %6104 = vrot.lane.b32.xlu0 %v6030, 63
      %v6105 = vpop.permute.xlu0 %6104
      %6106 = vrot.lane.b32.xlu0 %v6064, 63
      %v6107 = vpop.permute.xlu0 %6106
      %6108 = vrot.lane.b32.xlu0 %v6031, 63
      %v6109 = vpop.permute.xlu0 %6108
      %6110 = vrot.lane.b32.xlu0 %v6065, 63
      %v6111 = vpop.permute.xlu0 %6110
      %6112 = vrot.lane.b32.xlu0 %v6032, 63
      %v6113 = vpop.permute.xlu0 %6112
      %6114 = vrot.lane.b32.xlu0 %v6066, 63
      %v6115 = vpop.permute.xlu0 %6114
      %6116 = vrot.lane.b32.xlu0 %v6033, 63
      %v6117 = vpop.permute.xlu0 %6116
      %6118 = vrot.lane.b32.xlu0 %v6067, 63
      %v6119 = vpop.permute.xlu0 %6118
      %6120 = vrot.lane.b32.xlu0 %v6034, 63
      %v6121 = vpop.permute.xlu0 %6120
      %6122 = vrot.lane.b32.xlu0 %v6068, 63
      %v6123 = vpop.permute.xlu0 %6122
      %6124 = vrot.lane.b32.xlu0 %v6035, 63
      %v6125 = vpop.permute.xlu0 %6124
      %6126 = vrot.lane.b32.xlu0 %v6069, 63
      %v6127 = vpop.permute.xlu0 %6126
      %6128 = vrot.lane.b32.xlu0 %v6036, 63
      %v6129 = vpop.permute.xlu0 %6128
      %6130 = vrot.lane.b32.xlu0 %v6070, 63
      %v6131 = vpop.permute.xlu0 %6130
      %6132 = vrot.lane.b32.xlu0 %v6037, 63
      %v6133 = vpop.permute.xlu0 %6132
      %6134 = vrot.lane.b32.xlu0 %v6071, 63
      %v6135 = vpop.permute.xlu0 %6134
      %6136 = vrot.lane.b32.xlu0 %v6038, 63
      %v6137 = vpop.permute.xlu0 %6136
      %v6138 = vsel %vm4370, %v6073, %v6075
      %v6139 = vsel %vm4370, %v6075, %v6077
      %v6140 = vsel %vm4370, %v6077, %v6079
      %v6141 = vsel %vm4370, %v6079, %v6081
      %v6142 = vsel %vm4370, %v6081, %v6083
      %v6143 = vsel %vm4370, %v6083, %v6085
      %v6144 = vsel %vm4370, %v6085, %v6087
      %v6145 = vsel %vm4370, %v6087, %v6089
      %v6146 = vsel %vm4370, %v6089, %v6091
      %v6147 = vsel %vm4370, %v6091, %v6093
      %v6148 = vsel %vm4370, %v6093, %v6095
      %v6149 = vsel %vm4370, %v6095, %v6097
      %v6150 = vsel %vm4370, %v6097, %v6099
      %v6151 = vsel %vm4370, %v6099, %v6101
      %v6152 = vsel %vm4370, %v6101, %v6103
      %v6153 = vsel %vm4370, %v6103, %v6105
      %v6154 = vsel %vm4370, %v6105, %v6107
      %v6155 = vsel %vm4370, %v6107, %v6109
      %v6156 = vsel %vm4370, %v6109, %v6111
      %v6157 = vsel %vm4370, %v6111, %v6113
      %v6158 = vsel %vm4370, %v6113, %v6115
      %v6159 = vsel %vm4370, %v6115, %v6117
      %v6160 = vsel %vm4370, %v6117, %v6119
      %v6161 = vsel %vm4370, %v6119, %v6121
      %v6162 = vsel %vm4370, %v6121, %v6123
      %v6163 = vsel %vm4370, %v6123, %v6125
      %v6164 = vsel %vm4370, %v6125, %v6127
      %v6165 = vsel %vm4370, %v6127, %v6129
      %v6166 = vsel %vm4370, %v6129, %v6131
      %v6167 = vsel %vm4370, %v6131, %v6133
      %v6168 = vsel %vm4370, %v6133, %v6135
      %v6169 = vsel %vm4370, %v6135, %v6137
      %v6202 = vsel %vm4239, %v6138, 0.0
      %v6203 = vsel %vm4240, %v6139, 0.0
      %v6204 = vsel %vm4241, %v6140, 0.0
      %v6205 = vsel %vm4242, %v6141, 0.0
      %v6206 = vsel %vm4243, %v6142, 0.0
      %v6207 = vsel %vm4244, %v6143, 0.0
      %v6208 = vsel %vm4245, %v6144, 0.0
      %v6209 = vsel %vm4246, %v6145, 0.0
      %v6210 = vsel %vm4247, %v6146, 0.0
      %v6211 = vsel %vm4248, %v6147, 0.0
      %v6212 = vsel %vm4249, %v6148, 0.0
      %v6213 = vsel %vm4250, %v6149, 0.0
      %v6214 = vsel %vm4251, %v6150, 0.0
      %v6215 = vsel %vm4252, %v6151, 0.0
      %v6216 = vsel %vm4253, %v6152, 0.0
      %v6217 = vsel %vm4254, %v6153, 0.0
      %v6218 = vsel %vm4255, %v6154, 0.0
      %v6219 = vsel %vm4256, %v6155, 0.0
      %v6220 = vsel %vm4257, %v6156, 0.0
      %v6221 = vsel %vm4258, %v6157, 0.0
      %v6222 = vsel %vm4259, %v6158, 0.0
      %v6223 = vsel %vm4260, %v6159, 0.0
      %v6224 = vsel %vm4261, %v6160, 0.0
      %v6225 = vsel %vm4262, %v6161, 0.0
      %v6226 = vsel %vm4263, %v6162, 0.0
      %v6227 = vsel %vm4264, %v6163, 0.0
      %v6228 = vsel %vm4265, %v6164, 0.0
      %v6229 = vsel %vm4266, %v6165, 0.0
      %v6230 = vsel %vm4267, %v6166, 0.0
      %v6231 = vsel %vm4268, %v6167, 0.0
      %v6232 = vsel %vm4269, %v6168, 0.0
      %v6233 = vsel %vm4270, %v6169, 0.0
      %6234 = vst [vmem:[#allocation3 + $0x300] sm:$0x7] %v6202
      %6235 = vst [vmem:[#allocation3 + $0x308] sm:$0x7] %v6203
      %6236 = vst [vmem:[#allocation3 + $0x310] sm:$0x7] %v6204
      %6237 = vst [vmem:[#allocation3 + $0x318] sm:$0x7] %v6205
      %6238 = vst [vmem:[#allocation3 + $0x320] sm:$0x7] %v6206
      %6239 = vst [vmem:[#allocation3 + $0x328] sm:$0x7] %v6207
      %6240 = vst [vmem:[#allocation3 + $0x330] sm:$0x7] %v6208
      %6241 = vst [vmem:[#allocation3 + $0x338] sm:$0x7] %v6209
      %6242 = vst [vmem:[#allocation3 + $0x340] sm:$0x7] %v6210
      %6243 = vst [vmem:[#allocation3 + $0x348] sm:$0x7] %v6211
      %6244 = vst [vmem:[#allocation3 + $0x350] sm:$0x7] %v6212
      %6245 = vst [vmem:[#allocation3 + $0x358] sm:$0x7] %v6213
      %6246 = vst [vmem:[#allocation3 + $0x360] sm:$0x7] %v6214
      %6247 = vst [vmem:[#allocation3 + $0x368] sm:$0x7] %v6215
      %6248 = vst [vmem:[#allocation3 + $0x370] sm:$0x7] %v6216
      %6249 = vst [vmem:[#allocation3 + $0x378] sm:$0x7] %v6217
      %6250 = vst [vmem:[#allocation3 + $0x380] sm:$0x7] %v6218
      %6251 = vst [vmem:[#allocation3 + $0x388] sm:$0x7] %v6219
      %6252 = vst [vmem:[#allocation3 + $0x390] sm:$0x7] %v6220
      %6253 = vst [vmem:[#allocation3 + $0x398] sm:$0x7] %v6221
      %6254 = vst [vmem:[#allocation3 + $0x3a0] sm:$0x7] %v6222
      %6255 = vst [vmem:[#allocation3 + $0x3a8] sm:$0x7] %v6223
      %6256 = vst [vmem:[#allocation3 + $0x3b0] sm:$0x7] %v6224
      %6257 = vst [vmem:[#allocation3 + $0x3b8] sm:$0x7] %v6225
      %6258 = vst [vmem:[#allocation3 + $0x3c0] sm:$0x7] %v6226
      %6259 = vst [vmem:[#allocation3 + $0x3c8] sm:$0x7] %v6227
      %6260 = vst [vmem:[#allocation3 + $0x3d0] sm:$0x7] %v6228
      %6261 = vst [vmem:[#allocation3 + $0x3d8] sm:$0x7] %v6229
      %6262 = vst [vmem:[#allocation3 + $0x3e0] sm:$0x7] %v6230
      %6263 = vst [vmem:[#allocation3 + $0x3e8] sm:$0x7] %v6231
      %6264 = vst [vmem:[#allocation3 + $0x3f0] sm:$0x7] %v6232
      %6265 = vst [vmem:[#allocation3 + $0x3f8] sm:$0x7] %v6233
      %6266 = vst [vmem:[#allocation3 + $0x300] sm:$0xf8] 0.0
      %6267 = vst [vmem:[#allocation3 + $0x308] sm:$0xf8] 0.0
      %6268 = vst [vmem:[#allocation3 + $0x310] sm:$0xf8] 0.0
      %6269 = vst [vmem:[#allocation3 + $0x318] sm:$0xf8] 0.0
      %6270 = vst [vmem:[#allocation3 + $0x320] sm:$0xf8] 0.0
      %6271 = vst [vmem:[#allocation3 + $0x328] sm:$0xf8] 0.0
      %6272 = vst [vmem:[#allocation3 + $0x330] sm:$0xf8] 0.0
      %6273 = vst [vmem:[#allocation3 + $0x338] sm:$0xf8] 0.0
      %6274 = vst [vmem:[#allocation3 + $0x340] sm:$0xf8] 0.0
      %6275 = vst [vmem:[#allocation3 + $0x348] sm:$0xf8] 0.0
      %6276 = vst [vmem:[#allocation3 + $0x350] sm:$0xf8] 0.0
      %6277 = vst [vmem:[#allocation3 + $0x358] sm:$0xf8] 0.0
      %6278 = vst [vmem:[#allocation3 + $0x360] sm:$0xf8] 0.0
      %6279 = vst [vmem:[#allocation3 + $0x368] sm:$0xf8] 0.0
      %6280 = vst [vmem:[#allocation3 + $0x370] sm:$0xf8] 0.0
      %6281 = vst [vmem:[#allocation3 + $0x378] sm:$0xf8] 0.0
      %6282 = vst [vmem:[#allocation3 + $0x380] sm:$0xf8] 0.0
      %6283 = vst [vmem:[#allocation3 + $0x388] sm:$0xf8] 0.0
      %6284 = vst [vmem:[#allocation3 + $0x390] sm:$0xf8] 0.0
      %6285 = vst [vmem:[#allocation3 + $0x398] sm:$0xf8] 0.0
      %6286 = vst [vmem:[#allocation3 + $0x3a0] sm:$0xf8] 0.0
      %6287 = vst [vmem:[#allocation3 + $0x3a8] sm:$0xf8] 0.0
      %6288 = vst [vmem:[#allocation3 + $0x3b0] sm:$0xf8] 0.0
      %6289 = vst [vmem:[#allocation3 + $0x3b8] sm:$0xf8] 0.0
      %6290 = vst [vmem:[#allocation3 + $0x3c0] sm:$0xf8] 0.0
      %6291 = vst [vmem:[#allocation3 + $0x3c8] sm:$0xf8] 0.0
      %6292 = vst [vmem:[#allocation3 + $0x3d0] sm:$0xf8] 0.0
      %6293 = vst [vmem:[#allocation3 + $0x3d8] sm:$0xf8] 0.0
      %6294 = vst [vmem:[#allocation3 + $0x3e0] sm:$0xf8] 0.0
      %6295 = vst [vmem:[#allocation3 + $0x3e8] sm:$0xf8] 0.0
      %6296 = vst [vmem:[#allocation3 + $0x3f0] sm:$0xf8] 0.0
      %6297 = vst [vmem:[#allocation3 + $0x3f8] sm:$0xf8] 0.0
      %v6298 = vld [vmem:[%s11] sm:$0xf]
      %v6299 = vld [vmem:[%s11 + $0x4] sm:$0xf]
      %v6300 = vld [vmem:[%s11 + $0x8] sm:$0xf]
      %v6301 = vld [vmem:[%s11 + $0xc] sm:$0xf]
      %v6302 = vld [vmem:[#allocation3] sm:$0xff]
      %v6303 = vld [vmem:[#allocation3 + $0x8] sm:$0xff]
      %v6304 = vld [vmem:[#allocation3 + $0x10] sm:$0xff]
      %v6305 = vld [vmem:[#allocation3 + $0x18] sm:$0xff]
      %v6306 = vld [vmem:[#allocation3 + $0x20] sm:$0xff]
      %v6307 = vld [vmem:[#allocation3 + $0x28] sm:$0xff]
      %v6308 = vld [vmem:[#allocation3 + $0x30] sm:$0xff]
      %v6309 = vld [vmem:[#allocation3 + $0x38] sm:$0xff]
      %v6310 = vld [vmem:[#allocation3 + $0x40] sm:$0xff]
      %v6311 = vld [vmem:[#allocation3 + $0x48] sm:$0xff]
      %v6312 = vld [vmem:[#allocation3 + $0x50] sm:$0xff]
      %v6313 = vld [vmem:[#allocation3 + $0x58] sm:$0xff]
      %v6314 = vld [vmem:[#allocation3 + $0x60] sm:$0xff]
      %v6315 = vld [vmem:[#allocation3 + $0x68] sm:$0xff]
      %v6316 = vld [vmem:[#allocation3 + $0x70] sm:$0xff]
      %v6317 = vld [vmem:[#allocation3 + $0x78] sm:$0xff]
      %v6318 = vld [vmem:[#allocation3 + $0x80] sm:$0xff]
      %v6319 = vld [vmem:[#allocation3 + $0x88] sm:$0xff]
      %v6320 = vld [vmem:[#allocation3 + $0x90] sm:$0xff]
      %v6321 = vld [vmem:[#allocation3 + $0x98] sm:$0xff]
      %v6322 = vld [vmem:[#allocation3 + $0xa0] sm:$0xff]
      %v6323 = vld [vmem:[#allocation3 + $0xa8] sm:$0xff]
      %v6324 = vld [vmem:[#allocation3 + $0xb0] sm:$0xff]
      %v6325 = vld [vmem:[#allocation3 + $0xb8] sm:$0xff]
      %v6326 = vld [vmem:[#allocation3 + $0xc0] sm:$0xff]
      %v6327 = vld [vmem:[#allocation3 + $0xc8] sm:$0xff]
      %v6328 = vld [vmem:[#allocation3 + $0xd0] sm:$0xff]
      %v6329 = vld [vmem:[#allocation3 + $0xd8] sm:$0xff]
      %v6330 = vld [vmem:[#allocation3 + $0xe0] sm:$0xff]
      %v6331 = vld [vmem:[#allocation3 + $0xe8] sm:$0xff]
      %v6332 = vld [vmem:[#allocation3 + $0xf0] sm:$0xff]
      %v6333 = vld [vmem:[#allocation3 + $0xf8] sm:$0xff]
      %v6334 = vld [vmem:[#allocation3 + $0x100] sm:$0xff]
      %v6335 = vld [vmem:[#allocation3 + $0x108] sm:$0xff]
      %v6336 = vld [vmem:[#allocation3 + $0x110] sm:$0xff]
      %v6337 = vld [vmem:[#allocation3 + $0x118] sm:$0xff]
      %v6338 = vld [vmem:[#allocation3 + $0x120] sm:$0xff]
      %v6339 = vld [vmem:[#allocation3 + $0x128] sm:$0xff]
      %v6340 = vld [vmem:[#allocation3 + $0x130] sm:$0xff]
      %v6341 = vld [vmem:[#allocation3 + $0x138] sm:$0xff]
      %v6342 = vld [vmem:[#allocation3 + $0x140] sm:$0xff]
      %v6343 = vld [vmem:[#allocation3 + $0x148] sm:$0xff]
      %v6344 = vld [vmem:[#allocation3 + $0x150] sm:$0xff]
      %v6345 = vld [vmem:[#allocation3 + $0x158] sm:$0xff]
      %v6346 = vld [vmem:[#allocation3 + $0x160] sm:$0xff]
      %v6347 = vld [vmem:[#allocation3 + $0x168] sm:$0xff]
      %v6348 = vld [vmem:[#allocation3 + $0x170] sm:$0xff]
      %v6349 = vld [vmem:[#allocation3 + $0x178] sm:$0xff]
      %v6350 = vld [vmem:[#allocation3 + $0x180] sm:$0xff]
      %v6351 = vld [vmem:[#allocation3 + $0x188] sm:$0xff]
      %v6352 = vld [vmem:[#allocation3 + $0x190] sm:$0xff]
      %v6353 = vld [vmem:[#allocation3 + $0x198] sm:$0xff]
      %v6354 = vld [vmem:[#allocation3 + $0x1a0] sm:$0xff]
      %v6355 = vld [vmem:[#allocation3 + $0x1a8] sm:$0xff]
      %v6356 = vld [vmem:[#allocation3 + $0x1b0] sm:$0xff]
      %v6357 = vld [vmem:[#allocation3 + $0x1b8] sm:$0xff]
      %v6358 = vld [vmem:[#allocation3 + $0x1c0] sm:$0xff]
      %v6359 = vld [vmem:[#allocation3 + $0x1c8] sm:$0xff]
      %v6360 = vld [vmem:[#allocation3 + $0x1d0] sm:$0xff]
      %v6361 = vld [vmem:[#allocation3 + $0x1d8] sm:$0xff]
      %v6362 = vld [vmem:[#allocation3 + $0x1e0] sm:$0xff]
      %v6363 = vld [vmem:[#allocation3 + $0x1e8] sm:$0xff]
      %v6364 = vld [vmem:[#allocation3 + $0x1f0] sm:$0xff]
      %v6365 = vld [vmem:[#allocation3 + $0x1f8] sm:$0xff]
      %v6366 = vld [vmem:[#allocation3 + $0x200] sm:$0xff]
      %v6367 = vld [vmem:[#allocation3 + $0x208] sm:$0xff]
      %v6368 = vld [vmem:[#allocation3 + $0x210] sm:$0xff]
      %v6369 = vld [vmem:[#allocation3 + $0x218] sm:$0xff]
      %v6370 = vld [vmem:[#allocation3 + $0x220] sm:$0xff]
      %v6371 = vld [vmem:[#allocation3 + $0x228] sm:$0xff]
      %v6372 = vld [vmem:[#allocation3 + $0x230] sm:$0xff]
      %v6373 = vld [vmem:[#allocation3 + $0x238] sm:$0xff]
      %v6374 = vld [vmem:[#allocation3 + $0x240] sm:$0xff]
      %v6375 = vld [vmem:[#allocation3 + $0x248] sm:$0xff]
      %v6376 = vld [vmem:[#allocation3 + $0x250] sm:$0xff]
      %v6377 = vld [vmem:[#allocation3 + $0x258] sm:$0xff]
      %v6378 = vld [vmem:[#allocation3 + $0x260] sm:$0xff]
      %v6379 = vld [vmem:[#allocation3 + $0x268] sm:$0xff]
      %v6380 = vld [vmem:[#allocation3 + $0x270] sm:$0xff]
      %v6381 = vld [vmem:[#allocation3 + $0x278] sm:$0xff]
      %v6382 = vld [vmem:[#allocation3 + $0x280] sm:$0xff]
      %v6383 = vld [vmem:[#allocation3 + $0x288] sm:$0xff]
      %v6384 = vld [vmem:[#allocation3 + $0x290] sm:$0xff]
      %v6385 = vld [vmem:[#allocation3 + $0x298] sm:$0xff]
      %v6386 = vld [vmem:[#allocation3 + $0x2a0] sm:$0xff]
      %v6387 = vld [vmem:[#allocation3 + $0x2a8] sm:$0xff]
      %v6388 = vld [vmem:[#allocation3 + $0x2b0] sm:$0xff]
      %v6389 = vld [vmem:[#allocation3 + $0x2b8] sm:$0xff]
      %v6390 = vld [vmem:[#allocation3 + $0x2c0] sm:$0xff]
      %v6391 = vld [vmem:[#allocation3 + $0x2c8] sm:$0xff]
      %v6392 = vld [vmem:[#allocation3 + $0x2d0] sm:$0xff]
      %v6393 = vld [vmem:[#allocation3 + $0x2d8] sm:$0xff]
      %v6394 = vld [vmem:[#allocation3 + $0x2e0] sm:$0xff]
      %v6395 = vld [vmem:[#allocation3 + $0x2e8] sm:$0xff]
      %v6396 = vld [vmem:[#allocation3 + $0x2f0] sm:$0xff]
      %v6397 = vld [vmem:[#allocation3 + $0x2f8] sm:$0xff]
      %v6398 = vld [vmem:[#allocation3 + $0x300] sm:$0xff]
      %v6399 = vld [vmem:[#allocation3 + $0x308] sm:$0xff]
      %v6400 = vld [vmem:[#allocation3 + $0x310] sm:$0xff]
      %v6401 = vld [vmem:[#allocation3 + $0x318] sm:$0xff]
      %v6402 = vld [vmem:[#allocation3 + $0x320] sm:$0xff]
      %v6403 = vld [vmem:[#allocation3 + $0x328] sm:$0xff]
      %v6404 = vld [vmem:[#allocation3 + $0x330] sm:$0xff]
      %v6405 = vld [vmem:[#allocation3 + $0x338] sm:$0xff]
      %v6406 = vld [vmem:[#allocation3 + $0x340] sm:$0xff]
      %v6407 = vld [vmem:[#allocation3 + $0x348] sm:$0xff]
      %v6408 = vld [vmem:[#allocation3 + $0x350] sm:$0xff]
      %v6409 = vld [vmem:[#allocation3 + $0x358] sm:$0xff]
      %v6410 = vld [vmem:[#allocation3 + $0x360] sm:$0xff]
      %v6411 = vld [vmem:[#allocation3 + $0x368] sm:$0xff]
      %v6412 = vld [vmem:[#allocation3 + $0x370] sm:$0xff]
      %v6413 = vld [vmem:[#allocation3 + $0x378] sm:$0xff]
      %v6414 = vld [vmem:[#allocation3 + $0x380] sm:$0xff]
      %v6415 = vld [vmem:[#allocation3 + $0x388] sm:$0xff]
      %v6416 = vld [vmem:[#allocation3 + $0x390] sm:$0xff]
      %v6417 = vld [vmem:[#allocation3 + $0x398] sm:$0xff]
      %v6418 = vld [vmem:[#allocation3 + $0x3a0] sm:$0xff]
      %v6419 = vld [vmem:[#allocation3 + $0x3a8] sm:$0xff]
      %v6420 = vld [vmem:[#allocation3 + $0x3b0] sm:$0xff]
      %v6421 = vld [vmem:[#allocation3 + $0x3b8] sm:$0xff]
      %v6422 = vld [vmem:[#allocation3 + $0x3c0] sm:$0xff]
      %v6423 = vld [vmem:[#allocation3 + $0x3c8] sm:$0xff]
      %v6424 = vld [vmem:[#allocation3 + $0x3d0] sm:$0xff]
      %v6425 = vld [vmem:[#allocation3 + $0x3d8] sm:$0xff]
      %v6426 = vld [vmem:[#allocation3 + $0x3e0] sm:$0xff]
      %v6427 = vld [vmem:[#allocation3 + $0x3e8] sm:$0xff]
      %v6428 = vld [vmem:[#allocation3 + $0x3f0] sm:$0xff]
      %v6429 = vld [vmem:[#allocation3 + $0x3f8] sm:$0xff]
      %v6430 = vpack.c.bf16 %v6334, %v6302
      %v6431 = vpack.c.bf16 %v6335, %v6303
      %v6432 = vpack.c.bf16 %v6336, %v6304
      %v6433 = vpack.c.bf16 %v6337, %v6305
      %v6434 = vpack.c.bf16 %v6338, %v6306
      %v6435 = vpack.c.bf16 %v6339, %v6307
      %v6436 = vpack.c.bf16 %v6340, %v6308
      %v6437 = vpack.c.bf16 %v6341, %v6309
      %v6438 = vpack.c.bf16 %v6342, %v6310
      %v6439 = vpack.c.bf16 %v6343, %v6311
      %v6440 = vpack.c.bf16 %v6344, %v6312
      %v6441 = vpack.c.bf16 %v6345, %v6313
      %v6442 = vpack.c.bf16 %v6346, %v6314
      %v6443 = vpack.c.bf16 %v6347, %v6315
      %v6444 = vpack.c.bf16 %v6348, %v6316
      %v6445 = vpack.c.bf16 %v6349, %v6317
      %v6446 = vpack.c.bf16 %v6350, %v6318
      %v6447 = vpack.c.bf16 %v6351, %v6319
      %v6448 = vpack.c.bf16 %v6352, %v6320
      %v6449 = vpack.c.bf16 %v6353, %v6321
      %v6450 = vpack.c.bf16 %v6354, %v6322
      %v6451 = vpack.c.bf16 %v6355, %v6323
      %v6452 = vpack.c.bf16 %v6356, %v6324
      %v6453 = vpack.c.bf16 %v6357, %v6325
      %v6454 = vpack.c.bf16 %v6358, %v6326
      %v6455 = vpack.c.bf16 %v6359, %v6327
      %v6456 = vpack.c.bf16 %v6360, %v6328
      %v6457 = vpack.c.bf16 %v6361, %v6329
      %v6458 = vpack.c.bf16 %v6362, %v6330
      %v6459 = vpack.c.bf16 %v6363, %v6331
      %v6460 = vpack.c.bf16 %v6364, %v6332
      %v6461 = vpack.c.bf16 %v6365, %v6333
      %v6462 = vpack.c.bf16 %v6398, %v6366
      %v6463 = vpack.c.bf16 %v6399, %v6367
      %v6464 = vpack.c.bf16 %v6400, %v6368
      %v6465 = vpack.c.bf16 %v6401, %v6369
      %v6466 = vpack.c.bf16 %v6402, %v6370
      %v6467 = vpack.c.bf16 %v6403, %v6371
      %v6468 = vpack.c.bf16 %v6404, %v6372
      %v6469 = vpack.c.bf16 %v6405, %v6373
      %v6470 = vpack.c.bf16 %v6406, %v6374
      %v6471 = vpack.c.bf16 %v6407, %v6375
      %v6472 = vpack.c.bf16 %v6408, %v6376
      %v6473 = vpack.c.bf16 %v6409, %v6377
      %v6474 = vpack.c.bf16 %v6410, %v6378
      %v6475 = vpack.c.bf16 %v6411, %v6379
      %v6476 = vpack.c.bf16 %v6412, %v6380
      %v6477 = vpack.c.bf16 %v6413, %v6381
      %v6478 = vpack.c.bf16 %v6414, %v6382
      %v6479 = vpack.c.bf16 %v6415, %v6383
      %v6480 = vpack.c.bf16 %v6416, %v6384
      %v6481 = vpack.c.bf16 %v6417, %v6385
      %v6482 = vpack.c.bf16 %v6418, %v6386
      %v6483 = vpack.c.bf16 %v6419, %v6387
      %v6484 = vpack.c.bf16 %v6420, %v6388
      %v6485 = vpack.c.bf16 %v6421, %v6389
      %v6486 = vpack.c.bf16 %v6422, %v6390
      %v6487 = vpack.c.bf16 %v6423, %v6391
      %v6488 = vpack.c.bf16 %v6424, %v6392
      %v6489 = vpack.c.bf16 %v6425, %v6393
      %v6490 = vpack.c.bf16 %v6426, %v6394
      %v6491 = vpack.c.bf16 %v6427, %v6395
      %v6492 = vpack.c.bf16 %v6428, %v6396
      %v6493 = vpack.c.bf16 %v6429, %v6397
      %v6494 = vld [vmem:[%s12] sm:$0xff]
      %v6495 = vld [vmem:[%s12 + $0x8] sm:$0xff]
      %v6496 = vld [vmem:[%s12 + $0x10] sm:$0xff]
      %v6497 = vld [vmem:[%s12 + $0x18] sm:$0xff]
      %6499 = vset.pattern.permute.xlu0 0
      %6500 = vperm.xlu0 %6499, %v6494
      %v6501 = vpop.permute.xlu0 %6500
      %6504 = vset.pattern.permute.xlu0 0
      %6505 = vperm.xlu0 %6504, %v6495
      %v6506 = vpop.permute.xlu0 %6505
      %6509 = vset.pattern.permute.xlu0 0
      %6510 = vperm.xlu0 %6509, %v6496
      %v6511 = vpop.permute.xlu0 %6510
      %6514 = vset.pattern.permute.xlu0 0
      %6515 = vperm.xlu0 %6514, %v6497
      %v6516 = vpop.permute.xlu0 %6515
      %v6522 = vunpack.c.l.b16 %v6298
      %v6523 = vunpack.c.l.b16 %v6299
      %v6524 = vunpack.c.l.b16 %v6300
      %v6525 = vunpack.c.l.b16 %v6301
      %v6526 = vpack.c.b16 %v6523, %v6522
      %v6527 = vpack.c.b16 %v6525, %v6524
      %vm6528 = vcmask 261120
      %v6530 = vsel %vm6528, %v6526, 0
      %v6533 = vsel %vm6528, %v6527, 0
      %6535 = vmatprep.subr.bf16.mxu0 %v6431
      %6536 = vmatpush1.bf16.msra.mxu0 %v6430
      %6537 = vmatprep.subr.bf16.mxu0 %v6463
      %6538 = vmatpush1.bf16.msra.mxu0 %v6462
      %6539 = vmatprep.subr.bf16.mxu0 0
      %6540 = vmatpush1.bf16.msra.mxu0 0
      %6541 = vmatprep.subr.bf16.mxu0 0
      %6542 = vmatpush1.bf16.msra.mxu0 0
      %6543 = vmatprep.subr.bf16.mxu0 0
      %6544 = vmatpush1.bf16.msra.mxu0 0
      %6545 = vmatprep.subr.bf16.mxu0 0
      %6546 = vmatpush1.bf16.msra.mxu0 0
      %6547 = vmatprep.subr.bf16.mxu0 0
      %6548 = vmatpush1.bf16.msra.mxu0 0
      %6549 = vmatprep.subr.bf16.mxu0 0
      %6550 = vmatpush1.bf16.msra.mxu0 0
      %6551 = vmatprep.subr.bf16.mxu0 0
      %6552 = vmatpush1.bf16.msra.mxu0 0
      %6553 = vmatprep.subr.bf16.mxu0 0
      %6554 = vmatpush1.bf16.msra.mxu0 0
      %6555 = vmatprep.subr.bf16.mxu0 0
      %6556 = vmatpush1.bf16.msra.mxu0 0
      %6557 = vmatprep.subr.bf16.mxu0 0
      %6558 = vmatpush1.bf16.msra.mxu0 0
      %6559 = vmatprep.subr.bf16.mxu0 0
      %6560 = vmatpush1.bf16.msra.mxu0 0
      %6561 = vmatprep.subr.bf16.mxu0 0
      %6562 = vmatpush1.bf16.msra.mxu0 0
      %6563 = vmatprep.subr.bf16.mxu0 0
      %6564 = vmatpush1.bf16.msra.mxu0 0
      %6565 = vmatprep.subr.bf16.mxu0 0
      %6566 = vmatpush1.bf16.msra.mxu0 0
      %6567 = vmatprep.mubr.bf16.mxu0 0
      %6568 = vmatmul.mubr.bf16.gmra.mrb[0].mxu0 %v6530
      %v6569 = vpop.f32.mrb[0].mxu0
      %v6570 = vadd.f32 %v6501, %v6569
      %v6571 = vpop.f32.mrb[0].mxu0
      %v6572 = vadd.f32 %v6501, %v6571
      %v6573 = vpop.f32.mrb[0].mxu0
      %v6574 = vadd.f32 %v6506, %v6573
      %v6575 = vpop.f32.mrb[0].mxu0
      %v6576 = vadd.f32 %v6506, %v6575
      %6577 = vmatprep.mubr.bf16.mxu0 0
      %6578 = vmatmul.mubr.bf16.gmra.mrb[0].mxu0 %v6533
      %v6579 = vpop.f32.mrb[0].mxu0
      %v6580 = vadd.f32 %v6511, %v6579
      %v6581 = vpop.f32.mrb[0].mxu0
      %v6582 = vadd.f32 %v6511, %v6581
      %v6583 = vpop.f32.mrb[0].mxu0
      %v6584 = vadd.f32 %v6516, %v6583
      %v6585 = vpop.f32.mrb[0].mxu0
      %v6586 = vadd.f32 %v6516, %v6585
      %6587 = vdwg.mxu0
      %6588 = vmatprep.subr.bf16.mxu0 %v6433
      %6589 = vmatpush1.bf16.msra.mxu0 %v6432
      %6590 = vmatprep.subr.bf16.mxu0 %v6465
      %6591 = vmatpush1.bf16.msra.mxu0 %v6464
      %6592 = vmatprep.subr.bf16.mxu0 0
      %6593 = vmatpush1.bf16.msra.mxu0 0
      %6594 = vmatprep.subr.bf16.mxu0 0
      %6595 = vmatpush1.bf16.msra.mxu0 0
      %6596 = vmatprep.subr.bf16.mxu0 0
      %6597 = vmatpush1.bf16.msra.mxu0 0
      %6598 = vmatprep.subr.bf16.mxu0 0
      %6599 = vmatpush1.bf16.msra.mxu0 0
      %6600 = vmatprep.subr.bf16.mxu0 0
      %6601 = vmatpush1.bf16.msra.mxu0 0
      %6602 = vmatprep.subr.bf16.mxu0 0
      %6603 = vmatpush1.bf16.msra.mxu0 0
      %6604 = vmatprep.subr.bf16.mxu0 0
      %6605 = vmatpush1.bf16.msra.mxu0 0
      %6606 = vmatprep.subr.bf16.mxu0 0
      %6607 = vmatpush1.bf16.msra.mxu0 0
      %6608 = vmatprep.subr.bf16.mxu0 0
      %6609 = vmatpush1.bf16.msra.mxu0 0
      %6610 = vmatprep.subr.bf16.mxu0 0
      %6611 = vmatpush1.bf16.msra.mxu0 0
      %6612 = vmatprep.subr.bf16.mxu0 0
      %6613 = vmatpush1.bf16.msra.mxu0 0
      %6614 = vmatprep.subr.bf16.mxu0 0
      %6615 = vmatpush1.bf16.msra.mxu0 0
      %6616 = vmatprep.subr.bf16.mxu0 0
      %6617 = vmatpush1.bf16.msra.mxu0 0
      %6618 = vmatprep.subr.bf16.mxu0 0
      %6619 = vmatpush1.bf16.msra.mxu0 0
      %6620 = vmatprep.mubr.bf16.mxu0 0
      %6621 = vmatmul.mubr.bf16.gmra.mrb[0].mxu0 %v6530
      %v6622 = vpop.f32.mrb[0].mxu0
      %v6623 = vadd.f32 %v6501, %v6622
      %v6624 = vpop.f32.mrb[0].mxu0
      %v6625 = vadd.f32 %v6501, %v6624
      %v6626 = vpop.f32.mrb[0].mxu0
      %v6627 = vadd.f32 %v6506, %v6626
      %v6628 = vpop.f32.mrb[0].mxu0
      %v6629 = vadd.f32 %v6506, %v6628
      %6630 = vmatprep.mubr.bf16.mxu0 0
      %6631 = vmatmul.mubr.bf16.gmra.mrb[0].mxu0 %v6533
      %v6632 = vpop.f32.mrb[0].mxu0
      %v6633 = vadd.f32 %v6511, %v6632
      %v6634 = vpop.f32.mrb[0].mxu0
      %v6635 = vadd.f32 %v6511, %v6634
      %v6636 = vpop.f32.mrb[0].mxu0
      %v6637 = vadd.f32 %v6516, %v6636
      %v6638 = vpop.f32.mrb[0].mxu0
      %v6639 = vadd.f32 %v6516, %v6638
      %6640 = vdwg.mxu0
      %6641 = vmatprep.subr.bf16.mxu0 %v6435
      %6642 = vmatpush1.bf16.msra.mxu0 %v6434
      %6643 = vmatprep.subr.bf16.mxu0 %v6467
      %6644 = vmatpush1.bf16.msra.mxu0 %v6466
      %6645 = vmatprep.subr.bf16.mxu0 0
      %6646 = vmatpush1.bf16.msra.mxu0 0
      %6647 = vmatprep.subr.bf16.mxu0 0
      %6648 = vmatpush1.bf16.msra.mxu0 0
      %6649 = vmatprep.subr.bf16.mxu0 0
      %6650 = vmatpush1.bf16.msra.mxu0 0
      %6651 = vmatprep.subr.bf16.mxu0 0
      %6652 = vmatpush1.bf16.msra.mxu0 0
      %6653 = vmatprep.subr.bf16.mxu0 0
      %6654 = vmatpush1.bf16.msra.mxu0 0
      %6655 = vmatprep.subr.bf16.mxu0 0
      %6656 = vmatpush1.bf16.msra.mxu0 0
      %6657 = vmatprep.subr.bf16.mxu0 0
      %6658 = vmatpush1.bf16.msra.mxu0 0
      %6659 = vmatprep.subr.bf16.mxu0 0
      %6660 = vmatpush1.bf16.msra.mxu0 0
      %6661 = vmatprep.subr.bf16.mxu0 0
      %6662 = vmatpush1.bf16.msra.mxu0 0
      %6663 = vmatprep.subr.bf16.mxu0 0
      %6664 = vmatpush1.bf16.msra.mxu0 0
      %6665 = vmatprep.subr.bf16.mxu0 0
      %6666 = vmatpush1.bf16.msra.mxu0 0
      %6667 = vmatprep.subr.bf16.mxu0 0
      %6668 = vmatpush1.bf16.msra.mxu0 0
      %6669 = vmatprep.subr.bf16.mxu0 0
      %6670 = vmatpush1.bf16.msra.mxu0 0
      %6671 = vmatprep.subr.bf16.mxu0 0
      %6672 = vmatpush1.bf16.msra.mxu0 0
      %6673 = vmatprep.mubr.bf16.mxu0 0
      %6674 = vmatmul.mubr.bf16.gmra.mrb[0].mxu0 %v6530
      %v6675 = vpop.f32.mrb[0].mxu0
      %v6676 = vadd.f32 %v6501, %v6675
      %v6677 = vpop.f32.mrb[0].mxu0
      %v6678 = vadd.f32 %v6501, %v6677
      %v6679 = vpop.f32.mrb[0].mxu0
      %v6680 = vadd.f32 %v6506, %v6679
      %v6681 = vpop.f32.mrb[0].mxu0
      %v6682 = vadd.f32 %v6506, %v6681
      %6683 = vmatprep.mubr.bf16.mxu0 0
      %6684 = vmatmul.mubr.bf16.gmra.mrb[0].mxu0 %v6533
      %v6685 = vpop.f32.mrb[0].mxu0
      %v6686 = vadd.f32 %v6511, %v6685
      %v6687 = vpop.f32.mrb[0].mxu0
      %v6688 = vadd.f32 %v6511, %v6687
      %v6689 = vpop.f32.mrb[0].mxu0
      %v6690 = vadd.f32 %v6516, %v6689
      %v6691 = vpop.f32.mrb[0].mxu0
      %v6692 = vadd.f32 %v6516, %v6691
      %6693 = vdwg.mxu0
      %6694 = vmatprep.subr.bf16.mxu0 %v6437
      %6695 = vmatpush1.bf16.msra.mxu0 %v6436
      %6696 = vmatprep.subr.bf16.mxu0 %v6469
      %6697 = vmatpush1.bf16.msra.mxu0 %v6468
      %6698 = vmatprep.subr.bf16.mxu0 0
      %6699 = vmatpush1.bf16.msra.mxu0 0
      %6700 = vmatprep.subr.bf16.mxu0 0
      %6701 = vmatpush1.bf16.msra.mxu0 0
      %6702 = vmatprep.subr.bf16.mxu0 0
      %6703 = vmatpush1.bf16.msra.mxu0 0
      %6704 = vmatprep.subr.bf16.mxu0 0
      %6705 = vmatpush1.bf16.msra.mxu0 0
      %6706 = vmatprep.subr.bf16.mxu0 0
      %6707 = vmatpush1.bf16.msra.mxu0 0
      %6708 = vmatprep.subr.bf16.mxu0 0
      %6709 = vmatpush1.bf16.msra.mxu0 0
      %6710 = vmatprep.subr.bf16.mxu0 0
      %6711 = vmatpush1.bf16.msra.mxu0 0
      %6712 = vmatprep.subr.bf16.mxu0 0
      %6713 = vmatpush1.bf16.msra.mxu0 0
      %6714 = vmatprep.subr.bf16.mxu0 0
      %6715 = vmatpush1.bf16.msra.mxu0 0
      %6716 = vmatprep.subr.bf16.mxu0 0
      %6717 = vmatpush1.bf16.msra.mxu0 0
      %6718 = vmatprep.subr.bf16.mxu0 0
      %6719 = vmatpush1.bf16.msra.mxu0 0
      %6720 = vmatprep.subr.bf16.mxu0 0
      %6721 = vmatpush1.bf16.msra.mxu0 0
      %6722 = vmatprep.subr.bf16.mxu0 0
      %6723 = vmatpush1.bf16.msra.mxu0 0
      %6724 = vmatprep.subr.bf16.mxu0 0
      %6725 = vmatpush1.bf16.msra.mxu0 0
      %6726 = vmatprep.mubr.bf16.mxu0 0
      %6727 = vmatmul.mubr.bf16.gmra.mrb[0].mxu0 %v6530
      %v6728 = vpop.f32.mrb[0].mxu0
      %v6729 = vadd.f32 %v6501, %v6728
      %v6730 = vpop.f32.mrb[0].mxu0
      %v6731 = vadd.f32 %v6501, %v6730
      %v6732 = vpop.f32.mrb[0].mxu0
      %v6733 = vadd.f32 %v6506, %v6732
      %v6734 = vpop.f32.mrb[0].mxu0
      %v6735 = vadd.f32 %v6506, %v6734
      %6736 = vmatprep.mubr.bf16.mxu0 0
      %6737 = vmatmul.mubr.bf16.gmra.mrb[0].mxu0 %v6533
      %v6738 = vpop.f32.mrb[0].mxu0
      %v6739 = vadd.f32 %v6511, %v6738
      %v6740 = vpop.f32.mrb[0].mxu0
      %v6741 = vadd.f32 %v6511, %v6740
      %v6742 = vpop.f32.mrb[0].mxu0
      %v6743 = vadd.f32 %v6516, %v6742
      %v6744 = vpop.f32.mrb[0].mxu0
      %v6745 = vadd.f32 %v6516, %v6744
      %6746 = vdwg.mxu0
      %6747 = vmatprep.subr.bf16.mxu0 %v6439
      %6748 = vmatpush1.bf16.msra.mxu0 %v6438
      %6749 = vmatprep.subr.bf16.mxu0 %v6471
      %6750 = vmatpush1.bf16.msra.mxu0 %v6470
      %6751 = vmatprep.subr.bf16.mxu0 0
      %6752 = vmatpush1.bf16.msra.mxu0 0
      %6753 = vmatprep.subr.bf16.mxu0 0
      %6754 = vmatpush1.bf16.msra.mxu0 0
      %6755 = vmatprep.subr.bf16.mxu0 0
      %6756 = vmatpush1.bf16.msra.mxu0 0
      %6757 = vmatprep.subr.bf16.mxu0 0
      %6758 = vmatpush1.bf16.msra.mxu0 0
      %6759 = vmatprep.subr.bf16.mxu0 0
      %6760 = vmatpush1.bf16.msra.mxu0 0
      %6761 = vmatprep.subr.bf16.mxu0 0
      %6762 = vmatpush1.bf16.msra.mxu0 0
      %6763 = vmatprep.subr.bf16.mxu0 0
      %6764 = vmatpush1.bf16.msra.mxu0 0
      %6765 = vmatprep.subr.bf16.mxu0 0
      %6766 = vmatpush1.bf16.msra.mxu0 0
      %6767 = vmatprep.subr.bf16.mxu0 0
      %6768 = vmatpush1.bf16.msra.mxu0 0
      %6769 = vmatprep.subr.bf16.mxu0 0
      %6770 = vmatpush1.bf16.msra.mxu0 0
      %6771 = vmatprep.subr.bf16.mxu0 0
      %6772 = vmatpush1.bf16.msra.mxu0 0
      %6773 = vmatprep.subr.bf16.mxu0 0
      %6774 = vmatpush1.bf16.msra.mxu0 0
      %6775 = vmatprep.subr.bf16.mxu0 0
      %6776 = vmatpush1.bf16.msra.mxu0 0
      %6777 = vmatprep.subr.bf16.mxu0 0
      %6778 = vmatpush1.bf16.msra.mxu0 0
      %6779 = vmatprep.mubr.bf16.mxu0 0
      %6780 = vmatmul.mubr.bf16.gmra.mrb[0].mxu0 %v6530
      %v6781 = vpop.f32.mrb[0].mxu0
      %v6782 = vadd.f32 %v6501, %v6781
      %v6783 = vpop.f32.mrb[0].mxu0
      %v6784 = vadd.f32 %v6501, %v6783
      %v6785 = vpop.f32.mrb[0].mxu0
      %v6786 = vadd.f32 %v6506, %v6785
      %v6787 = vpop.f32.mrb[0].mxu0
      %v6788 = vadd.f32 %v6506, %v6787
      %6789 = vmatprep.mubr.bf16.mxu0 0
      %6790 = vmatmul.mubr.bf16.gmra.mrb[0].mxu0 %v6533
      %v6791 = vpop.f32.mrb[0].mxu0
      %v6792 = vadd.f32 %v6511, %v6791
      %v6793 = vpop.f32.mrb[0].mxu0
      %v6794 = vadd.f32 %v6511, %v6793
      %v6795 = vpop.f32.mrb[0].mxu0
      %v6796 = vadd.f32 %v6516, %v6795
      %v6797 = vpop.f32.mrb[0].mxu0
      %v6798 = vadd.f32 %v6516, %v6797
      %6799 = vdwg.mxu0
      %6800 = vmatprep.subr.bf16.mxu0 %v6441
      %6801 = vmatpush1.bf16.msra.mxu0 %v6440
      %6802 = vmatprep.subr.bf16.mxu0 %v6473
      %6803 = vmatpush1.bf16.msra.mxu0 %v6472
      %6804 = vmatprep.subr.bf16.mxu0 0
      %6805 = vmatpush1.bf16.msra.mxu0 0
      %6806 = vmatprep.subr.bf16.mxu0 0
      %6807 = vmatpush1.bf16.msra.mxu0 0
      %6808 = vmatprep.subr.bf16.mxu0 0
      %6809 = vmatpush1.bf16.msra.mxu0 0
      %6810 = vmatprep.subr.bf16.mxu0 0
      %6811 = vmatpush1.bf16.msra.mxu0 0
      %6812 = vmatprep.subr.bf16.mxu0 0
      %6813 = vmatpush1.bf16.msra.mxu0 0
      %6814 = vmatprep.subr.bf16.mxu0 0
      %6815 = vmatpush1.bf16.msra.mxu0 0
      %6816 = vmatprep.subr.bf16.mxu0 0
      %6817 = vmatpush1.bf16.msra.mxu0 0
      %6818 = vmatprep.subr.bf16.mxu0 0
      %6819 = vmatpush1.bf16.msra.mxu0 0
      %6820 = vmatprep.subr.bf16.mxu0 0
      %6821 = vmatpush1.bf16.msra.mxu0 0
      %6822 = vmatprep.subr.bf16.mxu0 0
      %6823 = vmatpush1.bf16.msra.mxu0 0
      %6824 = vmatprep.subr.bf16.mxu0 0
      %6825 = vmatpush1.bf16.msra.mxu0 0
      %6826 = vmatprep.subr.bf16.mxu0 0
      %6827 = vmatpush1.bf16.msra.mxu0 0
      %6828 = vmatprep.subr.bf16.mxu0 0
      %6829 = vmatpush1.bf16.msra.mxu0 0
      %6830 = vmatprep.subr.bf16.mxu0 0
      %6831 = vmatpush1.bf16.msra.mxu0 0
      %6832 = vmatprep.mubr.bf16.mxu0 0
      %6833 = vmatmul.mubr.bf16.gmra.mrb[0].mxu0 %v6530
      %v6834 = vpop.f32.mrb[0].mxu0
      %v6835 = vadd.f32 %v6501, %v6834
      %v6836 = vpop.f32.mrb[0].mxu0
      %v6837 = vadd.f32 %v6501, %v6836
      %v6838 = vpop.f32.mrb[0].mxu0
      %v6839 = vadd.f32 %v6506, %v6838
      %v6840 = vpop.f32.mrb[0].mxu0
      %v6841 = vadd.f32 %v6506, %v6840
      %6842 = vmatprep.mubr.bf16.mxu0 0
      %6843 = vmatmul.mubr.bf16.gmra.mrb[0].mxu0 %v6533
      %v6844 = vpop.f32.mrb[0].mxu0
      %v6845 = vadd.f32 %v6511, %v6844
      %v6846 = vpop.f32.mrb[0].mxu0
      %v6847 = vadd.f32 %v6511, %v6846
      %v6848 = vpop.f32.mrb[0].mxu0
      %v6849 = vadd.f32 %v6516, %v6848
      %v6850 = vpop.f32.mrb[0].mxu0
      %v6851 = vadd.f32 %v6516, %v6850
      %6852 = vdwg.mxu0
      %6853 = vmatprep.subr.bf16.mxu0 %v6443
      %6854 = vmatpush1.bf16.msra.mxu0 %v6442
      %6855 = vmatprep.subr.bf16.mxu0 %v6475
      %6856 = vmatpush1.bf16.msra.mxu0 %v6474
      %6857 = vmatprep.subr.bf16.mxu0 0
      %6858 = vmatpush1.bf16.msra.mxu0 0
      %6859 = vmatprep.subr.bf16.mxu0 0
      %6860 = vmatpush1.bf16.msra.mxu0 0
      %6861 = vmatprep.subr.bf16.mxu0 0
      %6862 = vmatpush1.bf16.msra.mxu0 0
      %6863 = vmatprep.subr.bf16.mxu0 0
      %6864 = vmatpush1.bf16.msra.mxu0 0
      %6865 = vmatprep.subr.bf16.mxu0 0
      %6866 = vmatpush1.bf16.msra.mxu0 0
      %6867 = vmatprep.subr.bf16.mxu0 0
      %6868 = vmatpush1.bf16.msra.mxu0 0
      %6869 = vmatprep.subr.bf16.mxu0 0
      %6870 = vmatpush1.bf16.msra.mxu0 0
      %6871 = vmatprep.subr.bf16.mxu0 0
      %6872 = vmatpush1.bf16.msra.mxu0 0
      %6873 = vmatprep.subr.bf16.mxu0 0
      %6874 = vmatpush1.bf16.msra.mxu0 0
      %6875 = vmatprep.subr.bf16.mxu0 0
      %6876 = vmatpush1.bf16.msra.mxu0 0
      %6877 = vmatprep.subr.bf16.mxu0 0
      %6878 = vmatpush1.bf16.msra.mxu0 0
      %6879 = vmatprep.subr.bf16.mxu0 0
      %6880 = vmatpush1.bf16.msra.mxu0 0
      %6881 = vmatprep.subr.bf16.mxu0 0
      %6882 = vmatpush1.bf16.msra.mxu0 0
      %6883 = vmatprep.subr.bf16.mxu0 0
      %6884 = vmatpush1.bf16.msra.mxu0 0
      %6885 = vmatprep.mubr.bf16.mxu0 0
      %6886 = vmatmul.mubr.bf16.gmra.mrb[0].mxu0 %v6530
      %v6887 = vpop.f32.mrb[0].mxu0
      %v6888 = vadd.f32 %v6501, %v6887
      %v6889 = vpop.f32.mrb[0].mxu0
      %v6890 = vadd.f32 %v6501, %v6889
      %v6891 = vpop.f32.mrb[0].mxu0
      %v6892 = vadd.f32 %v6506, %v6891
      %v6893 = vpop.f32.mrb[0].mxu0
      %v6894 = vadd.f32 %v6506, %v6893
      %6895 = vmatprep.mubr.bf16.mxu0 0
      %6896 = vmatmul.mubr.bf16.gmra.mrb[0].mxu0 %v6533
      %v6897 = vpop.f32.mrb[0].mxu0
      %v6898 = vadd.f32 %v6511, %v6897
      %v6899 = vpop.f32.mrb[0].mxu0
      %v6900 = vadd.f32 %v6511, %v6899
      %v6901 = vpop.f32.mrb[0].mxu0
      %v6902 = vadd.f32 %v6516, %v6901
      %v6903 = vpop.f32.mrb[0].mxu0
      %v6904 = vadd.f32 %v6516, %v6903
      %6905 = vdwg.mxu0
      %6906 = vmatprep.subr.bf16.mxu0 %v6445
      %6907 = vmatpush1.bf16.msra.mxu0 %v6444
      %6908 = vmatprep.subr.bf16.mxu0 %v6477
      %6909 = vmatpush1.bf16.msra.mxu0 %v6476
      %6910 = vmatprep.subr.bf16.mxu0 0
      %6911 = vmatpush1.bf16.msra.mxu0 0
      %6912 = vmatprep.subr.bf16.mxu0 0
      %6913 = vmatpush1.bf16.msra.mxu0 0
      %6914 = vmatprep.subr.bf16.mxu0 0
      %6915 = vmatpush1.bf16.msra.mxu0 0
      %6916 = vmatprep.subr.bf16.mxu0 0
      %6917 = vmatpush1.bf16.msra.mxu0 0
      %6918 = vmatprep.subr.bf16.mxu0 0
      %6919 = vmatpush1.bf16.msra.mxu0 0
      %6920 = vmatprep.subr.bf16.mxu0 0
      %6921 = vmatpush1.bf16.msra.mxu0 0
      %6922 = vmatprep.subr.bf16.mxu0 0
      %6923 = vmatpush1.bf16.msra.mxu0 0
      %6924 = vmatprep.subr.bf16.mxu0 0
      %6925 = vmatpush1.bf16.msra.mxu0 0
      %6926 = vmatprep.subr.bf16.mxu0 0
      %6927 = vmatpush1.bf16.msra.mxu0 0
      %6928 = vmatprep.subr.bf16.mxu0 0
      %6929 = vmatpush1.bf16.msra.mxu0 0
      %6930 = vmatprep.subr.bf16.mxu0 0
      %6931 = vmatpush1.bf16.msra.mxu0 0
      %6932 = vmatprep.subr.bf16.mxu0 0
      %6933 = vmatpush1.bf16.msra.mxu0 0
      %6934 = vmatprep.subr.bf16.mxu0 0
      %6935 = vmatpush1.bf16.msra.mxu0 0
      %6936 = vmatprep.subr.bf16.mxu0 0
      %6937 = vmatpush1.bf16.msra.mxu0 0
      %6938 = vmatprep.mubr.bf16.mxu0 0
      %6939 = vmatmul.mubr.bf16.gmra.mrb[0].mxu0 %v6530
      %v6940 = vpop.f32.mrb[0].mxu0
      %v6941 = vadd.f32 %v6501, %v6940
      %v6942 = vpop.f32.mrb[0].mxu0
      %v6943 = vadd.f32 %v6501, %v6942
      %v6944 = vpop.f32.mrb[0].mxu0
      %v6945 = vadd.f32 %v6506, %v6944
      %v6946 = vpop.f32.mrb[0].mxu0
      %v6947 = vadd.f32 %v6506, %v6946
      %6948 = vmatprep.mubr.bf16.mxu0 0
      %6949 = vmatmul.mubr.bf16.gmra.mrb[0].mxu0 %v6533
      %v6950 = vpop.f32.mrb[0].mxu0
      %v6951 = vadd.f32 %v6511, %v6950
      %v6952 = vpop.f32.mrb[0].mxu0
      %v6953 = vadd.f32 %v6511, %v6952
      %v6954 = vpop.f32.mrb[0].mxu0
      %v6955 = vadd.f32 %v6516, %v6954
      %v6956 = vpop.f32.mrb[0].mxu0
      %v6957 = vadd.f32 %v6516, %v6956
      %6958 = vdwg.mxu0
      %6959 = vmatprep.subr.bf16.mxu0 %v6447
      %6960 = vmatpush1.bf16.msra.mxu0 %v6446
      %6961 = vmatprep.subr.bf16.mxu0 %v6479
      %6962 = vmatpush1.bf16.msra.mxu0 %v6478
      %6963 = vmatprep.subr.bf16.mxu0 0
      %6964 = vmatpush1.bf16.msra.mxu0 0
      %6965 = vmatprep.subr.bf16.mxu0 0
      %6966 = vmatpush1.bf16.msra.mxu0 0
      %6967 = vmatprep.subr.bf16.mxu0 0
      %6968 = vmatpush1.bf16.msra.mxu0 0
      %6969 = vmatprep.subr.bf16.mxu0 0
      %6970 = vmatpush1.bf16.msra.mxu0 0
      %6971 = vmatprep.subr.bf16.mxu0 0
      %6972 = vmatpush1.bf16.msra.mxu0 0
      %6973 = vmatprep.subr.bf16.mxu0 0
      %6974 = vmatpush1.bf16.msra.mxu0 0
      %6975 = vmatprep.subr.bf16.mxu0 0
      %6976 = vmatpush1.bf16.msra.mxu0 0
      %6977 = vmatprep.subr.bf16.mxu0 0
      %6978 = vmatpush1.bf16.msra.mxu0 0
      %6979 = vmatprep.subr.bf16.mxu0 0
      %6980 = vmatpush1.bf16.msra.mxu0 0
      %6981 = vmatprep.subr.bf16.mxu0 0
      %6982 = vmatpush1.bf16.msra.mxu0 0
      %6983 = vmatprep.subr.bf16.mxu0 0
      %6984 = vmatpush1.bf16.msra.mxu0 0
      %6985 = vmatprep.subr.bf16.mxu0 0
      %6986 = vmatpush1.bf16.msra.mxu0 0
      %6987 = vmatprep.subr.bf16.mxu0 0
      %6988 = vmatpush1.bf16.msra.mxu0 0
      %6989 = vmatprep.subr.bf16.mxu0 0
      %6990 = vmatpush1.bf16.msra.mxu0 0
      %6991 = vmatprep.mubr.bf16.mxu0 0
      %6992 = vmatmul.mubr.bf16.gmra.mrb[0].mxu0 %v6530
      %v6993 = vpop.f32.mrb[0].mxu0
      %v6994 = vadd.f32 %v6501, %v6993
      %v6995 = vpop.f32.mrb[0].mxu0
      %v6996 = vadd.f32 %v6501, %v6995
      %v6997 = vpop.f32.mrb[0].mxu0
      %v6998 = vadd.f32 %v6506, %v6997
      %v6999 = vpop.f32.mrb[0].mxu0
      %v7000 = vadd.f32 %v6506, %v6999
      %7001 = vmatprep.mubr.bf16.mxu0 0
      %7002 = vmatmul.mubr.bf16.gmra.mrb[0].mxu0 %v6533
      %v7003 = vpop.f32.mrb[0].mxu0
      %v7004 = vadd.f32 %v6511, %v7003
      %v7005 = vpop.f32.mrb[0].mxu0
      %v7006 = vadd.f32 %v6511, %v7005
      %v7007 = vpop.f32.mrb[0].mxu0
      %v7008 = vadd.f32 %v6516, %v7007
      %v7009 = vpop.f32.mrb[0].mxu0
      %v7010 = vadd.f32 %v6516, %v7009
      %7011 = vdwg.mxu0
      %7012 = vmatprep.subr.bf16.mxu0 %v6449
      %7013 = vmatpush1.bf16.msra.mxu0 %v6448
      %7014 = vmatprep.subr.bf16.mxu0 %v6481
      %7015 = vmatpush1.bf16.msra.mxu0 %v6480
      %7016 = vmatprep.subr.bf16.mxu0 0
      %7017 = vmatpush1.bf16.msra.mxu0 0
      %7018 = vmatprep.subr.bf16.mxu0 0
      %7019 = vmatpush1.bf16.msra.mxu0 0
      %7020 = vmatprep.subr.bf16.mxu0 0
      %7021 = vmatpush1.bf16.msra.mxu0 0
      %7022 = vmatprep.subr.bf16.mxu0 0
      %7023 = vmatpush1.bf16.msra.mxu0 0
      %7024 = vmatprep.subr.bf16.mxu0 0
      %7025 = vmatpush1.bf16.msra.mxu0 0
      %7026 = vmatprep.subr.bf16.mxu0 0
      %7027 = vmatpush1.bf16.msra.mxu0 0
      %7028 = vmatprep.subr.bf16.mxu0 0
      %7029 = vmatpush1.bf16.msra.mxu0 0
      %7030 = vmatprep.subr.bf16.mxu0 0
      %7031 = vmatpush1.bf16.msra.mxu0 0
      %7032 = vmatprep.subr.bf16.mxu0 0
      %7033 = vmatpush1.bf16.msra.mxu0 0
      %7034 = vmatprep.subr.bf16.mxu0 0
      %7035 = vmatpush1.bf16.msra.mxu0 0
      %7036 = vmatprep.subr.bf16.mxu0 0
      %7037 = vmatpush1.bf16.msra.mxu0 0
      %7038 = vmatprep.subr.bf16.mxu0 0
      %7039 = vmatpush1.bf16.msra.mxu0 0
      %7040 = vmatprep.subr.bf16.mxu0 0
      %7041 = vmatpush1.bf16.msra.mxu0 0
      %7042 = vmatprep.subr.bf16.mxu0 0
      %7043 = vmatpush1.bf16.msra.mxu0 0
      %7044 = vmatprep.mubr.bf16.mxu0 0
      %7045 = vmatmul.mubr.bf16.gmra.mrb[0].mxu0 %v6530
      %v7046 = vpop.f32.mrb[0].mxu0
      %v7047 = vadd.f32 %v6501, %v7046
      %v7048 = vpop.f32.mrb[0].mxu0
      %v7049 = vadd.f32 %v6501, %v7048
      %v7050 = vpop.f32.mrb[0].mxu0
      %v7051 = vadd.f32 %v6506, %v7050
      %v7052 = vpop.f32.mrb[0].mxu0
      %v7053 = vadd.f32 %v6506, %v7052
      %7054 = vmatprep.mubr.bf16.mxu0 0
      %7055 = vmatmul.mubr.bf16.gmra.mrb[0].mxu0 %v6533
      %v7056 = vpop.f32.mrb[0].mxu0
      %v7057 = vadd.f32 %v6511, %v7056
      %v7058 = vpop.f32.mrb[0].mxu0
      %v7059 = vadd.f32 %v6511, %v7058
      %v7060 = vpop.f32.mrb[0].mxu0
      %v7061 = vadd.f32 %v6516, %v7060
      %v7062 = vpop.f32.mrb[0].mxu0
      %v7063 = vadd.f32 %v6516, %v7062
      %7064 = vdwg.mxu0
      %7065 = vmatprep.subr.bf16.mxu0 %v6451
      %7066 = vmatpush1.bf16.msra.mxu0 %v6450
      %7067 = vmatprep.subr.bf16.mxu0 %v6483
      %7068 = vmatpush1.bf16.msra.mxu0 %v6482
      %7069 = vmatprep.subr.bf16.mxu0 0
      %7070 = vmatpush1.bf16.msra.mxu0 0
      %7071 = vmatprep.subr.bf16.mxu0 0
      %7072 = vmatpush1.bf16.msra.mxu0 0
      %7073 = vmatprep.subr.bf16.mxu0 0
      %7074 = vmatpush1.bf16.msra.mxu0 0
      %7075 = vmatprep.subr.bf16.mxu0 0
      %7076 = vmatpush1.bf16.msra.mxu0 0
      %7077 = vmatprep.subr.bf16.mxu0 0
      %7078 = vmatpush1.bf16.msra.mxu0 0
      %7079 = vmatprep.subr.bf16.mxu0 0
      %7080 = vmatpush1.bf16.msra.mxu0 0
      %7081 = vmatprep.subr.bf16.mxu0 0
      %7082 = vmatpush1.bf16.msra.mxu0 0
      %7083 = vmatprep.subr.bf16.mxu0 0
      %7084 = vmatpush1.bf16.msra.mxu0 0
      %7085 = vmatprep.subr.bf16.mxu0 0
      %7086 = vmatpush1.bf16.msra.mxu0 0
      %7087 = vmatprep.subr.bf16.mxu0 0
      %7088 = vmatpush1.bf16.msra.mxu0 0
      %7089 = vmatprep.subr.bf16.mxu0 0
      %7090 = vmatpush1.bf16.msra.mxu0 0
      %7091 = vmatprep.subr.bf16.mxu0 0
      %7092 = vmatpush1.bf16.msra.mxu0 0
      %7093 = vmatprep.subr.bf16.mxu0 0
      %7094 = vmatpush1.bf16.msra.mxu0 0
      %7095 = vmatprep.subr.bf16.mxu0 0
      %7096 = vmatpush1.bf16.msra.mxu0 0
      %7097 = vmatprep.mubr.bf16.mxu0 0
      %7098 = vmatmul.mubr.bf16.gmra.mrb[0].mxu0 %v6530
      %v7099 = vpop.f32.mrb[0].mxu0
      %v7100 = vadd.f32 %v6501, %v7099
      %v7101 = vpop.f32.mrb[0].mxu0
      %v7102 = vadd.f32 %v6501, %v7101
      %v7103 = vpop.f32.mrb[0].mxu0
      %v7104 = vadd.f32 %v6506, %v7103
      %v7105 = vpop.f32.mrb[0].mxu0
      %v7106 = vadd.f32 %v6506, %v7105
      %7107 = vmatprep.mubr.bf16.mxu0 0
      %7108 = vmatmul.mubr.bf16.gmra.mrb[0].mxu0 %v6533
      %v7109 = vpop.f32.mrb[0].mxu0
      %v7110 = vadd.f32 %v6511, %v7109
      %v7111 = vpop.f32.mrb[0].mxu0
      %v7112 = vadd.f32 %v6511, %v7111
      %v7113 = vpop.f32.mrb[0].mxu0
      %v7114 = vadd.f32 %v6516, %v7113
      %v7115 = vpop.f32.mrb[0].mxu0
      %v7116 = vadd.f32 %v6516, %v7115
      %7117 = vdwg.mxu0
      %7118 = vmatprep.subr.bf16.mxu0 %v6453
      %7119 = vmatpush1.bf16.msra.mxu0 %v6452
      %7120 = vmatprep.subr.bf16.mxu0 %v6485
      %7121 = vmatpush1.bf16.msra.mxu0 %v6484
      %7122 = vmatprep.subr.bf16.mxu0 0
      %7123 = vmatpush1.bf16.msra.mxu0 0
      %7124 = vmatprep.subr.bf16.mxu0 0
      %7125 = vmatpush1.bf16.msra.mxu0 0
      %7126 = vmatprep.subr.bf16.mxu0 0
      %7127 = vmatpush1.bf16.msra.mxu0 0
      %7128 = vmatprep.subr.bf16.mxu0 0
      %7129 = vmatpush1.bf16.msra.mxu0 0
      %7130 = vmatprep.subr.bf16.mxu0 0
      %7131 = vmatpush1.bf16.msra.mxu0 0
      %7132 = vmatprep.subr.bf16.mxu0 0
      %7133 = vmatpush1.bf16.msra.mxu0 0
      %7134 = vmatprep.subr.bf16.mxu0 0
      %7135 = vmatpush1.bf16.msra.mxu0 0
      %7136 = vmatprep.subr.bf16.mxu0 0
      %7137 = vmatpush1.bf16.msra.mxu0 0
      %7138 = vmatprep.subr.bf16.mxu0 0
      %7139 = vmatpush1.bf16.msra.mxu0 0
      %7140 = vmatprep.subr.bf16.mxu0 0
      %7141 = vmatpush1.bf16.msra.mxu0 0
      %7142 = vmatprep.subr.bf16.mxu0 0
      %7143 = vmatpush1.bf16.msra.mxu0 0
      %7144 = vmatprep.subr.bf16.mxu0 0
      %7145 = vmatpush1.bf16.msra.mxu0 0
      %7146 = vmatprep.subr.bf16.mxu0 0
      %7147 = vmatpush1.bf16.msra.mxu0 0
      %7148 = vmatprep.subr.bf16.mxu0 0
      %7149 = vmatpush1.bf16.msra.mxu0 0
      %7150 = vmatprep.mubr.bf16.mxu0 0
      %7151 = vmatmul.mubr.bf16.gmra.mrb[0].mxu0 %v6530
      %v7152 = vpop.f32.mrb[0].mxu0
      %v7153 = vadd.f32 %v6501, %v7152
      %v7154 = vpop.f32.mrb[0].mxu0
      %v7155 = vadd.f32 %v6501, %v7154
      %v7156 = vpop.f32.mrb[0].mxu0
      %v7157 = vadd.f32 %v6506, %v7156
      %v7158 = vpop.f32.mrb[0].mxu0
      %v7159 = vadd.f32 %v6506, %v7158
      %7160 = vmatprep.mubr.bf16.mxu0 0
      %7161 = vmatmul.mubr.bf16.gmra.mrb[0].mxu0 %v6533
      %v7162 = vpop.f32.mrb[0].mxu0
      %v7163 = vadd.f32 %v6511, %v7162
      %v7164 = vpop.f32.mrb[0].mxu0
      %v7165 = vadd.f32 %v6511, %v7164
      %v7166 = vpop.f32.mrb[0].mxu0
      %v7167 = vadd.f32 %v6516, %v7166
      %v7168 = vpop.f32.mrb[0].mxu0
      %v7169 = vadd.f32 %v6516, %v7168
      %7170 = vdwg.mxu0
      %7171 = vmatprep.subr.bf16.mxu0 %v6455
      %7172 = vmatpush1.bf16.msra.mxu0 %v6454
      %7173 = vmatprep.subr.bf16.mxu0 %v6487
      %7174 = vmatpush1.bf16.msra.mxu0 %v6486
      %7175 = vmatprep.subr.bf16.mxu0 0
      %7176 = vmatpush1.bf16.msra.mxu0 0
      %7177 = vmatprep.subr.bf16.mxu0 0
      %7178 = vmatpush1.bf16.msra.mxu0 0
      %7179 = vmatprep.subr.bf16.mxu0 0
      %7180 = vmatpush1.bf16.msra.mxu0 0
      %7181 = vmatprep.subr.bf16.mxu0 0
      %7182 = vmatpush1.bf16.msra.mxu0 0
      %7183 = vmatprep.subr.bf16.mxu0 0
      %7184 = vmatpush1.bf16.msra.mxu0 0
      %7185 = vmatprep.subr.bf16.mxu0 0
      %7186 = vmatpush1.bf16.msra.mxu0 0
      %7187 = vmatprep.subr.bf16.mxu0 0
      %7188 = vmatpush1.bf16.msra.mxu0 0
      %7189 = vmatprep.subr.bf16.mxu0 0
      %7190 = vmatpush1.bf16.msra.mxu0 0
      %7191 = vmatprep.subr.bf16.mxu0 0
      %7192 = vmatpush1.bf16.msra.mxu0 0
      %7193 = vmatprep.subr.bf16.mxu0 0
      %7194 = vmatpush1.bf16.msra.mxu0 0
      %7195 = vmatprep.subr.bf16.mxu0 0
      %7196 = vmatpush1.bf16.msra.mxu0 0
      %7197 = vmatprep.subr.bf16.mxu0 0
      %7198 = vmatpush1.bf16.msra.mxu0 0
      %7199 = vmatprep.subr.bf16.mxu0 0
      %7200 = vmatpush1.bf16.msra.mxu0 0
      %7201 = vmatprep.subr.bf16.mxu0 0
      %7202 = vmatpush1.bf16.msra.mxu0 0
      %7203 = vmatprep.mubr.bf16.mxu0 0
      %7204 = vmatmul.mubr.bf16.gmra.mrb[0].mxu0 %v6530
      %v7205 = vpop.f32.mrb[0].mxu0
      %v7206 = vadd.f32 %v6501, %v7205
      %v7207 = vpop.f32.mrb[0].mxu0
      %v7208 = vadd.f32 %v6501, %v7207
      %v7209 = vpop.f32.mrb[0].mxu0
      %v7210 = vadd.f32 %v6506, %v7209
      %v7211 = vpop.f32.mrb[0].mxu0
      %v7212 = vadd.f32 %v6506, %v7211
      %7213 = vmatprep.mubr.bf16.mxu0 0
      %7214 = vmatmul.mubr.bf16.gmra.mrb[0].mxu0 %v6533
      %v7215 = vpop.f32.mrb[0].mxu0
      %v7216 = vadd.f32 %v6511, %v7215
      %v7217 = vpop.f32.mrb[0].mxu0
      %v7218 = vadd.f32 %v6511, %v7217
      %v7219 = vpop.f32.mrb[0].mxu0
      %v7220 = vadd.f32 %v6516, %v7219
      %v7221 = vpop.f32.mrb[0].mxu0
      %v7222 = vadd.f32 %v6516, %v7221
      %7223 = vdwg.mxu0
      %7224 = vmatprep.subr.bf16.mxu0 %v6457
      %7225 = vmatpush1.bf16.msra.mxu0 %v6456
      %7226 = vmatprep.subr.bf16.mxu0 %v6489
      %7227 = vmatpush1.bf16.msra.mxu0 %v6488
      %7228 = vmatprep.subr.bf16.mxu0 0
      %7229 = vmatpush1.bf16.msra.mxu0 0
      %7230 = vmatprep.subr.bf16.mxu0 0
      %7231 = vmatpush1.bf16.msra.mxu0 0
      %7232 = vmatprep.subr.bf16.mxu0 0
      %7233 = vmatpush1.bf16.msra.mxu0 0
      %7234 = vmatprep.subr.bf16.mxu0 0
      %7235 = vmatpush1.bf16.msra.mxu0 0
      %7236 = vmatprep.subr.bf16.mxu0 0
      %7237 = vmatpush1.bf16.msra.mxu0 0
      %7238 = vmatprep.subr.bf16.mxu0 0
      %7239 = vmatpush1.bf16.msra.mxu0 0
      %7240 = vmatprep.subr.bf16.mxu0 0
      %7241 = vmatpush1.bf16.msra.mxu0 0
      %7242 = vmatprep.subr.bf16.mxu0 0
      %7243 = vmatpush1.bf16.msra.mxu0 0
      %7244 = vmatprep.subr.bf16.mxu0 0
      %7245 = vmatpush1.bf16.msra.mxu0 0
      %7246 = vmatprep.subr.bf16.mxu0 0
      %7247 = vmatpush1.bf16.msra.mxu0 0
      %7248 = vmatprep.subr.bf16.mxu0 0
      %7249 = vmatpush1.bf16.msra.mxu0 0
      %7250 = vmatprep.subr.bf16.mxu0 0
      %7251 = vmatpush1.bf16.msra.mxu0 0
      %7252 = vmatprep.subr.bf16.mxu0 0
      %7253 = vmatpush1.bf16.msra.mxu0 0
      %7254 = vmatprep.subr.bf16.mxu0 0
      %7255 = vmatpush1.bf16.msra.mxu0 0
      %7256 = vmatprep.mubr.bf16.mxu0 0
      %7257 = vmatmul.mubr.bf16.gmra.mrb[0].mxu0 %v6530
      %v7258 = vpop.f32.mrb[0].mxu0
      %v7259 = vadd.f32 %v6501, %v7258
      %v7260 = vpop.f32.mrb[0].mxu0
      %v7261 = vadd.f32 %v6501, %v7260
      %v7262 = vpop.f32.mrb[0].mxu0
      %v7263 = vadd.f32 %v6506, %v7262
      %v7264 = vpop.f32.mrb[0].mxu0
      %v7265 = vadd.f32 %v6506, %v7264
      %7266 = vmatprep.mubr.bf16.mxu0 0
      %7267 = vmatmul.mubr.bf16.gmra.mrb[0].mxu0 %v6533
      %v7268 = vpop.f32.mrb[0].mxu0
      %v7269 = vadd.f32 %v6511, %v7268
      %v7270 = vpop.f32.mrb[0].mxu0
      %v7271 = vadd.f32 %v6511, %v7270
      %v7272 = vpop.f32.mrb[0].mxu0
      %v7273 = vadd.f32 %v6516, %v7272
      %v7274 = vpop.f32.mrb[0].mxu0
      %v7275 = vadd.f32 %v6516, %v7274
      %7276 = vdwg.mxu0
      %7277 = vmatprep.subr.bf16.mxu0 %v6459
      %7278 = vmatpush1.bf16.msra.mxu0 %v6458
      %7279 = vmatprep.subr.bf16.mxu0 %v6491
      %7280 = vmatpush1.bf16.msra.mxu0 %v6490
      %7281 = vmatprep.subr.bf16.mxu0 0
      %7282 = vmatpush1.bf16.msra.mxu0 0
      %7283 = vmatprep.subr.bf16.mxu0 0
      %7284 = vmatpush1.bf16.msra.mxu0 0
      %7285 = vmatprep.subr.bf16.mxu0 0
      %7286 = vmatpush1.bf16.msra.mxu0 0
      %7287 = vmatprep.subr.bf16.mxu0 0
      %7288 = vmatpush1.bf16.msra.mxu0 0
      %7289 = vmatprep.subr.bf16.mxu0 0
      %7290 = vmatpush1.bf16.msra.mxu0 0
      %7291 = vmatprep.subr.bf16.mxu0 0
      %7292 = vmatpush1.bf16.msra.mxu0 0
      %7293 = vmatprep.subr.bf16.mxu0 0
      %7294 = vmatpush1.bf16.msra.mxu0 0
      %7295 = vmatprep.subr.bf16.mxu0 0
      %7296 = vmatpush1.bf16.msra.mxu0 0
      %7297 = vmatprep.subr.bf16.mxu0 0
      %7298 = vmatpush1.bf16.msra.mxu0 0
      %7299 = vmatprep.subr.bf16.mxu0 0
      %7300 = vmatpush1.bf16.msra.mxu0 0
      %7301 = vmatprep.subr.bf16.mxu0 0
      %7302 = vmatpush1.bf16.msra.mxu0 0
      %7303 = vmatprep.subr.bf16.mxu0 0
      %7304 = vmatpush1.bf16.msra.mxu0 0
      %7305 = vmatprep.subr.bf16.mxu0 0
      %7306 = vmatpush1.bf16.msra.mxu0 0
      %7307 = vmatprep.subr.bf16.mxu0 0
      %7308 = vmatpush1.bf16.msra.mxu0 0
      %7309 = vmatprep.mubr.bf16.mxu0 0
      %7310 = vmatmul.mubr.bf16.gmra.mrb[0].mxu0 %v6530
      %v7311 = vpop.f32.mrb[0].mxu0
      %v7312 = vadd.f32 %v6501, %v7311
      %v7313 = vpop.f32.mrb[0].mxu0
      %v7314 = vadd.f32 %v6501, %v7313
      %v7315 = vpop.f32.mrb[0].mxu0
      %v7316 = vadd.f32 %v6506, %v7315
      %v7317 = vpop.f32.mrb[0].mxu0
      %v7318 = vadd.f32 %v6506, %v7317
      %7319 = vmatprep.mubr.bf16.mxu0 0
      %7320 = vmatmul.mubr.bf16.gmra.mrb[0].mxu0 %v6533
      %v7321 = vpop.f32.mrb[0].mxu0
      %v7322 = vadd.f32 %v6511, %v7321
      %v7323 = vpop.f32.mrb[0].mxu0
      %v7324 = vadd.f32 %v6511, %v7323
      %v7325 = vpop.f32.mrb[0].mxu0
      %v7326 = vadd.f32 %v6516, %v7325
      %v7327 = vpop.f32.mrb[0].mxu0
      %v7328 = vadd.f32 %v6516, %v7327
      %7329 = vdwg.mxu0
      %7330 = vmatprep.subr.bf16.mxu0 %v6461
      %7331 = vmatpush1.bf16.msra.mxu0 %v6460
      %7332 = vmatprep.subr.bf16.mxu0 %v6493
      %7333 = vmatpush1.bf16.msra.mxu0 %v6492
      %7334 = vmatprep.subr.bf16.mxu0 0
      %7335 = vmatpush1.bf16.msra.mxu0 0
      %7336 = vmatprep.subr.bf16.mxu0 0
      %7337 = vmatpush1.bf16.msra.mxu0 0
      %7338 = vmatprep.subr.bf16.mxu0 0
      %7339 = vmatpush1.bf16.msra.mxu0 0
      %7340 = vmatprep.subr.bf16.mxu0 0
      %7341 = vmatpush1.bf16.msra.mxu0 0
      %7342 = vmatprep.subr.bf16.mxu0 0
      %7343 = vmatpush1.bf16.msra.mxu0 0
      %7344 = vmatprep.subr.bf16.mxu0 0
      %7345 = vmatpush1.bf16.msra.mxu0 0
      %7346 = vmatprep.subr.bf16.mxu0 0
      %7347 = vmatpush1.bf16.msra.mxu0 0
      %7348 = vmatprep.subr.bf16.mxu0 0
      %7349 = vmatpush1.bf16.msra.mxu0 0
      %7350 = vmatprep.subr.bf16.mxu0 0
      %7351 = vmatpush1.bf16.msra.mxu0 0
      %7352 = vmatprep.subr.bf16.mxu0 0
      %7353 = vmatpush1.bf16.msra.mxu0 0
      %7354 = vmatprep.subr.bf16.mxu0 0
      %7355 = vmatpush1.bf16.msra.mxu0 0
      %7356 = vmatprep.subr.bf16.mxu0 0
      %7357 = vmatpush1.bf16.msra.mxu0 0
      %7358 = vmatprep.subr.bf16.mxu0 0
      %7359 = vmatpush1.bf16.msra.mxu0 0
      %7360 = vmatprep.subr.bf16.mxu0 0
      %7361 = vmatpush1.bf16.msra.mxu0 0
      %7362 = vmatprep.mubr.bf16.mxu0 0
      %7363 = vmatmul.mubr.bf16.gmra.mrb[0].mxu0 %v6530
      %v7364 = vpop.f32.mrb[0].mxu0
      %v7365 = vadd.f32 %v6501, %v7364
      %v7366 = vpop.f32.mrb[0].mxu0
      %v7367 = vadd.f32 %v6501, %v7366
      %v7368 = vpop.f32.mrb[0].mxu0
      %v7369 = vadd.f32 %v6506, %v7368
      %v7370 = vpop.f32.mrb[0].mxu0
      %v7371 = vadd.f32 %v6506, %v7370
      %7372 = vmatprep.mubr.bf16.mxu0 0
      %7373 = vmatmul.mubr.bf16.gmra.mrb[0].mxu0 %v6533
      %v7374 = vpop.f32.mrb[0].mxu0
      %v7375 = vadd.f32 %v6511, %v7374
      %v7376 = vpop.f32.mrb[0].mxu0
      %v7377 = vadd.f32 %v6511, %v7376
      %v7378 = vpop.f32.mrb[0].mxu0
      %v7379 = vadd.f32 %v6516, %v7378
      %v7380 = vpop.f32.mrb[0].mxu0
      %v7381 = vadd.f32 %v6516, %v7380
      %7382 = vdwg.mxu0
      %v7383 = vmax.f32 %v6570, 0.0
      %v7384 = vmax.f32 %v6572, 0.0
      %v7385 = vmax.f32 %v6623, 0.0
      %v7386 = vmax.f32 %v6625, 0.0
      %v7387 = vmax.f32 %v6676, 0.0
      %v7388 = vmax.f32 %v6678, 0.0
      %v7389 = vmax.f32 %v6729, 0.0
      %v7390 = vmax.f32 %v6731, 0.0
      %v7391 = vmax.f32 %v6782, 0.0
      %v7392 = vmax.f32 %v6784, 0.0
      %v7393 = vmax.f32 %v6835, 0.0
      %v7394 = vmax.f32 %v6837, 0.0
      %v7395 = vmax.f32 %v6888, 0.0
      %v7396 = vmax.f32 %v6890, 0.0
      %v7397 = vmax.f32 %v6941, 0.0
      %v7398 = vmax.f32 %v6943, 0.0
      %v7399 = vmax.f32 %v6994, 0.0
      %v7400 = vmax.f32 %v6996, 0.0
      %v7401 = vmax.f32 %v7047, 0.0
      %v7402 = vmax.f32 %v7049, 0.0
      %v7403 = vmax.f32 %v7100, 0.0
      %v7404 = vmax.f32 %v7102, 0.0
      %v7405 = vmax.f32 %v7153, 0.0
      %v7406 = vmax.f32 %v7155, 0.0
      %v7407 = vmax.f32 %v7206, 0.0
      %v7408 = vmax.f32 %v7208, 0.0
      %v7409 = vmax.f32 %v7259, 0.0
      %v7410 = vmax.f32 %v7261, 0.0
      %v7411 = vmax.f32 %v7312, 0.0
      %v7412 = vmax.f32 %v7314, 0.0
      %v7413 = vmax.f32 %v7365, 0.0
      %v7414 = vmax.f32 %v7367, 0.0
      %v7415 = vmax.f32 %v6574, 0.0
      %v7416 = vmax.f32 %v6576, 0.0
      %v7417 = vmax.f32 %v6627, 0.0
      %v7418 = vmax.f32 %v6629, 0.0
      %v7419 = vmax.f32 %v6680, 0.0
      %v7420 = vmax.f32 %v6682, 0.0
      %v7421 = vmax.f32 %v6733, 0.0
      %v7422 = vmax.f32 %v6735, 0.0
      %v7423 = vmax.f32 %v6786, 0.0
      %v7424 = vmax.f32 %v6788, 0.0
      %v7425 = vmax.f32 %v6839, 0.0
      %v7426 = vmax.f32 %v6841, 0.0
      %v7427 = vmax.f32 %v6892, 0.0
      %v7428 = vmax.f32 %v6894, 0.0
      %v7429 = vmax.f32 %v6945, 0.0
      %v7430 = vmax.f32 %v6947, 0.0
      %v7431 = vmax.f32 %v6998, 0.0
      %v7432 = vmax.f32 %v7000, 0.0
      %v7433 = vmax.f32 %v7051, 0.0
      %v7434 = vmax.f32 %v7053, 0.0
      %v7435 = vmax.f32 %v7104, 0.0
      %v7436 = vmax.f32 %v7106, 0.0
      %v7437 = vmax.f32 %v7157, 0.0
      %v7438 = vmax.f32 %v7159, 0.0
      %v7439 = vmax.f32 %v7210, 0.0
      %v7440 = vmax.f32 %v7212, 0.0
      %v7441 = vmax.f32 %v7263, 0.0
      %v7442 = vmax.f32 %v7265, 0.0
      %v7443 = vmax.f32 %v7316, 0.0
      %v7444 = vmax.f32 %v7318, 0.0
      %v7445 = vmax.f32 %v7369, 0.0
      %v7446 = vmax.f32 %v7371, 0.0
      %v7447 = vmax.f32 %v6580, 0.0
      %v7448 = vmax.f32 %v6582, 0.0
      %v7449 = vmax.f32 %v6633, 0.0
      %v7450 = vmax.f32 %v6635, 0.0
      %v7451 = vmax.f32 %v6686, 0.0
      %v7452 = vmax.f32 %v6688, 0.0
      %v7453 = vmax.f32 %v6739, 0.0
      %v7454 = vmax.f32 %v6741, 0.0
      %v7455 = vmax.f32 %v6792, 0.0
      %v7456 = vmax.f32 %v6794, 0.0
      %v7457 = vmax.f32 %v6845, 0.0
      %v7458 = vmax.f32 %v6847, 0.0
      %v7459 = vmax.f32 %v6898, 0.0
      %v7460 = vmax.f32 %v6900, 0.0
      %v7461 = vmax.f32 %v6951, 0.0
      %v7462 = vmax.f32 %v6953, 0.0
      %v7463 = vmax.f32 %v7004, 0.0
      %v7464 = vmax.f32 %v7006, 0.0
      %v7465 = vmax.f32 %v7057, 0.0
      %v7466 = vmax.f32 %v7059, 0.0
      %v7467 = vmax.f32 %v7110, 0.0
      %v7468 = vmax.f32 %v7112, 0.0
      %v7469 = vmax.f32 %v7163, 0.0
      %v7470 = vmax.f32 %v7165, 0.0
      %v7471 = vmax.f32 %v7216, 0.0
      %v7472 = vmax.f32 %v7218, 0.0
      %v7473 = vmax.f32 %v7269, 0.0
      %v7474 = vmax.f32 %v7271, 0.0
      %v7475 = vmax.f32 %v7322, 0.0
      %v7476 = vmax.f32 %v7324, 0.0
      %v7477 = vmax.f32 %v7375, 0.0
      %v7478 = vmax.f32 %v7377, 0.0
      %v7479 = vmax.f32 %v6584, 0.0
      %v7480 = vmax.f32 %v6586, 0.0
      %v7481 = vmax.f32 %v6637, 0.0
      %v7482 = vmax.f32 %v6639, 0.0
      %v7483 = vmax.f32 %v6690, 0.0
      %v7484 = vmax.f32 %v6692, 0.0
      %v7485 = vmax.f32 %v6743, 0.0
      %v7486 = vmax.f32 %v6745, 0.0
      %v7487 = vmax.f32 %v6796, 0.0
      %v7488 = vmax.f32 %v6798, 0.0
      %v7489 = vmax.f32 %v6849, 0.0
      %v7490 = vmax.f32 %v6851, 0.0
      %v7491 = vmax.f32 %v6902, 0.0
      %v7492 = vmax.f32 %v6904, 0.0
      %v7493 = vmax.f32 %v6955, 0.0
      %v7494 = vmax.f32 %v6957, 0.0
      %v7495 = vmax.f32 %v7008, 0.0
      %v7496 = vmax.f32 %v7010, 0.0
      %v7497 = vmax.f32 %v7061, 0.0
      %v7498 = vmax.f32 %v7063, 0.0
      %v7499 = vmax.f32 %v7114, 0.0
      %v7500 = vmax.f32 %v7116, 0.0
      %v7501 = vmax.f32 %v7167, 0.0
      %v7502 = vmax.f32 %v7169, 0.0
      %v7503 = vmax.f32 %v7220, 0.0
      %v7504 = vmax.f32 %v7222, 0.0
      %v7505 = vmax.f32 %v7273, 0.0
      %v7506 = vmax.f32 %v7275, 0.0
      %v7507 = vmax.f32 %v7326, 0.0
      %v7508 = vmax.f32 %v7328, 0.0
      %v7509 = vmax.f32 %v7379, 0.0
      %v7510 = vmax.f32 %v7381, 0.0
      %v7511 = vld [vmem:[%s13] sm:$0xf]
      %v7512 = vld [vmem:[%s13 + $0x4] sm:$0xf]
      %v7513 = vld [vmem:[%s13 + $0x8] sm:$0xf]
      %v7514 = vld [vmem:[%s13 + $0xc] sm:$0xf]
      %v7515 = vld [vmem:[%s13 + $0x10] sm:$0xf]
      %v7516 = vld [vmem:[%s13 + $0x14] sm:$0xf]
      %v7517 = vld [vmem:[%s13 + $0x18] sm:$0xf]
      %v7518 = vld [vmem:[%s13 + $0x1c] sm:$0xf]
      %v7519 = vpack.c.bf16 %v7415, %v7383
      %v7520 = vpack.c.bf16 %v7416, %v7384
      %v7521 = vpack.c.bf16 %v7417, %v7385
      %v7522 = vpack.c.bf16 %v7418, %v7386
      %v7523 = vpack.c.bf16 %v7419, %v7387
      %v7524 = vpack.c.bf16 %v7420, %v7388
      %v7525 = vpack.c.bf16 %v7421, %v7389
      %v7526 = vpack.c.bf16 %v7422, %v7390
      %v7527 = vpack.c.bf16 %v7423, %v7391
      %v7528 = vpack.c.bf16 %v7424, %v7392
      %v7529 = vpack.c.bf16 %v7425, %v7393
      %v7530 = vpack.c.bf16 %v7426, %v7394
      %v7531 = vpack.c.bf16 %v7427, %v7395
      %v7532 = vpack.c.bf16 %v7428, %v7396
      %v7533 = vpack.c.bf16 %v7429, %v7397
      %v7534 = vpack.c.bf16 %v7430, %v7398
      %v7535 = vpack.c.bf16 %v7431, %v7399
      %v7536 = vpack.c.bf16 %v7432, %v7400
      %v7537 = vpack.c.bf16 %v7433, %v7401
      %v7538 = vpack.c.bf16 %v7434, %v7402
      %v7539 = vpack.c.bf16 %v7435, %v7403
      %v7540 = vpack.c.bf16 %v7436, %v7404
      %v7541 = vpack.c.bf16 %v7437, %v7405
      %v7542 = vpack.c.bf16 %v7438, %v7406
      %v7543 = vpack.c.bf16 %v7439, %v7407
      %v7544 = vpack.c.bf16 %v7440, %v7408
      %v7545 = vpack.c.bf16 %v7441, %v7409
      %v7546 = vpack.c.bf16 %v7442, %v7410
      %v7547 = vpack.c.bf16 %v7443, %v7411
      %v7548 = vpack.c.bf16 %v7444, %v7412
      %v7549 = vpack.c.bf16 %v7445, %v7413
      %v7550 = vpack.c.bf16 %v7446, %v7414
      %v7551 = vpack.c.bf16 %v7479, %v7447
      %v7552 = vpack.c.bf16 %v7480, %v7448
      %v7553 = vpack.c.bf16 %v7481, %v7449
      %v7554 = vpack.c.bf16 %v7482, %v7450
      %v7555 = vpack.c.bf16 %v7483, %v7451
      %v7556 = vpack.c.bf16 %v7484, %v7452
      %v7557 = vpack.c.bf16 %v7485, %v7453
      %v7558 = vpack.c.bf16 %v7486, %v7454
      %v7559 = vpack.c.bf16 %v7487, %v7455
      %v7560 = vpack.c.bf16 %v7488, %v7456
      %v7561 = vpack.c.bf16 %v7489, %v7457
      %v7562 = vpack.c.bf16 %v7490, %v7458
      %v7563 = vpack.c.bf16 %v7491, %v7459
      %v7564 = vpack.c.bf16 %v7492, %v7460
      %v7565 = vpack.c.bf16 %v7493, %v7461
      %v7566 = vpack.c.bf16 %v7494, %v7462
      %v7567 = vpack.c.bf16 %v7495, %v7463
      %v7568 = vpack.c.bf16 %v7496, %v7464
      %v7569 = vpack.c.bf16 %v7497, %v7465
      %v7570 = vpack.c.bf16 %v7498, %v7466
      %v7571 = vpack.c.bf16 %v7499, %v7467
      %v7572 = vpack.c.bf16 %v7500, %v7468
      %v7573 = vpack.c.bf16 %v7501, %v7469
      %v7574 = vpack.c.bf16 %v7502, %v7470
      %v7575 = vpack.c.bf16 %v7503, %v7471
      %v7576 = vpack.c.bf16 %v7504, %v7472
      %v7577 = vpack.c.bf16 %v7505, %v7473
      %v7578 = vpack.c.bf16 %v7506, %v7474
      %v7579 = vpack.c.bf16 %v7507, %v7475
      %v7580 = vpack.c.bf16 %v7508, %v7476
      %v7581 = vpack.c.bf16 %v7509, %v7477
      %v7582 = vpack.c.bf16 %v7510, %v7478
      %v7583 = vld [vmem:[%s14] sm:$0xff]
      %v7584 = vld [vmem:[%s14 + $0x8] sm:$0xff]
      %v7585 = vld [vmem:[%s14 + $0x10] sm:$0xff]
      %v7586 = vld [vmem:[%s14 + $0x18] sm:$0xff]
      %v7587 = vld [vmem:[%s14 + $0x20] sm:$0xff]
      %v7588 = vld [vmem:[%s14 + $0x28] sm:$0xff]
      %v7589 = vld [vmem:[%s14 + $0x30] sm:$0xff]
      %v7590 = vld [vmem:[%s14 + $0x38] sm:$0xff]
      %7592 = vset.pattern.permute.xlu0 0
      %7593 = vperm.xlu0 %7592, %v7583
      %v7594 = vpop.permute.xlu0 %7593
      %7597 = vset.pattern.permute.xlu0 0
      %7598 = vperm.xlu0 %7597, %v7584
      %v7599 = vpop.permute.xlu0 %7598
      %7602 = vset.pattern.permute.xlu0 0
      %7603 = vperm.xlu0 %7602, %v7585
      %v7604 = vpop.permute.xlu0 %7603
      %7607 = vset.pattern.permute.xlu0 0
      %7608 = vperm.xlu0 %7607, %v7586
      %v7609 = vpop.permute.xlu0 %7608
      %7612 = vset.pattern.permute.xlu0 0
      %7613 = vperm.xlu0 %7612, %v7587
      %v7614 = vpop.permute.xlu0 %7613
      %7617 = vset.pattern.permute.xlu0 0
      %7618 = vperm.xlu0 %7617, %v7588
      %v7619 = vpop.permute.xlu0 %7618
      %7622 = vset.pattern.permute.xlu0 0
      %7623 = vperm.xlu0 %7622, %v7589
      %v7624 = vpop.permute.xlu0 %7623
      %7627 = vset.pattern.permute.xlu0 0
      %7628 = vperm.xlu0 %7627, %v7590
      %v7629 = vpop.permute.xlu0 %7628
      %v7639 = vunpack.c.l.b16 %v7511
      %v7640 = vunpack.c.l.b16 %v7512
      %v7641 = vunpack.c.l.b16 %v7513
      %v7642 = vunpack.c.l.b16 %v7514
      %v7643 = vunpack.c.l.b16 %v7515
      %v7644 = vunpack.c.l.b16 %v7516
      %v7645 = vunpack.c.l.b16 %v7517
      %v7646 = vunpack.c.l.b16 %v7518
      %v7647 = vpack.c.b16 %v7640, %v7639
      %v7648 = vpack.c.b16 %v7642, %v7641
      %v7649 = vpack.c.b16 %v7644, %v7643
      %v7650 = vpack.c.b16 %v7646, %v7645
      %v7652 = vsel %vm6528, %v7647, 0
      %v7655 = vsel %vm6528, %v7648, 0
      %v7658 = vsel %vm6528, %v7649, 0
      %v7661 = vsel %vm6528, %v7650, 0
      %7663 = vmatprep.subr.bf16.mxu0 %v7520
      %7664 = vmatpush1.bf16.msra.mxu0 %v7519
      %7665 = vmatprep.subr.bf16.mxu0 %v7552
      %7666 = vmatpush1.bf16.msra.mxu0 %v7551
      %7667 = vmatprep.subr.bf16.mxu0 0
      %7668 = vmatpush1.bf16.msra.mxu0 0
      %7669 = vmatprep.subr.bf16.mxu0 0
      %7670 = vmatpush1.bf16.msra.mxu0 0
      %7671 = vmatprep.subr.bf16.mxu0 0
      %7672 = vmatpush1.bf16.msra.mxu0 0
      %7673 = vmatprep.subr.bf16.mxu0 0
      %7674 = vmatpush1.bf16.msra.mxu0 0
      %7675 = vmatprep.subr.bf16.mxu0 0
      %7676 = vmatpush1.bf16.msra.mxu0 0
      %7677 = vmatprep.subr.bf16.mxu0 0
      %7678 = vmatpush1.bf16.msra.mxu0 0
      %7679 = vmatprep.subr.bf16.mxu0 0
      %7680 = vmatpush1.bf16.msra.mxu0 0
      %7681 = vmatprep.subr.bf16.mxu0 0
      %7682 = vmatpush1.bf16.msra.mxu0 0
      %7683 = vmatprep.subr.bf16.mxu0 0
      %7684 = vmatpush1.bf16.msra.mxu0 0
      %7685 = vmatprep.subr.bf16.mxu0 0
      %7686 = vmatpush1.bf16.msra.mxu0 0
      %7687 = vmatprep.subr.bf16.mxu0 0
      %7688 = vmatpush1.bf16.msra.mxu0 0
      %7689 = vmatprep.subr.bf16.mxu0 0
      %7690 = vmatpush1.bf16.msra.mxu0 0
      %7691 = vmatprep.subr.bf16.mxu0 0
      %7692 = vmatpush1.bf16.msra.mxu0 0
      %7693 = vmatprep.subr.bf16.mxu0 0
      %7694 = vmatpush1.bf16.msra.mxu0 0
      %7695 = vmatprep.mubr.bf16.mxu0 0
      %7696 = vmatmul.mubr.bf16.gmra.mrb[0].mxu0 %v7652
      %v7697 = vpop.f32.mrb[0].mxu0
      %v7698 = vadd.f32 %v7594, %v7697
      %v7699 = vpop.f32.mrb[0].mxu0
      %v7700 = vadd.f32 %v7594, %v7699
      %v7701 = vpop.f32.mrb[0].mxu0
      %v7702 = vadd.f32 %v7599, %v7701
      %v7703 = vpop.f32.mrb[0].mxu0
      %v7704 = vadd.f32 %v7599, %v7703
      %7705 = vmatprep.mubr.bf16.mxu0 0
      %7706 = vmatmul.mubr.bf16.gmra.mrb[0].mxu0 %v7655
      %v7707 = vpop.f32.mrb[0].mxu0
      %v7708 = vadd.f32 %v7604, %v7707
      %v7709 = vpop.f32.mrb[0].mxu0
      %v7710 = vadd.f32 %v7604, %v7709
      %v7711 = vpop.f32.mrb[0].mxu0
      %v7712 = vadd.f32 %v7609, %v7711
      %v7713 = vpop.f32.mrb[0].mxu0
      %v7714 = vadd.f32 %v7609, %v7713
      %7715 = vmatprep.mubr.bf16.mxu0 0
      %7716 = vmatmul.mubr.bf16.gmra.mrb[0].mxu0 %v7658
      %v7717 = vpop.f32.mrb[0].mxu0
      %v7718 = vadd.f32 %v7614, %v7717
      %v7719 = vpop.f32.mrb[0].mxu0
      %v7720 = vadd.f32 %v7614, %v7719
      %v7721 = vpop.f32.mrb[0].mxu0
      %v7722 = vadd.f32 %v7619, %v7721
      %v7723 = vpop.f32.mrb[0].mxu0
      %v7724 = vadd.f32 %v7619, %v7723
      %7725 = vmatprep.mubr.bf16.mxu0 0
      %7726 = vmatmul.mubr.bf16.gmra.mrb[0].mxu0 %v7661
      %v7727 = vpop.f32.mrb[0].mxu0
      %v7728 = vadd.f32 %v7624, %v7727
      %v7729 = vpop.f32.mrb[0].mxu0
      %v7730 = vadd.f32 %v7624, %v7729
      %v7731 = vpop.f32.mrb[0].mxu0
      %v7732 = vadd.f32 %v7629, %v7731
      %v7733 = vpop.f32.mrb[0].mxu0
      %v7734 = vadd.f32 %v7629, %v7733
      %7735 = vdwg.mxu0
      %7736 = vmatprep.subr.bf16.mxu0 %v7522
      %7737 = vmatpush1.bf16.msra.mxu0 %v7521
      %7738 = vmatprep.subr.bf16.mxu0 %v7554
      %7739 = vmatpush1.bf16.msra.mxu0 %v7553
      %7740 = vmatprep.subr.bf16.mxu0 0
      %7741 = vmatpush1.bf16.msra.mxu0 0
      %7742 = vmatprep.subr.bf16.mxu0 0
      %7743 = vmatpush1.bf16.msra.mxu0 0
      %7744 = vmatprep.subr.bf16.mxu0 0
      %7745 = vmatpush1.bf16.msra.mxu0 0
      %7746 = vmatprep.subr.bf16.mxu0 0
      %7747 = vmatpush1.bf16.msra.mxu0 0
      %7748 = vmatprep.subr.bf16.mxu0 0
      %7749 = vmatpush1.bf16.msra.mxu0 0
      %7750 = vmatprep.subr.bf16.mxu0 0
      %7751 = vmatpush1.bf16.msra.mxu0 0
      %7752 = vmatprep.subr.bf16.mxu0 0
      %7753 = vmatpush1.bf16.msra.mxu0 0
      %7754 = vmatprep.subr.bf16.mxu0 0
      %7755 = vmatpush1.bf16.msra.mxu0 0
      %7756 = vmatprep.subr.bf16.mxu0 0
      %7757 = vmatpush1.bf16.msra.mxu0 0
      %7758 = vmatprep.subr.bf16.mxu0 0
      %7759 = vmatpush1.bf16.msra.mxu0 0
      %7760 = vmatprep.subr.bf16.mxu0 0
      %7761 = vmatpush1.bf16.msra.mxu0 0
      %7762 = vmatprep.subr.bf16.mxu0 0
      %7763 = vmatpush1.bf16.msra.mxu0 0
      %7764 = vmatprep.subr.bf16.mxu0 0
      %7765 = vmatpush1.bf16.msra.mxu0 0
      %7766 = vmatprep.subr.bf16.mxu0 0
      %7767 = vmatpush1.bf16.msra.mxu0 0
      %7768 = vmatprep.mubr.bf16.mxu0 0
      %7769 = vmatmul.mubr.bf16.gmra.mrb[0].mxu0 %v7652
      %v7770 = vpop.f32.mrb[0].mxu0
      %v7771 = vadd.f32 %v7594, %v7770
      %v7772 = vpop.f32.mrb[0].mxu0
      %v7773 = vadd.f32 %v7594, %v7772
      %v7774 = vpop.f32.mrb[0].mxu0
      %v7775 = vadd.f32 %v7599, %v7774
      %v7776 = vpop.f32.mrb[0].mxu0
      %v7777 = vadd.f32 %v7599, %v7776
      %7778 = vmatprep.mubr.bf16.mxu0 0
      %7779 = vmatmul.mubr.bf16.gmra.mrb[0].mxu0 %v7655
      %v7780 = vpop.f32.mrb[0].mxu0
      %v7781 = vadd.f32 %v7604, %v7780
      %v7782 = vpop.f32.mrb[0].mxu0
      %v7783 = vadd.f32 %v7604, %v7782
      %v7784 = vpop.f32.mrb[0].mxu0
      %v7785 = vadd.f32 %v7609, %v7784
      %v7786 = vpop.f32.mrb[0].mxu0
      %v7787 = vadd.f32 %v7609, %v7786
      %7788 = vmatprep.mubr.bf16.mxu0 0
      %7789 = vmatmul.mubr.bf16.gmra.mrb[0].mxu0 %v7658
      %v7790 = vpop.f32.mrb[0].mxu0
      %v7791 = vadd.f32 %v7614, %v7790
      %v7792 = vpop.f32.mrb[0].mxu0
      %v7793 = vadd.f32 %v7614, %v7792
      %v7794 = vpop.f32.mrb[0].mxu0
      %v7795 = vadd.f32 %v7619, %v7794
      %v7796 = vpop.f32.mrb[0].mxu0
      %v7797 = vadd.f32 %v7619, %v7796
      %7798 = vmatprep.mubr.bf16.mxu0 0
      %7799 = vmatmul.mubr.bf16.gmra.mrb[0].mxu0 %v7661
      %v7800 = vpop.f32.mrb[0].mxu0
      %v7801 = vadd.f32 %v7624, %v7800
      %v7802 = vpop.f32.mrb[0].mxu0
      %v7803 = vadd.f32 %v7624, %v7802
      %v7804 = vpop.f32.mrb[0].mxu0
      %v7805 = vadd.f32 %v7629, %v7804
      %v7806 = vpop.f32.mrb[0].mxu0
      %v7807 = vadd.f32 %v7629, %v7806
      %7808 = vdwg.mxu0
      %7809 = vmatprep.subr.bf16.mxu0 %v7524
      %7810 = vmatpush1.bf16.msra.mxu0 %v7523
      %7811 = vmatprep.subr.bf16.mxu0 %v7556
      %7812 = vmatpush1.bf16.msra.mxu0 %v7555
      %7813 = vmatprep.subr.bf16.mxu0 0
      %7814 = vmatpush1.bf16.msra.mxu0 0
      %7815 = vmatprep.subr.bf16.mxu0 0
      %7816 = vmatpush1.bf16.msra.mxu0 0
      %7817 = vmatprep.subr.bf16.mxu0 0
      %7818 = vmatpush1.bf16.msra.mxu0 0
      %7819 = vmatprep.subr.bf16.mxu0 0
      %7820 = vmatpush1.bf16.msra.mxu0 0
      %7821 = vmatprep.subr.bf16.mxu0 0
      %7822 = vmatpush1.bf16.msra.mxu0 0
      %7823 = vmatprep.subr.bf16.mxu0 0
      %7824 = vmatpush1.bf16.msra.mxu0 0
      %7825 = vmatprep.subr.bf16.mxu0 0
      %7826 = vmatpush1.bf16.msra.mxu0 0
      %7827 = vmatprep.subr.bf16.mxu0 0
      %7828 = vmatpush1.bf16.msra.mxu0 0
      %7829 = vmatprep.subr.bf16.mxu0 0
      %7830 = vmatpush1.bf16.msra.mxu0 0
      %7831 = vmatprep.subr.bf16.mxu0 0
      %7832 = vmatpush1.bf16.msra.mxu0 0
      %7833 = vmatprep.subr.bf16.mxu0 0
      %7834 = vmatpush1.bf16.msra.mxu0 0
      %7835 = vmatprep.subr.bf16.mxu0 0
      %7836 = vmatpush1.bf16.msra.mxu0 0
      %7837 = vmatprep.subr.bf16.mxu0 0
      %7838 = vmatpush1.bf16.msra.mxu0 0
      %7839 = vmatprep.subr.bf16.mxu0 0
      %7840 = vmatpush1.bf16.msra.mxu0 0
      %7841 = vmatprep.mubr.bf16.mxu0 0
      %7842 = vmatmul.mubr.bf16.gmra.mrb[0].mxu0 %v7652
      %v7843 = vpop.f32.mrb[0].mxu0
      %v7844 = vadd.f32 %v7594, %v7843
      %v7845 = vpop.f32.mrb[0].mxu0
      %v7846 = vadd.f32 %v7594, %v7845
      %v7847 = vpop.f32.mrb[0].mxu0
      %v7848 = vadd.f32 %v7599, %v7847
      %v7849 = vpop.f32.mrb[0].mxu0
      %v7850 = vadd.f32 %v7599, %v7849
      %7851 = vmatprep.mubr.bf16.mxu0 0
      %7852 = vmatmul.mubr.bf16.gmra.mrb[0].mxu0 %v7655
      %v7853 = vpop.f32.mrb[0].mxu0
      %v7854 = vadd.f32 %v7604, %v7853
      %v7855 = vpop.f32.mrb[0].mxu0
      %v7856 = vadd.f32 %v7604, %v7855
      %v7857 = vpop.f32.mrb[0].mxu0
      %v7858 = vadd.f32 %v7609, %v7857
      %v7859 = vpop.f32.mrb[0].mxu0
      %v7860 = vadd.f32 %v7609, %v7859
      %7861 = vmatprep.mubr.bf16.mxu0 0
      %7862 = vmatmul.mubr.bf16.gmra.mrb[0].mxu0 %v7658
      %v7863 = vpop.f32.mrb[0].mxu0
      %v7864 = vadd.f32 %v7614, %v7863
      %v7865 = vpop.f32.mrb[0].mxu0
      %v7866 = vadd.f32 %v7614, %v7865
      %v7867 = vpop.f32.mrb[0].mxu0
      %v7868 = vadd.f32 %v7619, %v7867
      %v7869 = vpop.f32.mrb[0].mxu0
      %v7870 = vadd.f32 %v7619, %v7869
      %7871 = vmatprep.mubr.bf16.mxu0 0
      %7872 = vmatmul.mubr.bf16.gmra.mrb[0].mxu0 %v7661
      %v7873 = vpop.f32.mrb[0].mxu0
      %v7874 = vadd.f32 %v7624, %v7873
      %v7875 = vpop.f32.mrb[0].mxu0
      %v7876 = vadd.f32 %v7624, %v7875
      %v7877 = vpop.f32.mrb[0].mxu0
      %v7878 = vadd.f32 %v7629, %v7877
      %v7879 = vpop.f32.mrb[0].mxu0
      %v7880 = vadd.f32 %v7629, %v7879
      %7881 = vdwg.mxu0
      %7882 = vmatprep.subr.bf16.mxu0 %v7526
      %7883 = vmatpush1.bf16.msra.mxu0 %v7525
      %7884 = vmatprep.subr.bf16.mxu0 %v7558
      %7885 = vmatpush1.bf16.msra.mxu0 %v7557
      %7886 = vmatprep.subr.bf16.mxu0 0
      %7887 = vmatpush1.bf16.msra.mxu0 0
      %7888 = vmatprep.subr.bf16.mxu0 0
      %7889 = vmatpush1.bf16.msra.mxu0 0
      %7890 = vmatprep.subr.bf16.mxu0 0
      %7891 = vmatpush1.bf16.msra.mxu0 0
      %7892 = vmatprep.subr.bf16.mxu0 0
      %7893 = vmatpush1.bf16.msra.mxu0 0
      %7894 = vmatprep.subr.bf16.mxu0 0
      %7895 = vmatpush1.bf16.msra.mxu0 0
      %7896 = vmatprep.subr.bf16.mxu0 0
      %7897 = vmatpush1.bf16.msra.mxu0 0
      %7898 = vmatprep.subr.bf16.mxu0 0
      %7899 = vmatpush1.bf16.msra.mxu0 0
      %7900 = vmatprep.subr.bf16.mxu0 0
      %7901 = vmatpush1.bf16.msra.mxu0 0
      %7902 = vmatprep.subr.bf16.mxu0 0
      %7903 = vmatpush1.bf16.msra.mxu0 0
      %7904 = vmatprep.subr.bf16.mxu0 0
      %7905 = vmatpush1.bf16.msra.mxu0 0
      %7906 = vmatprep.subr.bf16.mxu0 0
      %7907 = vmatpush1.bf16.msra.mxu0 0
      %7908 = vmatprep.subr.bf16.mxu0 0
      %7909 = vmatpush1.bf16.msra.mxu0 0
      %7910 = vmatprep.subr.bf16.mxu0 0
      %7911 = vmatpush1.bf16.msra.mxu0 0
      %7912 = vmatprep.subr.bf16.mxu0 0
      %7913 = vmatpush1.bf16.msra.mxu0 0
      %7914 = vmatprep.mubr.bf16.mxu0 0
      %7915 = vmatmul.mubr.bf16.gmra.mrb[0].mxu0 %v7652
      %v7916 = vpop.f32.mrb[0].mxu0
      %v7917 = vadd.f32 %v7594, %v7916
      %v7918 = vpop.f32.mrb[0].mxu0
      %v7919 = vadd.f32 %v7594, %v7918
      %v7920 = vpop.f32.mrb[0].mxu0
      %v7921 = vadd.f32 %v7599, %v7920
      %v7922 = vpop.f32.mrb[0].mxu0
      %v7923 = vadd.f32 %v7599, %v7922
      %7924 = vmatprep.mubr.bf16.mxu0 0
      %7925 = vmatmul.mubr.bf16.gmra.mrb[0].mxu0 %v7655
      %v7926 = vpop.f32.mrb[0].mxu0
      %v7927 = vadd.f32 %v7604, %v7926
      %v7928 = vpop.f32.mrb[0].mxu0
      %v7929 = vadd.f32 %v7604, %v7928
      %v7930 = vpop.f32.mrb[0].mxu0
      %v7931 = vadd.f32 %v7609, %v7930
      %v7932 = vpop.f32.mrb[0].mxu0
      %v7933 = vadd.f32 %v7609, %v7932
      %7934 = vmatprep.mubr.bf16.mxu0 0
      %7935 = vmatmul.mubr.bf16.gmra.mrb[0].mxu0 %v7658
      %v7936 = vpop.f32.mrb[0].mxu0
      %v7937 = vadd.f32 %v7614, %v7936
      %v7938 = vpop.f32.mrb[0].mxu0
      %v7939 = vadd.f32 %v7614, %v7938
      %v7940 = vpop.f32.mrb[0].mxu0
      %v7941 = vadd.f32 %v7619, %v7940
      %v7942 = vpop.f32.mrb[0].mxu0
      %v7943 = vadd.f32 %v7619, %v7942
      %7944 = vmatprep.mubr.bf16.mxu0 0
      %7945 = vmatmul.mubr.bf16.gmra.mrb[0].mxu0 %v7661
      %v7946 = vpop.f32.mrb[0].mxu0
      %v7947 = vadd.f32 %v7624, %v7946
      %v7948 = vpop.f32.mrb[0].mxu0
      %v7949 = vadd.f32 %v7624, %v7948
      %v7950 = vpop.f32.mrb[0].mxu0
      %v7951 = vadd.f32 %v7629, %v7950
      %v7952 = vpop.f32.mrb[0].mxu0
      %v7953 = vadd.f32 %v7629, %v7952
      %7954 = vdwg.mxu0
      %7955 = vmatprep.subr.bf16.mxu0 %v7528
      %7956 = vmatpush1.bf16.msra.mxu0 %v7527
      %7957 = vmatprep.subr.bf16.mxu0 %v7560
      %7958 = vmatpush1.bf16.msra.mxu0 %v7559
      %7959 = vmatprep.subr.bf16.mxu0 0
      %7960 = vmatpush1.bf16.msra.mxu0 0
      %7961 = vmatprep.subr.bf16.mxu0 0
      %7962 = vmatpush1.bf16.msra.mxu0 0
      %7963 = vmatprep.subr.bf16.mxu0 0
      %7964 = vmatpush1.bf16.msra.mxu0 0
      %7965 = vmatprep.subr.bf16.mxu0 0
      %7966 = vmatpush1.bf16.msra.mxu0 0
      %7967 = vmatprep.subr.bf16.mxu0 0
      %7968 = vmatpush1.bf16.msra.mxu0 0
      %7969 = vmatprep.subr.bf16.mxu0 0
      %7970 = vmatpush1.bf16.msra.mxu0 0
      %7971 = vmatprep.subr.bf16.mxu0 0
      %7972 = vmatpush1.bf16.msra.mxu0 0
      %7973 = vmatprep.subr.bf16.mxu0 0
      %7974 = vmatpush1.bf16.msra.mxu0 0
      %7975 = vmatprep.subr.bf16.mxu0 0
      %7976 = vmatpush1.bf16.msra.mxu0 0
      %7977 = vmatprep.subr.bf16.mxu0 0
      %7978 = vmatpush1.bf16.msra.mxu0 0
      %7979 = vmatprep.subr.bf16.mxu0 0
      %7980 = vmatpush1.bf16.msra.mxu0 0
      %7981 = vmatprep.subr.bf16.mxu0 0
      %7982 = vmatpush1.bf16.msra.mxu0 0
      %7983 = vmatprep.subr.bf16.mxu0 0
      %7984 = vmatpush1.bf16.msra.mxu0 0
      %7985 = vmatprep.subr.bf16.mxu0 0
      %7986 = vmatpush1.bf16.msra.mxu0 0
      %7987 = vmatprep.mubr.bf16.mxu0 0
      %7988 = vmatmul.mubr.bf16.gmra.mrb[0].mxu0 %v7652
      %v7989 = vpop.f32.mrb[0].mxu0
      %v7990 = vadd.f32 %v7594, %v7989
      %v7991 = vpop.f32.mrb[0].mxu0
      %v7992 = vadd.f32 %v7594, %v7991
      %v7993 = vpop.f32.mrb[0].mxu0
      %v7994 = vadd.f32 %v7599, %v7993
      %v7995 = vpop.f32.mrb[0].mxu0
      %v7996 = vadd.f32 %v7599, %v7995
      %7997 = vmatprep.mubr.bf16.mxu0 0
      %7998 = vmatmul.mubr.bf16.gmra.mrb[0].mxu0 %v7655
      %v7999 = vpop.f32.mrb[0].mxu0
      %v8000 = vadd.f32 %v7604, %v7999
      %v8001 = vpop.f32.mrb[0].mxu0
      %v8002 = vadd.f32 %v7604, %v8001
      %v8003 = vpop.f32.mrb[0].mxu0
      %v8004 = vadd.f32 %v7609, %v8003
      %v8005 = vpop.f32.mrb[0].mxu0
      %v8006 = vadd.f32 %v7609, %v8005
      %8007 = vmatprep.mubr.bf16.mxu0 0
      %8008 = vmatmul.mubr.bf16.gmra.mrb[0].mxu0 %v7658
      %v8009 = vpop.f32.mrb[0].mxu0
      %v8010 = vadd.f32 %v7614, %v8009
      %v8011 = vpop.f32.mrb[0].mxu0
      %v8012 = vadd.f32 %v7614, %v8011
      %v8013 = vpop.f32.mrb[0].mxu0
      %v8014 = vadd.f32 %v7619, %v8013
      %v8015 = vpop.f32.mrb[0].mxu0
      %v8016 = vadd.f32 %v7619, %v8015
      %8017 = vmatprep.mubr.bf16.mxu0 0
      %8018 = vmatmul.mubr.bf16.gmra.mrb[0].mxu0 %v7661
      %v8019 = vpop.f32.mrb[0].mxu0
      %v8020 = vadd.f32 %v7624, %v8019
      %v8021 = vpop.f32.mrb[0].mxu0
      %v8022 = vadd.f32 %v7624, %v8021
      %v8023 = vpop.f32.mrb[0].mxu0
      %v8024 = vadd.f32 %v7629, %v8023
      %v8025 = vpop.f32.mrb[0].mxu0
      %v8026 = vadd.f32 %v7629, %v8025
      %8027 = vdwg.mxu0
      %8028 = vmatprep.subr.bf16.mxu0 %v7530
      %8029 = vmatpush1.bf16.msra.mxu0 %v7529
      %8030 = vmatprep.subr.bf16.mxu0 %v7562
      %8031 = vmatpush1.bf16.msra.mxu0 %v7561
      %8032 = vmatprep.subr.bf16.mxu0 0
      %8033 = vmatpush1.bf16.msra.mxu0 0
      %8034 = vmatprep.subr.bf16.mxu0 0
      %8035 = vmatpush1.bf16.msra.mxu0 0
      %8036 = vmatprep.subr.bf16.mxu0 0
      %8037 = vmatpush1.bf16.msra.mxu0 0
      %8038 = vmatprep.subr.bf16.mxu0 0
      %8039 = vmatpush1.bf16.msra.mxu0 0
      %8040 = vmatprep.subr.bf16.mxu0 0
      %8041 = vmatpush1.bf16.msra.mxu0 0
      %8042 = vmatprep.subr.bf16.mxu0 0
      %8043 = vmatpush1.bf16.msra.mxu0 0
      %8044 = vmatprep.subr.bf16.mxu0 0
      %8045 = vmatpush1.bf16.msra.mxu0 0
      %8046 = vmatprep.subr.bf16.mxu0 0
      %8047 = vmatpush1.bf16.msra.mxu0 0
      %8048 = vmatprep.subr.bf16.mxu0 0
      %8049 = vmatpush1.bf16.msra.mxu0 0
      %8050 = vmatprep.subr.bf16.mxu0 0
      %8051 = vmatpush1.bf16.msra.mxu0 0
      %8052 = vmatprep.subr.bf16.mxu0 0
      %8053 = vmatpush1.bf16.msra.mxu0 0
      %8054 = vmatprep.subr.bf16.mxu0 0
      %8055 = vmatpush1.bf16.msra.mxu0 0
      %8056 = vmatprep.subr.bf16.mxu0 0
      %8057 = vmatpush1.bf16.msra.mxu0 0
      %8058 = vmatprep.subr.bf16.mxu0 0
      %8059 = vmatpush1.bf16.msra.mxu0 0
      %8060 = vmatprep.mubr.bf16.mxu0 0
      %8061 = vmatmul.mubr.bf16.gmra.mrb[0].mxu0 %v7652
      %v8062 = vpop.f32.mrb[0].mxu0
      %v8063 = vadd.f32 %v7594, %v8062
      %v8064 = vpop.f32.mrb[0].mxu0
      %v8065 = vadd.f32 %v7594, %v8064
      %v8066 = vpop.f32.mrb[0].mxu0
      %v8067 = vadd.f32 %v7599, %v8066
      %v8068 = vpop.f32.mrb[0].mxu0
      %v8069 = vadd.f32 %v7599, %v8068
      %8070 = vmatprep.mubr.bf16.mxu0 0
      %8071 = vmatmul.mubr.bf16.gmra.mrb[0].mxu0 %v7655
      %v8072 = vpop.f32.mrb[0].mxu0
      %v8073 = vadd.f32 %v7604, %v8072
      %v8074 = vpop.f32.mrb[0].mxu0
      %v8075 = vadd.f32 %v7604, %v8074
      %v8076 = vpop.f32.mrb[0].mxu0
      %v8077 = vadd.f32 %v7609, %v8076
      %v8078 = vpop.f32.mrb[0].mxu0
      %v8079 = vadd.f32 %v7609, %v8078
      %8080 = vmatprep.mubr.bf16.mxu0 0
      %8081 = vmatmul.mubr.bf16.gmra.mrb[0].mxu0 %v7658
      %v8082 = vpop.f32.mrb[0].mxu0
      %v8083 = vadd.f32 %v7614, %v8082
      %v8084 = vpop.f32.mrb[0].mxu0
      %v8085 = vadd.f32 %v7614, %v8084
      %v8086 = vpop.f32.mrb[0].mxu0
      %v8087 = vadd.f32 %v7619, %v8086
      %v8088 = vpop.f32.mrb[0].mxu0
      %v8089 = vadd.f32 %v7619, %v8088
      %8090 = vmatprep.mubr.bf16.mxu0 0
      %8091 = vmatmul.mubr.bf16.gmra.mrb[0].mxu0 %v7661
      %v8092 = vpop.f32.mrb[0].mxu0
      %v8093 = vadd.f32 %v7624, %v8092
      %v8094 = vpop.f32.mrb[0].mxu0
      %v8095 = vadd.f32 %v7624, %v8094
      %v8096 = vpop.f32.mrb[0].mxu0
      %v8097 = vadd.f32 %v7629, %v8096
      %v8098 = vpop.f32.mrb[0].mxu0
      %v8099 = vadd.f32 %v7629, %v8098
      %8100 = vdwg.mxu0
      %8101 = vmatprep.subr.bf16.mxu0 %v7532
      %8102 = vmatpush1.bf16.msra.mxu0 %v7531
      %8103 = vmatprep.subr.bf16.mxu0 %v7564
      %8104 = vmatpush1.bf16.msra.mxu0 %v7563
      %8105 = vmatprep.subr.bf16.mxu0 0
      %8106 = vmatpush1.bf16.msra.mxu0 0
      %8107 = vmatprep.subr.bf16.mxu0 0
      %8108 = vmatpush1.bf16.msra.mxu0 0
      %8109 = vmatprep.subr.bf16.mxu0 0
      %8110 = vmatpush1.bf16.msra.mxu0 0
      %8111 = vmatprep.subr.bf16.mxu0 0
      %8112 = vmatpush1.bf16.msra.mxu0 0
      %8113 = vmatprep.subr.bf16.mxu0 0
      %8114 = vmatpush1.bf16.msra.mxu0 0
      %8115 = vmatprep.subr.bf16.mxu0 0
      %8116 = vmatpush1.bf16.msra.mxu0 0
      %8117 = vmatprep.subr.bf16.mxu0 0
      %8118 = vmatpush1.bf16.msra.mxu0 0
      %8119 = vmatprep.subr.bf16.mxu0 0
      %8120 = vmatpush1.bf16.msra.mxu0 0
      %8121 = vmatprep.subr.bf16.mxu0 0
      %8122 = vmatpush1.bf16.msra.mxu0 0
      %8123 = vmatprep.subr.bf16.mxu0 0
      %8124 = vmatpush1.bf16.msra.mxu0 0
      %8125 = vmatprep.subr.bf16.mxu0 0
      %8126 = vmatpush1.bf16.msra.mxu0 0
      %8127 = vmatprep.subr.bf16.mxu0 0
      %8128 = vmatpush1.bf16.msra.mxu0 0
      %8129 = vmatprep.subr.bf16.mxu0 0
      %8130 = vmatpush1.bf16.msra.mxu0 0
      %8131 = vmatprep.subr.bf16.mxu0 0
      %8132 = vmatpush1.bf16.msra.mxu0 0
      %8133 = vmatprep.mubr.bf16.mxu0 0
      %8134 = vmatmul.mubr.bf16.gmra.mrb[0].mxu0 %v7652
      %v8135 = vpop.f32.mrb[0].mxu0
      %v8136 = vadd.f32 %v7594, %v8135
      %v8137 = vpop.f32.mrb[0].mxu0
      %v8138 = vadd.f32 %v7594, %v8137
      %v8139 = vpop.f32.mrb[0].mxu0
      %v8140 = vadd.f32 %v7599, %v8139
      %v8141 = vpop.f32.mrb[0].mxu0
      %v8142 = vadd.f32 %v7599, %v8141
      %8143 = vmatprep.mubr.bf16.mxu0 0
      %8144 = vmatmul.mubr.bf16.gmra.mrb[0].mxu0 %v7655
      %v8145 = vpop.f32.mrb[0].mxu0
      %v8146 = vadd.f32 %v7604, %v8145
      %v8147 = vpop.f32.mrb[0].mxu0
      %v8148 = vadd.f32 %v7604, %v8147
      %v8149 = vpop.f32.mrb[0].mxu0
      %v8150 = vadd.f32 %v7609, %v8149
      %v8151 = vpop.f32.mrb[0].mxu0
      %v8152 = vadd.f32 %v7609, %v8151
      %8153 = vmatprep.mubr.bf16.mxu0 0
      %8154 = vmatmul.mubr.bf16.gmra.mrb[0].mxu0 %v7658
      %v8155 = vpop.f32.mrb[0].mxu0
      %v8156 = vadd.f32 %v7614, %v8155
      %v8157 = vpop.f32.mrb[0].mxu0
      %v8158 = vadd.f32 %v7614, %v8157
      %v8159 = vpop.f32.mrb[0].mxu0
      %v8160 = vadd.f32 %v7619, %v8159
      %v8161 = vpop.f32.mrb[0].mxu0
      %v8162 = vadd.f32 %v7619, %v8161
      %8163 = vmatprep.mubr.bf16.mxu0 0
      %8164 = vmatmul.mubr.bf16.gmra.mrb[0].mxu0 %v7661
      %v8165 = vpop.f32.mrb[0].mxu0
      %v8166 = vadd.f32 %v7624, %v8165
      %v8167 = vpop.f32.mrb[0].mxu0
      %v8168 = vadd.f32 %v7624, %v8167
      %v8169 = vpop.f32.mrb[0].mxu0
      %v8170 = vadd.f32 %v7629, %v8169
      %v8171 = vpop.f32.mrb[0].mxu0
      %v8172 = vadd.f32 %v7629, %v8171
      %8173 = vdwg.mxu0
      %8174 = vmatprep.subr.bf16.mxu0 %v7534
      %8175 = vmatpush1.bf16.msra.mxu0 %v7533
      %8176 = vmatprep.subr.bf16.mxu0 %v7566
      %8177 = vmatpush1.bf16.msra.mxu0 %v7565
      %8178 = vmatprep.subr.bf16.mxu0 0
      %8179 = vmatpush1.bf16.msra.mxu0 0
      %8180 = vmatprep.subr.bf16.mxu0 0
      %8181 = vmatpush1.bf16.msra.mxu0 0
      %8182 = vmatprep.subr.bf16.mxu0 0
      %8183 = vmatpush1.bf16.msra.mxu0 0
      %8184 = vmatprep.subr.bf16.mxu0 0
      %8185 = vmatpush1.bf16.msra.mxu0 0
      %8186 = vmatprep.subr.bf16.mxu0 0
      %8187 = vmatpush1.bf16.msra.mxu0 0
      %8188 = vmatprep.subr.bf16.mxu0 0
      %8189 = vmatpush1.bf16.msra.mxu0 0
      %8190 = vmatprep.subr.bf16.mxu0 0
      %8191 = vmatpush1.bf16.msra.mxu0 0
      %8192 = vmatprep.subr.bf16.mxu0 0
      %8193 = vmatpush1.bf16.msra.mxu0 0
      %8194 = vmatprep.subr.bf16.mxu0 0
      %8195 = vmatpush1.bf16.msra.mxu0 0
      %8196 = vmatprep.subr.bf16.mxu0 0
      %8197 = vmatpush1.bf16.msra.mxu0 0
      %8198 = vmatprep.subr.bf16.mxu0 0
      %8199 = vmatpush1.bf16.msra.mxu0 0
      %8200 = vmatprep.subr.bf16.mxu0 0
      %8201 = vmatpush1.bf16.msra.mxu0 0
      %8202 = vmatprep.subr.bf16.mxu0 0
      %8203 = vmatpush1.bf16.msra.mxu0 0
      %8204 = vmatprep.subr.bf16.mxu0 0
      %8205 = vmatpush1.bf16.msra.mxu0 0
      %8206 = vmatprep.mubr.bf16.mxu0 0
      %8207 = vmatmul.mubr.bf16.gmra.mrb[0].mxu0 %v7652
      %v8208 = vpop.f32.mrb[0].mxu0
      %v8209 = vadd.f32 %v7594, %v8208
      %v8210 = vpop.f32.mrb[0].mxu0
      %v8211 = vadd.f32 %v7594, %v8210
      %v8212 = vpop.f32.mrb[0].mxu0
      %v8213 = vadd.f32 %v7599, %v8212
      %v8214 = vpop.f32.mrb[0].mxu0
      %v8215 = vadd.f32 %v7599, %v8214
      %8216 = vmatprep.mubr.bf16.mxu0 0
      %8217 = vmatmul.mubr.bf16.gmra.mrb[0].mxu0 %v7655
      %v8218 = vpop.f32.mrb[0].mxu0
      %v8219 = vadd.f32 %v7604, %v8218
      %v8220 = vpop.f32.mrb[0].mxu0
      %v8221 = vadd.f32 %v7604, %v8220
      %v8222 = vpop.f32.mrb[0].mxu0
      %v8223 = vadd.f32 %v7609, %v8222
      %v8224 = vpop.f32.mrb[0].mxu0
      %v8225 = vadd.f32 %v7609, %v8224
      %8226 = vmatprep.mubr.bf16.mxu0 0
      %8227 = vmatmul.mubr.bf16.gmra.mrb[0].mxu0 %v7658
      %v8228 = vpop.f32.mrb[0].mxu0
      %v8229 = vadd.f32 %v7614, %v8228
      %v8230 = vpop.f32.mrb[0].mxu0
      %v8231 = vadd.f32 %v7614, %v8230
      %v8232 = vpop.f32.mrb[0].mxu0
      %v8233 = vadd.f32 %v7619, %v8232
      %v8234 = vpop.f32.mrb[0].mxu0
      %v8235 = vadd.f32 %v7619, %v8234
      %8236 = vmatprep.mubr.bf16.mxu0 0
      %8237 = vmatmul.mubr.bf16.gmra.mrb[0].mxu0 %v7661
      %v8238 = vpop.f32.mrb[0].mxu0
      %v8239 = vadd.f32 %v7624, %v8238
      %v8240 = vpop.f32.mrb[0].mxu0
      %v8241 = vadd.f32 %v7624, %v8240
      %v8242 = vpop.f32.mrb[0].mxu0
      %v8243 = vadd.f32 %v7629, %v8242
      %v8244 = vpop.f32.mrb[0].mxu0
      %v8245 = vadd.f32 %v7629, %v8244
      %8246 = vdwg.mxu0
      %8247 = vmatprep.subr.bf16.mxu0 %v7536
      %8248 = vmatpush1.bf16.msra.mxu0 %v7535
      %8249 = vmatprep.subr.bf16.mxu0 %v7568
      %8250 = vmatpush1.bf16.msra.mxu0 %v7567
      %8251 = vmatprep.subr.bf16.mxu0 0
      %8252 = vmatpush1.bf16.msra.mxu0 0
      %8253 = vmatprep.subr.bf16.mxu0 0
      %8254 = vmatpush1.bf16.msra.mxu0 0
      %8255 = vmatprep.subr.bf16.mxu0 0
      %8256 = vmatpush1.bf16.msra.mxu0 0
      %8257 = vmatprep.subr.bf16.mxu0 0
      %8258 = vmatpush1.bf16.msra.mxu0 0
      %8259 = vmatprep.subr.bf16.mxu0 0
      %8260 = vmatpush1.bf16.msra.mxu0 0
      %8261 = vmatprep.subr.bf16.mxu0 0
      %8262 = vmatpush1.bf16.msra.mxu0 0
      %8263 = vmatprep.subr.bf16.mxu0 0
      %8264 = vmatpush1.bf16.msra.mxu0 0
      %8265 = vmatprep.subr.bf16.mxu0 0
      %8266 = vmatpush1.bf16.msra.mxu0 0
      %8267 = vmatprep.subr.bf16.mxu0 0
      %8268 = vmatpush1.bf16.msra.mxu0 0
      %8269 = vmatprep.subr.bf16.mxu0 0
      %8270 = vmatpush1.bf16.msra.mxu0 0
      %8271 = vmatprep.subr.bf16.mxu0 0
      %8272 = vmatpush1.bf16.msra.mxu0 0
      %8273 = vmatprep.subr.bf16.mxu0 0
      %8274 = vmatpush1.bf16.msra.mxu0 0
      %8275 = vmatprep.subr.bf16.mxu0 0
      %8276 = vmatpush1.bf16.msra.mxu0 0
      %8277 = vmatprep.subr.bf16.mxu0 0
      %8278 = vmatpush1.bf16.msra.mxu0 0
      %8279 = vmatprep.mubr.bf16.mxu0 0
      %8280 = vmatmul.mubr.bf16.gmra.mrb[0].mxu0 %v7652
      %v8281 = vpop.f32.mrb[0].mxu0
      %v8282 = vadd.f32 %v7594, %v8281
      %v8283 = vpop.f32.mrb[0].mxu0
      %v8284 = vadd.f32 %v7594, %v8283
      %v8285 = vpop.f32.mrb[0].mxu0
      %v8286 = vadd.f32 %v7599, %v8285
      %v8287 = vpop.f32.mrb[0].mxu0
      %v8288 = vadd.f32 %v7599, %v8287
      %8289 = vmatprep.mubr.bf16.mxu0 0
      %8290 = vmatmul.mubr.bf16.gmra.mrb[0].mxu0 %v7655
      %v8291 = vpop.f32.mrb[0].mxu0
      %v8292 = vadd.f32 %v7604, %v8291
      %v8293 = vpop.f32.mrb[0].mxu0
      %v8294 = vadd.f32 %v7604, %v8293
      %v8295 = vpop.f32.mrb[0].mxu0
      %v8296 = vadd.f32 %v7609, %v8295
      %v8297 = vpop.f32.mrb[0].mxu0
      %v8298 = vadd.f32 %v7609, %v8297
      %8299 = vmatprep.mubr.bf16.mxu0 0
      %8300 = vmatmul.mubr.bf16.gmra.mrb[0].mxu0 %v7658
      %v8301 = vpop.f32.mrb[0].mxu0
      %v8302 = vadd.f32 %v7614, %v8301
      %v8303 = vpop.f32.mrb[0].mxu0
      %v8304 = vadd.f32 %v7614, %v8303
      %v8305 = vpop.f32.mrb[0].mxu0
      %v8306 = vadd.f32 %v7619, %v8305
      %v8307 = vpop.f32.mrb[0].mxu0
      %v8308 = vadd.f32 %v7619, %v8307
      %8309 = vmatprep.mubr.bf16.mxu0 0
      %8310 = vmatmul.mubr.bf16.gmra.mrb[0].mxu0 %v7661
      %v8311 = vpop.f32.mrb[0].mxu0
      %v8312 = vadd.f32 %v7624, %v8311
      %v8313 = vpop.f32.mrb[0].mxu0
      %v8314 = vadd.f32 %v7624, %v8313
      %v8315 = vpop.f32.mrb[0].mxu0
      %v8316 = vadd.f32 %v7629, %v8315
      %v8317 = vpop.f32.mrb[0].mxu0
      %v8318 = vadd.f32 %v7629, %v8317
      %8319 = vdwg.mxu0
      %8320 = vmatprep.subr.bf16.mxu0 %v7538
      %8321 = vmatpush1.bf16.msra.mxu0 %v7537
      %8322 = vmatprep.subr.bf16.mxu0 %v7570
      %8323 = vmatpush1.bf16.msra.mxu0 %v7569
      %8324 = vmatprep.subr.bf16.mxu0 0
      %8325 = vmatpush1.bf16.msra.mxu0 0
      %8326 = vmatprep.subr.bf16.mxu0 0
      %8327 = vmatpush1.bf16.msra.mxu0 0
      %8328 = vmatprep.subr.bf16.mxu0 0
      %8329 = vmatpush1.bf16.msra.mxu0 0
      %8330 = vmatprep.subr.bf16.mxu0 0
      %8331 = vmatpush1.bf16.msra.mxu0 0
      %8332 = vmatprep.subr.bf16.mxu0 0
      %8333 = vmatpush1.bf16.msra.mxu0 0
      %8334 = vmatprep.subr.bf16.mxu0 0
      %8335 = vmatpush1.bf16.msra.mxu0 0
      %8336 = vmatprep.subr.bf16.mxu0 0
      %8337 = vmatpush1.bf16.msra.mxu0 0
      %8338 = vmatprep.subr.bf16.mxu0 0
      %8339 = vmatpush1.bf16.msra.mxu0 0
      %8340 = vmatprep.subr.bf16.mxu0 0
      %8341 = vmatpush1.bf16.msra.mxu0 0
      %8342 = vmatprep.subr.bf16.mxu0 0
      %8343 = vmatpush1.bf16.msra.mxu0 0
      %8344 = vmatprep.subr.bf16.mxu0 0
      %8345 = vmatpush1.bf16.msra.mxu0 0
      %8346 = vmatprep.subr.bf16.mxu0 0
      %8347 = vmatpush1.bf16.msra.mxu0 0
      %8348 = vmatprep.subr.bf16.mxu0 0
      %8349 = vmatpush1.bf16.msra.mxu0 0
      %8350 = vmatprep.subr.bf16.mxu0 0
      %8351 = vmatpush1.bf16.msra.mxu0 0
      %8352 = vmatprep.mubr.bf16.mxu0 0
      %8353 = vmatmul.mubr.bf16.gmra.mrb[0].mxu0 %v7652
      %v8354 = vpop.f32.mrb[0].mxu0
      %v8355 = vadd.f32 %v7594, %v8354
      %v8356 = vpop.f32.mrb[0].mxu0
      %v8357 = vadd.f32 %v7594, %v8356
      %v8358 = vpop.f32.mrb[0].mxu0
      %v8359 = vadd.f32 %v7599, %v8358
      %v8360 = vpop.f32.mrb[0].mxu0
      %v8361 = vadd.f32 %v7599, %v8360
      %8362 = vmatprep.mubr.bf16.mxu0 0
      %8363 = vmatmul.mubr.bf16.gmra.mrb[0].mxu0 %v7655
      %v8364 = vpop.f32.mrb[0].mxu0
      %v8365 = vadd.f32 %v7604, %v8364
      %v8366 = vpop.f32.mrb[0].mxu0
      %v8367 = vadd.f32 %v7604, %v8366
      %v8368 = vpop.f32.mrb[0].mxu0
      %v8369 = vadd.f32 %v7609, %v8368
      %v8370 = vpop.f32.mrb[0].mxu0
      %v8371 = vadd.f32 %v7609, %v8370
      %8372 = vmatprep.mubr.bf16.mxu0 0
      %8373 = vmatmul.mubr.bf16.gmra.mrb[0].mxu0 %v7658
      %v8374 = vpop.f32.mrb[0].mxu0
      %v8375 = vadd.f32 %v7614, %v8374
      %v8376 = vpop.f32.mrb[0].mxu0
      %v8377 = vadd.f32 %v7614, %v8376
      %v8378 = vpop.f32.mrb[0].mxu0
      %v8379 = vadd.f32 %v7619, %v8378
      %v8380 = vpop.f32.mrb[0].mxu0
      %v8381 = vadd.f32 %v7619, %v8380
      %8382 = vmatprep.mubr.bf16.mxu0 0
      %8383 = vmatmul.mubr.bf16.gmra.mrb[0].mxu0 %v7661
      %v8384 = vpop.f32.mrb[0].mxu0
      %v8385 = vadd.f32 %v7624, %v8384
      %v8386 = vpop.f32.mrb[0].mxu0
      %v8387 = vadd.f32 %v7624, %v8386
      %v8388 = vpop.f32.mrb[0].mxu0
      %v8389 = vadd.f32 %v7629, %v8388
      %v8390 = vpop.f32.mrb[0].mxu0
      %v8391 = vadd.f32 %v7629, %v8390
      %8392 = vdwg.mxu0
      %8393 = vmatprep.subr.bf16.mxu0 %v7540
      %8394 = vmatpush1.bf16.msra.mxu0 %v7539
      %8395 = vmatprep.subr.bf16.mxu0 %v7572
      %8396 = vmatpush1.bf16.msra.mxu0 %v7571
      %8397 = vmatprep.subr.bf16.mxu0 0
      %8398 = vmatpush1.bf16.msra.mxu0 0
      %8399 = vmatprep.subr.bf16.mxu0 0
      %8400 = vmatpush1.bf16.msra.mxu0 0
      %8401 = vmatprep.subr.bf16.mxu0 0
      %8402 = vmatpush1.bf16.msra.mxu0 0
      %8403 = vmatprep.subr.bf16.mxu0 0
      %8404 = vmatpush1.bf16.msra.mxu0 0
      %8405 = vmatprep.subr.bf16.mxu0 0
      %8406 = vmatpush1.bf16.msra.mxu0 0
      %8407 = vmatprep.subr.bf16.mxu0 0
      %8408 = vmatpush1.bf16.msra.mxu0 0
      %8409 = vmatprep.subr.bf16.mxu0 0
      %8410 = vmatpush1.bf16.msra.mxu0 0
      %8411 = vmatprep.subr.bf16.mxu0 0
      %8412 = vmatpush1.bf16.msra.mxu0 0
      %8413 = vmatprep.subr.bf16.mxu0 0
      %8414 = vmatpush1.bf16.msra.mxu0 0
      %8415 = vmatprep.subr.bf16.mxu0 0
      %8416 = vmatpush1.bf16.msra.mxu0 0
      %8417 = vmatprep.subr.bf16.mxu0 0
      %8418 = vmatpush1.bf16.msra.mxu0 0
      %8419 = vmatprep.subr.bf16.mxu0 0
      %8420 = vmatpush1.bf16.msra.mxu0 0
      %8421 = vmatprep.subr.bf16.mxu0 0
      %8422 = vmatpush1.bf16.msra.mxu0 0
      %8423 = vmatprep.subr.bf16.mxu0 0
      %8424 = vmatpush1.bf16.msra.mxu0 0
      %8425 = vmatprep.mubr.bf16.mxu0 0
      %8426 = vmatmul.mubr.bf16.gmra.mrb[0].mxu0 %v7652
      %v8427 = vpop.f32.mrb[0].mxu0
      %v8428 = vadd.f32 %v7594, %v8427
      %v8429 = vpop.f32.mrb[0].mxu0
      %v8430 = vadd.f32 %v7594, %v8429
      %v8431 = vpop.f32.mrb[0].mxu0
      %v8432 = vadd.f32 %v7599, %v8431
      %v8433 = vpop.f32.mrb[0].mxu0
      %v8434 = vadd.f32 %v7599, %v8433
      %8435 = vmatprep.mubr.bf16.mxu0 0
      %8436 = vmatmul.mubr.bf16.gmra.mrb[0].mxu0 %v7655
      %v8437 = vpop.f32.mrb[0].mxu0
      %v8438 = vadd.f32 %v7604, %v8437
      %v8439 = vpop.f32.mrb[0].mxu0
      %v8440 = vadd.f32 %v7604, %v8439
      %v8441 = vpop.f32.mrb[0].mxu0
      %v8442 = vadd.f32 %v7609, %v8441
      %v8443 = vpop.f32.mrb[0].mxu0
      %v8444 = vadd.f32 %v7609, %v8443
      %8445 = vmatprep.mubr.bf16.mxu0 0
      %8446 = vmatmul.mubr.bf16.gmra.mrb[0].mxu0 %v7658
      %v8447 = vpop.f32.mrb[0].mxu0
      %v8448 = vadd.f32 %v7614, %v8447
      %v8449 = vpop.f32.mrb[0].mxu0
      %v8450 = vadd.f32 %v7614, %v8449
      %v8451 = vpop.f32.mrb[0].mxu0
      %v8452 = vadd.f32 %v7619, %v8451
      %v8453 = vpop.f32.mrb[0].mxu0
      %v8454 = vadd.f32 %v7619, %v8453
      %8455 = vmatprep.mubr.bf16.mxu0 0
      %8456 = vmatmul.mubr.bf16.gmra.mrb[0].mxu0 %v7661
      %v8457 = vpop.f32.mrb[0].mxu0
      %v8458 = vadd.f32 %v7624, %v8457
      %v8459 = vpop.f32.mrb[0].mxu0
      %v8460 = vadd.f32 %v7624, %v8459
      %v8461 = vpop.f32.mrb[0].mxu0
      %v8462 = vadd.f32 %v7629, %v8461
      %v8463 = vpop.f32.mrb[0].mxu0
      %v8464 = vadd.f32 %v7629, %v8463
      %8465 = vdwg.mxu0
      %8466 = vmatprep.subr.bf16.mxu0 %v7542
      %8467 = vmatpush1.bf16.msra.mxu0 %v7541
      %8468 = vmatprep.subr.bf16.mxu0 %v7574
      %8469 = vmatpush1.bf16.msra.mxu0 %v7573
      %8470 = vmatprep.subr.bf16.mxu0 0
      %8471 = vmatpush1.bf16.msra.mxu0 0
      %8472 = vmatprep.subr.bf16.mxu0 0
      %8473 = vmatpush1.bf16.msra.mxu0 0
      %8474 = vmatprep.subr.bf16.mxu0 0
      %8475 = vmatpush1.bf16.msra.mxu0 0
      %8476 = vmatprep.subr.bf16.mxu0 0
      %8477 = vmatpush1.bf16.msra.mxu0 0
      %8478 = vmatprep.subr.bf16.mxu0 0
      %8479 = vmatpush1.bf16.msra.mxu0 0
      %8480 = vmatprep.subr.bf16.mxu0 0
      %8481 = vmatpush1.bf16.msra.mxu0 0
      %8482 = vmatprep.subr.bf16.mxu0 0
      %8483 = vmatpush1.bf16.msra.mxu0 0
      %8484 = vmatprep.subr.bf16.mxu0 0
      %8485 = vmatpush1.bf16.msra.mxu0 0
      %8486 = vmatprep.subr.bf16.mxu0 0
      %8487 = vmatpush1.bf16.msra.mxu0 0
      %8488 = vmatprep.subr.bf16.mxu0 0
      %8489 = vmatpush1.bf16.msra.mxu0 0
      %8490 = vmatprep.subr.bf16.mxu0 0
      %8491 = vmatpush1.bf16.msra.mxu0 0
      %8492 = vmatprep.subr.bf16.mxu0 0
      %8493 = vmatpush1.bf16.msra.mxu0 0
      %8494 = vmatprep.subr.bf16.mxu0 0
      %8495 = vmatpush1.bf16.msra.mxu0 0
      %8496 = vmatprep.subr.bf16.mxu0 0
      %8497 = vmatpush1.bf16.msra.mxu0 0
      %8498 = vmatprep.mubr.bf16.mxu0 0
      %8499 = vmatmul.mubr.bf16.gmra.mrb[0].mxu0 %v7652
      %v8500 = vpop.f32.mrb[0].mxu0
      %v8501 = vadd.f32 %v7594, %v8500
      %v8502 = vpop.f32.mrb[0].mxu0
      %v8503 = vadd.f32 %v7594, %v8502
      %v8504 = vpop.f32.mrb[0].mxu0
      %v8505 = vadd.f32 %v7599, %v8504
      %v8506 = vpop.f32.mrb[0].mxu0
      %v8507 = vadd.f32 %v7599, %v8506
      %8508 = vmatprep.mubr.bf16.mxu0 0
      %8509 = vmatmul.mubr.bf16.gmra.mrb[0].mxu0 %v7655
      %v8510 = vpop.f32.mrb[0].mxu0
      %v8511 = vadd.f32 %v7604, %v8510
      %v8512 = vpop.f32.mrb[0].mxu0
      %v8513 = vadd.f32 %v7604, %v8512
      %v8514 = vpop.f32.mrb[0].mxu0
      %v8515 = vadd.f32 %v7609, %v8514
      %v8516 = vpop.f32.mrb[0].mxu0
      %v8517 = vadd.f32 %v7609, %v8516
      %8518 = vmatprep.mubr.bf16.mxu0 0
      %8519 = vmatmul.mubr.bf16.gmra.mrb[0].mxu0 %v7658
      %v8520 = vpop.f32.mrb[0].mxu0
      %v8521 = vadd.f32 %v7614, %v8520
      %v8522 = vpop.f32.mrb[0].mxu0
      %v8523 = vadd.f32 %v7614, %v8522
      %v8524 = vpop.f32.mrb[0].mxu0
      %v8525 = vadd.f32 %v7619, %v8524
      %v8526 = vpop.f32.mrb[0].mxu0
      %v8527 = vadd.f32 %v7619, %v8526
      %8528 = vmatprep.mubr.bf16.mxu0 0
      %8529 = vmatmul.mubr.bf16.gmra.mrb[0].mxu0 %v7661
      %v8530 = vpop.f32.mrb[0].mxu0
      %v8531 = vadd.f32 %v7624, %v8530
      %v8532 = vpop.f32.mrb[0].mxu0
      %v8533 = vadd.f32 %v7624, %v8532
      %v8534 = vpop.f32.mrb[0].mxu0
      %v8535 = vadd.f32 %v7629, %v8534
      %v8536 = vpop.f32.mrb[0].mxu0
      %v8537 = vadd.f32 %v7629, %v8536
      %8538 = vdwg.mxu0
      %8539 = vmatprep.subr.bf16.mxu0 %v7544
      %8540 = vmatpush1.bf16.msra.mxu0 %v7543
      %8541 = vmatprep.subr.bf16.mxu0 %v7576
      %8542 = vmatpush1.bf16.msra.mxu0 %v7575
      %8543 = vmatprep.subr.bf16.mxu0 0
      %8544 = vmatpush1.bf16.msra.mxu0 0
      %8545 = vmatprep.subr.bf16.mxu0 0
      %8546 = vmatpush1.bf16.msra.mxu0 0
      %8547 = vmatprep.subr.bf16.mxu0 0
      %8548 = vmatpush1.bf16.msra.mxu0 0
      %8549 = vmatprep.subr.bf16.mxu0 0
      %8550 = vmatpush1.bf16.msra.mxu0 0
      %8551 = vmatprep.subr.bf16.mxu0 0
      %8552 = vmatpush1.bf16.msra.mxu0 0
      %8553 = vmatprep.subr.bf16.mxu0 0
      %8554 = vmatpush1.bf16.msra.mxu0 0
      %8555 = vmatprep.subr.bf16.mxu0 0
      %8556 = vmatpush1.bf16.msra.mxu0 0
      %8557 = vmatprep.subr.bf16.mxu0 0
      %8558 = vmatpush1.bf16.msra.mxu0 0
      %8559 = vmatprep.subr.bf16.mxu0 0
      %8560 = vmatpush1.bf16.msra.mxu0 0
      %8561 = vmatprep.subr.bf16.mxu0 0
      %8562 = vmatpush1.bf16.msra.mxu0 0
      %8563 = vmatprep.subr.bf16.mxu0 0
      %8564 = vmatpush1.bf16.msra.mxu0 0
      %8565 = vmatprep.subr.bf16.mxu0 0
      %8566 = vmatpush1.bf16.msra.mxu0 0
      %8567 = vmatprep.subr.bf16.mxu0 0
      %8568 = vmatpush1.bf16.msra.mxu0 0
      %8569 = vmatprep.subr.bf16.mxu0 0
      %8570 = vmatpush1.bf16.msra.mxu0 0
      %8571 = vmatprep.mubr.bf16.mxu0 0
      %8572 = vmatmul.mubr.bf16.gmra.mrb[0].mxu0 %v7652
      %v8573 = vpop.f32.mrb[0].mxu0
      %v8574 = vadd.f32 %v7594, %v8573
      %v8575 = vpop.f32.mrb[0].mxu0
      %v8576 = vadd.f32 %v7594, %v8575
      %v8577 = vpop.f32.mrb[0].mxu0
      %v8578 = vadd.f32 %v7599, %v8577
      %v8579 = vpop.f32.mrb[0].mxu0
      %v8580 = vadd.f32 %v7599, %v8579
      %8581 = vmatprep.mubr.bf16.mxu0 0
      %8582 = vmatmul.mubr.bf16.gmra.mrb[0].mxu0 %v7655
      %v8583 = vpop.f32.mrb[0].mxu0
      %v8584 = vadd.f32 %v7604, %v8583
      %v8585 = vpop.f32.mrb[0].mxu0
      %v8586 = vadd.f32 %v7604, %v8585
      %v8587 = vpop.f32.mrb[0].mxu0
      %v8588 = vadd.f32 %v7609, %v8587
      %v8589 = vpop.f32.mrb[0].mxu0
      %v8590 = vadd.f32 %v7609, %v8589
      %8591 = vmatprep.mubr.bf16.mxu0 0
      %8592 = vmatmul.mubr.bf16.gmra.mrb[0].mxu0 %v7658
      %v8593 = vpop.f32.mrb[0].mxu0
      %v8594 = vadd.f32 %v7614, %v8593
      %v8595 = vpop.f32.mrb[0].mxu0
      %v8596 = vadd.f32 %v7614, %v8595
      %v8597 = vpop.f32.mrb[0].mxu0
      %v8598 = vadd.f32 %v7619, %v8597
      %v8599 = vpop.f32.mrb[0].mxu0
      %v8600 = vadd.f32 %v7619, %v8599
      %8601 = vmatprep.mubr.bf16.mxu0 0
      %8602 = vmatmul.mubr.bf16.gmra.mrb[0].mxu0 %v7661
      %v8603 = vpop.f32.mrb[0].mxu0
      %v8604 = vadd.f32 %v7624, %v8603
      %v8605 = vpop.f32.mrb[0].mxu0
      %v8606 = vadd.f32 %v7624, %v8605
      %v8607 = vpop.f32.mrb[0].mxu0
      %v8608 = vadd.f32 %v7629, %v8607
      %v8609 = vpop.f32.mrb[0].mxu0
      %v8610 = vadd.f32 %v7629, %v8609
      %8611 = vdwg.mxu0
      %8612 = vmatprep.subr.bf16.mxu0 %v7546
      %8613 = vmatpush1.bf16.msra.mxu0 %v7545
      %8614 = vmatprep.subr.bf16.mxu0 %v7578
      %8615 = vmatpush1.bf16.msra.mxu0 %v7577
      %8616 = vmatprep.subr.bf16.mxu0 0
      %8617 = vmatpush1.bf16.msra.mxu0 0
      %8618 = vmatprep.subr.bf16.mxu0 0
      %8619 = vmatpush1.bf16.msra.mxu0 0
      %8620 = vmatprep.subr.bf16.mxu0 0
      %8621 = vmatpush1.bf16.msra.mxu0 0
      %8622 = vmatprep.subr.bf16.mxu0 0
      %8623 = vmatpush1.bf16.msra.mxu0 0
      %8624 = vmatprep.subr.bf16.mxu0 0
      %8625 = vmatpush1.bf16.msra.mxu0 0
      %8626 = vmatprep.subr.bf16.mxu0 0
      %8627 = vmatpush1.bf16.msra.mxu0 0
      %8628 = vmatprep.subr.bf16.mxu0 0
      %8629 = vmatpush1.bf16.msra.mxu0 0
      %8630 = vmatprep.subr.bf16.mxu0 0
      %8631 = vmatpush1.bf16.msra.mxu0 0
      %8632 = vmatprep.subr.bf16.mxu0 0
      %8633 = vmatpush1.bf16.msra.mxu0 0
      %8634 = vmatprep.subr.bf16.mxu0 0
      %8635 = vmatpush1.bf16.msra.mxu0 0
      %8636 = vmatprep.subr.bf16.mxu0 0
      %8637 = vmatpush1.bf16.msra.mxu0 0
      %8638 = vmatprep.subr.bf16.mxu0 0
      %8639 = vmatpush1.bf16.msra.mxu0 0
      %8640 = vmatprep.subr.bf16.mxu0 0
      %8641 = vmatpush1.bf16.msra.mxu0 0
      %8642 = vmatprep.subr.bf16.mxu0 0
      %8643 = vmatpush1.bf16.msra.mxu0 0
      %8644 = vmatprep.mubr.bf16.mxu0 0
      %8645 = vmatmul.mubr.bf16.gmra.mrb[0].mxu0 %v7652
      %v8646 = vpop.f32.mrb[0].mxu0
      %v8647 = vadd.f32 %v7594, %v8646
      %v8648 = vpop.f32.mrb[0].mxu0
      %v8649 = vadd.f32 %v7594, %v8648
      %v8650 = vpop.f32.mrb[0].mxu0
      %v8651 = vadd.f32 %v7599, %v8650
      %v8652 = vpop.f32.mrb[0].mxu0
      %v8653 = vadd.f32 %v7599, %v8652
      %8654 = vmatprep.mubr.bf16.mxu0 0
      %8655 = vmatmul.mubr.bf16.gmra.mrb[0].mxu0 %v7655
      %v8656 = vpop.f32.mrb[0].mxu0
      %v8657 = vadd.f32 %v7604, %v8656
      %v8658 = vpop.f32.mrb[0].mxu0
      %v8659 = vadd.f32 %v7604, %v8658
      %v8660 = vpop.f32.mrb[0].mxu0
      %v8661 = vadd.f32 %v7609, %v8660
      %v8662 = vpop.f32.mrb[0].mxu0
      %v8663 = vadd.f32 %v7609, %v8662
      %8664 = vmatprep.mubr.bf16.mxu0 0
      %8665 = vmatmul.mubr.bf16.gmra.mrb[0].mxu0 %v7658
      %v8666 = vpop.f32.mrb[0].mxu0
      %v8667 = vadd.f32 %v7614, %v8666
      %v8668 = vpop.f32.mrb[0].mxu0
      %v8669 = vadd.f32 %v7614, %v8668
      %v8670 = vpop.f32.mrb[0].mxu0
      %v8671 = vadd.f32 %v7619, %v8670
      %v8672 = vpop.f32.mrb[0].mxu0
      %v8673 = vadd.f32 %v7619, %v8672
      %8674 = vmatprep.mubr.bf16.mxu0 0
      %8675 = vmatmul.mubr.bf16.gmra.mrb[0].mxu0 %v7661
      %v8676 = vpop.f32.mrb[0].mxu0
      %v8677 = vadd.f32 %v7624, %v8676
      %v8678 = vpop.f32.mrb[0].mxu0
      %v8679 = vadd.f32 %v7624, %v8678
      %v8680 = vpop.f32.mrb[0].mxu0
      %v8681 = vadd.f32 %v7629, %v8680
      %v8682 = vpop.f32.mrb[0].mxu0
      %v8683 = vadd.f32 %v7629, %v8682
      %8684 = vdwg.mxu0
      %8685 = vmatprep.subr.bf16.mxu0 %v7548
      %8686 = vmatpush1.bf16.msra.mxu0 %v7547
      %8687 = vmatprep.subr.bf16.mxu0 %v7580
      %8688 = vmatpush1.bf16.msra.mxu0 %v7579
      %8689 = vmatprep.subr.bf16.mxu0 0
      %8690 = vmatpush1.bf16.msra.mxu0 0
      %8691 = vmatprep.subr.bf16.mxu0 0
      %8692 = vmatpush1.bf16.msra.mxu0 0
      %8693 = vmatprep.subr.bf16.mxu0 0
      %8694 = vmatpush1.bf16.msra.mxu0 0
      %8695 = vmatprep.subr.bf16.mxu0 0
      %8696 = vmatpush1.bf16.msra.mxu0 0
      %8697 = vmatprep.subr.bf16.mxu0 0
      %8698 = vmatpush1.bf16.msra.mxu0 0
      %8699 = vmatprep.subr.bf16.mxu0 0
      %8700 = vmatpush1.bf16.msra.mxu0 0
      %8701 = vmatprep.subr.bf16.mxu0 0
      %8702 = vmatpush1.bf16.msra.mxu0 0
      %8703 = vmatprep.subr.bf16.mxu0 0
      %8704 = vmatpush1.bf16.msra.mxu0 0
      %8705 = vmatprep.subr.bf16.mxu0 0
      %8706 = vmatpush1.bf16.msra.mxu0 0
      %8707 = vmatprep.subr.bf16.mxu0 0
      %8708 = vmatpush1.bf16.msra.mxu0 0
      %8709 = vmatprep.subr.bf16.mxu0 0
      %8710 = vmatpush1.bf16.msra.mxu0 0
      %8711 = vmatprep.subr.bf16.mxu0 0
      %8712 = vmatpush1.bf16.msra.mxu0 0
      %8713 = vmatprep.subr.bf16.mxu0 0
      %8714 = vmatpush1.bf16.msra.mxu0 0
      %8715 = vmatprep.subr.bf16.mxu0 0
      %8716 = vmatpush1.bf16.msra.mxu0 0
      %8717 = vmatprep.mubr.bf16.mxu0 0
      %8718 = vmatmul.mubr.bf16.gmra.mrb[0].mxu0 %v7652
      %v8719 = vpop.f32.mrb[0].mxu0
      %v8720 = vadd.f32 %v7594, %v8719
      %v8721 = vpop.f32.mrb[0].mxu0
      %v8722 = vadd.f32 %v7594, %v8721
      %v8723 = vpop.f32.mrb[0].mxu0
      %v8724 = vadd.f32 %v7599, %v8723
      %v8725 = vpop.f32.mrb[0].mxu0
      %v8726 = vadd.f32 %v7599, %v8725
      %8727 = vmatprep.mubr.bf16.mxu0 0
      %8728 = vmatmul.mubr.bf16.gmra.mrb[0].mxu0 %v7655
      %v8729 = vpop.f32.mrb[0].mxu0
      %v8730 = vadd.f32 %v7604, %v8729
      %v8731 = vpop.f32.mrb[0].mxu0
      %v8732 = vadd.f32 %v7604, %v8731
      %v8733 = vpop.f32.mrb[0].mxu0
      %v8734 = vadd.f32 %v7609, %v8733
      %v8735 = vpop.f32.mrb[0].mxu0
      %v8736 = vadd.f32 %v7609, %v8735
      %8737 = vmatprep.mubr.bf16.mxu0 0
      %8738 = vmatmul.mubr.bf16.gmra.mrb[0].mxu0 %v7658
      %v8739 = vpop.f32.mrb[0].mxu0
      %v8740 = vadd.f32 %v7614, %v8739
      %v8741 = vpop.f32.mrb[0].mxu0
      %v8742 = vadd.f32 %v7614, %v8741
      %v8743 = vpop.f32.mrb[0].mxu0
      %v8744 = vadd.f32 %v7619, %v8743
      %v8745 = vpop.f32.mrb[0].mxu0
      %v8746 = vadd.f32 %v7619, %v8745
      %8747 = vmatprep.mubr.bf16.mxu0 0
      %8748 = vmatmul.mubr.bf16.gmra.mrb[0].mxu0 %v7661
      %v8749 = vpop.f32.mrb[0].mxu0
      %v8750 = vadd.f32 %v7624, %v8749
      %v8751 = vpop.f32.mrb[0].mxu0
      %v8752 = vadd.f32 %v7624, %v8751
      %v8753 = vpop.f32.mrb[0].mxu0
      %v8754 = vadd.f32 %v7629, %v8753
      %v8755 = vpop.f32.mrb[0].mxu0
      %v8756 = vadd.f32 %v7629, %v8755
      %8757 = vdwg.mxu0
      %8758 = vmatprep.subr.bf16.mxu0 %v7550
      %8759 = vmatpush1.bf16.msra.mxu0 %v7549
      %8760 = vmatprep.subr.bf16.mxu0 %v7582
      %8761 = vmatpush1.bf16.msra.mxu0 %v7581
      %8762 = vmatprep.subr.bf16.mxu0 0
      %8763 = vmatpush1.bf16.msra.mxu0 0
      %8764 = vmatprep.subr.bf16.mxu0 0
      %8765 = vmatpush1.bf16.msra.mxu0 0
      %8766 = vmatprep.subr.bf16.mxu0 0
      %8767 = vmatpush1.bf16.msra.mxu0 0
      %8768 = vmatprep.subr.bf16.mxu0 0
      %8769 = vmatpush1.bf16.msra.mxu0 0
      %8770 = vmatprep.subr.bf16.mxu0 0
      %8771 = vmatpush1.bf16.msra.mxu0 0
      %8772 = vmatprep.subr.bf16.mxu0 0
      %8773 = vmatpush1.bf16.msra.mxu0 0
      %8774 = vmatprep.subr.bf16.mxu0 0
      %8775 = vmatpush1.bf16.msra.mxu0 0
      %8776 = vmatprep.subr.bf16.mxu0 0
      %8777 = vmatpush1.bf16.msra.mxu0 0
      %8778 = vmatprep.subr.bf16.mxu0 0
      %8779 = vmatpush1.bf16.msra.mxu0 0
      %8780 = vmatprep.subr.bf16.mxu0 0
      %8781 = vmatpush1.bf16.msra.mxu0 0
      %8782 = vmatprep.subr.bf16.mxu0 0
      %8783 = vmatpush1.bf16.msra.mxu0 0
      %8784 = vmatprep.subr.bf16.mxu0 0
      %8785 = vmatpush1.bf16.msra.mxu0 0
      %8786 = vmatprep.subr.bf16.mxu0 0
      %8787 = vmatpush1.bf16.msra.mxu0 0
      %8788 = vmatprep.subr.bf16.mxu0 0
      %8789 = vmatpush1.bf16.msra.mxu0 0
      %8790 = vmatprep.mubr.bf16.mxu0 0
      %8791 = vmatmul.mubr.bf16.gmra.mrb[0].mxu0 %v7652
      %v8792 = vpop.f32.mrb[0].mxu0
      %v8793 = vadd.f32 %v7594, %v8792
      %v8794 = vpop.f32.mrb[0].mxu0
      %v8795 = vadd.f32 %v7594, %v8794
      %v8796 = vpop.f32.mrb[0].mxu0
      %v8797 = vadd.f32 %v7599, %v8796
      %v8798 = vpop.f32.mrb[0].mxu0
      %v8799 = vadd.f32 %v7599, %v8798
      %8800 = vmatprep.mubr.bf16.mxu0 0
      %8801 = vmatmul.mubr.bf16.gmra.mrb[0].mxu0 %v7655
      %v8802 = vpop.f32.mrb[0].mxu0
      %v8803 = vadd.f32 %v7604, %v8802
      %v8804 = vpop.f32.mrb[0].mxu0
      %v8805 = vadd.f32 %v7604, %v8804
      %v8806 = vpop.f32.mrb[0].mxu0
      %v8807 = vadd.f32 %v7609, %v8806
      %v8808 = vpop.f32.mrb[0].mxu0
      %v8809 = vadd.f32 %v7609, %v8808
      %8810 = vmatprep.mubr.bf16.mxu0 0
      %8811 = vmatmul.mubr.bf16.gmra.mrb[0].mxu0 %v7658
      %v8812 = vpop.f32.mrb[0].mxu0
      %v8813 = vadd.f32 %v7614, %v8812
      %v8814 = vpop.f32.mrb[0].mxu0
      %v8815 = vadd.f32 %v7614, %v8814
      %v8816 = vpop.f32.mrb[0].mxu0
      %v8817 = vadd.f32 %v7619, %v8816
      %v8818 = vpop.f32.mrb[0].mxu0
      %v8819 = vadd.f32 %v7619, %v8818
      %8820 = vmatprep.mubr.bf16.mxu0 0
      %8821 = vmatmul.mubr.bf16.gmra.mrb[0].mxu0 %v7661
      %v8822 = vpop.f32.mrb[0].mxu0
      %v8823 = vadd.f32 %v7624, %v8822
      %v8824 = vpop.f32.mrb[0].mxu0
      %v8825 = vadd.f32 %v7624, %v8824
      %v8826 = vpop.f32.mrb[0].mxu0
      %v8827 = vadd.f32 %v7629, %v8826
      %v8828 = vpop.f32.mrb[0].mxu0
      %v8829 = vadd.f32 %v7629, %v8828
      %8830 = vdwg.mxu0
      %v8831 = vadd.f32 %v7698, %v2814
      %v8832 = vadd.f32 %v7700, %v2815
      %v8833 = vadd.f32 %v7771, %v2816
      %v8834 = vadd.f32 %v7773, %v2817
      %v8835 = vadd.f32 %v7844, %v2818
      %v8836 = vadd.f32 %v7846, %v2819
      %v8837 = vadd.f32 %v7917, %v2820
      %v8838 = vadd.f32 %v7919, %v2821
      %v8839 = vadd.f32 %v7990, %v2822
      %v8840 = vadd.f32 %v7992, %v2823
      %v8841 = vadd.f32 %v8063, %v2824
      %v8842 = vadd.f32 %v8065, %v2825
      %v8843 = vadd.f32 %v8136, %v2826
      %v8844 = vadd.f32 %v8138, %v2827
      %v8845 = vadd.f32 %v8209, %v2828
      %v8846 = vadd.f32 %v8211, %v2829
      %v8847 = vadd.f32 %v8282, %v2830
      %v8848 = vadd.f32 %v8284, %v2831
      %v8849 = vadd.f32 %v8355, %v2832
      %v8850 = vadd.f32 %v8357, %v2833
      %v8851 = vadd.f32 %v8428, %v2834
      %v8852 = vadd.f32 %v8430, %v2835
      %v8853 = vadd.f32 %v8501, %v2836
      %v8854 = vadd.f32 %v8503, %v2837
      %v8855 = vadd.f32 %v8574, %v2838
      %v8856 = vadd.f32 %v8576, %v2839
      %v8857 = vadd.f32 %v8647, %v2840
      %v8858 = vadd.f32 %v8649, %v2841
      %v8859 = vadd.f32 %v8720, %v2842
      %v8860 = vadd.f32 %v8722, %v2843
      %v8861 = vadd.f32 %v8793, %v2844
      %v8862 = vadd.f32 %v8795, %v2845
      %v8863 = vadd.f32 %v7702, %v2846
      %v8864 = vadd.f32 %v7704, %v2847
      %v8865 = vadd.f32 %v7775, %v2848
      %v8866 = vadd.f32 %v7777, %v2849
      %v8867 = vadd.f32 %v7848, %v2850
      %v8868 = vadd.f32 %v7850, %v2851
      %v8869 = vadd.f32 %v7921, %v2852
      %v8870 = vadd.f32 %v7923, %v2853
      %v8871 = vadd.f32 %v7994, %v2854
      %v8872 = vadd.f32 %v7996, %v2855
      %v8873 = vadd.f32 %v8067, %v2856
      %v8874 = vadd.f32 %v8069, %v2857
      %v8875 = vadd.f32 %v8140, %v2858
      %v8876 = vadd.f32 %v8142, %v2859
      %v8877 = vadd.f32 %v8213, %v2860
      %v8878 = vadd.f32 %v8215, %v2861
      %v8879 = vadd.f32 %v8286, %v2862
      %v8880 = vadd.f32 %v8288, %v2863
      %v8881 = vadd.f32 %v8359, %v2864
      %v8882 = vadd.f32 %v8361, %v2865
      %v8883 = vadd.f32 %v8432, %v2866
      %v8884 = vadd.f32 %v8434, %v2867
      %v8885 = vadd.f32 %v8505, %v2868
      %v8886 = vadd.f32 %v8507, %v2869
      %v8887 = vadd.f32 %v8578, %v2870
      %v8888 = vadd.f32 %v8580, %v2871
      %v8889 = vadd.f32 %v8651, %v2872
      %v8890 = vadd.f32 %v8653, %v2873
      %v8891 = vadd.f32 %v8724, %v2874
      %v8892 = vadd.f32 %v8726, %v2875
      %v8893 = vadd.f32 %v8797, %v2876
      %v8894 = vadd.f32 %v8799, %v2877
      %v8895 = vadd.f32 %v7708, %v2878
      %v8896 = vadd.f32 %v7710, %v2879
      %v8897 = vadd.f32 %v7781, %v2880
      %v8898 = vadd.f32 %v7783, %v2881
      %v8899 = vadd.f32 %v7854, %v2882
      %v8900 = vadd.f32 %v7856, %v2883
      %v8901 = vadd.f32 %v7927, %v2884
      %v8902 = vadd.f32 %v7929, %v2885
      %v8903 = vadd.f32 %v8000, %v2886
      %v8904 = vadd.f32 %v8002, %v2887
      %v8905 = vadd.f32 %v8073, %v2888
      %v8906 = vadd.f32 %v8075, %v2889
      %v8907 = vadd.f32 %v8146, %v2890
      %v8908 = vadd.f32 %v8148, %v2891
      %v8909 = vadd.f32 %v8219, %v2892
      %v8910 = vadd.f32 %v8221, %v2893
      %v8911 = vadd.f32 %v8292, %v2894
      %v8912 = vadd.f32 %v8294, %v2895
      %v8913 = vadd.f32 %v8365, %v2896
      %v8914 = vadd.f32 %v8367, %v2897
      %v8915 = vadd.f32 %v8438, %v2898
      %v8916 = vadd.f32 %v8440, %v2899
      %v8917 = vadd.f32 %v8511, %v2900
      %v8918 = vadd.f32 %v8513, %v2901
      %v8919 = vadd.f32 %v8584, %v2902
      %v8920 = vadd.f32 %v8586, %v2903
      %v8921 = vadd.f32 %v8657, %v2904
      %v8922 = vadd.f32 %v8659, %v2905
      %v8923 = vadd.f32 %v8730, %v2906
      %v8924 = vadd.f32 %v8732, %v2907
      %v8925 = vadd.f32 %v8803, %v2908
      %v8926 = vadd.f32 %v8805, %v2909
      %v8927 = vadd.f32 %v7712, %v2910
      %v8928 = vadd.f32 %v7714, %v2911
      %v8929 = vadd.f32 %v7785, %v2912
      %v8930 = vadd.f32 %v7787, %v2913
      %v8931 = vadd.f32 %v7858, %v2914
      %v8932 = vadd.f32 %v7860, %v2915
      %v8933 = vadd.f32 %v7931, %v2916
      %v8934 = vadd.f32 %v7933, %v2917
      %v8935 = vadd.f32 %v8004, %v2918
      %v8936 = vadd.f32 %v8006, %v2919
      %v8937 = vadd.f32 %v8077, %v2920
      %v8938 = vadd.f32 %v8079, %v2921
      %v8939 = vadd.f32 %v8150, %v2922
      %v8940 = vadd.f32 %v8152, %v2923
      %v8941 = vadd.f32 %v8223, %v2924
      %v8942 = vadd.f32 %v8225, %v2925
      %v8943 = vadd.f32 %v8296, %v2926
      %v8944 = vadd.f32 %v8298, %v2927
      %v8945 = vadd.f32 %v8369, %v2928
      %v8946 = vadd.f32 %v8371, %v2929
      %v8947 = vadd.f32 %v8442, %v2930
      %v8948 = vadd.f32 %v8444, %v2931
      %v8949 = vadd.f32 %v8515, %v2932
      %v8950 = vadd.f32 %v8517, %v2933
      %v8951 = vadd.f32 %v8588, %v2934
      %v8952 = vadd.f32 %v8590, %v2935
      %v8953 = vadd.f32 %v8661, %v2936
      %v8954 = vadd.f32 %v8663, %v2937
      %v8955 = vadd.f32 %v8734, %v2938
      %v8956 = vadd.f32 %v8736, %v2939
      %v8957 = vadd.f32 %v8807, %v2940
      %v8958 = vadd.f32 %v8809, %v2941
      %v8959 = vadd.f32 %v7718, %v2942
      %v8960 = vadd.f32 %v7720, %v2943
      %v8961 = vadd.f32 %v7791, %v2944
      %v8962 = vadd.f32 %v7793, %v2945
      %v8963 = vadd.f32 %v7864, %v2946
      %v8964 = vadd.f32 %v7866, %v2947
      %v8965 = vadd.f32 %v7937, %v2948
      %v8966 = vadd.f32 %v7939, %v2949
      %v8967 = vadd.f32 %v8010, %v2950
      %v8968 = vadd.f32 %v8012, %v2951
      %v8969 = vadd.f32 %v8083, %v2952
      %v8970 = vadd.f32 %v8085, %v2953
      %v8971 = vadd.f32 %v8156, %v2954
      %v8972 = vadd.f32 %v8158, %v2955
      %v8973 = vadd.f32 %v8229, %v2956
      %v8974 = vadd.f32 %v8231, %v2957
      %v8975 = vadd.f32 %v8302, %v2958
      %v8976 = vadd.f32 %v8304, %v2959
      %v8977 = vadd.f32 %v8375, %v2960
      %v8978 = vadd.f32 %v8377, %v2961
      %v8979 = vadd.f32 %v8448, %v2962
      %v8980 = vadd.f32 %v8450, %v2963
      %v8981 = vadd.f32 %v8521, %v2964
      %v8982 = vadd.f32 %v8523, %v2965
      %v8983 = vadd.f32 %v8594, %v2966
      %v8984 = vadd.f32 %v8596, %v2967
      %v8985 = vadd.f32 %v8667, %v2968
      %v8986 = vadd.f32 %v8669, %v2969
      %v8987 = vadd.f32 %v8740, %v2970
      %v8988 = vadd.f32 %v8742, %v2971
      %v8989 = vadd.f32 %v8813, %v2972
      %v8990 = vadd.f32 %v8815, %v2973
      %v8991 = vadd.f32 %v7722, %v2974
      %v8992 = vadd.f32 %v7724, %v2975
      %v8993 = vadd.f32 %v7795, %v2976
      %v8994 = vadd.f32 %v7797, %v2977
      %v8995 = vadd.f32 %v7868, %v2978
      %v8996 = vadd.f32 %v7870, %v2979
      %v8997 = vadd.f32 %v7941, %v2980
      %v8998 = vadd.f32 %v7943, %v2981
      %v8999 = vadd.f32 %v8014, %v2982
      %v9000 = vadd.f32 %v8016, %v2983
      %v9001 = vadd.f32 %v8087, %v2984
      %v9002 = vadd.f32 %v8089, %v2985
      %v9003 = vadd.f32 %v8160, %v2986
      %v9004 = vadd.f32 %v8162, %v2987
      %v9005 = vadd.f32 %v8233, %v2988
      %v9006 = vadd.f32 %v8235, %v2989
      %v9007 = vadd.f32 %v8306, %v2990
      %v9008 = vadd.f32 %v8308, %v2991
      %v9009 = vadd.f32 %v8379, %v2992
      %v9010 = vadd.f32 %v8381, %v2993
      %v9011 = vadd.f32 %v8452, %v2994
      %v9012 = vadd.f32 %v8454, %v2995
      %v9013 = vadd.f32 %v8525, %v2996
      %v9014 = vadd.f32 %v8527, %v2997
      %v9015 = vadd.f32 %v8598, %v2998
      %v9016 = vadd.f32 %v8600, %v2999
      %v9017 = vadd.f32 %v8671, %v3000
      %v9018 = vadd.f32 %v8673, %v3001
      %v9019 = vadd.f32 %v8744, %v3002
      %v9020 = vadd.f32 %v8746, %v3003
      %v9021 = vadd.f32 %v8817, %v3004
      %v9022 = vadd.f32 %v8819, %v3005
      %v9023 = vadd.f32 %v7728, %v3006
      %v9024 = vadd.f32 %v7730, %v3007
      %v9025 = vadd.f32 %v7801, %v3008
      %v9026 = vadd.f32 %v7803, %v3009
      %v9027 = vadd.f32 %v7874, %v3010
      %v9028 = vadd.f32 %v7876, %v3011
      %v9029 = vadd.f32 %v7947, %v3012
      %v9030 = vadd.f32 %v7949, %v3013
      %v9031 = vadd.f32 %v8020, %v3014
      %v9032 = vadd.f32 %v8022, %v3015
      %v9033 = vadd.f32 %v8093, %v3016
      %v9034 = vadd.f32 %v8095, %v3017
      %v9035 = vadd.f32 %v8166, %v3018
      %v9036 = vadd.f32 %v8168, %v3019
      %v9037 = vadd.f32 %v8239, %v3020
      %v9038 = vadd.f32 %v8241, %v3021
      %v9039 = vadd.f32 %v8312, %v3022
      %v9040 = vadd.f32 %v8314, %v3023
      %v9041 = vadd.f32 %v8385, %v3024
      %v9042 = vadd.f32 %v8387, %v3025
      %v9043 = vadd.f32 %v8458, %v3026
      %v9044 = vadd.f32 %v8460, %v3027
      %v9045 = vadd.f32 %v8531, %v3028
      %v9046 = vadd.f32 %v8533, %v3029
      %v9047 = vadd.f32 %v8604, %v3030
      %v9048 = vadd.f32 %v8606, %v3031
      %v9049 = vadd.f32 %v8677, %v3032
      %v9050 = vadd.f32 %v8679, %v3033
      %v9051 = vadd.f32 %v8750, %v3034
      %v9052 = vadd.f32 %v8752, %v3035
      %v9053 = vadd.f32 %v8823, %v3036
      %v9054 = vadd.f32 %v8825, %v3037
      %v9055 = vadd.f32 %v7732, %v3038
      %v9056 = vadd.f32 %v7734, %v3039
      %v9057 = vadd.f32 %v7805, %v3040
      %v9058 = vadd.f32 %v7807, %v3041
      %v9059 = vadd.f32 %v7878, %v3042
      %v9060 = vadd.f32 %v7880, %v3043
      %v9061 = vadd.f32 %v7951, %v3044
      %v9062 = vadd.f32 %v7953, %v3045
      %v9063 = vadd.f32 %v8024, %v3046
      %v9064 = vadd.f32 %v8026, %v3047
      %v9065 = vadd.f32 %v8097, %v3048
      %v9066 = vadd.f32 %v8099, %v3049
      %v9067 = vadd.f32 %v8170, %v3050
      %v9068 = vadd.f32 %v8172, %v3051
      %v9069 = vadd.f32 %v8243, %v3052
      %v9070 = vadd.f32 %v8245, %v3053
      %v9071 = vadd.f32 %v8316, %v3054
      %v9072 = vadd.f32 %v8318, %v3055
      %v9073 = vadd.f32 %v8389, %v3056
      %v9074 = vadd.f32 %v8391, %v3057
      %v9075 = vadd.f32 %v8462, %v3058
      %v9076 = vadd.f32 %v8464, %v3059
      %v9077 = vadd.f32 %v8535, %v3060
      %v9078 = vadd.f32 %v8537, %v3061
      %v9079 = vadd.f32 %v8608, %v3062
      %v9080 = vadd.f32 %v8610, %v3063
      %v9081 = vadd.f32 %v8681, %v3064
      %v9082 = vadd.f32 %v8683, %v3065
      %v9083 = vadd.f32 %v8754, %v3066
      %v9084 = vadd.f32 %v8756, %v3067
      %v9085 = vadd.f32 %v8827, %v3068
      %v9086 = vadd.f32 %v8829, %v3069
      %v9087 = vmax.f32 %v8831, 0.0
      %v9088 = vmax.f32 %v8832, 0.0
      %v9089 = vmax.f32 %v8833, 0.0
      %v9090 = vmax.f32 %v8834, 0.0
      %v9091 = vmax.f32 %v8835, 0.0
      %v9092 = vmax.f32 %v8836, 0.0
      %v9093 = vmax.f32 %v8837, 0.0
      %v9094 = vmax.f32 %v8838, 0.0
      %v9095 = vmax.f32 %v8839, 0.0
      %v9096 = vmax.f32 %v8840, 0.0
      %v9097 = vmax.f32 %v8841, 0.0
      %v9098 = vmax.f32 %v8842, 0.0
      %v9099 = vmax.f32 %v8843, 0.0
      %v9100 = vmax.f32 %v8844, 0.0
      %v9101 = vmax.f32 %v8845, 0.0
      %v9102 = vmax.f32 %v8846, 0.0
      %v9103 = vmax.f32 %v8847, 0.0
      %v9104 = vmax.f32 %v8848, 0.0
      %v9105 = vmax.f32 %v8849, 0.0
      %v9106 = vmax.f32 %v8850, 0.0
      %v9107 = vmax.f32 %v8851, 0.0
      %v9108 = vmax.f32 %v8852, 0.0
      %v9109 = vmax.f32 %v8853, 0.0
      %v9110 = vmax.f32 %v8854, 0.0
      %v9111 = vmax.f32 %v8855, 0.0
      %v9112 = vmax.f32 %v8856, 0.0
      %v9113 = vmax.f32 %v8857, 0.0
      %v9114 = vmax.f32 %v8858, 0.0
      %v9115 = vmax.f32 %v8859, 0.0
      %v9116 = vmax.f32 %v8860, 0.0
      %v9117 = vmax.f32 %v8861, 0.0
      %v9118 = vmax.f32 %v8862, 0.0
      %v9119 = vmax.f32 %v8863, 0.0
      %v9120 = vmax.f32 %v8864, 0.0
      %v9121 = vmax.f32 %v8865, 0.0
      %v9122 = vmax.f32 %v8866, 0.0
      %v9123 = vmax.f32 %v8867, 0.0
      %v9124 = vmax.f32 %v8868, 0.0
      %v9125 = vmax.f32 %v8869, 0.0
      %v9126 = vmax.f32 %v8870, 0.0
      %v9127 = vmax.f32 %v8871, 0.0
      %v9128 = vmax.f32 %v8872, 0.0
      %v9129 = vmax.f32 %v8873, 0.0
      %v9130 = vmax.f32 %v8874, 0.0
      %v9131 = vmax.f32 %v8875, 0.0
      %v9132 = vmax.f32 %v8876, 0.0
      %v9133 = vmax.f32 %v8877, 0.0
      %v9134 = vmax.f32 %v8878, 0.0
      %v9135 = vmax.f32 %v8879, 0.0
      %v9136 = vmax.f32 %v8880, 0.0
      %v9137 = vmax.f32 %v8881, 0.0
      %v9138 = vmax.f32 %v8882, 0.0
      %v9139 = vmax.f32 %v8883, 0.0
      %v9140 = vmax.f32 %v8884, 0.0
      %v9141 = vmax.f32 %v8885, 0.0
      %v9142 = vmax.f32 %v8886, 0.0
      %v9143 = vmax.f32 %v8887, 0.0
      %v9144 = vmax.f32 %v8888, 0.0
      %v9145 = vmax.f32 %v8889, 0.0
      %v9146 = vmax.f32 %v8890, 0.0
      %v9147 = vmax.f32 %v8891, 0.0
      %v9148 = vmax.f32 %v8892, 0.0
      %v9149 = vmax.f32 %v8893, 0.0
      %v9150 = vmax.f32 %v8894, 0.0
      %v9151 = vmax.f32 %v8895, 0.0
      %v9152 = vmax.f32 %v8896, 0.0
      %v9153 = vmax.f32 %v8897, 0.0
      %v9154 = vmax.f32 %v8898, 0.0
      %v9155 = vmax.f32 %v8899, 0.0
      %v9156 = vmax.f32 %v8900, 0.0
      %v9157 = vmax.f32 %v8901, 0.0
      %v9158 = vmax.f32 %v8902, 0.0
      %v9159 = vmax.f32 %v8903, 0.0
      %v9160 = vmax.f32 %v8904, 0.0
      %v9161 = vmax.f32 %v8905, 0.0
      %v9162 = vmax.f32 %v8906, 0.0
      %v9163 = vmax.f32 %v8907, 0.0
      %v9164 = vmax.f32 %v8908, 0.0
      %v9165 = vmax.f32 %v8909, 0.0
      %v9166 = vmax.f32 %v8910, 0.0
      %v9167 = vmax.f32 %v8911, 0.0
      %v9168 = vmax.f32 %v8912, 0.0
      %v9169 = vmax.f32 %v8913, 0.0
      %v9170 = vmax.f32 %v8914, 0.0
      %v9171 = vmax.f32 %v8915, 0.0
      %v9172 = vmax.f32 %v8916, 0.0
      %v9173 = vmax.f32 %v8917, 0.0
      %v9174 = vmax.f32 %v8918, 0.0
      %v9175 = vmax.f32 %v8919, 0.0
      %v9176 = vmax.f32 %v8920, 0.0
      %v9177 = vmax.f32 %v8921, 0.0
      %v9178 = vmax.f32 %v8922, 0.0
      %v9179 = vmax.f32 %v8923, 0.0
      %v9180 = vmax.f32 %v8924, 0.0
      %v9181 = vmax.f32 %v8925, 0.0
      %v9182 = vmax.f32 %v8926, 0.0
      %v9183 = vmax.f32 %v8927, 0.0
      %v9184 = vmax.f32 %v8928, 0.0
      %v9185 = vmax.f32 %v8929, 0.0
      %v9186 = vmax.f32 %v8930, 0.0
      %v9187 = vmax.f32 %v8931, 0.0
      %v9188 = vmax.f32 %v8932, 0.0
      %v9189 = vmax.f32 %v8933, 0.0
      %v9190 = vmax.f32 %v8934, 0.0
      %v9191 = vmax.f32 %v8935, 0.0
      %v9192 = vmax.f32 %v8936, 0.0
      %v9193 = vmax.f32 %v8937, 0.0
      %v9194 = vmax.f32 %v8938, 0.0
      %v9195 = vmax.f32 %v8939, 0.0
      %v9196 = vmax.f32 %v8940, 0.0
      %v9197 = vmax.f32 %v8941, 0.0
      %v9198 = vmax.f32 %v8942, 0.0
      %v9199 = vmax.f32 %v8943, 0.0
      %v9200 = vmax.f32 %v8944, 0.0
      %v9201 = vmax.f32 %v8945, 0.0
      %v9202 = vmax.f32 %v8946, 0.0
      %v9203 = vmax.f32 %v8947, 0.0
      %v9204 = vmax.f32 %v8948, 0.0
      %v9205 = vmax.f32 %v8949, 0.0
      %v9206 = vmax.f32 %v8950, 0.0
      %v9207 = vmax.f32 %v8951, 0.0
      %v9208 = vmax.f32 %v8952, 0.0
      %v9209 = vmax.f32 %v8953, 0.0
      %v9210 = vmax.f32 %v8954, 0.0
      %v9211 = vmax.f32 %v8955, 0.0
      %v9212 = vmax.f32 %v8956, 0.0
      %v9213 = vmax.f32 %v8957, 0.0
      %v9214 = vmax.f32 %v8958, 0.0
      %v9215 = vmax.f32 %v8959, 0.0
      %v9216 = vmax.f32 %v8960, 0.0
      %v9217 = vmax.f32 %v8961, 0.0
      %v9218 = vmax.f32 %v8962, 0.0
      %v9219 = vmax.f32 %v8963, 0.0
      %v9220 = vmax.f32 %v8964, 0.0
      %v9221 = vmax.f32 %v8965, 0.0
      %v9222 = vmax.f32 %v8966, 0.0
      %v9223 = vmax.f32 %v8967, 0.0
      %v9224 = vmax.f32 %v8968, 0.0
      %v9225 = vmax.f32 %v8969, 0.0
      %v9226 = vmax.f32 %v8970, 0.0
      %v9227 = vmax.f32 %v8971, 0.0
      %v9228 = vmax.f32 %v8972, 0.0
      %v9229 = vmax.f32 %v8973, 0.0
      %v9230 = vmax.f32 %v8974, 0.0
      %v9231 = vmax.f32 %v8975, 0.0
      %v9232 = vmax.f32 %v8976, 0.0
      %v9233 = vmax.f32 %v8977, 0.0
      %v9234 = vmax.f32 %v8978, 0.0
      %v9235 = vmax.f32 %v8979, 0.0
      %v9236 = vmax.f32 %v8980, 0.0
      %v9237 = vmax.f32 %v8981, 0.0
      %v9238 = vmax.f32 %v8982, 0.0
      %v9239 = vmax.f32 %v8983, 0.0
      %v9240 = vmax.f32 %v8984, 0.0
      %v9241 = vmax.f32 %v8985, 0.0
      %v9242 = vmax.f32 %v8986, 0.0
      %v9243 = vmax.f32 %v8987, 0.0
      %v9244 = vmax.f32 %v8988, 0.0
      %v9245 = vmax.f32 %v8989, 0.0
      %v9246 = vmax.f32 %v8990, 0.0
      %v9247 = vmax.f32 %v8991, 0.0
      %v9248 = vmax.f32 %v8992, 0.0
      %v9249 = vmax.f32 %v8993, 0.0
      %v9250 = vmax.f32 %v8994, 0.0
      %v9251 = vmax.f32 %v8995, 0.0
      %v9252 = vmax.f32 %v8996, 0.0
      %v9253 = vmax.f32 %v8997, 0.0
      %v9254 = vmax.f32 %v8998, 0.0
      %v9255 = vmax.f32 %v8999, 0.0
      %v9256 = vmax.f32 %v9000, 0.0
      %v9257 = vmax.f32 %v9001, 0.0
      %v9258 = vmax.f32 %v9002, 0.0
      %v9259 = vmax.f32 %v9003, 0.0
      %v9260 = vmax.f32 %v9004, 0.0
      %v9261 = vmax.f32 %v9005, 0.0
      %v9262 = vmax.f32 %v9006, 0.0
      %v9263 = vmax.f32 %v9007, 0.0
      %v9264 = vmax.f32 %v9008, 0.0
      %v9265 = vmax.f32 %v9009, 0.0
      %v9266 = vmax.f32 %v9010, 0.0
      %v9267 = vmax.f32 %v9011, 0.0
      %v9268 = vmax.f32 %v9012, 0.0
      %v9269 = vmax.f32 %v9013, 0.0
      %v9270 = vmax.f32 %v9014, 0.0
      %v9271 = vmax.f32 %v9015, 0.0
      %v9272 = vmax.f32 %v9016, 0.0
      %v9273 = vmax.f32 %v9017, 0.0
      %v9274 = vmax.f32 %v9018, 0.0
      %v9275 = vmax.f32 %v9019, 0.0
      %v9276 = vmax.f32 %v9020, 0.0
      %v9277 = vmax.f32 %v9021, 0.0
      %v9278 = vmax.f32 %v9022, 0.0
      %v9279 = vmax.f32 %v9023, 0.0
      %v9280 = vmax.f32 %v9024, 0.0
      %v9281 = vmax.f32 %v9025, 0.0
      %v9282 = vmax.f32 %v9026, 0.0
      %v9283 = vmax.f32 %v9027, 0.0
      %v9284 = vmax.f32 %v9028, 0.0
      %v9285 = vmax.f32 %v9029, 0.0
      %v9286 = vmax.f32 %v9030, 0.0
      %v9287 = vmax.f32 %v9031, 0.0
      %v9288 = vmax.f32 %v9032, 0.0
      %v9289 = vmax.f32 %v9033, 0.0
      %v9290 = vmax.f32 %v9034, 0.0
      %v9291 = vmax.f32 %v9035, 0.0
      %v9292 = vmax.f32 %v9036, 0.0
      %v9293 = vmax.f32 %v9037, 0.0
      %v9294 = vmax.f32 %v9038, 0.0
      %v9295 = vmax.f32 %v9039, 0.0
      %v9296 = vmax.f32 %v9040, 0.0
      %v9297 = vmax.f32 %v9041, 0.0
      %v9298 = vmax.f32 %v9042, 0.0
      %v9299 = vmax.f32 %v9043, 0.0
      %v9300 = vmax.f32 %v9044, 0.0
      %v9301 = vmax.f32 %v9045, 0.0
      %v9302 = vmax.f32 %v9046, 0.0
      %v9303 = vmax.f32 %v9047, 0.0
      %v9304 = vmax.f32 %v9048, 0.0
      %v9305 = vmax.f32 %v9049, 0.0
      %v9306 = vmax.f32 %v9050, 0.0
      %v9307 = vmax.f32 %v9051, 0.0
      %v9308 = vmax.f32 %v9052, 0.0
      %v9309 = vmax.f32 %v9053, 0.0
      %v9310 = vmax.f32 %v9054, 0.0
      %v9311 = vmax.f32 %v9055, 0.0
      %v9312 = vmax.f32 %v9056, 0.0
      %v9313 = vmax.f32 %v9057, 0.0
      %v9314 = vmax.f32 %v9058, 0.0
      %v9315 = vmax.f32 %v9059, 0.0
      %v9316 = vmax.f32 %v9060, 0.0
      %v9317 = vmax.f32 %v9061, 0.0
      %v9318 = vmax.f32 %v9062, 0.0
      %v9319 = vmax.f32 %v9063, 0.0
      %v9320 = vmax.f32 %v9064, 0.0
      %v9321 = vmax.f32 %v9065, 0.0
      %v9322 = vmax.f32 %v9066, 0.0
      %v9323 = vmax.f32 %v9067, 0.0
      %v9324 = vmax.f32 %v9068, 0.0
      %v9325 = vmax.f32 %v9069, 0.0
      %v9326 = vmax.f32 %v9070, 0.0
      %v9327 = vmax.f32 %v9071, 0.0
      %v9328 = vmax.f32 %v9072, 0.0
      %v9329 = vmax.f32 %v9073, 0.0
      %v9330 = vmax.f32 %v9074, 0.0
      %v9331 = vmax.f32 %v9075, 0.0
      %v9332 = vmax.f32 %v9076, 0.0
      %v9333 = vmax.f32 %v9077, 0.0
      %v9334 = vmax.f32 %v9078, 0.0
      %v9335 = vmax.f32 %v9079, 0.0
      %v9336 = vmax.f32 %v9080, 0.0
      %v9337 = vmax.f32 %v9081, 0.0
      %v9338 = vmax.f32 %v9082, 0.0
      %v9339 = vmax.f32 %v9083, 0.0
      %v9340 = vmax.f32 %v9084, 0.0
      %v9341 = vmax.f32 %v9085, 0.0
      %v9342 = vmax.f32 %v9086, 0.0
      %v9343 = vld [vmem:[%s15] sm:$0xff]
      %v9344 = vld [vmem:[%s15 + $0x8] sm:$0xff]
      %v9345 = vld [vmem:[%s15 + $0x10] sm:$0xff]
      %v9346 = vld [vmem:[%s15 + $0x18] sm:$0xff]
      %v9347 = vld [vmem:[%s15 + $0x20] sm:$0xff]
      %v9348 = vld [vmem:[%s15 + $0x28] sm:$0xff]
      %v9349 = vld [vmem:[%s15 + $0x30] sm:$0xff]
      %v9350 = vld [vmem:[%s15 + $0x38] sm:$0xff]
      %9352 = vset.pattern.permute.xlu0 0
      %9353 = vperm.xlu0 %9352, %v9343
      %v9354 = vpop.permute.xlu0 %9353
      %9357 = vset.pattern.permute.xlu0 0
      %9358 = vperm.xlu0 %9357, %v9344
      %v9359 = vpop.permute.xlu0 %9358
      %9362 = vset.pattern.permute.xlu0 0
      %9363 = vperm.xlu0 %9362, %v9345
      %v9364 = vpop.permute.xlu0 %9363
      %9367 = vset.pattern.permute.xlu0 0
      %9368 = vperm.xlu0 %9367, %v9346
      %v9369 = vpop.permute.xlu0 %9368
      %9372 = vset.pattern.permute.xlu0 0
      %9373 = vperm.xlu0 %9372, %v9347
      %v9374 = vpop.permute.xlu0 %9373
      %9377 = vset.pattern.permute.xlu0 0
      %9378 = vperm.xlu0 %9377, %v9348
      %v9379 = vpop.permute.xlu0 %9378
      %9382 = vset.pattern.permute.xlu0 0
      %9383 = vperm.xlu0 %9382, %v9349
      %v9384 = vpop.permute.xlu0 %9383
      %9387 = vset.pattern.permute.xlu0 0
      %9388 = vperm.xlu0 %9387, %v9350
      %v9389 = vpop.permute.xlu0 %9388
      %v9391 = vmul.f32 %v9087, %v9354
      %v9392 = vmul.f32 %v9088, %v9354
      %v9393 = vmul.f32 %v9089, %v9354
      %v9394 = vmul.f32 %v9090, %v9354
      %v9395 = vmul.f32 %v9091, %v9354
      %v9396 = vmul.f32 %v9092, %v9354
      %v9397 = vmul.f32 %v9093, %v9354
      %v9398 = vmul.f32 %v9094, %v9354
      %v9399 = vmul.f32 %v9095, %v9354
      %v9400 = vmul.f32 %v9096, %v9354
      %v9401 = vmul.f32 %v9097, %v9354
      %v9402 = vmul.f32 %v9098, %v9354
      %v9403 = vmul.f32 %v9099, %v9354
      %v9404 = vmul.f32 %v9100, %v9354
      %v9405 = vmul.f32 %v9101, %v9354
      %v9406 = vmul.f32 %v9102, %v9354
      %v9407 = vmul.f32 %v9103, %v9354
      %v9408 = vmul.f32 %v9104, %v9354
      %v9409 = vmul.f32 %v9105, %v9354
      %v9410 = vmul.f32 %v9106, %v9354
      %v9411 = vmul.f32 %v9107, %v9354
      %v9412 = vmul.f32 %v9108, %v9354
      %v9413 = vmul.f32 %v9109, %v9354
      %v9414 = vmul.f32 %v9110, %v9354
      %v9415 = vmul.f32 %v9111, %v9354
      %v9416 = vmul.f32 %v9112, %v9354
      %v9417 = vmul.f32 %v9113, %v9354
      %v9418 = vmul.f32 %v9114, %v9354
      %v9419 = vmul.f32 %v9115, %v9354
      %v9420 = vmul.f32 %v9116, %v9354
      %v9421 = vmul.f32 %v9117, %v9354
      %v9422 = vmul.f32 %v9118, %v9354
      %v9423 = vmul.f32 %v9119, %v9359
      %v9424 = vmul.f32 %v9120, %v9359
      %v9425 = vmul.f32 %v9121, %v9359
      %v9426 = vmul.f32 %v9122, %v9359
      %v9427 = vmul.f32 %v9123, %v9359
      %v9428 = vmul.f32 %v9124, %v9359
      %v9429 = vmul.f32 %v9125, %v9359
      %v9430 = vmul.f32 %v9126, %v9359
      %v9431 = vmul.f32 %v9127, %v9359
      %v9432 = vmul.f32 %v9128, %v9359
      %v9433 = vmul.f32 %v9129, %v9359
      %v9434 = vmul.f32 %v9130, %v9359
      %v9435 = vmul.f32 %v9131, %v9359
      %v9436 = vmul.f32 %v9132, %v9359
      %v9437 = vmul.f32 %v9133, %v9359
      %v9438 = vmul.f32 %v9134, %v9359
      %v9439 = vmul.f32 %v9135, %v9359
      %v9440 = vmul.f32 %v9136, %v9359
      %v9441 = vmul.f32 %v9137, %v9359
      %v9442 = vmul.f32 %v9138, %v9359
      %v9443 = vmul.f32 %v9139, %v9359
      %v9444 = vmul.f32 %v9140, %v9359
      %v9445 = vmul.f32 %v9141, %v9359
      %v9446 = vmul.f32 %v9142, %v9359
      %v9447 = vmul.f32 %v9143, %v9359
      %v9448 = vmul.f32 %v9144, %v9359
      %v9449 = vmul.f32 %v9145, %v9359
      %v9450 = vmul.f32 %v9146, %v9359
      %v9451 = vmul.f32 %v9147, %v9359
      %v9452 = vmul.f32 %v9148, %v9359
      %v9453 = vmul.f32 %v9149, %v9359
      %v9454 = vmul.f32 %v9150, %v9359
      %v9455 = vmul.f32 %v9151, %v9364
      %v9456 = vmul.f32 %v9152, %v9364
      %v9457 = vmul.f32 %v9153, %v9364
      %v9458 = vmul.f32 %v9154, %v9364
      %v9459 = vmul.f32 %v9155, %v9364
      %v9460 = vmul.f32 %v9156, %v9364
      %v9461 = vmul.f32 %v9157, %v9364
      %v9462 = vmul.f32 %v9158, %v9364
      %v9463 = vmul.f32 %v9159, %v9364
      %v9464 = vmul.f32 %v9160, %v9364
      %v9465 = vmul.f32 %v9161, %v9364
      %v9466 = vmul.f32 %v9162, %v9364
      %v9467 = vmul.f32 %v9163, %v9364
      %v9468 = vmul.f32 %v9164, %v9364
      %v9469 = vmul.f32 %v9165, %v9364
      %v9470 = vmul.f32 %v9166, %v9364
      %v9471 = vmul.f32 %v9167, %v9364
      %v9472 = vmul.f32 %v9168, %v9364
      %v9473 = vmul.f32 %v9169, %v9364
      %v9474 = vmul.f32 %v9170, %v9364
      %v9475 = vmul.f32 %v9171, %v9364
      %v9476 = vmul.f32 %v9172, %v9364
      %v9477 = vmul.f32 %v9173, %v9364
      %v9478 = vmul.f32 %v9174, %v9364
      %v9479 = vmul.f32 %v9175, %v9364
      %v9480 = vmul.f32 %v9176, %v9364
      %v9481 = vmul.f32 %v9177, %v9364
      %v9482 = vmul.f32 %v9178, %v9364
      %v9483 = vmul.f32 %v9179, %v9364
      %v9484 = vmul.f32 %v9180, %v9364
      %v9485 = vmul.f32 %v9181, %v9364
      %v9486 = vmul.f32 %v9182, %v9364
      %v9487 = vmul.f32 %v9183, %v9369
      %v9488 = vmul.f32 %v9184, %v9369
      %v9489 = vmul.f32 %v9185, %v9369
      %v9490 = vmul.f32 %v9186, %v9369
      %v9491 = vmul.f32 %v9187, %v9369
      %v9492 = vmul.f32 %v9188, %v9369
      %v9493 = vmul.f32 %v9189, %v9369
      %v9494 = vmul.f32 %v9190, %v9369
      %v9495 = vmul.f32 %v9191, %v9369
      %v9496 = vmul.f32 %v9192, %v9369
      %v9497 = vmul.f32 %v9193, %v9369
      %v9498 = vmul.f32 %v9194, %v9369
      %v9499 = vmul.f32 %v9195, %v9369
      %v9500 = vmul.f32 %v9196, %v9369
      %v9501 = vmul.f32 %v9197, %v9369
      %v9502 = vmul.f32 %v9198, %v9369
      %v9503 = vmul.f32 %v9199, %v9369
      %v9504 = vmul.f32 %v9200, %v9369
      %v9505 = vmul.f32 %v9201, %v9369
      %v9506 = vmul.f32 %v9202, %v9369
      %v9507 = vmul.f32 %v9203, %v9369
      %v9508 = vmul.f32 %v9204, %v9369
      %v9509 = vmul.f32 %v9205, %v9369
      %v9510 = vmul.f32 %v9206, %v9369
      %v9511 = vmul.f32 %v9207, %v9369
      %v9512 = vmul.f32 %v9208, %v9369
      %v9513 = vmul.f32 %v9209, %v9369
      %v9514 = vmul.f32 %v9210, %v9369
      %v9515 = vmul.f32 %v9211, %v9369
      %v9516 = vmul.f32 %v9212, %v9369
      %v9517 = vmul.f32 %v9213, %v9369
      %v9518 = vmul.f32 %v9214, %v9369
      %v9519 = vmul.f32 %v9215, %v9374
      %v9520 = vmul.f32 %v9216, %v9374
      %v9521 = vmul.f32 %v9217, %v9374
      %v9522 = vmul.f32 %v9218, %v9374
      %v9523 = vmul.f32 %v9219, %v9374
      %v9524 = vmul.f32 %v9220, %v9374
      %v9525 = vmul.f32 %v9221, %v9374
      %v9526 = vmul.f32 %v9222, %v9374
      %v9527 = vmul.f32 %v9223, %v9374
      %v9528 = vmul.f32 %v9224, %v9374
      %v9529 = vmul.f32 %v9225, %v9374
      %v9530 = vmul.f32 %v9226, %v9374
      %v9531 = vmul.f32 %v9227, %v9374
      %v9532 = vmul.f32 %v9228, %v9374
      %v9533 = vmul.f32 %v9229, %v9374
      %v9534 = vmul.f32 %v9230, %v9374
      %v9535 = vmul.f32 %v9231, %v9374
      %v9536 = vmul.f32 %v9232, %v9374
      %v9537 = vmul.f32 %v9233, %v9374
      %v9538 = vmul.f32 %v9234, %v9374
      %v9539 = vmul.f32 %v9235, %v9374
      %v9540 = vmul.f32 %v9236, %v9374
      %v9541 = vmul.f32 %v9237, %v9374
      %v9542 = vmul.f32 %v9238, %v9374
      %v9543 = vmul.f32 %v9239, %v9374
      %v9544 = vmul.f32 %v9240, %v9374
      %v9545 = vmul.f32 %v9241, %v9374
      %v9546 = vmul.f32 %v9242, %v9374
      %v9547 = vmul.f32 %v9243, %v9374
      %v9548 = vmul.f32 %v9244, %v9374
      %v9549 = vmul.f32 %v9245, %v9374
      %v9550 = vmul.f32 %v9246, %v9374
      %v9551 = vmul.f32 %v9247, %v9379
      %v9552 = vmul.f32 %v9248, %v9379
      %v9553 = vmul.f32 %v9249, %v9379
      %v9554 = vmul.f32 %v9250, %v9379
      %v9555 = vmul.f32 %v9251, %v9379
      %v9556 = vmul.f32 %v9252, %v9379
      %v9557 = vmul.f32 %v9253, %v9379
      %v9558 = vmul.f32 %v9254, %v9379
      %v9559 = vmul.f32 %v9255, %v9379
      %v9560 = vmul.f32 %v9256, %v9379
      %v9561 = vmul.f32 %v9257, %v9379
      %v9562 = vmul.f32 %v9258, %v9379
      %v9563 = vmul.f32 %v9259, %v9379
      %v9564 = vmul.f32 %v9260, %v9379
      %v9565 = vmul.f32 %v9261, %v9379
      %v9566 = vmul.f32 %v9262, %v9379
      %v9567 = vmul.f32 %v9263, %v9379
      %v9568 = vmul.f32 %v9264, %v9379
      %v9569 = vmul.f32 %v9265, %v9379
      %v9570 = vmul.f32 %v9266, %v9379
      %v9571 = vmul.f32 %v9267, %v9379
      %v9572 = vmul.f32 %v9268, %v9379
      %v9573 = vmul.f32 %v9269, %v9379
      %v9574 = vmul.f32 %v9270, %v9379
      %v9575 = vmul.f32 %v9271, %v9379
      %v9576 = vmul.f32 %v9272, %v9379
      %v9577 = vmul.f32 %v9273, %v9379
      %v9578 = vmul.f32 %v9274, %v9379
      %v9579 = vmul.f32 %v9275, %v9379
      %v9580 = vmul.f32 %v9276, %v9379
      %v9581 = vmul.f32 %v9277, %v9379
      %v9582 = vmul.f32 %v9278, %v9379
      %v9583 = vmul.f32 %v9279, %v9384
      %v9584 = vmul.f32 %v9280, %v9384
      %v9585 = vmul.f32 %v9281, %v9384
      %v9586 = vmul.f32 %v9282, %v9384
      %v9587 = vmul.f32 %v9283, %v9384
      %v9588 = vmul.f32 %v9284, %v9384
      %v9589 = vmul.f32 %v9285, %v9384
      %v9590 = vmul.f32 %v9286, %v9384
      %v9591 = vmul.f32 %v9287, %v9384
      %v9592 = vmul.f32 %v9288, %v9384
      %v9593 = vmul.f32 %v9289, %v9384
      %v9594 = vmul.f32 %v9290, %v9384
      %v9595 = vmul.f32 %v9291, %v9384
      %v9596 = vmul.f32 %v9292, %v9384
      %v9597 = vmul.f32 %v9293, %v9384
      %v9598 = vmul.f32 %v9294, %v9384
      %v9599 = vmul.f32 %v9295, %v9384
      %v9600 = vmul.f32 %v9296, %v9384
      %v9601 = vmul.f32 %v9297, %v9384
      %v9602 = vmul.f32 %v9298, %v9384
      %v9603 = vmul.f32 %v9299, %v9384
      %v9604 = vmul.f32 %v9300, %v9384
      %v9605 = vmul.f32 %v9301, %v9384
      %v9606 = vmul.f32 %v9302, %v9384
      %v9607 = vmul.f32 %v9303, %v9384
      %v9608 = vmul.f32 %v9304, %v9384
      %v9609 = vmul.f32 %v9305, %v9384
      %v9610 = vmul.f32 %v9306, %v9384
      %v9611 = vmul.f32 %v9307, %v9384
      %v9612 = vmul.f32 %v9308, %v9384
      %v9613 = vmul.f32 %v9309, %v9384
      %v9614 = vmul.f32 %v9310, %v9384
      %v9615 = vmul.f32 %v9311, %v9389
      %v9616 = vmul.f32 %v9312, %v9389
      %v9617 = vmul.f32 %v9313, %v9389
      %v9618 = vmul.f32 %v9314, %v9389
      %v9619 = vmul.f32 %v9315, %v9389
      %v9620 = vmul.f32 %v9316, %v9389
      %v9621 = vmul.f32 %v9317, %v9389
      %v9622 = vmul.f32 %v9318, %v9389
      %v9623 = vmul.f32 %v9319, %v9389
      %v9624 = vmul.f32 %v9320, %v9389
      %v9625 = vmul.f32 %v9321, %v9389
      %v9626 = vmul.f32 %v9322, %v9389
      %v9627 = vmul.f32 %v9323, %v9389
      %v9628 = vmul.f32 %v9324, %v9389
      %v9629 = vmul.f32 %v9325, %v9389
      %v9630 = vmul.f32 %v9326, %v9389
      %v9631 = vmul.f32 %v9327, %v9389
      %v9632 = vmul.f32 %v9328, %v9389
      %v9633 = vmul.f32 %v9329, %v9389
      %v9634 = vmul.f32 %v9330, %v9389
      %v9635 = vmul.f32 %v9331, %v9389
      %v9636 = vmul.f32 %v9332, %v9389
      %v9637 = vmul.f32 %v9333, %v9389
      %v9638 = vmul.f32 %v9334, %v9389
      %v9639 = vmul.f32 %v9335, %v9389
      %v9640 = vmul.f32 %v9336, %v9389
      %v9641 = vmul.f32 %v9337, %v9389
      %v9642 = vmul.f32 %v9338, %v9389
      %v9643 = vmul.f32 %v9339, %v9389
      %v9644 = vmul.f32 %v9340, %v9389
      %v9645 = vmul.f32 %v9341, %v9389
      %v9646 = vmul.f32 %v9342, %v9389
      %v9647 = vadd.f32 %v9391, %v9423
      %v9648 = vadd.f32 %v9647, %v9455
      %v9649 = vadd.f32 %v9648, %v9487
      %v9650 = vadd.f32 %v9649, %v9519
      %v9651 = vadd.f32 %v9650, %v9551
      %v9652 = vadd.f32 %v9651, %v9583
      %v9653 = vadd.f32 %v9652, %v9615
      %v9654 = vrot.slane %v9653, 4
      %v9655 = vadd.f32 %v9653, %v9654
      %v9656 = vrot.slane %v9655, 2
      %v9657 = vadd.f32 %v9655, %v9656
      %v9658 = vrot.slane %v9657, 1
      %v9659 = vadd.f32 %v9657, %v9658
      %v9660 = vadd.f32 %v9392, %v9424
      %v9661 = vadd.f32 %v9660, %v9456
      %v9662 = vadd.f32 %v9661, %v9488
      %v9663 = vadd.f32 %v9662, %v9520
      %v9664 = vadd.f32 %v9663, %v9552
      %v9665 = vadd.f32 %v9664, %v9584
      %v9666 = vadd.f32 %v9665, %v9616
      %v9667 = vrot.slane %v9666, 4
      %v9668 = vadd.f32 %v9666, %v9667
      %v9669 = vrot.slane %v9668, 2
      %v9670 = vadd.f32 %v9668, %v9669
      %v9671 = vrot.slane %v9670, 1
      %v9672 = vadd.f32 %v9670, %v9671
      %v9673 = vadd.f32 %v9393, %v9425
      %v9674 = vadd.f32 %v9673, %v9457
      %v9675 = vadd.f32 %v9674, %v9489
      %v9676 = vadd.f32 %v9675, %v9521
      %v9677 = vadd.f32 %v9676, %v9553
      %v9678 = vadd.f32 %v9677, %v9585
      %v9679 = vadd.f32 %v9678, %v9617
      %v9680 = vrot.slane %v9679, 4
      %v9681 = vadd.f32 %v9679, %v9680
      %v9682 = vrot.slane %v9681, 2
      %v9683 = vadd.f32 %v9681, %v9682
      %v9684 = vrot.slane %v9683, 1
      %v9685 = vadd.f32 %v9683, %v9684
      %v9686 = vadd.f32 %v9394, %v9426
      %v9687 = vadd.f32 %v9686, %v9458
      %v9688 = vadd.f32 %v9687, %v9490
      %v9689 = vadd.f32 %v9688, %v9522
      %v9690 = vadd.f32 %v9689, %v9554
      %v9691 = vadd.f32 %v9690, %v9586
      %v9692 = vadd.f32 %v9691, %v9618
      %v9693 = vrot.slane %v9692, 4
      %v9694 = vadd.f32 %v9692, %v9693
      %v9695 = vrot.slane %v9694, 2
      %v9696 = vadd.f32 %v9694, %v9695
      %v9697 = vrot.slane %v9696, 1
      %v9698 = vadd.f32 %v9696, %v9697
      %v9699 = vadd.f32 %v9395, %v9427
      %v9700 = vadd.f32 %v9699, %v9459
      %v9701 = vadd.f32 %v9700, %v9491
      %v9702 = vadd.f32 %v9701, %v9523
      %v9703 = vadd.f32 %v9702, %v9555
      %v9704 = vadd.f32 %v9703, %v9587
      %v9705 = vadd.f32 %v9704, %v9619
      %v9706 = vrot.slane %v9705, 4
      %v9707 = vadd.f32 %v9705, %v9706
      %v9708 = vrot.slane %v9707, 2
      %v9709 = vadd.f32 %v9707, %v9708
      %v9710 = vrot.slane %v9709, 1
      %v9711 = vadd.f32 %v9709, %v9710
      %v9712 = vadd.f32 %v9396, %v9428
      %v9713 = vadd.f32 %v9712, %v9460
      %v9714 = vadd.f32 %v9713, %v9492
      %v9715 = vadd.f32 %v9714, %v9524
      %v9716 = vadd.f32 %v9715, %v9556
      %v9717 = vadd.f32 %v9716, %v9588
      %v9718 = vadd.f32 %v9717, %v9620
      %v9719 = vrot.slane %v9718, 4
      %v9720 = vadd.f32 %v9718, %v9719
      %v9721 = vrot.slane %v9720, 2
      %v9722 = vadd.f32 %v9720, %v9721
      %v9723 = vrot.slane %v9722, 1
      %v9724 = vadd.f32 %v9722, %v9723
      %v9725 = vadd.f32 %v9397, %v9429
      %v9726 = vadd.f32 %v9725, %v9461
      %v9727 = vadd.f32 %v9726, %v9493
      %v9728 = vadd.f32 %v9727, %v9525
      %v9729 = vadd.f32 %v9728, %v9557
      %v9730 = vadd.f32 %v9729, %v9589
      %v9731 = vadd.f32 %v9730, %v9621
      %v9732 = vrot.slane %v9731, 4
      %v9733 = vadd.f32 %v9731, %v9732
      %v9734 = vrot.slane %v9733, 2
      %v9735 = vadd.f32 %v9733, %v9734
      %v9736 = vrot.slane %v9735, 1
      %v9737 = vadd.f32 %v9735, %v9736
      %v9738 = vadd.f32 %v9398, %v9430
      %v9739 = vadd.f32 %v9738, %v9462
      %v9740 = vadd.f32 %v9739, %v9494
      %v9741 = vadd.f32 %v9740, %v9526
      %v9742 = vadd.f32 %v9741, %v9558
      %v9743 = vadd.f32 %v9742, %v9590
      %v9744 = vadd.f32 %v9743, %v9622
      %v9745 = vrot.slane %v9744, 4
      %v9746 = vadd.f32 %v9744, %v9745
      %v9747 = vrot.slane %v9746, 2
      %v9748 = vadd.f32 %v9746, %v9747
      %v9749 = vrot.slane %v9748, 1
      %v9750 = vadd.f32 %v9748, %v9749
      %v9751 = vadd.f32 %v9399, %v9431
      %v9752 = vadd.f32 %v9751, %v9463
      %v9753 = vadd.f32 %v9752, %v9495
      %v9754 = vadd.f32 %v9753, %v9527
      %v9755 = vadd.f32 %v9754, %v9559
      %v9756 = vadd.f32 %v9755, %v9591
      %v9757 = vadd.f32 %v9756, %v9623
      %v9758 = vrot.slane %v9757, 4
      %v9759 = vadd.f32 %v9757, %v9758
      %v9760 = vrot.slane %v9759, 2
      %v9761 = vadd.f32 %v9759, %v9760
      %v9762 = vrot.slane %v9761, 1
      %v9763 = vadd.f32 %v9761, %v9762
      %v9764 = vadd.f32 %v9400, %v9432
      %v9765 = vadd.f32 %v9764, %v9464
      %v9766 = vadd.f32 %v9765, %v9496
      %v9767 = vadd.f32 %v9766, %v9528
      %v9768 = vadd.f32 %v9767, %v9560
      %v9769 = vadd.f32 %v9768, %v9592
      %v9770 = vadd.f32 %v9769, %v9624
      %v9771 = vrot.slane %v9770, 4
      %v9772 = vadd.f32 %v9770, %v9771
      %v9773 = vrot.slane %v9772, 2
      %v9774 = vadd.f32 %v9772, %v9773
      %v9775 = vrot.slane %v9774, 1
      %v9776 = vadd.f32 %v9774, %v9775
      %v9777 = vadd.f32 %v9401, %v9433
      %v9778 = vadd.f32 %v9777, %v9465
      %v9779 = vadd.f32 %v9778, %v9497
      %v9780 = vadd.f32 %v9779, %v9529
      %v9781 = vadd.f32 %v9780, %v9561
      %v9782 = vadd.f32 %v9781, %v9593
      %v9783 = vadd.f32 %v9782, %v9625
      %v9784 = vrot.slane %v9783, 4
      %v9785 = vadd.f32 %v9783, %v9784
      %v9786 = vrot.slane %v9785, 2
      %v9787 = vadd.f32 %v9785, %v9786
      %v9788 = vrot.slane %v9787, 1
      %v9789 = vadd.f32 %v9787, %v9788
      %v9790 = vadd.f32 %v9402, %v9434
      %v9791 = vadd.f32 %v9790, %v9466
      %v9792 = vadd.f32 %v9791, %v9498
      %v9793 = vadd.f32 %v9792, %v9530
      %v9794 = vadd.f32 %v9793, %v9562
      %v9795 = vadd.f32 %v9794, %v9594
      %v9796 = vadd.f32 %v9795, %v9626
      %v9797 = vrot.slane %v9796, 4
      %v9798 = vadd.f32 %v9796, %v9797
      %v9799 = vrot.slane %v9798, 2
      %v9800 = vadd.f32 %v9798, %v9799
      %v9801 = vrot.slane %v9800, 1
      %v9802 = vadd.f32 %v9800, %v9801
      %v9803 = vadd.f32 %v9403, %v9435
      %v9804 = vadd.f32 %v9803, %v9467
      %v9805 = vadd.f32 %v9804, %v9499
      %v9806 = vadd.f32 %v9805, %v9531
      %v9807 = vadd.f32 %v9806, %v9563
      %v9808 = vadd.f32 %v9807, %v9595
      %v9809 = vadd.f32 %v9808, %v9627
      %v9810 = vrot.slane %v9809, 4
      %v9811 = vadd.f32 %v9809, %v9810
      %v9812 = vrot.slane %v9811, 2
      %v9813 = vadd.f32 %v9811, %v9812
      %v9814 = vrot.slane %v9813, 1
      %v9815 = vadd.f32 %v9813, %v9814
      %v9816 = vadd.f32 %v9404, %v9436
      %v9817 = vadd.f32 %v9816, %v9468
      %v9818 = vadd.f32 %v9817, %v9500
      %v9819 = vadd.f32 %v9818, %v9532
      %v9820 = vadd.f32 %v9819, %v9564
      %v9821 = vadd.f32 %v9820, %v9596
      %v9822 = vadd.f32 %v9821, %v9628
      %v9823 = vrot.slane %v9822, 4
      %v9824 = vadd.f32 %v9822, %v9823
      %v9825 = vrot.slane %v9824, 2
      %v9826 = vadd.f32 %v9824, %v9825
      %v9827 = vrot.slane %v9826, 1
      %v9828 = vadd.f32 %v9826, %v9827
      %v9829 = vadd.f32 %v9405, %v9437
      %v9830 = vadd.f32 %v9829, %v9469
      %v9831 = vadd.f32 %v9830, %v9501
      %v9832 = vadd.f32 %v9831, %v9533
      %v9833 = vadd.f32 %v9832, %v9565
      %v9834 = vadd.f32 %v9833, %v9597
      %v9835 = vadd.f32 %v9834, %v9629
      %v9836 = vrot.slane %v9835, 4
      %v9837 = vadd.f32 %v9835, %v9836
      %v9838 = vrot.slane %v9837, 2
      %v9839 = vadd.f32 %v9837, %v9838
      %v9840 = vrot.slane %v9839, 1
      %v9841 = vadd.f32 %v9839, %v9840
      %v9842 = vadd.f32 %v9406, %v9438
      %v9843 = vadd.f32 %v9842, %v9470
      %v9844 = vadd.f32 %v9843, %v9502
      %v9845 = vadd.f32 %v9844, %v9534
      %v9846 = vadd.f32 %v9845, %v9566
      %v9847 = vadd.f32 %v9846, %v9598
      %v9848 = vadd.f32 %v9847, %v9630
      %v9849 = vrot.slane %v9848, 4
      %v9850 = vadd.f32 %v9848, %v9849
      %v9851 = vrot.slane %v9850, 2
      %v9852 = vadd.f32 %v9850, %v9851
      %v9853 = vrot.slane %v9852, 1
      %v9854 = vadd.f32 %v9852, %v9853
      %v9855 = vadd.f32 %v9407, %v9439
      %v9856 = vadd.f32 %v9855, %v9471
      %v9857 = vadd.f32 %v9856, %v9503
      %v9858 = vadd.f32 %v9857, %v9535
      %v9859 = vadd.f32 %v9858, %v9567
      %v9860 = vadd.f32 %v9859, %v9599
      %v9861 = vadd.f32 %v9860, %v9631
      %v9862 = vrot.slane %v9861, 4
      %v9863 = vadd.f32 %v9861, %v9862
      %v9864 = vrot.slane %v9863, 2
      %v9865 = vadd.f32 %v9863, %v9864
      %v9866 = vrot.slane %v9865, 1
      %v9867 = vadd.f32 %v9865, %v9866
      %v9868 = vadd.f32 %v9408, %v9440
      %v9869 = vadd.f32 %v9868, %v9472
      %v9870 = vadd.f32 %v9869, %v9504
      %v9871 = vadd.f32 %v9870, %v9536
      %v9872 = vadd.f32 %v9871, %v9568
      %v9873 = vadd.f32 %v9872, %v9600
      %v9874 = vadd.f32 %v9873, %v9632
      %v9875 = vrot.slane %v9874, 4
      %v9876 = vadd.f32 %v9874, %v9875
      %v9877 = vrot.slane %v9876, 2
      %v9878 = vadd.f32 %v9876, %v9877
      %v9879 = vrot.slane %v9878, 1
      %v9880 = vadd.f32 %v9878, %v9879
      %v9881 = vadd.f32 %v9409, %v9441
      %v9882 = vadd.f32 %v9881, %v9473
      %v9883 = vadd.f32 %v9882, %v9505
      %v9884 = vadd.f32 %v9883, %v9537
      %v9885 = vadd.f32 %v9884, %v9569
      %v9886 = vadd.f32 %v9885, %v9601
      %v9887 = vadd.f32 %v9886, %v9633
      %v9888 = vrot.slane %v9887, 4
      %v9889 = vadd.f32 %v9887, %v9888
      %v9890 = vrot.slane %v9889, 2
      %v9891 = vadd.f32 %v9889, %v9890
      %v9892 = vrot.slane %v9891, 1
      %v9893 = vadd.f32 %v9891, %v9892
      %v9894 = vadd.f32 %v9410, %v9442
      %v9895 = vadd.f32 %v9894, %v9474
      %v9896 = vadd.f32 %v9895, %v9506
      %v9897 = vadd.f32 %v9896, %v9538
      %v9898 = vadd.f32 %v9897, %v9570
      %v9899 = vadd.f32 %v9898, %v9602
      %v9900 = vadd.f32 %v9899, %v9634
      %v9901 = vrot.slane %v9900, 4
      %v9902 = vadd.f32 %v9900, %v9901
      %v9903 = vrot.slane %v9902, 2
      %v9904 = vadd.f32 %v9902, %v9903
      %v9905 = vrot.slane %v9904, 1
      %v9906 = vadd.f32 %v9904, %v9905
      %v9907 = vadd.f32 %v9411, %v9443
      %v9908 = vadd.f32 %v9907, %v9475
      %v9909 = vadd.f32 %v9908, %v9507
      %v9910 = vadd.f32 %v9909, %v9539
      %v9911 = vadd.f32 %v9910, %v9571
      %v9912 = vadd.f32 %v9911, %v9603
      %v9913 = vadd.f32 %v9912, %v9635
      %v9914 = vrot.slane %v9913, 4
      %v9915 = vadd.f32 %v9913, %v9914
      %v9916 = vrot.slane %v9915, 2
      %v9917 = vadd.f32 %v9915, %v9916
      %v9918 = vrot.slane %v9917, 1
      %v9919 = vadd.f32 %v9917, %v9918
      %v9920 = vadd.f32 %v9412, %v9444
      %v9921 = vadd.f32 %v9920, %v9476
      %v9922 = vadd.f32 %v9921, %v9508
      %v9923 = vadd.f32 %v9922, %v9540
      %v9924 = vadd.f32 %v9923, %v9572
      %v9925 = vadd.f32 %v9924, %v9604
      %v9926 = vadd.f32 %v9925, %v9636
      %v9927 = vrot.slane %v9926, 4
      %v9928 = vadd.f32 %v9926, %v9927
      %v9929 = vrot.slane %v9928, 2
      %v9930 = vadd.f32 %v9928, %v9929
      %v9931 = vrot.slane %v9930, 1
      %v9932 = vadd.f32 %v9930, %v9931
      %v9933 = vadd.f32 %v9413, %v9445
      %v9934 = vadd.f32 %v9933, %v9477
      %v9935 = vadd.f32 %v9934, %v9509
      %v9936 = vadd.f32 %v9935, %v9541
      %v9937 = vadd.f32 %v9936, %v9573
      %v9938 = vadd.f32 %v9937, %v9605
      %v9939 = vadd.f32 %v9938, %v9637
      %v9940 = vrot.slane %v9939, 4
      %v9941 = vadd.f32 %v9939, %v9940
      %v9942 = vrot.slane %v9941, 2
      %v9943 = vadd.f32 %v9941, %v9942
      %v9944 = vrot.slane %v9943, 1
      %v9945 = vadd.f32 %v9943, %v9944
      %v9946 = vadd.f32 %v9414, %v9446
      %v9947 = vadd.f32 %v9946, %v9478
      %v9948 = vadd.f32 %v9947, %v9510
      %v9949 = vadd.f32 %v9948, %v9542
      %v9950 = vadd.f32 %v9949, %v9574
      %v9951 = vadd.f32 %v9950, %v9606
      %v9952 = vadd.f32 %v9951, %v9638
      %v9953 = vrot.slane %v9952, 4
      %v9954 = vadd.f32 %v9952, %v9953
      %v9955 = vrot.slane %v9954, 2
      %v9956 = vadd.f32 %v9954, %v9955
      %v9957 = vrot.slane %v9956, 1
      %v9958 = vadd.f32 %v9956, %v9957
      %v9959 = vadd.f32 %v9415, %v9447
      %v9960 = vadd.f32 %v9959, %v9479
      %v9961 = vadd.f32 %v9960, %v9511
      %v9962 = vadd.f32 %v9961, %v9543
      %v9963 = vadd.f32 %v9962, %v9575
      %v9964 = vadd.f32 %v9963, %v9607
      %v9965 = vadd.f32 %v9964, %v9639
      %v9966 = vrot.slane %v9965, 4
      %v9967 = vadd.f32 %v9965, %v9966
      %v9968 = vrot.slane %v9967, 2
      %v9969 = vadd.f32 %v9967, %v9968
      %v9970 = vrot.slane %v9969, 1
      %v9971 = vadd.f32 %v9969, %v9970
      %v9972 = vadd.f32 %v9416, %v9448
      %v9973 = vadd.f32 %v9972, %v9480
      %v9974 = vadd.f32 %v9973, %v9512
      %v9975 = vadd.f32 %v9974, %v9544
      %v9976 = vadd.f32 %v9975, %v9576
      %v9977 = vadd.f32 %v9976, %v9608
      %v9978 = vadd.f32 %v9977, %v9640
      %v9979 = vrot.slane %v9978, 4
      %v9980 = vadd.f32 %v9978, %v9979
      %v9981 = vrot.slane %v9980, 2
      %v9982 = vadd.f32 %v9980, %v9981
      %v9983 = vrot.slane %v9982, 1
      %v9984 = vadd.f32 %v9982, %v9983
      %v9985 = vadd.f32 %v9417, %v9449
      %v9986 = vadd.f32 %v9985, %v9481
      %v9987 = vadd.f32 %v9986, %v9513
      %v9988 = vadd.f32 %v9987, %v9545
      %v9989 = vadd.f32 %v9988, %v9577
      %v9990 = vadd.f32 %v9989, %v9609
      %v9991 = vadd.f32 %v9990, %v9641
      %v9992 = vrot.slane %v9991, 4
      %v9993 = vadd.f32 %v9991, %v9992
      %v9994 = vrot.slane %v9993, 2
      %v9995 = vadd.f32 %v9993, %v9994
      %v9996 = vrot.slane %v9995, 1
      %v9997 = vadd.f32 %v9995, %v9996
      %v9998 = vadd.f32 %v9418, %v9450
      %v9999 = vadd.f32 %v9998, %v9482
      %v10000 = vadd.f32 %v9999, %v9514
      %v10001 = vadd.f32 %v10000, %v9546
      %v10002 = vadd.f32 %v10001, %v9578
      %v10003 = vadd.f32 %v10002, %v9610
      %v10004 = vadd.f32 %v10003, %v9642
      %v10005 = vrot.slane %v10004, 4
      %v10006 = vadd.f32 %v10004, %v10005
      %v10007 = vrot.slane %v10006, 2
      %v10008 = vadd.f32 %v10006, %v10007
      %v10009 = vrot.slane %v10008, 1
      %v10010 = vadd.f32 %v10008, %v10009
      %v10011 = vadd.f32 %v9419, %v9451
      %v10012 = vadd.f32 %v10011, %v9483
      %v10013 = vadd.f32 %v10012, %v9515
      %v10014 = vadd.f32 %v10013, %v9547
      %v10015 = vadd.f32 %v10014, %v9579
      %v10016 = vadd.f32 %v10015, %v9611
      %v10017 = vadd.f32 %v10016, %v9643
      %v10018 = vrot.slane %v10017, 4
      %v10019 = vadd.f32 %v10017, %v10018
      %v10020 = vrot.slane %v10019, 2
      %v10021 = vadd.f32 %v10019, %v10020
      %v10022 = vrot.slane %v10021, 1
      %v10023 = vadd.f32 %v10021, %v10022
      %v10024 = vadd.f32 %v9420, %v9452
      %v10025 = vadd.f32 %v10024, %v9484
      %v10026 = vadd.f32 %v10025, %v9516
      %v10027 = vadd.f32 %v10026, %v9548
      %v10028 = vadd.f32 %v10027, %v9580
      %v10029 = vadd.f32 %v10028, %v9612
      %v10030 = vadd.f32 %v10029, %v9644
      %v10031 = vrot.slane %v10030, 4
      %v10032 = vadd.f32 %v10030, %v10031
      %v10033 = vrot.slane %v10032, 2
      %v10034 = vadd.f32 %v10032, %v10033
      %v10035 = vrot.slane %v10034, 1
      %v10036 = vadd.f32 %v10034, %v10035
      %v10037 = vadd.f32 %v9421, %v9453
      %v10038 = vadd.f32 %v10037, %v9485
      %v10039 = vadd.f32 %v10038, %v9517
      %v10040 = vadd.f32 %v10039, %v9549
      %v10041 = vadd.f32 %v10040, %v9581
      %v10042 = vadd.f32 %v10041, %v9613
      %v10043 = vadd.f32 %v10042, %v9645
      %v10044 = vrot.slane %v10043, 4
      %v10045 = vadd.f32 %v10043, %v10044
      %v10046 = vrot.slane %v10045, 2
      %v10047 = vadd.f32 %v10045, %v10046
      %v10048 = vrot.slane %v10047, 1
      %v10049 = vadd.f32 %v10047, %v10048
      %v10050 = vadd.f32 %v9422, %v9454
      %v10051 = vadd.f32 %v10050, %v9486
      %v10052 = vadd.f32 %v10051, %v9518
      %v10053 = vadd.f32 %v10052, %v9550
      %v10054 = vadd.f32 %v10053, %v9582
      %v10055 = vadd.f32 %v10054, %v9614
      %v10056 = vadd.f32 %v10055, %v9646
      %v10057 = vrot.slane %v10056, 4
      %v10058 = vadd.f32 %v10056, %v10057
      %v10059 = vrot.slane %v10058, 2
      %v10060 = vadd.f32 %v10058, %v10059
      %v10061 = vrot.slane %v10060, 1
      %v10062 = vadd.f32 %v10060, %v10061
      %v10063 = vld [vmem:[#allocation4] sm:$0x1]
      %10065 = vset.pattern.permute.xlu0 0
      %10066 = vperm.xlu0 %10065, %v10063
      %v10067 = vpop.permute.xlu0 %10066
      %v10069 = vlaneseq
      %v10070 = vshrl.u32 %v10069, 7
      %v10071 = vsub.s32 0, %v10070
      %v10072 = vrot.slane %v10067, %v10071
      %v10073 = vadd.f32 %v9659, %v10072
      %v10074 = vadd.f32 %v9672, %v10072
      %v10075 = vadd.f32 %v9685, %v10072
      %v10076 = vadd.f32 %v9698, %v10072
      %v10077 = vadd.f32 %v9711, %v10072
      %v10078 = vadd.f32 %v9724, %v10072
      %v10079 = vadd.f32 %v9737, %v10072
      %v10080 = vadd.f32 %v9750, %v10072
      %v10081 = vadd.f32 %v9763, %v10072
      %v10082 = vadd.f32 %v9776, %v10072
      %v10083 = vadd.f32 %v9789, %v10072
      %v10084 = vadd.f32 %v9802, %v10072
      %v10085 = vadd.f32 %v9815, %v10072
      %v10086 = vadd.f32 %v9828, %v10072
      %v10087 = vadd.f32 %v9841, %v10072
      %v10088 = vadd.f32 %v9854, %v10072
      %v10089 = vadd.f32 %v9867, %v10072
      %v10090 = vadd.f32 %v9880, %v10072
      %v10091 = vadd.f32 %v9893, %v10072
      %v10092 = vadd.f32 %v9906, %v10072
      %v10093 = vadd.f32 %v9919, %v10072
      %v10094 = vadd.f32 %v9932, %v10072
      %v10095 = vadd.f32 %v9945, %v10072
      %v10096 = vadd.f32 %v9958, %v10072
      %v10097 = vadd.f32 %v9971, %v10072
      %v10098 = vadd.f32 %v9984, %v10072
      %v10099 = vadd.f32 %v9997, %v10072
      %v10100 = vadd.f32 %v10010, %v10072
      %v10101 = vadd.f32 %v10023, %v10072
      %v10102 = vadd.f32 %v10036, %v10072
      %v10103 = vadd.f32 %v10049, %v10072
      %v10104 = vadd.f32 %v10062, %v10072
      %v10105 = vtanh.pop %v10073
      %v10106 = vtanh.pop %v10074
      %v10107 = vtanh.pop %v10075
      %v10108 = vtanh.pop %v10076
      %v10109 = vtanh.pop %v10077
      %v10110 = vtanh.pop %v10078
      %v10111 = vtanh.pop %v10079
      %v10112 = vtanh.pop %v10080
      %v10113 = vtanh.pop %v10081
      %v10114 = vtanh.pop %v10082
      %v10115 = vtanh.pop %v10083
      %v10116 = vtanh.pop %v10084
      %v10117 = vtanh.pop %v10085
      %v10118 = vtanh.pop %v10086
      %v10119 = vtanh.pop %v10087
      %v10120 = vtanh.pop %v10088
      %v10121 = vtanh.pop %v10089
      %v10122 = vtanh.pop %v10090
      %v10123 = vtanh.pop %v10091
      %v10124 = vtanh.pop %v10092
      %v10125 = vtanh.pop %v10093
      %v10126 = vtanh.pop %v10094
      %v10127 = vtanh.pop %v10095
      %v10128 = vtanh.pop %v10096
      %v10129 = vtanh.pop %v10097
      %v10130 = vtanh.pop %v10098
      %v10131 = vtanh.pop %v10099
      %v10132 = vtanh.pop %v10100
      %v10133 = vtanh.pop %v10101
      %v10134 = vtanh.pop %v10102
      %v10135 = vtanh.pop %v10103
      %v10136 = vtanh.pop %v10104
      %v10169 = vcombine.low %v10105, %v10106
      %v10170 = vcombine.low %v10107, %v10108
      %v10171 = vcombine.low %v10109, %v10110
      %v10172 = vcombine.low %v10111, %v10112
      %v10174 = vunpack.c.l.s4 1966171168
      %v10175 = vunpack.c.0.s8 %v10174
      %v10176 = vlaneseq
      %v10177 = vshrl.u32 %v10176, 7
      %v10178 = vsub.s32 %v10175, %v10177
      %v10179 = vrot.slane %v10169, %v10178
      %v10181 = vunpack.c.l.s4 1966171168
      %v10182 = vunpack.c.0.s8 %v10181
      %v10183 = vlaneseq
      %v10184 = vshrl.u32 %v10183, 7
      %v10185 = vsub.s32 %v10182, %v10184
      %v10186 = vrot.slane %v10170, %v10185
      %v10188 = vunpack.c.l.s4 1966171168
      %v10189 = vunpack.c.0.s8 %v10188
      %v10190 = vlaneseq
      %v10191 = vshrl.u32 %v10190, 7
      %v10192 = vsub.s32 %v10189, %v10191
      %v10193 = vrot.slane %v10171, %v10192
      %v10195 = vunpack.c.l.s4 1966171168
      %v10196 = vunpack.c.0.s8 %v10195
      %v10197 = vlaneseq
      %v10198 = vshrl.u32 %v10197, 7
      %v10199 = vsub.s32 %v10196, %v10198
      %v10200 = vrot.slane %v10172, %v10199
      %v10201 = vcombine.low %v10179, %v10186
      %v10202 = vcombine.low %v10193, %v10200
      %v10204 = vunpack.c.l.s4 1966171168
      %v10205 = vunpack.c.0.s8 %v10204
      %v10206 = vlaneseq
      %v10207 = vshrl.u32 %v10206, 7
      %v10208 = vsub.s32 %v10205, %v10207
      %v10209 = vrot.slane %v10201, %v10208
      %v10211 = vunpack.c.l.s4 1966171168
      %v10212 = vunpack.c.0.s8 %v10211
      %v10213 = vlaneseq
      %v10214 = vshrl.u32 %v10213, 7
      %v10215 = vsub.s32 %v10212, %v10214
      %v10216 = vrot.slane %v10202, %v10215
      %v10217 = vcombine.low %v10209, %v10216
      %v10218 = vcombine.low %v10113, %v10114
      %v10219 = vcombine.low %v10115, %v10116
      %v10220 = vcombine.low %v10117, %v10118
      %v10221 = vcombine.low %v10119, %v10120
      %v10223 = vunpack.c.l.s4 1966171168
      %v10224 = vunpack.c.0.s8 %v10223
      %v10225 = vlaneseq
      %v10226 = vshrl.u32 %v10225, 7
      %v10227 = vsub.s32 %v10224, %v10226
      %v10228 = vrot.slane %v10218, %v10227
      %v10230 = vunpack.c.l.s4 1966171168
      %v10231 = vunpack.c.0.s8 %v10230
      %v10232 = vlaneseq
      %v10233 = vshrl.u32 %v10232, 7
      %v10234 = vsub.s32 %v10231, %v10233
      %v10235 = vrot.slane %v10219, %v10234
      %v10237 = vunpack.c.l.s4 1966171168
      %v10238 = vunpack.c.0.s8 %v10237
      %v10239 = vlaneseq
      %v10240 = vshrl.u32 %v10239, 7
      %v10241 = vsub.s32 %v10238, %v10240
      %v10242 = vrot.slane %v10220, %v10241
      %v10244 = vunpack.c.l.s4 1966171168
      %v10245 = vunpack.c.0.s8 %v10244
      %v10246 = vlaneseq
      %v10247 = vshrl.u32 %v10246, 7
      %v10248 = vsub.s32 %v10245, %v10247
      %v10249 = vrot.slane %v10221, %v10248
      %v10250 = vcombine.low %v10228, %v10235
      %v10251 = vcombine.low %v10242, %v10249
      %v10253 = vunpack.c.l.s4 1966171168
      %v10254 = vunpack.c.0.s8 %v10253
      %v10255 = vlaneseq
      %v10256 = vshrl.u32 %v10255, 7
      %v10257 = vsub.s32 %v10254, %v10256
      %v10258 = vrot.slane %v10250, %v10257
      %v10260 = vunpack.c.l.s4 1966171168
      %v10261 = vunpack.c.0.s8 %v10260
      %v10262 = vlaneseq
      %v10263 = vshrl.u32 %v10262, 7
      %v10264 = vsub.s32 %v10261, %v10263
      %v10265 = vrot.slane %v10251, %v10264
      %v10266 = vcombine.low %v10258, %v10265
      %v10267 = vcombine.low %v10121, %v10122
      %v10268 = vcombine.low %v10123, %v10124
      %v10269 = vcombine.low %v10125, %v10126
      %v10270 = vcombine.low %v10127, %v10128
      %v10272 = vunpack.c.l.s4 1966171168
      %v10273 = vunpack.c.0.s8 %v10272
      %v10274 = vlaneseq
      %v10275 = vshrl.u32 %v10274, 7
      %v10276 = vsub.s32 %v10273, %v10275
      %v10277 = vrot.slane %v10267, %v10276
      %v10279 = vunpack.c.l.s4 1966171168
      %v10280 = vunpack.c.0.s8 %v10279
      %v10281 = vlaneseq
      %v10282 = vshrl.u32 %v10281, 7
      %v10283 = vsub.s32 %v10280, %v10282
      %v10284 = vrot.slane %v10268, %v10283
      %v10286 = vunpack.c.l.s4 1966171168
      %v10287 = vunpack.c.0.s8 %v10286
      %v10288 = vlaneseq
      %v10289 = vshrl.u32 %v10288, 7
      %v10290 = vsub.s32 %v10287, %v10289
      %v10291 = vrot.slane %v10269, %v10290
      %v10293 = vunpack.c.l.s4 1966171168
      %v10294 = vunpack.c.0.s8 %v10293
      %v10295 = vlaneseq
      %v10296 = vshrl.u32 %v10295, 7
      %v10297 = vsub.s32 %v10294, %v10296
      %v10298 = vrot.slane %v10270, %v10297
      %v10299 = vcombine.low %v10277, %v10284
      %v10300 = vcombine.low %v10291, %v10298
      %v10302 = vunpack.c.l.s4 1966171168
      %v10303 = vunpack.c.0.s8 %v10302
      %v10304 = vlaneseq
      %v10305 = vshrl.u32 %v10304, 7
      %v10306 = vsub.s32 %v10303, %v10305
      %v10307 = vrot.slane %v10299, %v10306
      %v10309 = vunpack.c.l.s4 1966171168
      %v10310 = vunpack.c.0.s8 %v10309
      %v10311 = vlaneseq
      %v10312 = vshrl.u32 %v10311, 7
      %v10313 = vsub.s32 %v10310, %v10312
      %v10314 = vrot.slane %v10300, %v10313
      %v10315 = vcombine.low %v10307, %v10314
      %v10316 = vcombine.low %v10129, %v10130
      %v10317 = vcombine.low %v10131, %v10132
      %v10318 = vcombine.low %v10133, %v10134
      %v10319 = vcombine.low %v10135, %v10136
      %v10321 = vunpack.c.l.s4 1966171168
      %v10322 = vunpack.c.0.s8 %v10321
      %v10323 = vlaneseq
      %v10324 = vshrl.u32 %v10323, 7
      %v10325 = vsub.s32 %v10322, %v10324
      %v10326 = vrot.slane %v10316, %v10325
      %v10328 = vunpack.c.l.s4 1966171168
      %v10329 = vunpack.c.0.s8 %v10328
      %v10330 = vlaneseq
      %v10331 = vshrl.u32 %v10330, 7
      %v10332 = vsub.s32 %v10329, %v10331
      %v10333 = vrot.slane %v10317, %v10332
      %v10335 = vunpack.c.l.s4 1966171168
      %v10336 = vunpack.c.0.s8 %v10335
      %v10337 = vlaneseq
      %v10338 = vshrl.u32 %v10337, 7
      %v10339 = vsub.s32 %v10336, %v10338
      %v10340 = vrot.slane %v10318, %v10339
      %v10342 = vunpack.c.l.s4 1966171168
      %v10343 = vunpack.c.0.s8 %v10342
      %v10344 = vlaneseq
      %v10345 = vshrl.u32 %v10344, 7
      %v10346 = vsub.s32 %v10343, %v10345
      %v10347 = vrot.slane %v10319, %v10346
      %v10348 = vcombine.low %v10326, %v10333
      %v10349 = vcombine.low %v10340, %v10347
      %v10351 = vunpack.c.l.s4 1966171168
      %v10352 = vunpack.c.0.s8 %v10351
      %v10353 = vlaneseq
      %v10354 = vshrl.u32 %v10353, 7
      %v10355 = vsub.s32 %v10352, %v10354
      %v10356 = vrot.slane %v10348, %v10355
      %v10358 = vunpack.c.l.s4 1966171168
      %v10359 = vunpack.c.0.s8 %v10358
      %v10360 = vlaneseq
      %v10361 = vshrl.u32 %v10360, 7
      %v10362 = vsub.s32 %v10359, %v10361
      %v10363 = vrot.slane %v10349, %v10362
      %v10364 = vcombine.low %v10356, %v10363
      %10369 = vst [vmem:[%s730] sm:$0xff] %v10217
      %10370 = vst [vmem:[%s730 + $0x8] sm:$0xff] %v10266
      %10371 = vst [vmem:[%s730 + $0x10] sm:$0xff] %v10315
      %10372 = vst [vmem:[%s730 + $0x18] sm:$0xff] %v10364
      %p10373 = scmp.lt.s32.totalorder %s34, 1
      %s10374 = scalar_select %p10373, %s34, 1
      %p10375 = scmp.lt.s32.totalorder %s35, 0
      %s10376 = scalar_select %p10375, %s35, 0
      %s10377 = smul.addr %s10376, 32
      %s10378 = smul.addr %s10374, 32
      %s10379 = sadd.s32 %s10377, %s10378
      %s10380 = scalar_lea.vmem %s17, %s10379
      // Predicated region
      $region89: #{generator_forward.1} parent=87 // pred_check
        %p10381 = pneg %p461
      $region90: #{generator_forward.1} parent=87 // pred_check_branch
        %10383 = sbr.rel (%p10381) target = $region92
      $region91: #{generator_forward.1} parent=87 // pred_region
        _
      $region92: #{generator_forward.1} parent=87 // pred_fallthru
        _
    $region88: #{generator_forward.1} parent=5 // pred_fallthru
      _
    %p10384 = scmp.le.s32.totalorder 2, %s25
    // Predicated region
    $region93: #{generator_forward.1} parent=5 // pred_check
      %p10385 = pneg %p10384
    $region94: #{generator_forward.1} parent=5 // pred_check_branch
      %10387 = sbr.rel (%p10385) target = $region96
    $region95: #{generator_forward.1} parent=5 // pred_region
      %s10388 = ssub.s32 %s25, 2
      // Predicated region
      $region97: #{generator_forward.1} parent=95 // pred_check
        %p10389 = pneg %p467
      $region98: #{generator_forward.1} parent=95 // pred_check_branch
        %10391 = sbr.rel (%p10389) target = $region100
      $region99: #{generator_forward.1} parent=95 // pred_region
        %p10392 = scmp.lt.s32.totalorder %s36, 1
        %s10393 = scalar_select %p10392, %s36, 1
        %p10394 = scmp.lt.s32.totalorder %s37, 0
        %s10395 = scalar_select %p10394, %s37, 0
        %s10396 = smul.addr %s10395, 32
        %s10397 = smul.addr %s10393, 32
        %s10398 = sadd.s32 %s10396, %s10397
        %s10399 = scalar_lea.vmem %s17, %s10398
      $region100: #{generator_forward.1} parent=95 // pred_fallthru
        _
    $region96: #{generator_forward.1} parent=5 // pred_fallthru
      _
  $region6: #{generator_forward.1} parent=0 // loop_footer
    %s29 = sadd.s32 1, %s25
  $region7: #{generator_forward.1} parent=0 // loop_footer_branch
    %24 = sbr.rel target = $region3
  $region8: #{generator_forward.1} parent=0 // loop_exit
    _

</llo_original>
